<compile_context>
chip_gen: v6e
topology: v6e:2x2x1
jax: 0.10.0
libtpu: 0.0.40
codegen_flags: <defaults>
</compile_context>

<pallas_src>
import jax
import jax.numpy as jnp
from jax.experimental import pallas as pl
from jax.experimental.pallas import tpu as pltpu


def _make_kernel(t_h, W, even_rows_dma):
    """Fused kernel: out = x_hi + W_proj @ x_lo[::2, ::2] + bias (per block)."""
    two_w = 2 * W

    def kernel(x_hi_ref, x_lo_ref, w_ref, b_ref, o_ref):
        w = w_ref[...]                           # (C, C), activation dtype
        b = b_ref[...].astype(jnp.float32)       # (C, 1)
        # Even-column selector S[u, v] = 1 iff u == 2v: compacts 2W -> W on
        # the MXU (exact, no lane-strided loads / unsupported reshapes).
        u = jax.lax.broadcasted_iota(jnp.int32, (two_w, W), 0)
        v = jax.lax.broadcasted_iota(jnp.int32, (two_w, W), 1)
        sel = (u == 2 * v).astype(w.dtype)       # (2W, W)

        for t in range(t_h):                     # static unroll, t_h <= 32
            if even_rows_dma:
                # Block already holds only even fine rows.
                row = x_lo_ref[:, t, :]          # (C, 2W)
            else:
                # Block holds the full row pair; take the even member.
                row = x_lo_ref[:, t, 0, :]       # (C, 2W)
            x_s = jnp.dot(row, sel)              # (C, W)  even columns (exact)
            y = jnp.dot(w, x_s, preferred_element_type=jnp.float32)   # (C, W)
            hi = x_hi_ref[:, pl.ds(t * W, W)].astype(jnp.float32)
            o_ref[:, pl.ds(t * W, W)] = (hi + y + b).astype(o_ref.dtype)

    return kernel


def _pick_row_tile(H, W, C, itemsize, batch, even_rows_dma):
    """Rows of the coarse map per block (byte-budgeted, layout-legal)."""
    hw = H * W
    # ~1.25 MiB per x_hi/out block; the x_lo block is at most 2x that.
    budget_lanes = max((1280 * 1024) // max(C * itemsize, 1), 1)
    divisors = [t for t in range(1, H + 1) if H % t == 0]

    def legal(t):
        # x_hi/out flattened block must be 128-lane aligned or the full map.
        lanes_ok = (t * W == hw) or ((t * W) % 128 == 0)
        # On the even-row-DMA path t_h sits on the sublane axis of x_lo.
        rows_ok = (not even_rows_dma) or (t == H) or (t % 8 == 0)
        return lanes_ok and rows_ok

    cand = [t for t in divisors if legal(t)]          # t == H is always legal
    in_budget = [t for t in cand if (t * W <= budget_lanes and t <= 32)]
    if in_budget:
        t_h = max(in_budget)
        # Prefer >= 4 grid blocks so both v7x TensorCores pipeline >= 2 blocks.
        if batch * (H // t_h) < 4:
            smaller = [t for t in in_budget if batch * (H // t) >= 4]
            if smaller:
                t_h = max(smaller)
    else:
        t_h = min(cand)
    return t_h


def _bu_residual_level(x_hi, x_lo, weight, bias):
    """out = x_hi + Conv1x1_stride2(x_lo), NCHW in / NCHW out, one pallas_call."""
    B, C, H, W = x_hi.shape
    assert x_lo.shape == (B, C, 2 * H, 2 * W), "bu expects a 2x higher-res input"

    dt = x_hi.dtype
    itemsize = jnp.dtype(dt).itemsize
    w = weight.astype(dt)                    # keep weight in activation dtype
    b = bias.reshape(C, 1).astype(dt)
    x_hi_f = x_hi.reshape(B, C, H * W)       # free, contiguity-preserving

    even_rows_dma = (2 * W) % 128 == 0
    t_h = _pick_row_tile(H, W, C, itemsize, B, even_rows_dma)
    grid = (B, H // t_h)

    if even_rows_dma:
        # (B, C, 2H, 2W) -> (B, C, H, 4W): row h holds [even fine row | odd
        # fine row].  Pinning the last-dim block to the first 2W DMAs only the
        # even rows (half the x_lo bytes).
        x_lo_v = x_lo.reshape(B, C, H, 4 * W)
        lo_spec = pl.BlockSpec(
            (pl.Squeezed(), C, t_h, 2 * W), lambda bb, j: (bb, 0, j, 0))
        lo_blk_bytes = C * t_h * 2 * W * itemsize
    else:
        # Small / unaligned maps: DMA the full row pair, select in-kernel.
        x_lo_v = x_lo.reshape(B, C, H, 2, 2 * W)
        lo_spec = pl.BlockSpec(
            (pl.Squeezed(), C, t_h, 2, 2 * W), lambda bb, j: (bb, 0, j, 0, 0))
        lo_blk_bytes = C * t_h * 4 * W * itemsize

    hi_spec = pl.BlockSpec((pl.Squeezed(), C, t_h * W), lambda bb, j: (bb, 0, j))
    out_spec = pl.BlockSpec((pl.Squeezed(), C, t_h * W), lambda bb, j: (bb, 0, j))
    w_spec = pl.BlockSpec((C, C), lambda bb, j: (0, 0))
    b_spec = pl.BlockSpec((C, 1), lambda bb, j: (0, 0))

    hi_blk_bytes = C * t_h * W * itemsize
    stream_bytes = 2 * (2 * hi_blk_bytes + lo_blk_bytes)   # double-buffered
    vmem_limit = int(min(96 * 1024 * 1024,
                         max(32 * 1024 * 1024, 2 * stream_bytes + (4 << 20))))

    cost = pl.CostEstimate(
        flops=int(2 * B * C * H * W * (C + 2 * W)),
        transcendentals=0,
        bytes_accessed=int(2 * B * C * H * W * itemsize
                           + B * (H // t_h) * lo_blk_bytes
                           + (C * C + C) * itemsize),
    )

    out_flat = pl.pallas_call(
        _make_kernel(t_h, W, even_rows_dma),
        out_shape=jax.ShapeDtypeStruct((B, C, H * W), dt),
        grid_spec=pltpu.PrefetchScalarGridSpec(
            num_scalar_prefetch=0,
            grid=grid,
            in_specs=[hi_spec, lo_spec, w_spec, b_spec],
            out_specs=out_spec,
        ),
        compiler_params=pltpu.CompilerParams(
            dimension_semantics=("parallel", "parallel"),
            vmem_limit_bytes=vmem_limit,
        ),
        cost_estimate=cost,
    )(x_hi_f, x_lo_v, w, b)

    return out_flat.reshape(B, C, H, W)


def bottom_up_forward(in_feat_maps, weight, bias):
    """Mirror of BottomUp.forward: list in, list (num_maps - 1 long) out."""
    num_maps = len(in_feat_maps)
    return [
        _bu_residual_level(in_feat_maps[i + 1], in_feat_maps[i], weight, bias)
        for i in range(num_maps - 1)
    ]


if __name__ == "__main__":
    key = jax.random.PRNGKey(0)
    k0, k1, k2, kw, kb = jax.random.split(key, 5)

    batch_size, channels = 2, 4
    # Three-level pyramid; the first pair exercises the even-row-DMA fast
    # path (2W multiple of 128), the second pair the row-pair fallback path.
    in_feat_maps = [
        jax.random.normal(k0, (batch_size, channels, 128, 128), dtype=jnp.float32),
        jax.random.normal(k1, (batch_size, channels, 64, 64), dtype=jnp.float32),
        jax.random.normal(k2, (batch_size, channels, 32, 32), dtype=jnp.float32),
    ]
    weight = 0.1 * jax.random.normal(kw, (channels, channels), dtype=jnp.float32)
    bias = 0.1 * jax.random.normal(kb, (channels,), dtype=jnp.float32)

    out_feat_maps = bottom_up_forward(in_feat_maps, weight, bias)
    out_feat_maps = [jax.block_until_ready(o) for o in out_feat_maps]

    # Pure-JAX reference of the same forward.
    def ref_bu(x):
        xs = x[:, :, ::2, ::2]
        y = jnp.einsum("oc,bchw->bohw", weight, xs)
        return y + bias[None, :, None, None]

    refs = [
        in_feat_maps[i + 1] + ref_bu(in_feat_maps[i])
        for i in range(len(in_feat_maps) - 1)
    ]

    assert len(out_feat_maps) == len(in_feat_maps) - 1
    for out, ref in zip(out_feat_maps, refs):
        assert out.shape == ref.shape
        assert jnp.allclose(out, ref, atol=1e-5, rtol=1e-5), "mismatch vs reference"

    print("KERNEL_OK")
</pallas_src>

<mosaic_0001>
module attributes {stable_mosaic.version = 11 : i64} {
  func.func @kernel(%arg0: i32, %arg1: i32, %arg2: memref<1x4x2048xf32, #tpu.memory_space<vmem>>, %arg3: memref<1x4x32x128xf32, #tpu.memory_space<vmem>>, %arg4: memref<4x4xf32, #tpu.memory_space<vmem>>, %arg5: memref<4x1xf32, #tpu.memory_space<vmem>>, %arg6: memref<1x4x2048xf32, #tpu.memory_space<vmem>>) attributes {dimension_semantics = [#tpu.dimension_semantics<parallel>, #tpu.dimension_semantics<parallel>], iteration_bounds = array<i64: 2, 2>, scalar_prefetch = 0 : i64, scratch_operands = 0 : i64, tpu.core_type = #tpu.core_type<tc>, window_params = [{transform_indices = @transform_0, window_bounds = array<i64: 1, 4, 2048>}, {transform_indices = @transform_1, window_bounds = array<i64: 1, 4, 32, 128>}, {pipeline_mode = #tpu.pipeline_mode<synchronous>, transform_indices = @transform_2, window_bounds = array<i64: 4, 4>}, {pipeline_mode = #tpu.pipeline_mode<synchronous>, transform_indices = @transform_3, window_bounds = array<i64: 4, 1>}, {transform_indices = @transform_4, window_bounds = array<i64: 1, 4, 2048>}]} {
    %c0 = arith.constant 0 : index
    %c0_0 = arith.constant 0 : index
    %0 = vector.load %arg4[%c0, %c0_0] : memref<4x4xf32, #tpu.memory_space<vmem>>, vector<4x4xf32>
    %c0_1 = arith.constant 0 : index
    %c0_2 = arith.constant 0 : index
    %1 = vector.load %arg5[%c0_1, %c0_2] : memref<4x1xf32, #tpu.memory_space<vmem>>, vector<4x1xf32>
    %2 = tpu.iota {dimensions = array<i32: 0>} : vector<128x64xi32>
    %3 = tpu.iota {dimensions = array<i32: 1>} : vector<128x64xi32>
    %c2_i32 = arith.constant 2 : i32
    %4 = vector.broadcast %c2_i32 : i32 to vector<128x64xi32>
    %5 = arith.muli %4, %3 : vector<128x64xi32>
    %6 = arith.cmpi eq, %2, %5 : vector<128x64xi32>
    %7 = arith.extui %6 : vector<128x64xi1> to vector<128x64xi32>
    %8 = arith.sitofp %7 : vector<128x64xi32> to vector<128x64xf32>
    %c0_3 = arith.constant 0 : index
    %c0_4 = arith.constant 0 : index
    %c0_5 = arith.constant 0 : index
    %c0_6 = arith.constant 0 : index
    %9 = vector.load %arg3[%c0_3, %c0_4, %c0_5, %c0_6] : memref<1x4x32x128xf32, #tpu.memory_space<vmem>>, vector<1x4x1x128xf32>
    %10 = vector.shape_cast %9 : vector<1x4x1x128xf32> to vector<4x128xf32>
    %cst = arith.constant dense<0.000000e+00> : vector<4x64xf32>
    %11 = tpu.matmul %10, %8, %cst {dimension_numbers = #tpu.dot_dimension_numbers<[1], [0], [0], [1], [0, 0, 1, 1], [], []>} : vector<4x128xf32>, vector<128x64xf32>, vector<4x64xf32> -> vector<4x64xf32>
    %cst_7 = arith.constant dense<0.000000e+00> : vector<4x64xf32>
    %12 = tpu.matmul %0, %11, %cst_7 {dimension_numbers = #tpu.dot_dimension_numbers<[1], [0], [0], [1], [0, 0, 1, 1], [], []>} : vector<4x4xf32>, vector<4x64xf32>, vector<4x64xf32> -> vector<4x64xf32>
    %c0_8 = arith.constant 0 : index
    %c0_9 = arith.constant 0 : index
    %c0_10 = arith.constant 0 : index
    %13 = vector.load %arg2[%c0_8, %c0_9, %c0_10] : memref<1x4x2048xf32, #tpu.memory_space<vmem>>, vector<1x4x64xf32>
    %14 = vector.shape_cast %13 : vector<1x4x64xf32> to vector<4x64xf32>
    %15 = arith.addf %14, %12 : vector<4x64xf32>
    %16 = vector.broadcast %1 : vector<4x1xf32> to vector<4x64xf32>
    %17 = arith.addf %15, %16 : vector<4x64xf32>
    %c0_11 = arith.constant 0 : index
    %c0_12 = arith.constant 0 : index
    %c0_13 = arith.constant 0 : index
    %18 = vector.load %arg6[%c0_11, %c0_12, %c0_13] : memref<1x4x2048xf32, #tpu.memory_space<vmem>>, vector<1x4x64xf32>
    %19 = vector.shape_cast %18 : vector<1x4x64xf32> to vector<4x64xf32>
    %20 = vector.shape_cast %17 : vector<4x64xf32> to vector<1x4x64xf32>
    tpu.vector_store %arg6[%c0_11, %c0_12, %c0_13], %20 {strides = array<i32>} : memref<1x4x2048xf32, #tpu.memory_space<vmem>>, vector<1x4x64xf32>,
    %c0_14 = arith.constant 0 : index
    %c0_15 = arith.constant 0 : index
    %c1 = arith.constant 1 : index
    %c0_16 = arith.constant 0 : index
    %21 = vector.load %arg3[%c0_14, %c0_15, %c1, %c0_16] : memref<1x4x32x128xf32, #tpu.memory_space<vmem>>, vector<1x4x1x128xf32>
    %22 = vector.shape_cast %21 : vector<1x4x1x128xf32> to vector<4x128xf32>
    %cst_17 = arith.constant dense<0.000000e+00> : vector<4x64xf32>
    %23 = tpu.matmul %22, %8, %cst_17 {dimension_numbers = #tpu.dot_dimension_numbers<[1], [0], [0], [1], [0, 0, 1, 1], [], []>} : vector<4x128xf32>, vector<128x64xf32>, vector<4x64xf32> -> vector<4x64xf32>
    %cst_18 = arith.constant dense<0.000000e+00> : vector<4x64xf32>
    %24 = tpu.matmul %0, %23, %cst_18 {dimension_numbers = #tpu.dot_dimension_numbers<[1], [0], [0], [1], [0, 0, 1, 1], [], []>} : vector<4x4xf32>, vector<4x64xf32>, vector<4x64xf32> -> vector<4x64xf32>
    %c0_19 = arith.constant 0 : index
    %c0_20 = arith.constant 0 : index
    %c64 = arith.constant 64 : index
    %25 = vector.load %arg2[%c0_19, %c0_20, %c64] : memref<1x4x2048xf32, #tpu.memory_space<vmem>>, vector<1x4x64xf32>
    %26 = vector.shape_cast %25 : vector<1x4x64xf32> to vector<4x64xf32>
    %27 = arith.addf %26, %24 : vector<4x64xf32>
    %28 = vector.broadcast %1 : vector<4x1xf32> to vector<4x64xf32>
    %29 = arith.addf %27, %28 : vector<4x64xf32>
    %c0_21 = arith.constant 0 : index
    %c0_22 = arith.constant 0 : index
    %c64_23 = arith.constant 64 : index
    %30 = vector.load %arg6[%c0_21, %c0_22, %c64_23] : memref<1x4x2048xf32, #tpu.memory_space<vmem>>, vector<1x4x64xf32>
    %31 = vector.shape_cast %30 : vector<1x4x64xf32> to vector<4x64xf32>
    %32 = vector.shape_cast %29 : vector<4x64xf32> to vector<1x4x64xf32>
    tpu.vector_store %arg6[%c0_21, %c0_22, %c64_23], %32 {strides = array<i32>} : memref<1x4x2048xf32, #tpu.memory_space<vmem>>, vector<1x4x64xf32>,
    %c0_24 = arith.constant 0 : index
    %c0_25 = arith.constant 0 : index
    %c2 = arith.constant 2 : index
    %c0_26 = arith.constant 0 : index
    %33 = vector.load %arg3[%c0_24, %c0_25, %c2, %c0_26] : memref<1x4x32x128xf32, #tpu.memory_space<vmem>>, vector<1x4x1x128xf32>
    %34 = vector.shape_cast %33 : vector<1x4x1x128xf32> to vector<4x128xf32>
    %cst_27 = arith.constant dense<0.000000e+00> : vector<4x64xf32>
    %35 = tpu.matmul %34, %8, %cst_27 {dimension_numbers = #tpu.dot_dimension_numbers<[1], [0], [0], [1], [0, 0, 1, 1], [], []>} : vector<4x128xf32>, vector<128x64xf32>, vector<4x64xf32> -> vector<4x64xf32>
    %cst_28 = arith.constant dense<0.000000e+00> : vector<4x64xf32>
    %36 = tpu.matmul %0, %35, %cst_28 {dimension_numbers = #tpu.dot_dimension_numbers<[1], [0], [0], [1], [0, 0, 1, 1], [], []>} : vector<4x4xf32>, vector<4x64xf32>, vector<4x64xf32> -> vector<4x64xf32>
    %c0_29 = arith.constant 0 : index
    %c0_30 = arith.constant 0 : index
    %c128 = arith.constant 128 : index
    %37 = vector.load %arg2[%c0_29, %c0_30, %c128] : memref<1x4x2048xf32, #tpu.memory_space<vmem>>, vector<1x4x64xf32>
    %38 = vector.shape_cast %37 : vector<1x4x64xf32> to vector<4x64xf32>
    %39 = arith.addf %38, %36 : vector<4x64xf32>
    %40 = vector.broadcast %1 : vector<4x1xf32> to vector<4x64xf32>
    %41 = arith.addf %39, %40 : vector<4x64xf32>
    %c0_31 = arith.constant 0 : index
    %c0_32 = arith.constant 0 : index
    %c128_33 = arith.constant 128 : index
    %42 = vector.load %arg6[%c0_31, %c0_32, %c128_33] : memref<1x4x2048xf32, #tpu.memory_space<vmem>>, vector<1x4x64xf32>
    %43 = vector.shape_cast %42 : vector<1x4x64xf32> to vector<4x64xf32>
    %44 = vector.shape_cast %41 : vector<4x64xf32> to vector<1x4x64xf32>
    tpu.vector_store %arg6[%c0_31, %c0_32, %c128_33], %44 {strides = array<i32>} : memref<1x4x2048xf32, #tpu.memory_space<vmem>>, vector<1x4x64xf32>,
    %c0_34 = arith.constant 0 : index
    %c0_35 = arith.constant 0 : index
    %c3 = arith.constant 3 : index
    %c0_36 = arith.constant 0 : index
    %45 = vector.load %arg3[%c0_34, %c0_35, %c3, %c0_36] : memref<1x4x32x128xf32, #tpu.memory_space<vmem>>, vector<1x4x1x128xf32>
    %46 = vector.shape_cast %45 : vector<1x4x1x128xf32> to vector<4x128xf32>
    %cst_37 = arith.constant dense<0.000000e+00> : vector<4x64xf32>
    %47 = tpu.matmul %46, %8, %cst_37 {dimension_numbers = #tpu.dot_dimension_numbers<[1], [0], [0], [1], [0, 0, 1, 1], [], []>} : vector<4x128xf32>, vector<128x64xf32>, vector<4x64xf32> -> vector<4x64xf32>
    %cst_38 = arith.constant dense<0.000000e+00> : vector<4x64xf32>
    %48 = tpu.matmul %0, %47, %cst_38 {dimension_numbers = #tpu.dot_dimension_numbers<[1], [0], [0], [1], [0, 0, 1, 1], [], []>} : vector<4x4xf32>, vector<4x64xf32>, vector<4x64xf32> -> vector<4x64xf32>
    %c0_39 = arith.constant 0 : index
    %c0_40 = arith.constant 0 : index
    %c192 = arith.constant 192 : index
    %49 = vector.load %arg2[%c0_39, %c0_40, %c192] : memref<1x4x2048xf32, #tpu.memory_space<vmem>>, vector<1x4x64xf32>
    %50 = vector.shape_cast %49 : vector<1x4x64xf32> to vector<4x64xf32>
    %51 = arith.addf %50, %48 : vector<4x64xf32>
    %52 = vector.broadcast %1 : vector<4x1xf32> to vector<4x64xf32>
    %53 = arith.addf %51, %52 : vector<4x64xf32>
    %c0_41 = arith.constant 0 : index
    %c0_42 = arith.constant 0 : index
    %c192_43 = arith.constant 192 : index
    %54 = vector.load %arg6[%c0_41, %c0_42, %c192_43] : memref<1x4x2048xf32, #tpu.memory_space<vmem>>, vector<1x4x64xf32>
    %55 = vector.shape_cast %54 : vector<1x4x64xf32> to vector<4x64xf32>
    %56 = vector.shape_cast %53 : vector<4x64xf32> to vector<1x4x64xf32>
    tpu.vector_store %arg6[%c0_41, %c0_42, %c192_43], %56 {strides = array<i32>} : memref<1x4x2048xf32, #tpu.memory_space<vmem>>, vector<1x4x64xf32>,
    %c0_44 = arith.constant 0 : index
    %c0_45 = arith.constant 0 : index
    %c4 = arith.constant 4 : index
    %c0_46 = arith.constant 0 : index
    %57 = vector.load %arg3[%c0_44, %c0_45, %c4, %c0_46] : memref<1x4x32x128xf32, #tpu.memory_space<vmem>>, vector<1x4x1x128xf32>
    %58 = vector.shape_cast %57 : vector<1x4x1x128xf32> to vector<4x128xf32>
    %cst_47 = arith.constant dense<0.000000e+00> : vector<4x64xf32>
    %59 = tpu.matmul %58, %8, %cst_47 {dimension_numbers = #tpu.dot_dimension_numbers<[1], [0], [0], [1], [0, 0, 1, 1], [], []>} : vector<4x128xf32>, vector<128x64xf32>, vector<4x64xf32> -> vector<4x64xf32>
    %cst_48 = arith.constant dense<0.000000e+00> : vector<4x64xf32>
    %60 = tpu.matmul %0, %59, %cst_48 {dimension_numbers = #tpu.dot_dimension_numbers<[1], [0], [0], [1], [0, 0, 1, 1], [], []>} : vector<4x4xf32>, vector<4x64xf32>, vector<4x64xf32> -> vector<4x64xf32>
    %c0_49 = arith.constant 0 : index
    %c0_50 = arith.constant 0 : index
    %c256 = arith.constant 256 : index
    %61 = vector.load %arg2[%c0_49, %c0_50, %c256] : memref<1x4x2048xf32, #tpu.memory_space<vmem>>, vector<1x4x64xf32>
    %62 = vector.shape_cast %61 : vector<1x4x64xf32> to vector<4x64xf32>
    %63 = arith.addf %62, %60 : vector<4x64xf32>
    %64 = vector.broadcast %1 : vector<4x1xf32> to vector<4x64xf32>
    %65 = arith.addf %63, %64 : vector<4x64xf32>
    %c0_51 = arith.constant 0 : index
    %c0_52 = arith.constant 0 : index
    %c256_53 = arith.constant 256 : index
    %66 = vector.load %arg6[%c0_51, %c0_52, %c256_53] : memref<1x4x2048xf32, #tpu.memory_space<vmem>>, vector<1x4x64xf32>
    %67 = vector.shape_cast %66 : vector<1x4x64xf32> to vector<4x64xf32>
    %68 = vector.shape_cast %65 : vector<4x64xf32> to vector<1x4x64xf32>
    tpu.vector_store %arg6[%c0_51, %c0_52, %c256_53], %68 {strides = array<i32>} : memref<1x4x2048xf32, #tpu.memory_space<vmem>>, vector<1x4x64xf32>,
    %c0_54 = arith.constant 0 : index
    %c0_55 = arith.constant 0 : index
    %c5 = arith.constant 5 : index
    %c0_56 = arith.constant 0 : index
    %69 = vector.load %arg3[%c0_54, %c0_55, %c5, %c0_56] : memref<1x4x32x128xf32, #tpu.memory_space<vmem>>, vector<1x4x1x128xf32>
    %70 = vector.shape_cast %69 : vector<1x4x1x128xf32> to vector<4x128xf32>
    %cst_57 = arith.constant dense<0.000000e+00> : vector<4x64xf32>
    %71 = tpu.matmul %70, %8, %cst_57 {dimension_numbers = #tpu.dot_dimension_numbers<[1], [0], [0], [1], [0, 0, 1, 1], [], []>} : vector<4x128xf32>, vector<128x64xf32>, vector<4x64xf32> -> vector<4x64xf32>
    %cst_58 = arith.constant dense<0.000000e+00> : vector<4x64xf32>
    %72 = tpu.matmul %0, %71, %cst_58 {dimension_numbers = #tpu.dot_dimension_numbers<[1], [0], [0], [1], [0, 0, 1, 1], [], []>} : vector<4x4xf32>, vector<4x64xf32>, vector<4x64xf32> -> vector<4x64xf32>
    %c0_59 = arith.constant 0 : index
    %c0_60 = arith.constant 0 : index
    %c320 = arith.constant 320 : index
    %73 = vector.load %arg2[%c0_59, %c0_60, %c320] : memref<1x4x2048xf32, #tpu.memory_space<vmem>>, vector<1x4x64xf32>
    %74 = vector.shape_cast %73 : vector<1x4x64xf32> to vector<4x64xf32>
    %75 = arith.addf %74, %72 : vector<4x64xf32>
    %76 = vector.broadcast %1 : vector<4x1xf32> to vector<4x64xf32>
    %77 = arith.addf %75, %76 : vector<4x64xf32>
    %c0_61 = arith.constant 0 : index
    %c0_62 = arith.constant 0 : index
    %c320_63 = arith.constant 320 : index
    %78 = vector.load %arg6[%c0_61, %c0_62, %c320_63] : memref<1x4x2048xf32, #tpu.memory_space<vmem>>, vector<1x4x64xf32>
    %79 = vector.shape_cast %78 : vector<1x4x64xf32> to vector<4x64xf32>
    %80 = vector.shape_cast %77 : vector<4x64xf32> to vector<1x4x64xf32>
    tpu.vector_store %arg6[%c0_61, %c0_62, %c320_63], %80 {strides = array<i32>} : memref<1x4x2048xf32, #tpu.memory_space<vmem>>, vector<1x4x64xf32>,
    %c0_64 = arith.constant 0 : index
    %c0_65 = arith.constant 0 : index
    %c6 = arith.constant 6 : index
    %c0_66 = arith.constant 0 : index
    %81 = vector.load %arg3[%c0_64, %c0_65, %c6, %c0_66] : memref<1x4x32x128xf32, #tpu.memory_space<vmem>>, vector<1x4x1x128xf32>
    %82 = vector.shape_cast %81 : vector<1x4x1x128xf32> to vector<4x128xf32>
    %cst_67 = arith.constant dense<0.000000e+00> : vector<4x64xf32>
    %83 = tpu.matmul %82, %8, %cst_67 {dimension_numbers = #tpu.dot_dimension_numbers<[1], [0], [0], [1], [0, 0, 1, 1], [], []>} : vector<4x128xf32>, vector<128x64xf32>, vector<4x64xf32> -> vector<4x64xf32>
    %cst_68 = arith.constant dense<0.000000e+00> : vector<4x64xf32>
    %84 = tpu.matmul %0, %83, %cst_68 {dimension_numbers = #tpu.dot_dimension_numbers<[1], [0], [0], [1], [0, 0, 1, 1], [], []>} : vector<4x4xf32>, vector<4x64xf32>, vector<4x64xf32> -> vector<4x64xf32>
    %c0_69 = arith.constant 0 : index
    %c0_70 = arith.constant 0 : index
    %c384 = arith.constant 384 : index
    %85 = vector.load %arg2[%c0_69, %c0_70, %c384] : memref<1x4x2048xf32, #tpu.memory_space<vmem>>, vector<1x4x64xf32>
    %86 = vector.shape_cast %85 : vector<1x4x64xf32> to vector<4x64xf32>
    %87 = arith.addf %86, %84 : vector<4x64xf32>
    %88 = vector.broadcast %1 : vector<4x1xf32> to vector<4x64xf32>
    %89 = arith.addf %87, %88 : vector<4x64xf32>
    %c0_71 = arith.constant 0 : index
    %c0_72 = arith.constant 0 : index
    %c384_73 = arith.constant 384 : index
    %90 = vector.load %arg6[%c0_71, %c0_72, %c384_73] : memref<1x4x2048xf32, #tpu.memory_space<vmem>>, vector<1x4x64xf32>
    %91 = vector.shape_cast %90 : vector<1x4x64xf32> to vector<4x64xf32>
    %92 = vector.shape_cast %89 : vector<4x64xf32> to vector<1x4x64xf32>
    tpu.vector_store %arg6[%c0_71, %c0_72, %c384_73], %92 {strides = array<i32>} : memref<1x4x2048xf32, #tpu.memory_space<vmem>>, vector<1x4x64xf32>,
    %c0_74 = arith.constant 0 : index
    %c0_75 = arith.constant 0 : index
    %c7 = arith.constant 7 : index
    %c0_76 = arith.constant 0 : index
    %93 = vector.load %arg3[%c0_74, %c0_75, %c7, %c0_76] : memref<1x4x32x128xf32, #tpu.memory_space<vmem>>, vector<1x4x1x128xf32>
    %94 = vector.shape_cast %93 : vector<1x4x1x128xf32> to vector<4x128xf32>
    %cst_77 = arith.constant dense<0.000000e+00> : vector<4x64xf32>
    %95 = tpu.matmul %94, %8, %cst_77 {dimension_numbers = #tpu.dot_dimension_numbers<[1], [0], [0], [1], [0, 0, 1, 1], [], []>} : vector<4x128xf32>, vector<128x64xf32>, vector<4x64xf32> -> vector<4x64xf32>
    %cst_78 = arith.constant dense<0.000000e+00> : vector<4x64xf32>
    %96 = tpu.matmul %0, %95, %cst_78 {dimension_numbers = #tpu.dot_dimension_numbers<[1], [0], [0], [1], [0, 0, 1, 1], [], []>} : vector<4x4xf32>, vector<4x64xf32>, vector<4x64xf32> -> vector<4x64xf32>
    %c0_79 = arith.constant 0 : index
    %c0_80 = arith.constant 0 : index
    %c448 = arith.constant 448 : index
    %97 = vector.load %arg2[%c0_79, %c0_80, %c448] : memref<1x4x2048xf32, #tpu.memory_space<vmem>>, vector<1x4x64xf32>
    %98 = vector.shape_cast %97 : vector<1x4x64xf32> to vector<4x64xf32>
    %99 = arith.addf %98, %96 : vector<4x64xf32>
    %100 = vector.broadcast %1 : vector<4x1xf32> to vector<4x64xf32>
    %101 = arith.addf %99, %100 : vector<4x64xf32>
    %c0_81 = arith.constant 0 : index
    %c0_82 = arith.constant 0 : index
    %c448_83 = arith.constant 448 : index
    %102 = vector.load %arg6[%c0_81, %c0_82, %c448_83] : memref<1x4x2048xf32, #tpu.memory_space<vmem>>, vector<1x4x64xf32>
    %103 = vector.shape_cast %102 : vector<1x4x64xf32> to vector<4x64xf32>
    %104 = vector.shape_cast %101 : vector<4x64xf32> to vector<1x4x64xf32>
    tpu.vector_store %arg6[%c0_81, %c0_82, %c448_83], %104 {strides = array<i32>} : memref<1x4x2048xf32, #tpu.memory_space<vmem>>, vector<1x4x64xf32>,
    %c0_84 = arith.constant 0 : index
    %c0_85 = arith.constant 0 : index
    %c8 = arith.constant 8 : index
    %c0_86 = arith.constant 0 : index
    %105 = vector.load %arg3[%c0_84, %c0_85, %c8, %c0_86] : memref<1x4x32x128xf32, #tpu.memory_space<vmem>>, vector<1x4x1x128xf32>
    %106 = vector.shape_cast %105 : vector<1x4x1x128xf32> to vector<4x128xf32>
    %cst_87 = arith.constant dense<0.000000e+00> : vector<4x64xf32>
    %107 = tpu.matmul %106, %8, %cst_87 {dimension_numbers = #tpu.dot_dimension_numbers<[1], [0], [0], [1], [0, 0, 1, 1], [], []>} : vector<4x128xf32>, vector<128x64xf32>, vector<4x64xf32> -> vector<4x64xf32>
    %cst_88 = arith.constant dense<0.000000e+00> : vector<4x64xf32>
    %108 = tpu.matmul %0, %107, %cst_88 {dimension_numbers = #tpu.dot_dimension_numbers<[1], [0], [0], [1], [0, 0, 1, 1], [], []>} : vector<4x4xf32>, vector<4x64xf32>, vector<4x64xf32> -> vector<4x64xf32>
    %c0_89 = arith.constant 0 : index
    %c0_90 = arith.constant 0 : index
    %c512 = arith.constant 512 : index
    %109 = vector.load %arg2[%c0_89, %c0_90, %c512] : memref<1x4x2048xf32, #tpu.memory_space<vmem>>, vector<1x4x64xf32>
    %110 = vector.shape_cast %109 : vector<1x4x64xf32> to vector<4x64xf32>
    %111 = arith.addf %110, %108 : vector<4x64xf32>
    %112 = vector.broadcast %1 : vector<4x1xf32> to vector<4x64xf32>
    %113 = arith.addf %111, %112 : vector<4x64xf32>
    %c0_91 = arith.constant 0 : index
    %c0_92 = arith.constant 0 : index
    %c512_93 = arith.constant 512 : index
    %114 = vector.load %arg6[%c0_91, %c0_92, %c512_93] : memref<1x4x2048xf32, #tpu.memory_space<vmem>>, vector<1x4x64xf32>
    %115 = vector.shape_cast %114 : vector<1x4x64xf32> to vector<4x64xf32>
    %116 = vector.shape_cast %113 : vector<4x64xf32> to vector<1x4x64xf32>
    tpu.vector_store %arg6[%c0_91, %c0_92, %c512_93], %116 {strides = array<i32>} : memref<1x4x2048xf32, #tpu.memory_space<vmem>>, vector<1x4x64xf32>,
    %c0_94 = arith.constant 0 : index
    %c0_95 = arith.constant 0 : index
    %c9 = arith.constant 9 : index
    %c0_96 = arith.constant 0 : index
    %117 = vector.load %arg3[%c0_94, %c0_95, %c9, %c0_96] : memref<1x4x32x128xf32, #tpu.memory_space<vmem>>, vector<1x4x1x128xf32>
    %118 = vector.shape_cast %117 : vector<1x4x1x128xf32> to vector<4x128xf32>
    %cst_97 = arith.constant dense<0.000000e+00> : vector<4x64xf32>
    %119 = tpu.matmul %118, %8, %cst_97 {dimension_numbers = #tpu.dot_dimension_numbers<[1], [0], [0], [1], [0, 0, 1, 1], [], []>} : vector<4x128xf32>, vector<128x64xf32>, vector<4x64xf32> -> vector<4x64xf32>
    %cst_98 = arith.constant dense<0.000000e+00> : vector<4x64xf32>
    %120 = tpu.matmul %0, %119, %cst_98 {dimension_numbers = #tpu.dot_dimension_numbers<[1], [0], [0], [1], [0, 0, 1, 1], [], []>} : vector<4x4xf32>, vector<4x64xf32>, vector<4x64xf32> -> vector<4x64xf32>
    %c0_99 = arith.constant 0 : index
    %c0_100 = arith.constant 0 : index
    %c576 = arith.constant 576 : index
    %121 = vector.load %arg2[%c0_99, %c0_100, %c576] : memref<1x4x2048xf32, #tpu.memory_space<vmem>>, vector<1x4x64xf32>
    %122 = vector.shape_cast %121 : vector<1x4x64xf32> to vector<4x64xf32>
    %123 = arith.addf %122, %120 : vector<4x64xf32>
    %124 = vector.broadcast %1 : vector<4x1xf32> to vector<4x64xf32>
    %125 = arith.addf %123, %124 : vector<4x64xf32>
    %c0_101 = arith.constant 0 : index
    %c0_102 = arith.constant 0 : index
    %c576_103 = arith.constant 576 : index
    %126 = vector.load %arg6[%c0_101, %c0_102, %c576_103] : memref<1x4x2048xf32, #tpu.memory_space<vmem>>, vector<1x4x64xf32>
    %127 = vector.shape_cast %126 : vector<1x4x64xf32> to vector<4x64xf32>
    %128 = vector.shape_cast %125 : vector<4x64xf32> to vector<1x4x64xf32>
    tpu.vector_store %arg6[%c0_101, %c0_102, %c576_103], %128 {strides = array<i32>} : memref<1x4x2048xf32, #tpu.memory_space<vmem>>, vector<1x4x64xf32>,
    %c0_104 = arith.constant 0 : index
    %c0_105 = arith.constant 0 : index
    %c10 = arith.constant 10 : index
    %c0_106 = arith.constant 0 : index
    %129 = vector.load %arg3[%c0_104, %c0_105, %c10, %c0_106] : memref<1x4x32x128xf32, #tpu.memory_space<vmem>>, vector<1x4x1x128xf32>
    %130 = vector.shape_cast %129 : vector<1x4x1x128xf32> to vector<4x128xf32>
    %cst_107 = arith.constant dense<0.000000e+00> : vector<4x64xf32>
    %131 = tpu.matmul %130, %8, %cst_107 {dimension_numbers = #tpu.dot_dimension_numbers<[1], [0], [0], [1], [0, 0, 1, 1], [], []>} : vector<4x128xf32>, vector<128x64xf32>, vector<4x64xf32> -> vector<4x64xf32>
    %cst_108 = arith.constant dense<0.000000e+00> : vector<4x64xf32>
    %132 = tpu.matmul %0, %131, %cst_108 {dimension_numbers = #tpu.dot_dimension_numbers<[1], [0], [0], [1], [0, 0, 1, 1], [], []>} : vector<4x4xf32>, vector<4x64xf32>, vector<4x64xf32> -> vector<4x64xf32>
    %c0_109 = arith.constant 0 : index
    %c0_110 = arith.constant 0 : index
    %c640 = arith.constant 640 : index
    %133 = vector.load %arg2[%c0_109, %c0_110, %c640] : memref<1x4x2048xf32, #tpu.memory_space<vmem>>, vector<1x4x64xf32>
    %134 = vector.shape_cast %133 : vector<1x4x64xf32> to vector<4x64xf32>
    %135 = arith.addf %134, %132 : vector<4x64xf32>
    %136 = vector.broadcast %1 : vector<4x1xf32> to vector<4x64xf32>
    %137 = arith.addf %135, %136 : vector<4x64xf32>
    %c0_111 = arith.constant 0 : index
    %c0_112 = arith.constant 0 : index
    %c640_113 = arith.constant 640 : index
    %138 = vector.load %arg6[%c0_111, %c0_112, %c640_113] : memref<1x4x2048xf32, #tpu.memory_space<vmem>>, vector<1x4x64xf32>
    %139 = vector.shape_cast %138 : vector<1x4x64xf32> to vector<4x64xf32>
    %140 = vector.shape_cast %137 : vector<4x64xf32> to vector<1x4x64xf32>
    tpu.vector_store %arg6[%c0_111, %c0_112, %c640_113], %140 {strides = array<i32>} : memref<1x4x2048xf32, #tpu.memory_space<vmem>>, vector<1x4x64xf32>,
    %c0_114 = arith.constant 0 : index
    %c0_115 = arith.constant 0 : index
    %c11 = arith.constant 11 : index
    %c0_116 = arith.constant 0 : index
    %141 = vector.load %arg3[%c0_114, %c0_115, %c11, %c0_116] : memref<1x4x32x128xf32, #tpu.memory_space<vmem>>, vector<1x4x1x128xf32>
    %142 = vector.shape_cast %141 : vector<1x4x1x128xf32> to vector<4x128xf32>
    %cst_117 = arith.constant dense<0.000000e+00> : vector<4x64xf32>
    %143 = tpu.matmul %142, %8, %cst_117 {dimension_numbers = #tpu.dot_dimension_numbers<[1], [0], [0], [1], [0, 0, 1, 1], [], []>} : vector<4x128xf32>, vector<128x64xf32>, vector<4x64xf32> -> vector<4x64xf32>
    %cst_118 = arith.constant dense<0.000000e+00> : vector<4x64xf32>
    %144 = tpu.matmul %0, %143, %cst_118 {dimension_numbers = #tpu.dot_dimension_numbers<[1], [0], [0], [1], [0, 0, 1, 1], [], []>} : vector<4x4xf32>, vector<4x64xf32>, vector<4x64xf32> -> vector<4x64xf32>
    %c0_119 = arith.constant 0 : index
    %c0_120 = arith.constant 0 : index
    %c704 = arith.constant 704 : index
    %145 = vector.load %arg2[%c0_119, %c0_120, %c704] : memref<1x4x2048xf32, #tpu.memory_space<vmem>>, vector<1x4x64xf32>
    %146 = vector.shape_cast %145 : vector<1x4x64xf32> to vector<4x64xf32>
    %147 = arith.addf %146, %144 : vector<4x64xf32>
    %148 = vector.broadcast %1 : vector<4x1xf32> to vector<4x64xf32>
    %149 = arith.addf %147, %148 : vector<4x64xf32>
    %c0_121 = arith.constant 0 : index
    %c0_122 = arith.constant 0 : index
    %c704_123 = arith.constant 704 : index
    %150 = vector.load %arg6[%c0_121, %c0_122, %c704_123] : memref<1x4x2048xf32, #tpu.memory_space<vmem>>, vector<1x4x64xf32>
    %151 = vector.shape_cast %150 : vector<1x4x64xf32> to vector<4x64xf32>
    %152 = vector.shape_cast %149 : vector<4x64xf32> to vector<1x4x64xf32>
    tpu.vector_store %arg6[%c0_121, %c0_122, %c704_123], %152 {strides = array<i32>} : memref<1x4x2048xf32, #tpu.memory_space<vmem>>, vector<1x4x64xf32>,
    %c0_124 = arith.constant 0 : index
    %c0_125 = arith.constant 0 : index
    %c12 = arith.constant 12 : index
    %c0_126 = arith.constant 0 : index
    %153 = vector.load %arg3[%c0_124, %c0_125, %c12, %c0_126] : memref<1x4x32x128xf32, #tpu.memory_space<vmem>>, vector<1x4x1x128xf32>
    %154 = vector.shape_cast %153 : vector<1x4x1x128xf32> to vector<4x128xf32>
    %cst_127 = arith.constant dense<0.000000e+00> : vector<4x64xf32>
    %155 = tpu.matmul %154, %8, %cst_127 {dimension_numbers = #tpu.dot_dimension_numbers<[1], [0], [0], [1], [0, 0, 1, 1], [], []>} : vector<4x128xf32>, vector<128x64xf32>, vector<4x64xf32> -> vector<4x64xf32>
    %cst_128 = arith.constant dense<0.000000e+00> : vector<4x64xf32>
    %156 = tpu.matmul %0, %155, %cst_128 {dimension_numbers = #tpu.dot_dimension_numbers<[1], [0], [0], [1], [0, 0, 1, 1], [], []>} : vector<4x4xf32>, vector<4x64xf32>, vector<4x64xf32> -> vector<4x64xf32>
    %c0_129 = arith.constant 0 : index
    %c0_130 = arith.constant 0 : index
    %c768 = arith.constant 768 : index
    %157 = vector.load %arg2[%c0_129, %c0_130, %c768] : memref<1x4x2048xf32, #tpu.memory_space<vmem>>, vector<1x4x64xf32>
    %158 = vector.shape_cast %157 : vector<1x4x64xf32> to vector<4x64xf32>
    %159 = arith.addf %158, %156 : vector<4x64xf32>
    %160 = vector.broadcast %1 : vector<4x1xf32> to vector<4x64xf32>
    %161 = arith.addf %159, %160 : vector<4x64xf32>
    %c0_131 = arith.constant 0 : index
    %c0_132 = arith.constant 0 : index
    %c768_133 = arith.constant 768 : index
    %162 = vector.load %arg6[%c0_131, %c0_132, %c768_133] : memref<1x4x2048xf32, #tpu.memory_space<vmem>>, vector<1x4x64xf32>
    %163 = vector.shape_cast %162 : vector<1x4x64xf32> to vector<4x64xf32>
    %164 = vector.shape_cast %161 : vector<4x64xf32> to vector<1x4x64xf32>
    tpu.vector_store %arg6[%c0_131, %c0_132, %c768_133], %164 {strides = array<i32>} : memref<1x4x2048xf32, #tpu.memory_space<vmem>>, vector<1x4x64xf32>,
    %c0_134 = arith.constant 0 : index
    %c0_135 = arith.constant 0 : index
    %c13 = arith.constant 13 : index
    %c0_136 = arith.constant 0 : index
    %165 = vector.load %arg3[%c0_134, %c0_135, %c13, %c0_136] : memref<1x4x32x128xf32, #tpu.memory_space<vmem>>, vector<1x4x1x128xf32>
    %166 = vector.shape_cast %165 : vector<1x4x1x128xf32> to vector<4x128xf32>
    %cst_137 = arith.constant dense<0.000000e+00> : vector<4x64xf32>
    %167 = tpu.matmul %166, %8, %cst_137 {dimension_numbers = #tpu.dot_dimension_numbers<[1], [0], [0], [1], [0, 0, 1, 1], [], []>} : vector<4x128xf32>, vector<128x64xf32>, vector<4x64xf32> -> vector<4x64xf32>
    %cst_138 = arith.constant dense<0.000000e+00> : vector<4x64xf32>
    %168 = tpu.matmul %0, %167, %cst_138 {dimension_numbers = #tpu.dot_dimension_numbers<[1], [0], [0], [1], [0, 0, 1, 1], [], []>} : vector<4x4xf32>, vector<4x64xf32>, vector<4x64xf32> -> vector<4x64xf32>
    %c0_139 = arith.constant 0 : index
    %c0_140 = arith.constant 0 : index
    %c832 = arith.constant 832 : index
    %169 = vector.load %arg2[%c0_139, %c0_140, %c832] : memref<1x4x2048xf32, #tpu.memory_space<vmem>>, vector<1x4x64xf32>
    %170 = vector.shape_cast %169 : vector<1x4x64xf32> to vector<4x64xf32>
    %171 = arith.addf %170, %168 : vector<4x64xf32>
    %172 = vector.broadcast %1 : vector<4x1xf32> to vector<4x64xf32>
    %173 = arith.addf %171, %172 : vector<4x64xf32>
    %c0_141 = arith.constant 0 : index
    %c0_142 = arith.constant 0 : index
    %c832_143 = arith.constant 832 : index
    %174 = vector.load %arg6[%c0_141, %c0_142, %c832_143] : memref<1x4x2048xf32, #tpu.memory_space<vmem>>, vector<1x4x64xf32>
    %175 = vector.shape_cast %174 : vector<1x4x64xf32> to vector<4x64xf32>
    %176 = vector.shape_cast %173 : vector<4x64xf32> to vector<1x4x64xf32>
    tpu.vector_store %arg6[%c0_141, %c0_142, %c832_143], %176 {strides = array<i32>} : memref<1x4x2048xf32, #tpu.memory_space<vmem>>, vector<1x4x64xf32>,
    %c0_144 = arith.constant 0 : index
    %c0_145 = arith.constant 0 : index
    %c14 = arith.constant 14 : index
    %c0_146 = arith.constant 0 : index
    %177 = vector.load %arg3[%c0_144, %c0_145, %c14, %c0_146] : memref<1x4x32x128xf32, #tpu.memory_space<vmem>>, vector<1x4x1x128xf32>
    %178 = vector.shape_cast %177 : vector<1x4x1x128xf32> to vector<4x128xf32>
    %cst_147 = arith.constant dense<0.000000e+00> : vector<4x64xf32>
    %179 = tpu.matmul %178, %8, %cst_147 {dimension_numbers = #tpu.dot_dimension_numbers<[1], [0], [0], [1], [0, 0, 1, 1], [], []>} : vector<4x128xf32>, vector<128x64xf32>, vector<4x64xf32> -> vector<4x64xf32>
    %cst_148 = arith.constant dense<0.000000e+00> : vector<4x64xf32>
    %180 = tpu.matmul %0, %179, %cst_148 {dimension_numbers = #tpu.dot_dimension_numbers<[1], [0], [0], [1], [0, 0, 1, 1], [], []>} : vector<4x4xf32>, vector<4x64xf32>, vector<4x64xf32> -> vector<4x64xf32>
    %c0_149 = arith.constant 0 : index
    %c0_150 = arith.constant 0 : index
    %c896 = arith.constant 896 : index
    %181 = vector.load %arg2[%c0_149, %c0_150, %c896] : memref<1x4x2048xf32, #tpu.memory_space<vmem>>, vector<1x4x64xf32>
    %182 = vector.shape_cast %181 : vector<1x4x64xf32> to vector<4x64xf32>
    %183 = arith.addf %182, %180 : vector<4x64xf32>
    %184 = vector.broadcast %1 : vector<4x1xf32> to vector<4x64xf32>
    %185 = arith.addf %183, %184 : vector<4x64xf32>
    %c0_151 = arith.constant 0 : index
    %c0_152 = arith.constant 0 : index
    %c896_153 = arith.constant 896 : index
    %186 = vector.load %arg6[%c0_151, %c0_152, %c896_153] : memref<1x4x2048xf32, #tpu.memory_space<vmem>>, vector<1x4x64xf32>
    %187 = vector.shape_cast %186 : vector<1x4x64xf32> to vector<4x64xf32>
    %188 = vector.shape_cast %185 : vector<4x64xf32> to vector<1x4x64xf32>
    tpu.vector_store %arg6[%c0_151, %c0_152, %c896_153], %188 {strides = array<i32>} : memref<1x4x2048xf32, #tpu.memory_space<vmem>>, vector<1x4x64xf32>,
    %c0_154 = arith.constant 0 : index
    %c0_155 = arith.constant 0 : index
    %c15 = arith.constant 15 : index
    %c0_156 = arith.constant 0 : index
    %189 = vector.load %arg3[%c0_154, %c0_155, %c15, %c0_156] : memref<1x4x32x128xf32, #tpu.memory_space<vmem>>, vector<1x4x1x128xf32>
    %190 = vector.shape_cast %189 : vector<1x4x1x128xf32> to vector<4x128xf32>
    %cst_157 = arith.constant dense<0.000000e+00> : vector<4x64xf32>
    %191 = tpu.matmul %190, %8, %cst_157 {dimension_numbers = #tpu.dot_dimension_numbers<[1], [0], [0], [1], [0, 0, 1, 1], [], []>} : vector<4x128xf32>, vector<128x64xf32>, vector<4x64xf32> -> vector<4x64xf32>
    %cst_158 = arith.constant dense<0.000000e+00> : vector<4x64xf32>
    %192 = tpu.matmul %0, %191, %cst_158 {dimension_numbers = #tpu.dot_dimension_numbers<[1], [0], [0], [1], [0, 0, 1, 1], [], []>} : vector<4x4xf32>, vector<4x64xf32>, vector<4x64xf32> -> vector<4x64xf32>
    %c0_159 = arith.constant 0 : index
    %c0_160 = arith.constant 0 : index
    %c960 = arith.constant 960 : index
    %193 = vector.load %arg2[%c0_159, %c0_160, %c960] : memref<1x4x2048xf32, #tpu.memory_space<vmem>>, vector<1x4x64xf32>
    %194 = vector.shape_cast %193 : vector<1x4x64xf32> to vector<4x64xf32>
    %195 = arith.addf %194, %192 : vector<4x64xf32>
    %196 = vector.broadcast %1 : vector<4x1xf32> to vector<4x64xf32>
    %197 = arith.addf %195, %196 : vector<4x64xf32>
    %c0_161 = arith.constant 0 : index
    %c0_162 = arith.constant 0 : index
    %c960_163 = arith.constant 960 : index
    %198 = vector.load %arg6[%c0_161, %c0_162, %c960_163] : memref<1x4x2048xf32, #tpu.memory_space<vmem>>, vector<1x4x64xf32>
    %199 = vector.shape_cast %198 : vector<1x4x64xf32> to vector<4x64xf32>
    %200 = vector.shape_cast %197 : vector<4x64xf32> to vector<1x4x64xf32>
    tpu.vector_store %arg6[%c0_161, %c0_162, %c960_163], %200 {strides = array<i32>} : memref<1x4x2048xf32, #tpu.memory_space<vmem>>, vector<1x4x64xf32>,
    %c0_164 = arith.constant 0 : index
    %c0_165 = arith.constant 0 : index
    %c16 = arith.constant 16 : index
    %c0_166 = arith.constant 0 : index
    %201 = vector.load %arg3[%c0_164, %c0_165, %c16, %c0_166] : memref<1x4x32x128xf32, #tpu.memory_space<vmem>>, vector<1x4x1x128xf32>
    %202 = vector.shape_cast %201 : vector<1x4x1x128xf32> to vector<4x128xf32>
    %cst_167 = arith.constant dense<0.000000e+00> : vector<4x64xf32>
    %203 = tpu.matmul %202, %8, %cst_167 {dimension_numbers = #tpu.dot_dimension_numbers<[1], [0], [0], [1], [0, 0, 1, 1], [], []>} : vector<4x128xf32>, vector<128x64xf32>, vector<4x64xf32> -> vector<4x64xf32>
    %cst_168 = arith.constant dense<0.000000e+00> : vector<4x64xf32>
    %204 = tpu.matmul %0, %203, %cst_168 {dimension_numbers = #tpu.dot_dimension_numbers<[1], [0], [0], [1], [0, 0, 1, 1], [], []>} : vector<4x4xf32>, vector<4x64xf32>, vector<4x64xf32> -> vector<4x64xf32>
    %c0_169 = arith.constant 0 : index
    %c0_170 = arith.constant 0 : index
    %c1024 = arith.constant 1024 : index
    %205 = vector.load %arg2[%c0_169, %c0_170, %c1024] : memref<1x4x2048xf32, #tpu.memory_space<vmem>>, vector<1x4x64xf32>
    %206 = vector.shape_cast %205 : vector<1x4x64xf32> to vector<4x64xf32>
    %207 = arith.addf %206, %204 : vector<4x64xf32>
    %208 = vector.broadcast %1 : vector<4x1xf32> to vector<4x64xf32>
    %209 = arith.addf %207, %208 : vector<4x64xf32>
    %c0_171 = arith.constant 0 : index
    %c0_172 = arith.constant 0 : index
    %c1024_173 = arith.constant 1024 : index
    %210 = vector.load %arg6[%c0_171, %c0_172, %c1024_173] : memref<1x4x2048xf32, #tpu.memory_space<vmem>>, vector<1x4x64xf32>
    %211 = vector.shape_cast %210 : vector<1x4x64xf32> to vector<4x64xf32>
    %212 = vector.shape_cast %209 : vector<4x64xf32> to vector<1x4x64xf32>
    tpu.vector_store %arg6[%c0_171, %c0_172, %c1024_173], %212 {strides = array<i32>} : memref<1x4x2048xf32, #tpu.memory_space<vmem>>, vector<1x4x64xf32>,
    %c0_174 = arith.constant 0 : index
    %c0_175 = arith.constant 0 : index
    %c17 = arith.constant 17 : index
    %c0_176 = arith.constant 0 : index
    %213 = vector.load %arg3[%c0_174, %c0_175, %c17, %c0_176] : memref<1x4x32x128xf32, #tpu.memory_space<vmem>>, vector<1x4x1x128xf32>
    %214 = vector.shape_cast %213 : vector<1x4x1x128xf32> to vector<4x128xf32>
    %cst_177 = arith.constant dense<0.000000e+00> : vector<4x64xf32>
    %215 = tpu.matmul %214, %8, %cst_177 {dimension_numbers = #tpu.dot_dimension_numbers<[1], [0], [0], [1], [0, 0, 1, 1], [], []>} : vector<4x128xf32>, vector<128x64xf32>, vector<4x64xf32> -> vector<4x64xf32>
    %cst_178 = arith.constant dense<0.000000e+00> : vector<4x64xf32>
    %216 = tpu.matmul %0, %215, %cst_178 {dimension_numbers = #tpu.dot_dimension_numbers<[1], [0], [0], [1], [0, 0, 1, 1], [], []>} : vector<4x4xf32>, vector<4x64xf32>, vector<4x64xf32> -> vector<4x64xf32>
    %c0_179 = arith.constant 0 : index
    %c0_180 = arith.constant 0 : index
    %c1088 = arith.constant 1088 : index
    %217 = vector.load %arg2[%c0_179, %c0_180, %c1088] : memref<1x4x2048xf32, #tpu.memory_space<vmem>>, vector<1x4x64xf32>
    %218 = vector.shape_cast %217 : vector<1x4x64xf32> to vector<4x64xf32>
    %219 = arith.addf %218, %216 : vector<4x64xf32>
    %220 = vector.broadcast %1 : vector<4x1xf32> to vector<4x64xf32>
    %221 = arith.addf %219, %220 : vector<4x64xf32>
    %c0_181 = arith.constant 0 : index
    %c0_182 = arith.constant 0 : index
    %c1088_183 = arith.constant 1088 : index
    %222 = vector.load %arg6[%c0_181, %c0_182, %c1088_183] : memref<1x4x2048xf32, #tpu.memory_space<vmem>>, vector<1x4x64xf32>
    %223 = vector.shape_cast %222 : vector<1x4x64xf32> to vector<4x64xf32>
    %224 = vector.shape_cast %221 : vector<4x64xf32> to vector<1x4x64xf32>
    tpu.vector_store %arg6[%c0_181, %c0_182, %c1088_183], %224 {strides = array<i32>} : memref<1x4x2048xf32, #tpu.memory_space<vmem>>, vector<1x4x64xf32>,
    %c0_184 = arith.constant 0 : index
    %c0_185 = arith.constant 0 : index
    %c18 = arith.constant 18 : index
    %c0_186 = arith.constant 0 : index
    %225 = vector.load %arg3[%c0_184, %c0_185, %c18, %c0_186] : memref<1x4x32x128xf32, #tpu.memory_space<vmem>>, vector<1x4x1x128xf32>
    %226 = vector.shape_cast %225 : vector<1x4x1x128xf32> to vector<4x128xf32>
    %cst_187 = arith.constant dense<0.000000e+00> : vector<4x64xf32>
    %227 = tpu.matmul %226, %8, %cst_187 {dimension_numbers = #tpu.dot_dimension_numbers<[1], [0], [0], [1], [0, 0, 1, 1], [], []>} : vector<4x128xf32>, vector<128x64xf32>, vector<4x64xf32> -> vector<4x64xf32>
    %cst_188 = arith.constant dense<0.000000e+00> : vector<4x64xf32>
    %228 = tpu.matmul %0, %227, %cst_188 {dimension_numbers = #tpu.dot_dimension_numbers<[1], [0], [0], [1], [0, 0, 1, 1], [], []>} : vector<4x4xf32>, vector<4x64xf32>, vector<4x64xf32> -> vector<4x64xf32>
    %c0_189 = arith.constant 0 : index
    %c0_190 = arith.constant 0 : index
    %c1152 = arith.constant 1152 : index
    %229 = vector.load %arg2[%c0_189, %c0_190, %c1152] : memref<1x4x2048xf32, #tpu.memory_space<vmem>>, vector<1x4x64xf32>
    %230 = vector.shape_cast %229 : vector<1x4x64xf32> to vector<4x64xf32>
    %231 = arith.addf %230, %228 : vector<4x64xf32>
    %232 = vector.broadcast %1 : vector<4x1xf32> to vector<4x64xf32>
    %233 = arith.addf %231, %232 : vector<4x64xf32>
    %c0_191 = arith.constant 0 : index
    %c0_192 = arith.constant 0 : index
    %c1152_193 = arith.constant 1152 : index
    %234 = vector.load %arg6[%c0_191, %c0_192, %c1152_193] : memref<1x4x2048xf32, #tpu.memory_space<vmem>>, vector<1x4x64xf32>
    %235 = vector.shape_cast %234 : vector<1x4x64xf32> to vector<4x64xf32>
    %236 = vector.shape_cast %233 : vector<4x64xf32> to vector<1x4x64xf32>
    tpu.vector_store %arg6[%c0_191, %c0_192, %c1152_193], %236 {strides = array<i32>} : memref<1x4x2048xf32, #tpu.memory_space<vmem>>, vector<1x4x64xf32>,
    %c0_194 = arith.constant 0 : index
    %c0_195 = arith.constant 0 : index
    %c19 = arith.constant 19 : index
    %c0_196 = arith.constant 0 : index
    %237 = vector.load %arg3[%c0_194, %c0_195, %c19, %c0_196] : memref<1x4x32x128xf32, #tpu.memory_space<vmem>>, vector<1x4x1x128xf32>
    %238 = vector.shape_cast %237 : vector<1x4x1x128xf32> to vector<4x128xf32>
    %cst_197 = arith.constant dense<0.000000e+00> : vector<4x64xf32>
    %239 = tpu.matmul %238, %8, %cst_197 {dimension_numbers = #tpu.dot_dimension_numbers<[1], [0], [0], [1], [0, 0, 1, 1], [], []>} : vector<4x128xf32>, vector<128x64xf32>, vector<4x64xf32> -> vector<4x64xf32>
    %cst_198 = arith.constant dense<0.000000e+00> : vector<4x64xf32>
    %240 = tpu.matmul %0, %239, %cst_198 {dimension_numbers = #tpu.dot_dimension_numbers<[1], [0], [0], [1], [0, 0, 1, 1], [], []>} : vector<4x4xf32>, vector<4x64xf32>, vector<4x64xf32> -> vector<4x64xf32>
    %c0_199 = arith.constant 0 : index
    %c0_200 = arith.constant 0 : index
    %c1216 = arith.constant 1216 : index
    %241 = vector.load %arg2[%c0_199, %c0_200, %c1216] : memref<1x4x2048xf32, #tpu.memory_space<vmem>>, vector<1x4x64xf32>
    %242 = vector.shape_cast %241 : vector<1x4x64xf32> to vector<4x64xf32>
    %243 = arith.addf %242, %240 : vector<4x64xf32>
    %244 = vector.broadcast %1 : vector<4x1xf32> to vector<4x64xf32>
    %245 = arith.addf %243, %244 : vector<4x64xf32>
    %c0_201 = arith.constant 0 : index
    %c0_202 = arith.constant 0 : index
    %c1216_203 = arith.constant 1216 : index
    %246 = vector.load %arg6[%c0_201, %c0_202, %c1216_203] : memref<1x4x2048xf32, #tpu.memory_space<vmem>>, vector<1x4x64xf32>
    %247 = vector.shape_cast %246 : vector<1x4x64xf32> to vector<4x64xf32>
    %248 = vector.shape_cast %245 : vector<4x64xf32> to vector<1x4x64xf32>
    tpu.vector_store %arg6[%c0_201, %c0_202, %c1216_203], %248 {strides = array<i32>} : memref<1x4x2048xf32, #tpu.memory_space<vmem>>, vector<1x4x64xf32>,
    %c0_204 = arith.constant 0 : index
    %c0_205 = arith.constant 0 : index
    %c20 = arith.constant 20 : index
    %c0_206 = arith.constant 0 : index
    %249 = vector.load %arg3[%c0_204, %c0_205, %c20, %c0_206] : memref<1x4x32x128xf32, #tpu.memory_space<vmem>>, vector<1x4x1x128xf32>
    %250 = vector.shape_cast %249 : vector<1x4x1x128xf32> to vector<4x128xf32>
    %cst_207 = arith.constant dense<0.000000e+00> : vector<4x64xf32>
    %251 = tpu.matmul %250, %8, %cst_207 {dimension_numbers = #tpu.dot_dimension_numbers<[1], [0], [0], [1], [0, 0, 1, 1], [], []>} : vector<4x128xf32>, vector<128x64xf32>, vector<4x64xf32> -> vector<4x64xf32>
    %cst_208 = arith.constant dense<0.000000e+00> : vector<4x64xf32>
    %252 = tpu.matmul %0, %251, %cst_208 {dimension_numbers = #tpu.dot_dimension_numbers<[1], [0], [0], [1], [0, 0, 1, 1], [], []>} : vector<4x4xf32>, vector<4x64xf32>, vector<4x64xf32> -> vector<4x64xf32>
    %c0_209 = arith.constant 0 : index
    %c0_210 = arith.constant 0 : index
    %c1280 = arith.constant 1280 : index
    %253 = vector.load %arg2[%c0_209, %c0_210, %c1280] : memref<1x4x2048xf32, #tpu.memory_space<vmem>>, vector<1x4x64xf32>
    %254 = vector.shape_cast %253 : vector<1x4x64xf32> to vector<4x64xf32>
    %255 = arith.addf %254, %252 : vector<4x64xf32>
    %256 = vector.broadcast %1 : vector<4x1xf32> to vector<4x64xf32>
    %257 = arith.addf %255, %256 : vector<4x64xf32>
    %c0_211 = arith.constant 0 : index
    %c0_212 = arith.constant 0 : index
    %c1280_213 = arith.constant 1280 : index
    %258 = vector.load %arg6[%c0_211, %c0_212, %c1280_213] : memref<1x4x2048xf32, #tpu.memory_space<vmem>>, vector<1x4x64xf32>
    %259 = vector.shape_cast %258 : vector<1x4x64xf32> to vector<4x64xf32>
    %260 = vector.shape_cast %257 : vector<4x64xf32> to vector<1x4x64xf32>
    tpu.vector_store %arg6[%c0_211, %c0_212, %c1280_213], %260 {strides = array<i32>} : memref<1x4x2048xf32, #tpu.memory_space<vmem>>, vector<1x4x64xf32>,
    %c0_214 = arith.constant 0 : index
    %c0_215 = arith.constant 0 : index
    %c21 = arith.constant 21 : index
    %c0_216 = arith.constant 0 : index
    %261 = vector.load %arg3[%c0_214, %c0_215, %c21, %c0_216] : memref<1x4x32x128xf32, #tpu.memory_space<vmem>>, vector<1x4x1x128xf32>
    %262 = vector.shape_cast %261 : vector<1x4x1x128xf32> to vector<4x128xf32>
    %cst_217 = arith.constant dense<0.000000e+00> : vector<4x64xf32>
    %263 = tpu.matmul %262, %8, %cst_217 {dimension_numbers = #tpu.dot_dimension_numbers<[1], [0], [0], [1], [0, 0, 1, 1], [], []>} : vector<4x128xf32>, vector<128x64xf32>, vector<4x64xf32> -> vector<4x64xf32>
    %cst_218 = arith.constant dense<0.000000e+00> : vector<4x64xf32>
    %264 = tpu.matmul %0, %263, %cst_218 {dimension_numbers = #tpu.dot_dimension_numbers<[1], [0], [0], [1], [0, 0, 1, 1], [], []>} : vector<4x4xf32>, vector<4x64xf32>, vector<4x64xf32> -> vector<4x64xf32>
    %c0_219 = arith.constant 0 : index
    %c0_220 = arith.constant 0 : index
    %c1344 = arith.constant 1344 : index
    %265 = vector.load %arg2[%c0_219, %c0_220, %c1344] : memref<1x4x2048xf32, #tpu.memory_space<vmem>>, vector<1x4x64xf32>
    %266 = vector.shape_cast %265 : vector<1x4x64xf32> to vector<4x64xf32>
    %267 = arith.addf %266, %264 : vector<4x64xf32>
    %268 = vector.broadcast %1 : vector<4x1xf32> to vector<4x64xf32>
    %269 = arith.addf %267, %268 : vector<4x64xf32>
    %c0_221 = arith.constant 0 : index
    %c0_222 = arith.constant 0 : index
    %c1344_223 = arith.constant 1344 : index
    %270 = vector.load %arg6[%c0_221, %c0_222, %c1344_223] : memref<1x4x2048xf32, #tpu.memory_space<vmem>>, vector<1x4x64xf32>
    %271 = vector.shape_cast %270 : vector<1x4x64xf32> to vector<4x64xf32>
    %272 = vector.shape_cast %269 : vector<4x64xf32> to vector<1x4x64xf32>
    tpu.vector_store %arg6[%c0_221, %c0_222, %c1344_223], %272 {strides = array<i32>} : memref<1x4x2048xf32, #tpu.memory_space<vmem>>, vector<1x4x64xf32>,
    %c0_224 = arith.constant 0 : index
    %c0_225 = arith.constant 0 : index
    %c22 = arith.constant 22 : index
    %c0_226 = arith.constant 0 : index
    %273 = vector.load %arg3[%c0_224, %c0_225, %c22, %c0_226] : memref<1x4x32x128xf32, #tpu.memory_space<vmem>>, vector<1x4x1x128xf32>
    %274 = vector.shape_cast %273 : vector<1x4x1x128xf32> to vector<4x128xf32>
    %cst_227 = arith.constant dense<0.000000e+00> : vector<4x64xf32>
    %275 = tpu.matmul %274, %8, %cst_227 {dimension_numbers = #tpu.dot_dimension_numbers<[1], [0], [0], [1], [0, 0, 1, 1], [], []>} : vector<4x128xf32>, vector<128x64xf32>, vector<4x64xf32> -> vector<4x64xf32>
    %cst_228 = arith.constant dense<0.000000e+00> : vector<4x64xf32>
    %276 = tpu.matmul %0, %275, %cst_228 {dimension_numbers = #tpu.dot_dimension_numbers<[1], [0], [0], [1], [0, 0, 1, 1], [], []>} : vector<4x4xf32>, vector<4x64xf32>, vector<4x64xf32> -> vector<4x64xf32>
    %c0_229 = arith.constant 0 : index
    %c0_230 = arith.constant 0 : index
    %c1408 = arith.constant 1408 : index
    %277 = vector.load %arg2[%c0_229, %c0_230, %c1408] : memref<1x4x2048xf32, #tpu.memory_space<vmem>>, vector<1x4x64xf32>
    %278 = vector.shape_cast %277 : vector<1x4x64xf32> to vector<4x64xf32>
    %279 = arith.addf %278, %276 : vector<4x64xf32>
    %280 = vector.broadcast %1 : vector<4x1xf32> to vector<4x64xf32>
    %281 = arith.addf %279, %280 : vector<4x64xf32>
    %c0_231 = arith.constant 0 : index
    %c0_232 = arith.constant 0 : index
    %c1408_233 = arith.constant 1408 : index
    %282 = vector.load %arg6[%c0_231, %c0_232, %c1408_233] : memref<1x4x2048xf32, #tpu.memory_space<vmem>>, vector<1x4x64xf32>
    %283 = vector.shape_cast %282 : vector<1x4x64xf32> to vector<4x64xf32>
    %284 = vector.shape_cast %281 : vector<4x64xf32> to vector<1x4x64xf32>
    tpu.vector_store %arg6[%c0_231, %c0_232, %c1408_233], %284 {strides = array<i32>} : memref<1x4x2048xf32, #tpu.memory_space<vmem>>, vector<1x4x64xf32>,
    %c0_234 = arith.constant 0 : index
    %c0_235 = arith.constant 0 : index
    %c23 = arith.constant 23 : index
    %c0_236 = arith.constant 0 : index
    %285 = vector.load %arg3[%c0_234, %c0_235, %c23, %c0_236] : memref<1x4x32x128xf32, #tpu.memory_space<vmem>>, vector<1x4x1x128xf32>
    %286 = vector.shape_cast %285 : vector<1x4x1x128xf32> to vector<4x128xf32>
    %cst_237 = arith.constant dense<0.000000e+00> : vector<4x64xf32>
    %287 = tpu.matmul %286, %8, %cst_237 {dimension_numbers = #tpu.dot_dimension_numbers<[1], [0], [0], [1], [0, 0, 1, 1], [], []>} : vector<4x128xf32>, vector<128x64xf32>, vector<4x64xf32> -> vector<4x64xf32>
    %cst_238 = arith.constant dense<0.000000e+00> : vector<4x64xf32>
    %288 = tpu.matmul %0, %287, %cst_238 {dimension_numbers = #tpu.dot_dimension_numbers<[1], [0], [0], [1], [0, 0, 1, 1], [], []>} : vector<4x4xf32>, vector<4x64xf32>, vector<4x64xf32> -> vector<4x64xf32>
    %c0_239 = arith.constant 0 : index
    %c0_240 = arith.constant 0 : index
    %c1472 = arith.constant 1472 : index
    %289 = vector.load %arg2[%c0_239, %c0_240, %c1472] : memref<1x4x2048xf32, #tpu.memory_space<vmem>>, vector<1x4x64xf32>
    %290 = vector.shape_cast %289 : vector<1x4x64xf32> to vector<4x64xf32>
    %291 = arith.addf %290, %288 : vector<4x64xf32>
    %292 = vector.broadcast %1 : vector<4x1xf32> to vector<4x64xf32>
    %293 = arith.addf %291, %292 : vector<4x64xf32>
    %c0_241 = arith.constant 0 : index
    %c0_242 = arith.constant 0 : index
    %c1472_243 = arith.constant 1472 : index
    %294 = vector.load %arg6[%c0_241, %c0_242, %c1472_243] : memref<1x4x2048xf32, #tpu.memory_space<vmem>>, vector<1x4x64xf32>
    %295 = vector.shape_cast %294 : vector<1x4x64xf32> to vector<4x64xf32>
    %296 = vector.shape_cast %293 : vector<4x64xf32> to vector<1x4x64xf32>
    tpu.vector_store %arg6[%c0_241, %c0_242, %c1472_243], %296 {strides = array<i32>} : memref<1x4x2048xf32, #tpu.memory_space<vmem>>, vector<1x4x64xf32>,
    %c0_244 = arith.constant 0 : index
    %c0_245 = arith.constant 0 : index
    %c24 = arith.constant 24 : index
    %c0_246 = arith.constant 0 : index
    %297 = vector.load %arg3[%c0_244, %c0_245, %c24, %c0_246] : memref<1x4x32x128xf32, #tpu.memory_space<vmem>>, vector<1x4x1x128xf32>
    %298 = vector.shape_cast %297 : vector<1x4x1x128xf32> to vector<4x128xf32>
    %cst_247 = arith.constant dense<0.000000e+00> : vector<4x64xf32>
    %299 = tpu.matmul %298, %8, %cst_247 {dimension_numbers = #tpu.dot_dimension_numbers<[1], [0], [0], [1], [0, 0, 1, 1], [], []>} : vector<4x128xf32>, vector<128x64xf32>, vector<4x64xf32> -> vector<4x64xf32>
    %cst_248 = arith.constant dense<0.000000e+00> : vector<4x64xf32>
    %300 = tpu.matmul %0, %299, %cst_248 {dimension_numbers = #tpu.dot_dimension_numbers<[1], [0], [0], [1], [0, 0, 1, 1], [], []>} : vector<4x4xf32>, vector<4x64xf32>, vector<4x64xf32> -> vector<4x64xf32>
    %c0_249 = arith.constant 0 : index
    %c0_250 = arith.constant 0 : index
    %c1536 = arith.constant 1536 : index
    %301 = vector.load %arg2[%c0_249, %c0_250, %c1536] : memref<1x4x2048xf32, #tpu.memory_space<vmem>>, vector<1x4x64xf32>
    %302 = vector.shape_cast %301 : vector<1x4x64xf32> to vector<4x64xf32>
    %303 = arith.addf %302, %300 : vector<4x64xf32>
    %304 = vector.broadcast %1 : vector<4x1xf32> to vector<4x64xf32>
    %305 = arith.addf %303, %304 : vector<4x64xf32>
    %c0_251 = arith.constant 0 : index
    %c0_252 = arith.constant 0 : index
    %c1536_253 = arith.constant 1536 : index
    %306 = vector.load %arg6[%c0_251, %c0_252, %c1536_253] : memref<1x4x2048xf32, #tpu.memory_space<vmem>>, vector<1x4x64xf32>
    %307 = vector.shape_cast %306 : vector<1x4x64xf32> to vector<4x64xf32>
    %308 = vector.shape_cast %305 : vector<4x64xf32> to vector<1x4x64xf32>
    tpu.vector_store %arg6[%c0_251, %c0_252, %c1536_253], %308 {strides = array<i32>} : memref<1x4x2048xf32, #tpu.memory_space<vmem>>, vector<1x4x64xf32>,
    %c0_254 = arith.constant 0 : index
    %c0_255 = arith.constant 0 : index
    %c25 = arith.constant 25 : index
    %c0_256 = arith.constant 0 : index
    %309 = vector.load %arg3[%c0_254, %c0_255, %c25, %c0_256] : memref<1x4x32x128xf32, #tpu.memory_space<vmem>>, vector<1x4x1x128xf32>
    %310 = vector.shape_cast %309 : vector<1x4x1x128xf32> to vector<4x128xf32>
    %cst_257 = arith.constant dense<0.000000e+00> : vector<4x64xf32>
    %311 = tpu.matmul %310, %8, %cst_257 {dimension_numbers = #tpu.dot_dimension_numbers<[1], [0], [0], [1], [0, 0, 1, 1], [], []>} : vector<4x128xf32>, vector<128x64xf32>, vector<4x64xf32> -> vector<4x64xf32>
    %cst_258 = arith.constant dense<0.000000e+00> : vector<4x64xf32>
    %312 = tpu.matmul %0, %311, %cst_258 {dimension_numbers = #tpu.dot_dimension_numbers<[1], [0], [0], [1], [0, 0, 1, 1], [], []>} : vector<4x4xf32>, vector<4x64xf32>, vector<4x64xf32> -> vector<4x64xf32>
    %c0_259 = arith.constant 0 : index
    %c0_260 = arith.constant 0 : index
    %c1600 = arith.constant 1600 : index
    %313 = vector.load %arg2[%c0_259, %c0_260, %c1600] : memref<1x4x2048xf32, #tpu.memory_space<vmem>>, vector<1x4x64xf32>
    %314 = vector.shape_cast %313 : vector<1x4x64xf32> to vector<4x64xf32>
    %315 = arith.addf %314, %312 : vector<4x64xf32>
    %316 = vector.broadcast %1 : vector<4x1xf32> to vector<4x64xf32>
    %317 = arith.addf %315, %316 : vector<4x64xf32>
    %c0_261 = arith.constant 0 : index
    %c0_262 = arith.constant 0 : index
    %c1600_263 = arith.constant 1600 : index
    %318 = vector.load %arg6[%c0_261, %c0_262, %c1600_263] : memref<1x4x2048xf32, #tpu.memory_space<vmem>>, vector<1x4x64xf32>
    %319 = vector.shape_cast %318 : vector<1x4x64xf32> to vector<4x64xf32>
    %320 = vector.shape_cast %317 : vector<4x64xf32> to vector<1x4x64xf32>
    tpu.vector_store %arg6[%c0_261, %c0_262, %c1600_263], %320 {strides = array<i32>} : memref<1x4x2048xf32, #tpu.memory_space<vmem>>, vector<1x4x64xf32>,
    %c0_264 = arith.constant 0 : index
    %c0_265 = arith.constant 0 : index
    %c26 = arith.constant 26 : index
    %c0_266 = arith.constant 0 : index
    %321 = vector.load %arg3[%c0_264, %c0_265, %c26, %c0_266] : memref<1x4x32x128xf32, #tpu.memory_space<vmem>>, vector<1x4x1x128xf32>
    %322 = vector.shape_cast %321 : vector<1x4x1x128xf32> to vector<4x128xf32>
    %cst_267 = arith.constant dense<0.000000e+00> : vector<4x64xf32>
    %323 = tpu.matmul %322, %8, %cst_267 {dimension_numbers = #tpu.dot_dimension_numbers<[1], [0], [0], [1], [0, 0, 1, 1], [], []>} : vector<4x128xf32>, vector<128x64xf32>, vector<4x64xf32> -> vector<4x64xf32>
    %cst_268 = arith.constant dense<0.000000e+00> : vector<4x64xf32>
    %324 = tpu.matmul %0, %323, %cst_268 {dimension_numbers = #tpu.dot_dimension_numbers<[1], [0], [0], [1], [0, 0, 1, 1], [], []>} : vector<4x4xf32>, vector<4x64xf32>, vector<4x64xf32> -> vector<4x64xf32>
    %c0_269 = arith.constant 0 : index
    %c0_270 = arith.constant 0 : index
    %c1664 = arith.constant 1664 : index
    %325 = vector.load %arg2[%c0_269, %c0_270, %c1664] : memref<1x4x2048xf32, #tpu.memory_space<vmem>>, vector<1x4x64xf32>
    %326 = vector.shape_cast %325 : vector<1x4x64xf32> to vector<4x64xf32>
    %327 = arith.addf %326, %324 : vector<4x64xf32>
    %328 = vector.broadcast %1 : vector<4x1xf32> to vector<4x64xf32>
    %329 = arith.addf %327, %328 : vector<4x64xf32>
    %c0_271 = arith.constant 0 : index
    %c0_272 = arith.constant 0 : index
    %c1664_273 = arith.constant 1664 : index
    %330 = vector.load %arg6[%c0_271, %c0_272, %c1664_273] : memref<1x4x2048xf32, #tpu.memory_space<vmem>>, vector<1x4x64xf32>
    %331 = vector.shape_cast %330 : vector<1x4x64xf32> to vector<4x64xf32>
    %332 = vector.shape_cast %329 : vector<4x64xf32> to vector<1x4x64xf32>
    tpu.vector_store %arg6[%c0_271, %c0_272, %c1664_273], %332 {strides = array<i32>} : memref<1x4x2048xf32, #tpu.memory_space<vmem>>, vector<1x4x64xf32>,
    %c0_274 = arith.constant 0 : index
    %c0_275 = arith.constant 0 : index
    %c27 = arith.constant 27 : index
    %c0_276 = arith.constant 0 : index
    %333 = vector.load %arg3[%c0_274, %c0_275, %c27, %c0_276] : memref<1x4x32x128xf32, #tpu.memory_space<vmem>>, vector<1x4x1x128xf32>
    %334 = vector.shape_cast %333 : vector<1x4x1x128xf32> to vector<4x128xf32>
    %cst_277 = arith.constant dense<0.000000e+00> : vector<4x64xf32>
    %335 = tpu.matmul %334, %8, %cst_277 {dimension_numbers = #tpu.dot_dimension_numbers<[1], [0], [0], [1], [0, 0, 1, 1], [], []>} : vector<4x128xf32>, vector<128x64xf32>, vector<4x64xf32> -> vector<4x64xf32>
    %cst_278 = arith.constant dense<0.000000e+00> : vector<4x64xf32>
    %336 = tpu.matmul %0, %335, %cst_278 {dimension_numbers = #tpu.dot_dimension_numbers<[1], [0], [0], [1], [0, 0, 1, 1], [], []>} : vector<4x4xf32>, vector<4x64xf32>, vector<4x64xf32> -> vector<4x64xf32>
    %c0_279 = arith.constant 0 : index
    %c0_280 = arith.constant 0 : index
    %c1728 = arith.constant 1728 : index
    %337 = vector.load %arg2[%c0_279, %c0_280, %c1728] : memref<1x4x2048xf32, #tpu.memory_space<vmem>>, vector<1x4x64xf32>
    %338 = vector.shape_cast %337 : vector<1x4x64xf32> to vector<4x64xf32>
    %339 = arith.addf %338, %336 : vector<4x64xf32>
    %340 = vector.broadcast %1 : vector<4x1xf32> to vector<4x64xf32>
    %341 = arith.addf %339, %340 : vector<4x64xf32>
    %c0_281 = arith.constant 0 : index
    %c0_282 = arith.constant 0 : index
    %c1728_283 = arith.constant 1728 : index
    %342 = vector.load %arg6[%c0_281, %c0_282, %c1728_283] : memref<1x4x2048xf32, #tpu.memory_space<vmem>>, vector<1x4x64xf32>
    %343 = vector.shape_cast %342 : vector<1x4x64xf32> to vector<4x64xf32>
    %344 = vector.shape_cast %341 : vector<4x64xf32> to vector<1x4x64xf32>
    tpu.vector_store %arg6[%c0_281, %c0_282, %c1728_283], %344 {strides = array<i32>} : memref<1x4x2048xf32, #tpu.memory_space<vmem>>, vector<1x4x64xf32>,
    %c0_284 = arith.constant 0 : index
    %c0_285 = arith.constant 0 : index
    %c28 = arith.constant 28 : index
    %c0_286 = arith.constant 0 : index
    %345 = vector.load %arg3[%c0_284, %c0_285, %c28, %c0_286] : memref<1x4x32x128xf32, #tpu.memory_space<vmem>>, vector<1x4x1x128xf32>
    %346 = vector.shape_cast %345 : vector<1x4x1x128xf32> to vector<4x128xf32>
    %cst_287 = arith.constant dense<0.000000e+00> : vector<4x64xf32>
    %347 = tpu.matmul %346, %8, %cst_287 {dimension_numbers = #tpu.dot_dimension_numbers<[1], [0], [0], [1], [0, 0, 1, 1], [], []>} : vector<4x128xf32>, vector<128x64xf32>, vector<4x64xf32> -> vector<4x64xf32>
    %cst_288 = arith.constant dense<0.000000e+00> : vector<4x64xf32>
    %348 = tpu.matmul %0, %347, %cst_288 {dimension_numbers = #tpu.dot_dimension_numbers<[1], [0], [0], [1], [0, 0, 1, 1], [], []>} : vector<4x4xf32>, vector<4x64xf32>, vector<4x64xf32> -> vector<4x64xf32>
    %c0_289 = arith.constant 0 : index
    %c0_290 = arith.constant 0 : index
    %c1792 = arith.constant 1792 : index
    %349 = vector.load %arg2[%c0_289, %c0_290, %c1792] : memref<1x4x2048xf32, #tpu.memory_space<vmem>>, vector<1x4x64xf32>
    %350 = vector.shape_cast %349 : vector<1x4x64xf32> to vector<4x64xf32>
    %351 = arith.addf %350, %348 : vector<4x64xf32>
    %352 = vector.broadcast %1 : vector<4x1xf32> to vector<4x64xf32>
    %353 = arith.addf %351, %352 : vector<4x64xf32>
    %c0_291 = arith.constant 0 : index
    %c0_292 = arith.constant 0 : index
    %c1792_293 = arith.constant 1792 : index
    %354 = vector.load %arg6[%c0_291, %c0_292, %c1792_293] : memref<1x4x2048xf32, #tpu.memory_space<vmem>>, vector<1x4x64xf32>
    %355 = vector.shape_cast %354 : vector<1x4x64xf32> to vector<4x64xf32>
    %356 = vector.shape_cast %353 : vector<4x64xf32> to vector<1x4x64xf32>
    tpu.vector_store %arg6[%c0_291, %c0_292, %c1792_293], %356 {strides = array<i32>} : memref<1x4x2048xf32, #tpu.memory_space<vmem>>, vector<1x4x64xf32>,
    %c0_294 = arith.constant 0 : index
    %c0_295 = arith.constant 0 : index
    %c29 = arith.constant 29 : index
    %c0_296 = arith.constant 0 : index
    %357 = vector.load %arg3[%c0_294, %c0_295, %c29, %c0_296] : memref<1x4x32x128xf32, #tpu.memory_space<vmem>>, vector<1x4x1x128xf32>
    %358 = vector.shape_cast %357 : vector<1x4x1x128xf32> to vector<4x128xf32>
    %cst_297 = arith.constant dense<0.000000e+00> : vector<4x64xf32>
    %359 = tpu.matmul %358, %8, %cst_297 {dimension_numbers = #tpu.dot_dimension_numbers<[1], [0], [0], [1], [0, 0, 1, 1], [], []>} : vector<4x128xf32>, vector<128x64xf32>, vector<4x64xf32> -> vector<4x64xf32>
    %cst_298 = arith.constant dense<0.000000e+00> : vector<4x64xf32>
    %360 = tpu.matmul %0, %359, %cst_298 {dimension_numbers = #tpu.dot_dimension_numbers<[1], [0], [0], [1], [0, 0, 1, 1], [], []>} : vector<4x4xf32>, vector<4x64xf32>, vector<4x64xf32> -> vector<4x64xf32>
    %c0_299 = arith.constant 0 : index
    %c0_300 = arith.constant 0 : index
    %c1856 = arith.constant 1856 : index
    %361 = vector.load %arg2[%c0_299, %c0_300, %c1856] : memref<1x4x2048xf32, #tpu.memory_space<vmem>>, vector<1x4x64xf32>
    %362 = vector.shape_cast %361 : vector<1x4x64xf32> to vector<4x64xf32>
    %363 = arith.addf %362, %360 : vector<4x64xf32>
    %364 = vector.broadcast %1 : vector<4x1xf32> to vector<4x64xf32>
    %365 = arith.addf %363, %364 : vector<4x64xf32>
    %c0_301 = arith.constant 0 : index
    %c0_302 = arith.constant 0 : index
    %c1856_303 = arith.constant 1856 : index
    %366 = vector.load %arg6[%c0_301, %c0_302, %c1856_303] : memref<1x4x2048xf32, #tpu.memory_space<vmem>>, vector<1x4x64xf32>
    %367 = vector.shape_cast %366 : vector<1x4x64xf32> to vector<4x64xf32>
    %368 = vector.shape_cast %365 : vector<4x64xf32> to vector<1x4x64xf32>
    tpu.vector_store %arg6[%c0_301, %c0_302, %c1856_303], %368 {strides = array<i32>} : memref<1x4x2048xf32, #tpu.memory_space<vmem>>, vector<1x4x64xf32>,
    %c0_304 = arith.constant 0 : index
    %c0_305 = arith.constant 0 : index
    %c30 = arith.constant 30 : index
    %c0_306 = arith.constant 0 : index
    %369 = vector.load %arg3[%c0_304, %c0_305, %c30, %c0_306] : memref<1x4x32x128xf32, #tpu.memory_space<vmem>>, vector<1x4x1x128xf32>
    %370 = vector.shape_cast %369 : vector<1x4x1x128xf32> to vector<4x128xf32>
    %cst_307 = arith.constant dense<0.000000e+00> : vector<4x64xf32>
    %371 = tpu.matmul %370, %8, %cst_307 {dimension_numbers = #tpu.dot_dimension_numbers<[1], [0], [0], [1], [0, 0, 1, 1], [], []>} : vector<4x128xf32>, vector<128x64xf32>, vector<4x64xf32> -> vector<4x64xf32>
    %cst_308 = arith.constant dense<0.000000e+00> : vector<4x64xf32>
    %372 = tpu.matmul %0, %371, %cst_308 {dimension_numbers = #tpu.dot_dimension_numbers<[1], [0], [0], [1], [0, 0, 1, 1], [], []>} : vector<4x4xf32>, vector<4x64xf32>, vector<4x64xf32> -> vector<4x64xf32>
    %c0_309 = arith.constant 0 : index
    %c0_310 = arith.constant 0 : index
    %c1920 = arith.constant 1920 : index
    %373 = vector.load %arg2[%c0_309, %c0_310, %c1920] : memref<1x4x2048xf32, #tpu.memory_space<vmem>>, vector<1x4x64xf32>
    %374 = vector.shape_cast %373 : vector<1x4x64xf32> to vector<4x64xf32>
    %375 = arith.addf %374, %372 : vector<4x64xf32>
    %376 = vector.broadcast %1 : vector<4x1xf32> to vector<4x64xf32>
    %377 = arith.addf %375, %376 : vector<4x64xf32>
    %c0_311 = arith.constant 0 : index
    %c0_312 = arith.constant 0 : index
    %c1920_313 = arith.constant 1920 : index
    %378 = vector.load %arg6[%c0_311, %c0_312, %c1920_313] : memref<1x4x2048xf32, #tpu.memory_space<vmem>>, vector<1x4x64xf32>
    %379 = vector.shape_cast %378 : vector<1x4x64xf32> to vector<4x64xf32>
    %380 = vector.shape_cast %377 : vector<4x64xf32> to vector<1x4x64xf32>
    tpu.vector_store %arg6[%c0_311, %c0_312, %c1920_313], %380 {strides = array<i32>} : memref<1x4x2048xf32, #tpu.memory_space<vmem>>, vector<1x4x64xf32>,
    %c0_314 = arith.constant 0 : index
    %c0_315 = arith.constant 0 : index
    %c31 = arith.constant 31 : index
    %c0_316 = arith.constant 0 : index
    %381 = vector.load %arg3[%c0_314, %c0_315, %c31, %c0_316] : memref<1x4x32x128xf32, #tpu.memory_space<vmem>>, vector<1x4x1x128xf32>
    %382 = vector.shape_cast %381 : vector<1x4x1x128xf32> to vector<4x128xf32>
    %cst_317 = arith.constant dense<0.000000e+00> : vector<4x64xf32>
    %383 = tpu.matmul %382, %8, %cst_317 {dimension_numbers = #tpu.dot_dimension_numbers<[1], [0], [0], [1], [0, 0, 1, 1], [], []>} : vector<4x128xf32>, vector<128x64xf32>, vector<4x64xf32> -> vector<4x64xf32>
    %cst_318 = arith.constant dense<0.000000e+00> : vector<4x64xf32>
    %384 = tpu.matmul %0, %383, %cst_318 {dimension_numbers = #tpu.dot_dimension_numbers<[1], [0], [0], [1], [0, 0, 1, 1], [], []>} : vector<4x4xf32>, vector<4x64xf32>, vector<4x64xf32> -> vector<4x64xf32>
    %c0_319 = arith.constant 0 : index
    %c0_320 = arith.constant 0 : index
    %c1984 = arith.constant 1984 : index
    %385 = vector.load %arg2[%c0_319, %c0_320, %c1984] : memref<1x4x2048xf32, #tpu.memory_space<vmem>>, vector<1x4x64xf32>
    %386 = vector.shape_cast %385 : vector<1x4x64xf32> to vector<4x64xf32>
    %387 = arith.addf %386, %384 : vector<4x64xf32>
    %388 = vector.broadcast %1 : vector<4x1xf32> to vector<4x64xf32>
    %389 = arith.addf %387, %388 : vector<4x64xf32>
    %c0_321 = arith.constant 0 : index
    %c0_322 = arith.constant 0 : index
    %c1984_323 = arith.constant 1984 : index
    %390 = vector.load %arg6[%c0_321, %c0_322, %c1984_323] : memref<1x4x2048xf32, #tpu.memory_space<vmem>>, vector<1x4x64xf32>
    %391 = vector.shape_cast %390 : vector<1x4x64xf32> to vector<4x64xf32>
    %392 = vector.shape_cast %389 : vector<4x64xf32> to vector<1x4x64xf32>
    tpu.vector_store %arg6[%c0_321, %c0_322, %c1984_323], %392 {strides = array<i32>} : memref<1x4x2048xf32, #tpu.memory_space<vmem>>, vector<1x4x64xf32>,
    return
  }
  func.func @transform_0(%arg0: i32, %arg1: i32) -> (i32, i32, i32) {
    %c0_i32 = arith.constant 0 : i32
    %c0_i32_0 = arith.constant 0 : i32
    return %arg0, %c0_i32, %arg1 : i32, i32, i32
  }
  func.func @transform_1(%arg0: i32, %arg1: i32) -> (i32, i32, i32, i32) {
    %c0_i32 = arith.constant 0 : i32
    %c0_i32_0 = arith.constant 0 : i32
    %c0_i32_1 = arith.constant 0 : i32
    return %arg0, %c0_i32, %arg1, %c0_i32_0 : i32, i32, i32, i32
  }
  func.func @transform_2(%arg0: i32, %arg1: i32) -> (i32, i32) {
    %c0_i32 = arith.constant 0 : i32
    %c0_i32_0 = arith.constant 0 : i32
    %c0_i32_1 = arith.constant 0 : i32
    return %c0_i32, %c0_i32_0 : i32, i32
  }
  func.func @transform_3(%arg0: i32, %arg1: i32) -> (i32, i32) {
    %c0_i32 = arith.constant 0 : i32
    %c0_i32_0 = arith.constant 0 : i32
    %c0_i32_1 = arith.constant 0 : i32
    return %c0_i32, %c0_i32_0 : i32, i32
  }
  func.func @transform_4(%arg0: i32, %arg1: i32) -> (i32, i32, i32) {
    %c0_i32 = arith.constant 0 : i32
    %c0_i32_0 = arith.constant 0 : i32
    return %arg0, %c0_i32, %arg1 : i32, i32, i32
  }
}

</mosaic_0001>

<llo_original>
// kernel: tpu_custom_call.1
$region0: #{tpu_custom_call.1}
  #allocation0 [shape = 'u32[]', space=smem, size = 0x4, offset = 0x4, fixed_abs, tag = 'smem constant byte address 0x4 - core index']
  #allocation1 [shape = 'u32[144,128]{1,0:T(1,128)}', space=vmem, size = 0x12000, scoped, tag = 'internal scratch']
  #allocation8 [shape = 's32[]', space=sflag, size = 0x4, offset = 0, fixed_abs, tag = 'sflag constant byte address 0x0 - dummy sync flag']
  %s0 = inlined_call_operand.hbm [shape: f32[2,4,4096], index: 0, kind: input, shape index: {}]
  %s1 = inlined_call_operand.hbm [shape: f32[2,4,64,256], index: 1, kind: input, shape index: {}]
  %s2 = inlined_call_operand.vmem [shape: f32[4,4], index: 2, kind: input, shape index: {}]
  %s3 = inlined_call_operand.vmem [shape: f32[4,1], index: 3, kind: input, shape index: {}]
  %s4 = inlined_call_operand.hbm [shape: f32[2,4,4096], index: 4, kind: output, shape index: {}]
  %s5 = sld [smem:[#allocation0]]
  $region57: #{tpu_custom_call.1} parent=0
    _
  %s7 = ssub.s32 1, %s5
  %s8 = scalar_select 0, %s7, %s5
  $region1: #{tpu_custom_call.1} parent=0
    #allocation2 [shape = 'u8[65536]{0}', space=vmem, size = 0x10000, scoped, tag = 'input window, operand 0']
    #allocation3 [shape = 's32[2]{0}', space=sflag, size = 0x8, scoped, tag = 'scoped memory for tpu_custom_call.1']
    #allocation4 [shape = 's32[2]{0}', space=sflag, size = 0x8, scoped, tag = 'scoped memory for tpu_custom_call.1']
    #allocation5 [shape = 'u8[131072]{0}', space=vmem, size = 0x20000, scoped, tag = 'input window, operand 1']
    #allocation6 [shape = 's32[2]{0}', space=sflag, size = 0x8, scoped, tag = 'scoped memory for tpu_custom_call.1']
    #allocation7 [shape = 'u8[65536]{0}', space=vmem, size = 0x10000, scoped, tag = 'output window, operand 0']
    %9 = vsyncpa [#allocation3], 0
    %s10 = scalar_lea.sflag [#allocation3], 1
    %11 = vsyncpa %s10, 0
    %12 = vsyncpa [#allocation6], 0
    %s13 = scalar_lea.sflag [#allocation6], 1
    %14 = vsyncpa %s13, 0
    %15 = vsyncpa [#allocation4], 0
    %s16 = scalar_lea.sflag [#allocation4], 1
    %17 = vsyncpa %s16, 0
    loop: start=0, step=1, limit=6
    $region2: #{tpu_custom_call.1} parent=1 // loop_pre_header
      _
    $region3: #{tpu_custom_call.1} parent=1 // loop_header
      %s19 = sphi 0, %s23
      %p20 = scmp.ge.s32.totalorder %s19, 6
      %s26 = sphi 0, %s38
      %s27 = sphi 0, %s34
      %s28 = sphi 0, %s26
      %s29 = sphi 0, %s27
      %s30 = sphi 0, %s28
      %s31 = sphi 0, %s29
      %s43 = sphi 0, %s45
      %s46 = sphi 0, %s43
      %s47 = sphi 0, %s46
      %s63 = sphi 0, %s47
      %s71 = sphi 0, %s73
      %s74 = sphi 0, %s71
      %s75 = sphi 0, %s74
      %s91 = sphi 0, %s75
      %s95 = sphi 0, %s95
      %s97 = sphi 0, %s95
      %s98 = sphi 0, %s97
      %s112 = sphi 0, %s98
      %s116 = sphi 0, %s116
      %s118 = sphi 0, %s116
      %s119 = sphi 0, %s118
      %s133 = sphi 0, %s119
      %s141 = sphi 0, %s143
      %s144 = sphi 0, %s141
      %s145 = sphi 0, %s144
      %s161 = sphi 0, %s145
    $region4: #{tpu_custom_call.1} parent=1 // loop_header_branch
      %22 = sbr.rel (%p20) target = $region8
    $region5: #{tpu_custom_call.1} parent=1 // loop_body
      %s24 = ssub.s32 %s19, 1
      %s25 = ssub.s32 %s19, 2
      %s32 = sadd.s32 1, %s27
      %p33 = scmp.ge.s32.totalorder %s32, 2
      %s34 = scalar_select %p33, 0, %s32
      %s35 = sadd.s32 1, %s26
      %s36 = scalar_select %p33, %s35, %s26
      %p37 = scmp.ge.s32.totalorder %s36, 2
      %s38 = scalar_select %p37, 0, %s36
      %s39 = ssub.s32 %s26, %s38
      %s40 = ssub.s32 %s27, %s34
      %s41 = sor.u32 %s39, %s40
      %p42 = scmp.eq.s32.totalorder %s41, 0
      %s44 = sadd.s32 %s43, 1
      %s45 = scalar_select %p42, %s43, %s44
      %p48 = pneg %p42
      %p49 = scmp.eq.s32.totalorder %s19, 3
      %p50 = por %p48, %p49
      %p51 = scmp.ne.s32.totalorder %s43, %s46
      %p52 = scmp.eq.s32.totalorder %s19, 0
      %p53 = por %p51, %p52
      %p54 = scmp.ne.s32.totalorder %s43, %s46
      %p55 = scmp.eq.s32.totalorder %s24, 3
      %p56 = por %p54, %p55
      %p57 = scmp.ne.s32.totalorder %s46, %s47
      %p58 = scmp.eq.s32.totalorder %s24, 0
      %p59 = por %p57, %p58
      %p60 = scmp.ne.s32.totalorder %s46, %s47
      %p61 = scmp.eq.s32.totalorder %s25, 3
      %p62 = por %p60, %p61
      %p64 = scmp.ne.s32.totalorder %s47, %s63
      %p65 = scmp.eq.s32.totalorder %s25, 0
      %p66 = por %p64, %p65
      %s67 = ssub.s32 %s26, %s38
      %s68 = ssub.s32 %s27, %s34
      %s69 = sor.u32 %s67, %s68
      %p70 = scmp.eq.s32.totalorder %s69, 0
      %s72 = sadd.s32 %s71, 1
      %s73 = scalar_select %p70, %s71, %s72
      %p76 = pneg %p70
      %p77 = scmp.eq.s32.totalorder %s19, 3
      %p78 = por %p76, %p77
      %p79 = scmp.ne.s32.totalorder %s71, %s74
      %p80 = scmp.eq.s32.totalorder %s19, 0
      %p81 = por %p79, %p80
      %p82 = scmp.ne.s32.totalorder %s71, %s74
      %p83 = scmp.eq.s32.totalorder %s24, 3
      %p84 = por %p82, %p83
      %p85 = scmp.ne.s32.totalorder %s74, %s75
      %p86 = scmp.eq.s32.totalorder %s24, 0
      %p87 = por %p85, %p86
      %p88 = scmp.ne.s32.totalorder %s74, %s75
      %p89 = scmp.eq.s32.totalorder %s25, 3
      %p90 = por %p88, %p89
      %p92 = scmp.ne.s32.totalorder %s75, %s91
      %p93 = scmp.eq.s32.totalorder %s25, 0
      %p94 = por %p92, %p93
      %s96 = sadd.s32 %s95, 1
      %p99 = scmp.eq.s32.totalorder %s19, 3
      %p100 = scmp.ne.s32.totalorder %s95, %s97
      %p101 = scmp.eq.s32.totalorder %s19, 0
      %p102 = por %p100, %p101
      %p103 = scmp.ne.s32.totalorder %s95, %s97
      %p104 = scmp.eq.s32.totalorder %s24, 3
      %p105 = por %p103, %p104
      %p106 = scmp.ne.s32.totalorder %s97, %s98
      %p107 = scmp.eq.s32.totalorder %s24, 0
      %p108 = por %p106, %p107
      %p109 = scmp.ne.s32.totalorder %s97, %s98
      %p110 = scmp.eq.s32.totalorder %s25, 3
      %p111 = por %p109, %p110
      %p113 = scmp.ne.s32.totalorder %s98, %s112
      %p114 = scmp.eq.s32.totalorder %s25, 0
      %p115 = por %p113, %p114
      %s117 = sadd.s32 %s116, 1
      %p120 = scmp.eq.s32.totalorder %s19, 3
      %p121 = scmp.ne.s32.totalorder %s116, %s118
      %p122 = scmp.eq.s32.totalorder %s19, 0
      %p123 = por %p121, %p122
      %p124 = scmp.ne.s32.totalorder %s116, %s118
      %p125 = scmp.eq.s32.totalorder %s24, 3
      %p126 = por %p124, %p125
      %p127 = scmp.ne.s32.totalorder %s118, %s119
      %p128 = scmp.eq.s32.totalorder %s24, 0
      %p129 = por %p127, %p128
      %p130 = scmp.ne.s32.totalorder %s118, %s119
      %p131 = scmp.eq.s32.totalorder %s25, 3
      %p132 = por %p130, %p131
      %p134 = scmp.ne.s32.totalorder %s119, %s133
      %p135 = scmp.eq.s32.totalorder %s25, 0
      %p136 = por %p134, %p135
      %s137 = ssub.s32 %s26, %s38
      %s138 = ssub.s32 %s27, %s34
      %s139 = sor.u32 %s137, %s138
      %p140 = scmp.eq.s32.totalorder %s139, 0
      %s142 = sadd.s32 %s141, 1
      %s143 = scalar_select %p140, %s141, %s142
      %p146 = pneg %p140
      %p147 = scmp.eq.s32.totalorder %s19, 3
      %p148 = por %p146, %p147
      %p149 = scmp.ne.s32.totalorder %s141, %s144
      %p150 = scmp.eq.s32.totalorder %s19, 0
      %p151 = por %p149, %p150
      %p152 = scmp.ne.s32.totalorder %s141, %s144
      %p153 = scmp.eq.s32.totalorder %s24, 3
      %p154 = por %p152, %p153
      %p155 = scmp.ne.s32.totalorder %s144, %s145
      %p156 = scmp.eq.s32.totalorder %s24, 0
      %p157 = por %p155, %p156
      %p158 = scmp.ne.s32.totalorder %s144, %s145
      %p159 = scmp.eq.s32.totalorder %s25, 3
      %p160 = por %p158, %p159
      %p162 = scmp.ne.s32.totalorder %s145, %s161
      %p163 = scmp.eq.s32.totalorder %s25, 0
      %p164 = por %p162, %p163
      %p165 = scmp.le.s32.totalorder 1, %s19
      %p166 = scmp.lt.s32.totalorder %s19, 5
      %p167 = pnand %p165, %p166
      %p168 = pneg %p167
      // Predicated region
      $region9: #{tpu_custom_call.1} parent=5 // pred_check
        _
      $region10: #{tpu_custom_call.1} parent=5 // pred_check_branch
        %170 = sbr.rel (%p167) target = $region12
      $region11: #{tpu_custom_call.1} parent=5 // pred_region
        %s171 = ssub.s32 %s19, 1
        // Predicated region
        $region13: #{tpu_custom_call.1} parent=11 // pred_check
          %p172 = pneg %p108
        $region14: #{tpu_custom_call.1} parent=11 // pred_check_branch
          %174 = sbr.rel (%p172) target = $region16
        $region15: #{tpu_custom_call.1} parent=11 // pred_region
          _
        $region16: #{tpu_custom_call.1} parent=11 // pred_fallthru
          _
        // Predicated region
        $region17: #{tpu_custom_call.1} parent=11 // pred_check
          %p175 = pneg %p129
        $region18: #{tpu_custom_call.1} parent=11 // pred_check_branch
          %177 = sbr.rel (%p175) target = $region20
        $region19: #{tpu_custom_call.1} parent=11 // pred_region
          _
        $region20: #{tpu_custom_call.1} parent=11 // pred_fallthru
          _
      $region12: #{tpu_custom_call.1} parent=5 // pred_fallthru
        _
      %p178 = scmp.lt.s32.totalorder %s19, 4
      // Predicated region
      $region21: #{tpu_custom_call.1} parent=5 // pred_check
        %p179 = pneg %p178
      $region22: #{tpu_custom_call.1} parent=5 // pred_check_branch
        %181 = sbr.rel (%p179) target = $region24
      $region23: #{tpu_custom_call.1} parent=5 // pred_region
        // Predicated region
        $region25: #{tpu_custom_call.1} parent=23 // pred_check
          %p182 = pneg %p53
        $region26: #{tpu_custom_call.1} parent=23 // pred_check_branch
          %184 = sbr.rel (%p182) target = $region28
        $region27: #{tpu_custom_call.1} parent=23 // pred_region
          %s185 = sand.u32 %s43, 1
          %s186 = scalar_lea.sflag [#allocation3], %s185
          %s187 = sand.u32 %s43, 1
          %s188 = smul.addr %s187, 64
          %s189 = scalar_lea.vmem [#allocation2], %s188
          %s190 = smul.u32 16, %s27
          %s192 = ssub.s32 1024, 1024
          %193 = vsyncadd %s186, %s192
          %s194 = smul.addr %s26, 32
          %s195 = sadd.s32 %s190, %s194
          %s196 = smul.addr %s195, 64
          %s197 = scalar_lea.hbm %s0, %s196
          %s199 = sshll.u32 %s189, 4
          %s200 = int_to_ptr.vmem [resolvable:$true] %s199
          %202 = dma.hbm_to_vmem [thread:$0]  %s197, 1024, %s200, %s186
        $region28: #{tpu_custom_call.1} parent=23 // pred_fallthru
          _
        // Predicated region
        $region29: #{tpu_custom_call.1} parent=23 // pred_check
          %p203 = pneg %p81
        $region30: #{tpu_custom_call.1} parent=23 // pred_check_branch
          %205 = sbr.rel (%p203) target = $region32
        $region31: #{tpu_custom_call.1} parent=23 // pred_region
          #allocation9 [shape = 'u32[6]{0}', space=smem, size = 0x18, scoped, tag = 'DMA stride descriptor']
          %s206 = sand.u32 %s71, 1
          %s207 = scalar_lea.sflag [#allocation6], %s206
          %s208 = sand.u32 %s71, 1
          %s209 = smul.addr %s208, 128
          %s210 = scalar_lea.vmem [#allocation5], %s209
          %s211 = smul.u32 4, %s27
          %s213 = ssub.s32 2048, 2048
          %214 = vsyncadd %s207, %s213
          %s215 = smul.addr %s211, 2
          %s216 = smul.addr %s26, 64
          %s217 = sadd.s32 %s215, %s216
          %s218 = smul.addr %s217, 128
          %s219 = scalar_lea.hbm %s1, %s218
          %s221 = sshll.u32 1, 14
          %s222 = sxor.u32 4294967295, %s221
          %s224 = sld [smem:[#allocation0]]
          %s225 = sadd.s32 2, %s224
          %s227 = sshll.u32 7, 26
          %s228 = sxor.u32 4294967295, %s227
          %s229 = sand.u32 0, %s228
          %s230 = sshll.u32 %s225, 26
          %s231 = sor.u32 %s229, %s230
          %s232 = sshll.u32 %s210, 4
          %s233 = int_to_ptr.vmem [resolvable:$true] %s232
          %239 = sst [smem:[#allocation9]] 2048
          %s240 = scalar_lea.smem [#allocation9], 1
          %241 = sst [smem:[%s240]] 512
          %s242 = scalar_lea.smem [#allocation9], 2
          %243 = sst [smem:[%s242]] 4
          %s244 = scalar_lea.smem [#allocation9], 3
          %245 = sst [smem:[%s244]] 256
          %s246 = scalar_lea.smem [#allocation9], 4
          %247 = sst [smem:[%s246]] 128
          %s248 = scalar_lea.smem [#allocation9], 5
          %249 = sst [smem:[%s248]] 8
          %251 = dma.general %s219, 2048, %s233, %s207, 131072, [#allocation9], %s231, 0
        $region32: #{tpu_custom_call.1} parent=23 // pred_fallthru
          _
      $region24: #{tpu_custom_call.1} parent=5 // pred_fallthru
        _
      %p252 = scmp.le.s32.totalorder 1, %s19
      %p253 = scmp.lt.s32.totalorder %s19, 5
      %p254 = pnand %p252, %p253
      %p255 = pneg %p254
      // Predicated region
      $region33: #{tpu_custom_call.1} parent=5 // pred_check
        _
      $region34: #{tpu_custom_call.1} parent=5 // pred_check_branch
        %257 = sbr.rel (%p254) target = $region36
      $region35: #{tpu_custom_call.1} parent=5 // pred_region
        %s258 = ssub.s32 %s19, 1
        %s259 = sand.u32 %s46, 1
        %s260 = scalar_lea.sflag [#allocation3], %s259
        %s261 = sand.u32 %s46, 1
        %s262 = smul.addr %s261, 64
        %s263 = scalar_lea.vmem [#allocation2], %s262
        // Predicated region
        $region37: #{tpu_custom_call.1} parent=35 // pred_check
          %p264 = pneg %p59
        $region38: #{tpu_custom_call.1} parent=35 // pred_check_branch
          %266 = sbr.rel (%p264) target = $region40
        $region39: #{tpu_custom_call.1} parent=35 // pred_region
          %267 = dma.done %s260, 1024
        $region40: #{tpu_custom_call.1} parent=35 // pred_fallthru
          _
        %s268 = sand.u32 %s74, 1
        %s269 = scalar_lea.sflag [#allocation6], %s268
        %s270 = sand.u32 %s74, 1
        %s271 = smul.addr %s270, 128
        %s272 = scalar_lea.vmem [#allocation5], %s271
        // Predicated region
        $region41: #{tpu_custom_call.1} parent=35 // pred_check
          %p273 = pneg %p87
        $region42: #{tpu_custom_call.1} parent=35 // pred_check_branch
          %275 = sbr.rel (%p273) target = $region44
        $region43: #{tpu_custom_call.1} parent=35 // pred_region
          %276 = dma.done %s269, 2048
        $region44: #{tpu_custom_call.1} parent=35 // pred_fallthru
          _
        %s277 = sand.u32 %s46, 1
        %s278 = scalar_lea.sflag [#allocation3], %s277
        %s279 = sand.u32 %s46, 1
        %s280 = smul.addr %s279, 64
        %s281 = scalar_lea.vmem [#allocation2], %s280
        %p282 = pneg %p59
        %p283 = pneg %p56
        %s284 = sand.u32 %s74, 1
        %s285 = scalar_lea.sflag [#allocation6], %s284
        %s286 = sand.u32 %s74, 1
        %s287 = smul.addr %s286, 128
        %s288 = scalar_lea.vmem [#allocation5], %s287
        %p289 = pneg %p87
        %p290 = pneg %p84
        %p291 = pneg %p108
        %p292 = pneg %p105
        %p293 = pneg %p129
        %p294 = pneg %p126
        %p295 = pneg %p157
        %p296 = pneg %p154
        %s297 = sand.u32 %s144, 1
        %s298 = scalar_lea.sflag [#allocation4], %s297
        %s299 = sand.u32 %s144, 1
        %s300 = smul.addr %s299, 64
        %s301 = scalar_lea.vmem [#allocation7], %s300
        %s302 = smul.u32 16, %s29
        %s303 = smul.u32 4, %s29
        %s304 = smul.u32 16, %s29
        %v305 = vld [vmem:[%s2] sm:$0xf]
        %v306 = vld [vmem:[%s3] sm:$0xf]
        %v307 = vlaneseq
        %v308 = vshrl.u32 %v307, 7
        %v309 = vadd.s32 %v308, 8
        %v310 = vadd.s32 %v308, 16
        %v311 = vadd.s32 %v308, 24
        %v312 = vadd.s32 %v308, 32
        %v313 = vadd.s32 %v308, 40
        %v314 = vadd.s32 %v308, 48
        %v315 = vadd.s32 %v308, 56
        %v316 = vadd.s32 %v308, 64
        %v317 = vadd.s32 %v308, 72
        %v318 = vadd.s32 %v308, 80
        %v319 = vadd.s32 %v308, 88
        %v320 = vadd.s32 %v308, 96
        %v321 = vadd.s32 %v308, 104
        %v322 = vadd.s32 %v308, 112
        %v323 = vadd.s32 %v308, 120
        %v324 = vlaneseq
        %v325 = vand.u32 %v324, 127
        %v326 = vmul.u32 %v325, 2
        %vm327 = vcmp.eq.s32.totalorder %v308, %v326
        %vm328 = vcmp.eq.s32.totalorder %v309, %v326
        %vm329 = vcmp.eq.s32.totalorder %v310, %v326
        %vm330 = vcmp.eq.s32.totalorder %v311, %v326
        %vm331 = vcmp.eq.s32.totalorder %v312, %v326
        %vm332 = vcmp.eq.s32.totalorder %v313, %v326
        %vm333 = vcmp.eq.s32.totalorder %v314, %v326
        %vm334 = vcmp.eq.s32.totalorder %v315, %v326
        %vm335 = vcmp.eq.s32.totalorder %v316, %v326
        %vm336 = vcmp.eq.s32.totalorder %v317, %v326
        %vm337 = vcmp.eq.s32.totalorder %v318, %v326
        %vm338 = vcmp.eq.s32.totalorder %v319, %v326
        %vm339 = vcmp.eq.s32.totalorder %v320, %v326
        %vm340 = vcmp.eq.s32.totalorder %v321, %v326
        %vm341 = vcmp.eq.s32.totalorder %v322, %v326
        %vm342 = vcmp.eq.s32.totalorder %v323, %v326
        %v343 = vsel %vm327, 1, 0
        %v344 = vsel %vm328, 1, 0
        %v345 = vsel %vm329, 1, 0
        %v346 = vsel %vm330, 1, 0
        %v347 = vsel %vm331, 1, 0
        %v348 = vsel %vm332, 1, 0
        %v349 = vsel %vm333, 1, 0
        %v350 = vsel %vm334, 1, 0
        %v351 = vsel %vm335, 1, 0
        %v352 = vsel %vm336, 1, 0
        %v353 = vsel %vm337, 1, 0
        %v354 = vsel %vm338, 1, 0
        %v355 = vsel %vm339, 1, 0
        %v356 = vsel %vm340, 1, 0
        %v357 = vsel %vm341, 1, 0
        %v358 = vsel %vm342, 1, 0
        %v359 = vcvt.s32.f32 %v343
        %v360 = vcvt.s32.f32 %v344
        %v361 = vcvt.s32.f32 %v345
        %v362 = vcvt.s32.f32 %v346
        %v363 = vcvt.s32.f32 %v347
        %v364 = vcvt.s32.f32 %v348
        %v365 = vcvt.s32.f32 %v349
        %v366 = vcvt.s32.f32 %v350
        %v367 = vcvt.s32.f32 %v351
        %v368 = vcvt.s32.f32 %v352
        %v369 = vcvt.s32.f32 %v353
        %v370 = vcvt.s32.f32 %v354
        %v371 = vcvt.s32.f32 %v355
        %v372 = vcvt.s32.f32 %v356
        %v373 = vcvt.s32.f32 %v357
        %v374 = vcvt.s32.f32 %v358
        %v375 = vld [vmem:[%s272] sm:$0x1]
        %v376 = vld [vmem:[%s272 + $0x20] sm:$0x1]
        %v377 = vld [vmem:[%s272 + $0x40] sm:$0x1]
        %v378 = vld [vmem:[%s272 + $0x60] sm:$0x1]
        %v383 = vrot.slane %v376, 7
        %vm384 = vcmask 1041409
        %v385 = vsel %vm384, %v383, %v375
        %v386 = vrot.slane %v377, 6
        %vm387 = vcmask 1042434
        %v388 = vsel %vm387, %v386, %v385
        %v389 = vrot.slane %v378, 5
        %vm390 = vcmask 1043459
        %v391 = vsel %vm390, %v389, %v388
        %393 = vmatprep.subr.mxu0 0.0
        %394 = vmatpush1.msra.mxu0 %v374
        %395 = vmatprep.subr.mxu0 0.0
        %396 = vmatpush1.msra.mxu0 %v373
        %397 = vmatprep.subr.mxu0 0.0
        %398 = vmatpush1.msra.mxu0 %v372
        %399 = vmatprep.subr.mxu0 0.0
        %400 = vmatpush1.msra.mxu0 %v371
        %401 = vmatprep.subr.mxu0 0.0
        %402 = vmatpush1.msra.mxu0 %v370
        %403 = vmatprep.subr.mxu0 0.0
        %404 = vmatpush1.msra.mxu0 %v369
        %405 = vmatprep.subr.mxu0 0.0
        %406 = vmatpush1.msra.mxu0 %v368
        %407 = vmatprep.subr.mxu0 0.0
        %408 = vmatpush1.msra.mxu0 %v367
        %409 = vmatprep.subr.mxu0 0.0
        %410 = vmatpush1.msra.mxu0 %v366
        %411 = vmatprep.subr.mxu0 0.0
        %412 = vmatpush1.msra.mxu0 %v365
        %413 = vmatprep.subr.mxu0 0.0
        %414 = vmatpush1.msra.mxu0 %v364
        %415 = vmatprep.subr.mxu0 0.0
        %416 = vmatpush1.msra.mxu0 %v363
        %417 = vmatprep.subr.mxu0 0.0
        %418 = vmatpush1.msra.mxu0 %v362
        %419 = vmatprep.subr.mxu0 0.0
        %420 = vmatpush1.msra.mxu0 %v361
        %421 = vmatprep.subr.mxu0 0.0
        %422 = vmatpush1.msra.mxu0 %v360
        %423 = vmatprep.subr.mxu0 0.0
        %424 = vmatpush1.msra.mxu0 %v359
        %425 = vmatprep.subr.mxu0 0.0
        %426 = vmatpush2.msra.mxu0 0.0
        %427 = vmatprep.subr.mxu0 0.0
        %428 = vmatpush2.msra.mxu0 0.0
        %429 = vmatprep.subr.mxu0 0.0
        %430 = vmatpush2.msra.mxu0 0.0
        %431 = vmatprep.subr.mxu0 0.0
        %432 = vmatpush2.msra.mxu0 0.0
        %433 = vmatprep.subr.mxu0 0.0
        %434 = vmatpush2.msra.mxu0 0.0
        %435 = vmatprep.subr.mxu0 0.0
        %436 = vmatpush2.msra.mxu0 0.0
        %437 = vmatprep.subr.mxu0 0.0
        %438 = vmatpush2.msra.mxu0 0.0
        %439 = vmatprep.subr.mxu0 0.0
        %440 = vmatpush2.msra.mxu0 0.0
        %441 = vmatprep.subr.mxu0 0.0
        %442 = vmatpush2.msra.mxu0 0.0
        %443 = vmatprep.subr.mxu0 0.0
        %444 = vmatpush2.msra.mxu0 0.0
        %445 = vmatprep.subr.mxu0 0.0
        %446 = vmatpush2.msra.mxu0 0.0
        %447 = vmatprep.subr.mxu0 0.0
        %448 = vmatpush2.msra.mxu0 0.0
        %449 = vmatprep.subr.mxu0 0.0
        %450 = vmatpush2.msra.mxu0 0.0
        %451 = vmatprep.subr.mxu0 0.0
        %452 = vmatpush2.msra.mxu0 0.0
        %453 = vmatprep.subr.mxu0 0.0
        %454 = vmatpush2.msra.mxu0 0.0
        %455 = vmatprep.subr.mxu0 0.0
        %456 = vmatpush2.msra.mxu0 0.0
        %457 = vmatprep.mubr.f32.mxu0 0.0
        %458 = vmatmul.mubr.f32.gmra.mxu0 %v391
        %v459 = vpop.f32.mrf.mxu0
        %v460 = vadd.f32 0.0, %v459
        %v461 = vpop.f32.mrf.mxu0
        %462 = vdwg.mxu0
        %vm463 = vcmask 31744
        %v465 = vsel %vm463, %v305, 0
        %vm467 = vcmask 1043456
        %v469 = vsel %vm467, %v460, 0
        %471 = vmatprep.subr.mxu0 0.0
        %472 = vmatpush1.msra.mxu0 0.0
        %473 = vmatprep.subr.mxu0 0.0
        %474 = vmatpush1.msra.mxu0 0.0
        %475 = vmatprep.subr.mxu0 0.0
        %476 = vmatpush1.msra.mxu0 0.0
        %477 = vmatprep.subr.mxu0 0.0
        %478 = vmatpush1.msra.mxu0 0.0
        %479 = vmatprep.subr.mxu0 0.0
        %480 = vmatpush1.msra.mxu0 0.0
        %481 = vmatprep.subr.mxu0 0.0
        %482 = vmatpush1.msra.mxu0 0.0
        %483 = vmatprep.subr.mxu0 0.0
        %484 = vmatpush1.msra.mxu0 0.0
        %485 = vmatprep.subr.mxu0 0.0
        %486 = vmatpush1.msra.mxu0 0.0
        %487 = vmatprep.subr.mxu0 0.0
        %488 = vmatpush1.msra.mxu0 0.0
        %489 = vmatprep.subr.mxu0 0.0
        %490 = vmatpush1.msra.mxu0 0.0
        %491 = vmatprep.subr.mxu0 0.0
        %492 = vmatpush1.msra.mxu0 0.0
        %493 = vmatprep.subr.mxu0 0.0
        %494 = vmatpush1.msra.mxu0 0.0
        %495 = vmatprep.subr.mxu0 0.0
        %496 = vmatpush1.msra.mxu0 0.0
        %497 = vmatprep.subr.mxu0 0.0
        %498 = vmatpush1.msra.mxu0 0.0
        %499 = vmatprep.subr.mxu0 0.0
        %500 = vmatpush1.msra.mxu0 0.0
        %501 = vmatprep.subr.mxu0 0.0
        %502 = vmatpush1.msra.mxu0 %v469
        %503 = vmatprep.subr.mxu0 0.0
        %504 = vmatpush2.msra.mxu0 0.0
        %505 = vmatprep.subr.mxu0 0.0
        %506 = vmatpush2.msra.mxu0 0.0
        %507 = vmatprep.subr.mxu0 0.0
        %508 = vmatpush2.msra.mxu0 0.0
        %509 = vmatprep.subr.mxu0 0.0
        %510 = vmatpush2.msra.mxu0 0.0
        %511 = vmatprep.subr.mxu0 0.0
        %512 = vmatpush2.msra.mxu0 0.0
        %513 = vmatprep.subr.mxu0 0.0
        %514 = vmatpush2.msra.mxu0 0.0
        %515 = vmatprep.subr.mxu0 0.0
        %516 = vmatpush2.msra.mxu0 0.0
        %517 = vmatprep.subr.mxu0 0.0
        %518 = vmatpush2.msra.mxu0 0.0
        %519 = vmatprep.subr.mxu0 0.0
        %520 = vmatpush2.msra.mxu0 0.0
        %521 = vmatprep.subr.mxu0 0.0
        %522 = vmatpush2.msra.mxu0 0.0
        %523 = vmatprep.subr.mxu0 0.0
        %524 = vmatpush2.msra.mxu0 0.0
        %525 = vmatprep.subr.mxu0 0.0
        %526 = vmatpush2.msra.mxu0 0.0
        %527 = vmatprep.subr.mxu0 0.0
        %528 = vmatpush2.msra.mxu0 0.0
        %529 = vmatprep.subr.mxu0 0.0
        %530 = vmatpush2.msra.mxu0 0.0
        %531 = vmatprep.subr.mxu0 0.0
        %532 = vmatpush2.msra.mxu0 0.0
        %533 = vmatprep.subr.mxu0 0.0
        %534 = vmatpush2.msra.mxu0 0.0
        %535 = vmatprep.mubr.f32.mxu0 0.0
        %536 = vmatmul.mubr.f32.gmra.mxu0 %v465
        %v537 = vpop.f32.mrf.mxu0
        %v538 = vadd.f32 0.0, %v537
        %v539 = vpop.f32.mrf.mxu0
        %540 = vdwg.mxu0
        %v541 = vld [vmem:[%s263] sm:$0xf]
        %v542 = vadd.f32 %v541, %v538
        %544 = vset.pattern.permute.xlu0 0
        %545 = vperm.xlu0 %544, %v306
        %v546 = vpop.permute.xlu0 %545
        %v548 = vadd.f32 %v542, %v546
        %vm549 = vcmask 519168
        %550 = vst.msk [vmem:[%s301] sm:$0xf] %vm549, %v548
        %v551 = vld [vmem:[%s272 + $0x1] sm:$0x1]
        %v552 = vld [vmem:[%s272 + $0x21] sm:$0x1]
        %v553 = vld [vmem:[%s272 + $0x41] sm:$0x1]
        %v554 = vld [vmem:[%s272 + $0x61] sm:$0x1]
        %v559 = vrot.slane %v552, 7
        %v560 = vsel %vm384, %v559, %v551
        %v561 = vrot.slane %v553, 6
        %v562 = vsel %vm387, %v561, %v560
        %v563 = vrot.slane %v554, 5
        %v564 = vsel %vm390, %v563, %v562
        %566 = vmatprep.subr.mxu0 0.0
        %567 = vmatpush1.msra.mxu0 %v374
        %568 = vmatprep.subr.mxu0 0.0
        %569 = vmatpush1.msra.mxu0 %v373
        %570 = vmatprep.subr.mxu0 0.0
        %571 = vmatpush1.msra.mxu0 %v372
        %572 = vmatprep.subr.mxu0 0.0
        %573 = vmatpush1.msra.mxu0 %v371
        %574 = vmatprep.subr.mxu0 0.0
        %575 = vmatpush1.msra.mxu0 %v370
        %576 = vmatprep.subr.mxu0 0.0
        %577 = vmatpush1.msra.mxu0 %v369
        %578 = vmatprep.subr.mxu0 0.0
        %579 = vmatpush1.msra.mxu0 %v368
        %580 = vmatprep.subr.mxu0 0.0
        %581 = vmatpush1.msra.mxu0 %v367
        %582 = vmatprep.subr.mxu0 0.0
        %583 = vmatpush1.msra.mxu0 %v366
        %584 = vmatprep.subr.mxu0 0.0
        %585 = vmatpush1.msra.mxu0 %v365
        %586 = vmatprep.subr.mxu0 0.0
        %587 = vmatpush1.msra.mxu0 %v364
        %588 = vmatprep.subr.mxu0 0.0
        %589 = vmatpush1.msra.mxu0 %v363
        %590 = vmatprep.subr.mxu0 0.0
        %591 = vmatpush1.msra.mxu0 %v362
        %592 = vmatprep.subr.mxu0 0.0
        %593 = vmatpush1.msra.mxu0 %v361
        %594 = vmatprep.subr.mxu0 0.0
        %595 = vmatpush1.msra.mxu0 %v360
        %596 = vmatprep.subr.mxu0 0.0
        %597 = vmatpush1.msra.mxu0 %v359
        %598 = vmatprep.subr.mxu0 0.0
        %599 = vmatpush2.msra.mxu0 0.0
        %600 = vmatprep.subr.mxu0 0.0
        %601 = vmatpush2.msra.mxu0 0.0
        %602 = vmatprep.subr.mxu0 0.0
        %603 = vmatpush2.msra.mxu0 0.0
        %604 = vmatprep.subr.mxu0 0.0
        %605 = vmatpush2.msra.mxu0 0.0
        %606 = vmatprep.subr.mxu0 0.0
        %607 = vmatpush2.msra.mxu0 0.0
        %608 = vmatprep.subr.mxu0 0.0
        %609 = vmatpush2.msra.mxu0 0.0
        %610 = vmatprep.subr.mxu0 0.0
        %611 = vmatpush2.msra.mxu0 0.0
        %612 = vmatprep.subr.mxu0 0.0
        %613 = vmatpush2.msra.mxu0 0.0
        %614 = vmatprep.subr.mxu0 0.0
        %615 = vmatpush2.msra.mxu0 0.0
        %616 = vmatprep.subr.mxu0 0.0
        %617 = vmatpush2.msra.mxu0 0.0
        %618 = vmatprep.subr.mxu0 0.0
        %619 = vmatpush2.msra.mxu0 0.0
        %620 = vmatprep.subr.mxu0 0.0
        %621 = vmatpush2.msra.mxu0 0.0
        %622 = vmatprep.subr.mxu0 0.0
        %623 = vmatpush2.msra.mxu0 0.0
        %624 = vmatprep.subr.mxu0 0.0
        %625 = vmatpush2.msra.mxu0 0.0
        %626 = vmatprep.subr.mxu0 0.0
        %627 = vmatpush2.msra.mxu0 0.0
        %628 = vmatprep.subr.mxu0 0.0
        %629 = vmatpush2.msra.mxu0 0.0
        %630 = vmatprep.mubr.f32.mxu0 0.0
        %631 = vmatmul.mubr.f32.gmra.mxu0 %v564
        %v632 = vpop.f32.mrf.mxu0
        %v633 = vadd.f32 0.0, %v632
        %v634 = vpop.f32.mrf.mxu0
        %635 = vdwg.mxu0
        %v637 = vsel %vm467, %v633, 0
        %639 = vmatprep.subr.mxu0 0.0
        %640 = vmatpush1.msra.mxu0 0.0
        %641 = vmatprep.subr.mxu0 0.0
        %642 = vmatpush1.msra.mxu0 0.0
        %643 = vmatprep.subr.mxu0 0.0
        %644 = vmatpush1.msra.mxu0 0.0
        %645 = vmatprep.subr.mxu0 0.0
        %646 = vmatpush1.msra.mxu0 0.0
        %647 = vmatprep.subr.mxu0 0.0
        %648 = vmatpush1.msra.mxu0 0.0
        %649 = vmatprep.subr.mxu0 0.0
        %650 = vmatpush1.msra.mxu0 0.0
        %651 = vmatprep.subr.mxu0 0.0
        %652 = vmatpush1.msra.mxu0 0.0
        %653 = vmatprep.subr.mxu0 0.0
        %654 = vmatpush1.msra.mxu0 0.0
        %655 = vmatprep.subr.mxu0 0.0
        %656 = vmatpush1.msra.mxu0 0.0
        %657 = vmatprep.subr.mxu0 0.0
        %658 = vmatpush1.msra.mxu0 0.0
        %659 = vmatprep.subr.mxu0 0.0
        %660 = vmatpush1.msra.mxu0 0.0
        %661 = vmatprep.subr.mxu0 0.0
        %662 = vmatpush1.msra.mxu0 0.0
        %663 = vmatprep.subr.mxu0 0.0
        %664 = vmatpush1.msra.mxu0 0.0
        %665 = vmatprep.subr.mxu0 0.0
        %666 = vmatpush1.msra.mxu0 0.0
        %667 = vmatprep.subr.mxu0 0.0
        %668 = vmatpush1.msra.mxu0 0.0
        %669 = vmatprep.subr.mxu0 0.0
        %670 = vmatpush1.msra.mxu0 %v637
        %671 = vmatprep.subr.mxu0 0.0
        %672 = vmatpush2.msra.mxu0 0.0
        %673 = vmatprep.subr.mxu0 0.0
        %674 = vmatpush2.msra.mxu0 0.0
        %675 = vmatprep.subr.mxu0 0.0
        %676 = vmatpush2.msra.mxu0 0.0
        %677 = vmatprep.subr.mxu0 0.0
        %678 = vmatpush2.msra.mxu0 0.0
        %679 = vmatprep.subr.mxu0 0.0
        %680 = vmatpush2.msra.mxu0 0.0
        %681 = vmatprep.subr.mxu0 0.0
        %682 = vmatpush2.msra.mxu0 0.0
        %683 = vmatprep.subr.mxu0 0.0
        %684 = vmatpush2.msra.mxu0 0.0
        %685 = vmatprep.subr.mxu0 0.0
        %686 = vmatpush2.msra.mxu0 0.0
        %687 = vmatprep.subr.mxu0 0.0
        %688 = vmatpush2.msra.mxu0 0.0
        %689 = vmatprep.subr.mxu0 0.0
        %690 = vmatpush2.msra.mxu0 0.0
        %691 = vmatprep.subr.mxu0 0.0
        %692 = vmatpush2.msra.mxu0 0.0
        %693 = vmatprep.subr.mxu0 0.0
        %694 = vmatpush2.msra.mxu0 0.0
        %695 = vmatprep.subr.mxu0 0.0
        %696 = vmatpush2.msra.mxu0 0.0
        %697 = vmatprep.subr.mxu0 0.0
        %698 = vmatpush2.msra.mxu0 0.0
        %699 = vmatprep.subr.mxu0 0.0
        %700 = vmatpush2.msra.mxu0 0.0
        %701 = vmatprep.subr.mxu0 0.0
        %702 = vmatpush2.msra.mxu0 0.0
        %703 = vmatprep.mubr.f32.mxu0 0.0
        %704 = vmatmul.mubr.f32.gmra.mxu0 %v465
        %v705 = vpop.f32.mrf.mxu0
        %v706 = vadd.f32 0.0, %v705
        %v707 = vpop.f32.mrf.mxu0
        %708 = vdwg.mxu0
        %v709 = vld [vmem:[%s263] sm:$0xf]
        %711 = vrot.lane.b32.xlu0 %v706, 64
        %v712 = vpop.permute.xlu0 %711
        %v714 = vadd.f32 %v709, %v712
        %v715 = vadd.f32 %v714, %v546
        %vm716 = vcmask 1043968
        %717 = vst.msk [vmem:[%s301] sm:$0xf] %vm716, %v715
        %v718 = vld [vmem:[%s272 + $0x2] sm:$0x1]
        %v719 = vld [vmem:[%s272 + $0x22] sm:$0x1]
        %v720 = vld [vmem:[%s272 + $0x42] sm:$0x1]
        %v721 = vld [vmem:[%s272 + $0x62] sm:$0x1]
        %v726 = vrot.slane %v719, 7
        %v727 = vsel %vm384, %v726, %v718
        %v728 = vrot.slane %v720, 6
        %v729 = vsel %vm387, %v728, %v727
        %v730 = vrot.slane %v721, 5
        %v731 = vsel %vm390, %v730, %v729
        %733 = vmatprep.subr.mxu0 0.0
        %734 = vmatpush1.msra.mxu0 %v374
        %735 = vmatprep.subr.mxu0 0.0
        %736 = vmatpush1.msra.mxu0 %v373
        %737 = vmatprep.subr.mxu0 0.0
        %738 = vmatpush1.msra.mxu0 %v372
        %739 = vmatprep.subr.mxu0 0.0
        %740 = vmatpush1.msra.mxu0 %v371
        %741 = vmatprep.subr.mxu0 0.0
        %742 = vmatpush1.msra.mxu0 %v370
        %743 = vmatprep.subr.mxu0 0.0
        %744 = vmatpush1.msra.mxu0 %v369
        %745 = vmatprep.subr.mxu0 0.0
        %746 = vmatpush1.msra.mxu0 %v368
        %747 = vmatprep.subr.mxu0 0.0
        %748 = vmatpush1.msra.mxu0 %v367
        %749 = vmatprep.subr.mxu0 0.0
        %750 = vmatpush1.msra.mxu0 %v366
        %751 = vmatprep.subr.mxu0 0.0
        %752 = vmatpush1.msra.mxu0 %v365
        %753 = vmatprep.subr.mxu0 0.0
        %754 = vmatpush1.msra.mxu0 %v364
        %755 = vmatprep.subr.mxu0 0.0
        %756 = vmatpush1.msra.mxu0 %v363
        %757 = vmatprep.subr.mxu0 0.0
        %758 = vmatpush1.msra.mxu0 %v362
        %759 = vmatprep.subr.mxu0 0.0
        %760 = vmatpush1.msra.mxu0 %v361
        %761 = vmatprep.subr.mxu0 0.0
        %762 = vmatpush1.msra.mxu0 %v360
        %763 = vmatprep.subr.mxu0 0.0
        %764 = vmatpush1.msra.mxu0 %v359
        %765 = vmatprep.subr.mxu0 0.0
        %766 = vmatpush2.msra.mxu0 0.0
        %767 = vmatprep.subr.mxu0 0.0
        %768 = vmatpush2.msra.mxu0 0.0
        %769 = vmatprep.subr.mxu0 0.0
        %770 = vmatpush2.msra.mxu0 0.0
        %771 = vmatprep.subr.mxu0 0.0
        %772 = vmatpush2.msra.mxu0 0.0
        %773 = vmatprep.subr.mxu0 0.0
        %774 = vmatpush2.msra.mxu0 0.0
        %775 = vmatprep.subr.mxu0 0.0
        %776 = vmatpush2.msra.mxu0 0.0
        %777 = vmatprep.subr.mxu0 0.0
        %778 = vmatpush2.msra.mxu0 0.0
        %779 = vmatprep.subr.mxu0 0.0
        %780 = vmatpush2.msra.mxu0 0.0
        %781 = vmatprep.subr.mxu0 0.0
        %782 = vmatpush2.msra.mxu0 0.0
        %783 = vmatprep.subr.mxu0 0.0
        %784 = vmatpush2.msra.mxu0 0.0
        %785 = vmatprep.subr.mxu0 0.0
        %786 = vmatpush2.msra.mxu0 0.0
        %787 = vmatprep.subr.mxu0 0.0
        %788 = vmatpush2.msra.mxu0 0.0
        %789 = vmatprep.subr.mxu0 0.0
        %790 = vmatpush2.msra.mxu0 0.0
        %791 = vmatprep.subr.mxu0 0.0
        %792 = vmatpush2.msra.mxu0 0.0
        %793 = vmatprep.subr.mxu0 0.0
        %794 = vmatpush2.msra.mxu0 0.0
        %795 = vmatprep.subr.mxu0 0.0
        %796 = vmatpush2.msra.mxu0 0.0
        %797 = vmatprep.mubr.f32.mxu0 0.0
        %798 = vmatmul.mubr.f32.gmra.mxu0 %v731
        %v799 = vpop.f32.mrf.mxu0
        %v800 = vadd.f32 0.0, %v799
        %v801 = vpop.f32.mrf.mxu0
        %802 = vdwg.mxu0
        %v804 = vsel %vm467, %v800, 0
        %806 = vmatprep.subr.mxu0 0.0
        %807 = vmatpush1.msra.mxu0 0.0
        %808 = vmatprep.subr.mxu0 0.0
        %809 = vmatpush1.msra.mxu0 0.0
        %810 = vmatprep.subr.mxu0 0.0
        %811 = vmatpush1.msra.mxu0 0.0
        %812 = vmatprep.subr.mxu0 0.0
        %813 = vmatpush1.msra.mxu0 0.0
        %814 = vmatprep.subr.mxu0 0.0
        %815 = vmatpush1.msra.mxu0 0.0
        %816 = vmatprep.subr.mxu0 0.0
        %817 = vmatpush1.msra.mxu0 0.0
        %818 = vmatprep.subr.mxu0 0.0
        %819 = vmatpush1.msra.mxu0 0.0
        %820 = vmatprep.subr.mxu0 0.0
        %821 = vmatpush1.msra.mxu0 0.0
        %822 = vmatprep.subr.mxu0 0.0
        %823 = vmatpush1.msra.mxu0 0.0
        %824 = vmatprep.subr.mxu0 0.0
        %825 = vmatpush1.msra.mxu0 0.0
        %826 = vmatprep.subr.mxu0 0.0
        %827 = vmatpush1.msra.mxu0 0.0
        %828 = vmatprep.subr.mxu0 0.0
        %829 = vmatpush1.msra.mxu0 0.0
        %830 = vmatprep.subr.mxu0 0.0
        %831 = vmatpush1.msra.mxu0 0.0
        %832 = vmatprep.subr.mxu0 0.0
        %833 = vmatpush1.msra.mxu0 0.0
        %834 = vmatprep.subr.mxu0 0.0
        %835 = vmatpush1.msra.mxu0 0.0
        %836 = vmatprep.subr.mxu0 0.0
        %837 = vmatpush1.msra.mxu0 %v804
        %838 = vmatprep.subr.mxu0 0.0
        %839 = vmatpush2.msra.mxu0 0.0
        %840 = vmatprep.subr.mxu0 0.0
        %841 = vmatpush2.msra.mxu0 0.0
        %842 = vmatprep.subr.mxu0 0.0
        %843 = vmatpush2.msra.mxu0 0.0
        %844 = vmatprep.subr.mxu0 0.0
        %845 = vmatpush2.msra.mxu0 0.0
        %846 = vmatprep.subr.mxu0 0.0
        %847 = vmatpush2.msra.mxu0 0.0
        %848 = vmatprep.subr.mxu0 0.0
        %849 = vmatpush2.msra.mxu0 0.0
        %850 = vmatprep.subr.mxu0 0.0
        %851 = vmatpush2.msra.mxu0 0.0
        %852 = vmatprep.subr.mxu0 0.0
        %853 = vmatpush2.msra.mxu0 0.0
        %854 = vmatprep.subr.mxu0 0.0
        %855 = vmatpush2.msra.mxu0 0.0
        %856 = vmatprep.subr.mxu0 0.0
        %857 = vmatpush2.msra.mxu0 0.0
        %858 = vmatprep.subr.mxu0 0.0
        %859 = vmatpush2.msra.mxu0 0.0
        %860 = vmatprep.subr.mxu0 0.0
        %861 = vmatpush2.msra.mxu0 0.0
        %862 = vmatprep.subr.mxu0 0.0
        %863 = vmatpush2.msra.mxu0 0.0
        %864 = vmatprep.subr.mxu0 0.0
        %865 = vmatpush2.msra.mxu0 0.0
        %866 = vmatprep.subr.mxu0 0.0
        %867 = vmatpush2.msra.mxu0 0.0
        %868 = vmatprep.subr.mxu0 0.0
        %869 = vmatpush2.msra.mxu0 0.0
        %870 = vmatprep.mubr.f32.mxu0 0.0
        %871 = vmatmul.mubr.f32.gmra.mxu0 %v465
        %v872 = vpop.f32.mrf.mxu0
        %v873 = vadd.f32 0.0, %v872
        %v874 = vpop.f32.mrf.mxu0
        %875 = vdwg.mxu0
        %v876 = vld [vmem:[%s263 + $0x4] sm:$0xf]
        %v877 = vadd.f32 %v876, %v873
        %v878 = vadd.f32 %v877, %v546
        %879 = vst.msk [vmem:[%s301 + $0x4] sm:$0xf] %vm549, %v878
        %v880 = vld [vmem:[%s272 + $0x3] sm:$0x1]
        %v881 = vld [vmem:[%s272 + $0x23] sm:$0x1]
        %v882 = vld [vmem:[%s272 + $0x43] sm:$0x1]
        %v883 = vld [vmem:[%s272 + $0x63] sm:$0x1]
        %v888 = vrot.slane %v881, 7
        %v889 = vsel %vm384, %v888, %v880
        %v890 = vrot.slane %v882, 6
        %v891 = vsel %vm387, %v890, %v889
        %v892 = vrot.slane %v883, 5
        %v893 = vsel %vm390, %v892, %v891
        %895 = vmatprep.subr.mxu0 0.0
        %896 = vmatpush1.msra.mxu0 %v374
        %897 = vmatprep.subr.mxu0 0.0
        %898 = vmatpush1.msra.mxu0 %v373
        %899 = vmatprep.subr.mxu0 0.0
        %900 = vmatpush1.msra.mxu0 %v372
        %901 = vmatprep.subr.mxu0 0.0
        %902 = vmatpush1.msra.mxu0 %v371
        %903 = vmatprep.subr.mxu0 0.0
        %904 = vmatpush1.msra.mxu0 %v370
        %905 = vmatprep.subr.mxu0 0.0
        %906 = vmatpush1.msra.mxu0 %v369
        %907 = vmatprep.subr.mxu0 0.0
        %908 = vmatpush1.msra.mxu0 %v368
        %909 = vmatprep.subr.mxu0 0.0
        %910 = vmatpush1.msra.mxu0 %v367
        %911 = vmatprep.subr.mxu0 0.0
        %912 = vmatpush1.msra.mxu0 %v366
        %913 = vmatprep.subr.mxu0 0.0
        %914 = vmatpush1.msra.mxu0 %v365
        %915 = vmatprep.subr.mxu0 0.0
        %916 = vmatpush1.msra.mxu0 %v364
        %917 = vmatprep.subr.mxu0 0.0
        %918 = vmatpush1.msra.mxu0 %v363
        %919 = vmatprep.subr.mxu0 0.0
        %920 = vmatpush1.msra.mxu0 %v362
        %921 = vmatprep.subr.mxu0 0.0
        %922 = vmatpush1.msra.mxu0 %v361
        %923 = vmatprep.subr.mxu0 0.0
        %924 = vmatpush1.msra.mxu0 %v360
        %925 = vmatprep.subr.mxu0 0.0
        %926 = vmatpush1.msra.mxu0 %v359
        %927 = vmatprep.subr.mxu0 0.0
        %928 = vmatpush2.msra.mxu0 0.0
        %929 = vmatprep.subr.mxu0 0.0
        %930 = vmatpush2.msra.mxu0 0.0
        %931 = vmatprep.subr.mxu0 0.0
        %932 = vmatpush2.msra.mxu0 0.0
        %933 = vmatprep.subr.mxu0 0.0
        %934 = vmatpush2.msra.mxu0 0.0
        %935 = vmatprep.subr.mxu0 0.0
        %936 = vmatpush2.msra.mxu0 0.0
        %937 = vmatprep.subr.mxu0 0.0
        %938 = vmatpush2.msra.mxu0 0.0
        %939 = vmatprep.subr.mxu0 0.0
        %940 = vmatpush2.msra.mxu0 0.0
        %941 = vmatprep.subr.mxu0 0.0
        %942 = vmatpush2.msra.mxu0 0.0
        %943 = vmatprep.subr.mxu0 0.0
        %944 = vmatpush2.msra.mxu0 0.0
        %945 = vmatprep.subr.mxu0 0.0
        %946 = vmatpush2.msra.mxu0 0.0
        %947 = vmatprep.subr.mxu0 0.0
        %948 = vmatpush2.msra.mxu0 0.0
        %949 = vmatprep.subr.mxu0 0.0
        %950 = vmatpush2.msra.mxu0 0.0
        %951 = vmatprep.subr.mxu0 0.0
        %952 = vmatpush2.msra.mxu0 0.0
        %953 = vmatprep.subr.mxu0 0.0
        %954 = vmatpush2.msra.mxu0 0.0
        %955 = vmatprep.subr.mxu0 0.0
        %956 = vmatpush2.msra.mxu0 0.0
        %957 = vmatprep.subr.mxu0 0.0
        %958 = vmatpush2.msra.mxu0 0.0
        %959 = vmatprep.mubr.f32.mxu0 0.0
        %960 = vmatmul.mubr.f32.gmra.mxu0 %v893
        %v961 = vpop.f32.mrf.mxu0
        %v962 = vadd.f32 0.0, %v961
        %v963 = vpop.f32.mrf.mxu0
        %964 = vdwg.mxu0
        %v966 = vsel %vm467, %v962, 0
        %968 = vmatprep.subr.mxu0 0.0
        %969 = vmatpush1.msra.mxu0 0.0
        %970 = vmatprep.subr.mxu0 0.0
        %971 = vmatpush1.msra.mxu0 0.0
        %972 = vmatprep.subr.mxu0 0.0
        %973 = vmatpush1.msra.mxu0 0.0
        %974 = vmatprep.subr.mxu0 0.0
        %975 = vmatpush1.msra.mxu0 0.0
        %976 = vmatprep.subr.mxu0 0.0
        %977 = vmatpush1.msra.mxu0 0.0
        %978 = vmatprep.subr.mxu0 0.0
        %979 = vmatpush1.msra.mxu0 0.0
        %980 = vmatprep.subr.mxu0 0.0
        %981 = vmatpush1.msra.mxu0 0.0
        %982 = vmatprep.subr.mxu0 0.0
        %983 = vmatpush1.msra.mxu0 0.0
        %984 = vmatprep.subr.mxu0 0.0
        %985 = vmatpush1.msra.mxu0 0.0
        %986 = vmatprep.subr.mxu0 0.0
        %987 = vmatpush1.msra.mxu0 0.0
        %988 = vmatprep.subr.mxu0 0.0
        %989 = vmatpush1.msra.mxu0 0.0
        %990 = vmatprep.subr.mxu0 0.0
        %991 = vmatpush1.msra.mxu0 0.0
        %992 = vmatprep.subr.mxu0 0.0
        %993 = vmatpush1.msra.mxu0 0.0
        %994 = vmatprep.subr.mxu0 0.0
        %995 = vmatpush1.msra.mxu0 0.0
        %996 = vmatprep.subr.mxu0 0.0
        %997 = vmatpush1.msra.mxu0 0.0
        %998 = vmatprep.subr.mxu0 0.0
        %999 = vmatpush1.msra.mxu0 %v966
        %1000 = vmatprep.subr.mxu0 0.0
        %1001 = vmatpush2.msra.mxu0 0.0
        %1002 = vmatprep.subr.mxu0 0.0
        %1003 = vmatpush2.msra.mxu0 0.0
        %1004 = vmatprep.subr.mxu0 0.0
        %1005 = vmatpush2.msra.mxu0 0.0
        %1006 = vmatprep.subr.mxu0 0.0
        %1007 = vmatpush2.msra.mxu0 0.0
        %1008 = vmatprep.subr.mxu0 0.0
        %1009 = vmatpush2.msra.mxu0 0.0
        %1010 = vmatprep.subr.mxu0 0.0
        %1011 = vmatpush2.msra.mxu0 0.0
        %1012 = vmatprep.subr.mxu0 0.0
        %1013 = vmatpush2.msra.mxu0 0.0
        %1014 = vmatprep.subr.mxu0 0.0
        %1015 = vmatpush2.msra.mxu0 0.0
        %1016 = vmatprep.subr.mxu0 0.0
        %1017 = vmatpush2.msra.mxu0 0.0
        %1018 = vmatprep.subr.mxu0 0.0
        %1019 = vmatpush2.msra.mxu0 0.0
        %1020 = vmatprep.subr.mxu0 0.0
        %1021 = vmatpush2.msra.mxu0 0.0
        %1022 = vmatprep.subr.mxu0 0.0
        %1023 = vmatpush2.msra.mxu0 0.0
        %1024 = vmatprep.subr.mxu0 0.0
        %1025 = vmatpush2.msra.mxu0 0.0
        %1026 = vmatprep.subr.mxu0 0.0
        %1027 = vmatpush2.msra.mxu0 0.0
        %1028 = vmatprep.subr.mxu0 0.0
        %1029 = vmatpush2.msra.mxu0 0.0
        %1030 = vmatprep.subr.mxu0 0.0
        %1031 = vmatpush2.msra.mxu0 0.0
        %1032 = vmatprep.mubr.f32.mxu0 0.0
        %1033 = vmatmul.mubr.f32.gmra.mxu0 %v465
        %v1034 = vpop.f32.mrf.mxu0
        %v1035 = vadd.f32 0.0, %v1034
        %v1036 = vpop.f32.mrf.mxu0
        %1037 = vdwg.mxu0
        %v1038 = vld [vmem:[%s263 + $0x4] sm:$0xf]
        %1040 = vrot.lane.b32.xlu0 %v1035, 64
        %v1041 = vpop.permute.xlu0 %1040
        %v1043 = vadd.f32 %v1038, %v1041
        %v1044 = vadd.f32 %v1043, %v546
        %1045 = vst.msk [vmem:[%s301 + $0x4] sm:$0xf] %vm716, %v1044
        %v1046 = vld [vmem:[%s272 + $0x4] sm:$0x1]
        %v1047 = vld [vmem:[%s272 + $0x24] sm:$0x1]
        %v1048 = vld [vmem:[%s272 + $0x44] sm:$0x1]
        %v1049 = vld [vmem:[%s272 + $0x64] sm:$0x1]
        %v1054 = vrot.slane %v1047, 7
        %v1055 = vsel %vm384, %v1054, %v1046
        %v1056 = vrot.slane %v1048, 6
        %v1057 = vsel %vm387, %v1056, %v1055
        %v1058 = vrot.slane %v1049, 5
        %v1059 = vsel %vm390, %v1058, %v1057
        %1061 = vmatprep.subr.mxu0 0.0
        %1062 = vmatpush1.msra.mxu0 %v374
        %1063 = vmatprep.subr.mxu0 0.0
        %1064 = vmatpush1.msra.mxu0 %v373
        %1065 = vmatprep.subr.mxu0 0.0
        %1066 = vmatpush1.msra.mxu0 %v372
        %1067 = vmatprep.subr.mxu0 0.0
        %1068 = vmatpush1.msra.mxu0 %v371
        %1069 = vmatprep.subr.mxu0 0.0
        %1070 = vmatpush1.msra.mxu0 %v370
        %1071 = vmatprep.subr.mxu0 0.0
        %1072 = vmatpush1.msra.mxu0 %v369
        %1073 = vmatprep.subr.mxu0 0.0
        %1074 = vmatpush1.msra.mxu0 %v368
        %1075 = vmatprep.subr.mxu0 0.0
        %1076 = vmatpush1.msra.mxu0 %v367
        %1077 = vmatprep.subr.mxu0 0.0
        %1078 = vmatpush1.msra.mxu0 %v366
        %1079 = vmatprep.subr.mxu0 0.0
        %1080 = vmatpush1.msra.mxu0 %v365
        %1081 = vmatprep.subr.mxu0 0.0
        %1082 = vmatpush1.msra.mxu0 %v364
        %1083 = vmatprep.subr.mxu0 0.0
        %1084 = vmatpush1.msra.mxu0 %v363
        %1085 = vmatprep.subr.mxu0 0.0
        %1086 = vmatpush1.msra.mxu0 %v362
        %1087 = vmatprep.subr.mxu0 0.0
        %1088 = vmatpush1.msra.mxu0 %v361
        %1089 = vmatprep.subr.mxu0 0.0
        %1090 = vmatpush1.msra.mxu0 %v360
        %1091 = vmatprep.subr.mxu0 0.0
        %1092 = vmatpush1.msra.mxu0 %v359
        %1093 = vmatprep.subr.mxu0 0.0
        %1094 = vmatpush2.msra.mxu0 0.0
        %1095 = vmatprep.subr.mxu0 0.0
        %1096 = vmatpush2.msra.mxu0 0.0
        %1097 = vmatprep.subr.mxu0 0.0
        %1098 = vmatpush2.msra.mxu0 0.0
        %1099 = vmatprep.subr.mxu0 0.0
        %1100 = vmatpush2.msra.mxu0 0.0
        %1101 = vmatprep.subr.mxu0 0.0
        %1102 = vmatpush2.msra.mxu0 0.0
        %1103 = vmatprep.subr.mxu0 0.0
        %1104 = vmatpush2.msra.mxu0 0.0
        %1105 = vmatprep.subr.mxu0 0.0
        %1106 = vmatpush2.msra.mxu0 0.0
        %1107 = vmatprep.subr.mxu0 0.0
        %1108 = vmatpush2.msra.mxu0 0.0
        %1109 = vmatprep.subr.mxu0 0.0
        %1110 = vmatpush2.msra.mxu0 0.0
        %1111 = vmatprep.subr.mxu0 0.0
        %1112 = vmatpush2.msra.mxu0 0.0
        %1113 = vmatprep.subr.mxu0 0.0
        %1114 = vmatpush2.msra.mxu0 0.0
        %1115 = vmatprep.subr.mxu0 0.0
        %1116 = vmatpush2.msra.mxu0 0.0
        %1117 = vmatprep.subr.mxu0 0.0
        %1118 = vmatpush2.msra.mxu0 0.0
        %1119 = vmatprep.subr.mxu0 0.0
        %1120 = vmatpush2.msra.mxu0 0.0
        %1121 = vmatprep.subr.mxu0 0.0
        %1122 = vmatpush2.msra.mxu0 0.0
        %1123 = vmatprep.subr.mxu0 0.0
        %1124 = vmatpush2.msra.mxu0 0.0
        %1125 = vmatprep.mubr.f32.mxu0 0.0
        %1126 = vmatmul.mubr.f32.gmra.mxu0 %v1059
        %v1127 = vpop.f32.mrf.mxu0
        %v1128 = vadd.f32 0.0, %v1127
        %v1129 = vpop.f32.mrf.mxu0
        %1130 = vdwg.mxu0
        %v1132 = vsel %vm467, %v1128, 0
        %1134 = vmatprep.subr.mxu0 0.0
        %1135 = vmatpush1.msra.mxu0 0.0
        %1136 = vmatprep.subr.mxu0 0.0
        %1137 = vmatpush1.msra.mxu0 0.0
        %1138 = vmatprep.subr.mxu0 0.0
        %1139 = vmatpush1.msra.mxu0 0.0
        %1140 = vmatprep.subr.mxu0 0.0
        %1141 = vmatpush1.msra.mxu0 0.0
        %1142 = vmatprep.subr.mxu0 0.0
        %1143 = vmatpush1.msra.mxu0 0.0
        %1144 = vmatprep.subr.mxu0 0.0
        %1145 = vmatpush1.msra.mxu0 0.0
        %1146 = vmatprep.subr.mxu0 0.0
        %1147 = vmatpush1.msra.mxu0 0.0
        %1148 = vmatprep.subr.mxu0 0.0
        %1149 = vmatpush1.msra.mxu0 0.0
        %1150 = vmatprep.subr.mxu0 0.0
        %1151 = vmatpush1.msra.mxu0 0.0
        %1152 = vmatprep.subr.mxu0 0.0
        %1153 = vmatpush1.msra.mxu0 0.0
        %1154 = vmatprep.subr.mxu0 0.0
        %1155 = vmatpush1.msra.mxu0 0.0
        %1156 = vmatprep.subr.mxu0 0.0
        %1157 = vmatpush1.msra.mxu0 0.0
        %1158 = vmatprep.subr.mxu0 0.0
        %1159 = vmatpush1.msra.mxu0 0.0
        %1160 = vmatprep.subr.mxu0 0.0
        %1161 = vmatpush1.msra.mxu0 0.0
        %1162 = vmatprep.subr.mxu0 0.0
        %1163 = vmatpush1.msra.mxu0 0.0
        %1164 = vmatprep.subr.mxu0 0.0
        %1165 = vmatpush1.msra.mxu0 %v1132
        %1166 = vmatprep.subr.mxu0 0.0
        %1167 = vmatpush2.msra.mxu0 0.0
        %1168 = vmatprep.subr.mxu0 0.0
        %1169 = vmatpush2.msra.mxu0 0.0
        %1170 = vmatprep.subr.mxu0 0.0
        %1171 = vmatpush2.msra.mxu0 0.0
        %1172 = vmatprep.subr.mxu0 0.0
        %1173 = vmatpush2.msra.mxu0 0.0
        %1174 = vmatprep.subr.mxu0 0.0
        %1175 = vmatpush2.msra.mxu0 0.0
        %1176 = vmatprep.subr.mxu0 0.0
        %1177 = vmatpush2.msra.mxu0 0.0
        %1178 = vmatprep.subr.mxu0 0.0
        %1179 = vmatpush2.msra.mxu0 0.0
        %1180 = vmatprep.subr.mxu0 0.0
        %1181 = vmatpush2.msra.mxu0 0.0
        %1182 = vmatprep.subr.mxu0 0.0
        %1183 = vmatpush2.msra.mxu0 0.0
        %1184 = vmatprep.subr.mxu0 0.0
        %1185 = vmatpush2.msra.mxu0 0.0
        %1186 = vmatprep.subr.mxu0 0.0
        %1187 = vmatpush2.msra.mxu0 0.0
        %1188 = vmatprep.subr.mxu0 0.0
        %1189 = vmatpush2.msra.mxu0 0.0
        %1190 = vmatprep.subr.mxu0 0.0
        %1191 = vmatpush2.msra.mxu0 0.0
        %1192 = vmatprep.subr.mxu0 0.0
        %1193 = vmatpush2.msra.mxu0 0.0
        %1194 = vmatprep.subr.mxu0 0.0
        %1195 = vmatpush2.msra.mxu0 0.0
        %1196 = vmatprep.subr.mxu0 0.0
        %1197 = vmatpush2.msra.mxu0 0.0
        %1198 = vmatprep.mubr.f32.mxu0 0.0
        %1199 = vmatmul.mubr.f32.gmra.mxu0 %v465
        %v1200 = vpop.f32.mrf.mxu0
        %v1201 = vadd.f32 0.0, %v1200
        %v1202 = vpop.f32.mrf.mxu0
        %1203 = vdwg.mxu0
        %v1204 = vld [vmem:[%s263 + $0x8] sm:$0xf]
        %v1205 = vadd.f32 %v1204, %v1201
        %v1206 = vadd.f32 %v1205, %v546
        %1207 = vst.msk [vmem:[%s301 + $0x8] sm:$0xf] %vm549, %v1206
        %v1208 = vld [vmem:[%s272 + $0x5] sm:$0x1]
        %v1209 = vld [vmem:[%s272 + $0x25] sm:$0x1]
        %v1210 = vld [vmem:[%s272 + $0x45] sm:$0x1]
        %v1211 = vld [vmem:[%s272 + $0x65] sm:$0x1]
        %v1216 = vrot.slane %v1209, 7
        %v1217 = vsel %vm384, %v1216, %v1208
        %v1218 = vrot.slane %v1210, 6
        %v1219 = vsel %vm387, %v1218, %v1217
        %v1220 = vrot.slane %v1211, 5
        %v1221 = vsel %vm390, %v1220, %v1219
        %1223 = vmatprep.subr.mxu0 0.0
        %1224 = vmatpush1.msra.mxu0 %v374
        %1225 = vmatprep.subr.mxu0 0.0
        %1226 = vmatpush1.msra.mxu0 %v373
        %1227 = vmatprep.subr.mxu0 0.0
        %1228 = vmatpush1.msra.mxu0 %v372
        %1229 = vmatprep.subr.mxu0 0.0
        %1230 = vmatpush1.msra.mxu0 %v371
        %1231 = vmatprep.subr.mxu0 0.0
        %1232 = vmatpush1.msra.mxu0 %v370
        %1233 = vmatprep.subr.mxu0 0.0
        %1234 = vmatpush1.msra.mxu0 %v369
        %1235 = vmatprep.subr.mxu0 0.0
        %1236 = vmatpush1.msra.mxu0 %v368
        %1237 = vmatprep.subr.mxu0 0.0
        %1238 = vmatpush1.msra.mxu0 %v367
        %1239 = vmatprep.subr.mxu0 0.0
        %1240 = vmatpush1.msra.mxu0 %v366
        %1241 = vmatprep.subr.mxu0 0.0
        %1242 = vmatpush1.msra.mxu0 %v365
        %1243 = vmatprep.subr.mxu0 0.0
        %1244 = vmatpush1.msra.mxu0 %v364
        %1245 = vmatprep.subr.mxu0 0.0
        %1246 = vmatpush1.msra.mxu0 %v363
        %1247 = vmatprep.subr.mxu0 0.0
        %1248 = vmatpush1.msra.mxu0 %v362
        %1249 = vmatprep.subr.mxu0 0.0
        %1250 = vmatpush1.msra.mxu0 %v361
        %1251 = vmatprep.subr.mxu0 0.0
        %1252 = vmatpush1.msra.mxu0 %v360
        %1253 = vmatprep.subr.mxu0 0.0
        %1254 = vmatpush1.msra.mxu0 %v359
        %1255 = vmatprep.subr.mxu0 0.0
        %1256 = vmatpush2.msra.mxu0 0.0
        %1257 = vmatprep.subr.mxu0 0.0
        %1258 = vmatpush2.msra.mxu0 0.0
        %1259 = vmatprep.subr.mxu0 0.0
        %1260 = vmatpush2.msra.mxu0 0.0
        %1261 = vmatprep.subr.mxu0 0.0
        %1262 = vmatpush2.msra.mxu0 0.0
        %1263 = vmatprep.subr.mxu0 0.0
        %1264 = vmatpush2.msra.mxu0 0.0
        %1265 = vmatprep.subr.mxu0 0.0
        %1266 = vmatpush2.msra.mxu0 0.0
        %1267 = vmatprep.subr.mxu0 0.0
        %1268 = vmatpush2.msra.mxu0 0.0
        %1269 = vmatprep.subr.mxu0 0.0
        %1270 = vmatpush2.msra.mxu0 0.0
        %1271 = vmatprep.subr.mxu0 0.0
        %1272 = vmatpush2.msra.mxu0 0.0
        %1273 = vmatprep.subr.mxu0 0.0
        %1274 = vmatpush2.msra.mxu0 0.0
        %1275 = vmatprep.subr.mxu0 0.0
        %1276 = vmatpush2.msra.mxu0 0.0
        %1277 = vmatprep.subr.mxu0 0.0
        %1278 = vmatpush2.msra.mxu0 0.0
        %1279 = vmatprep.subr.mxu0 0.0
        %1280 = vmatpush2.msra.mxu0 0.0
        %1281 = vmatprep.subr.mxu0 0.0
        %1282 = vmatpush2.msra.mxu0 0.0
        %1283 = vmatprep.subr.mxu0 0.0
        %1284 = vmatpush2.msra.mxu0 0.0
        %1285 = vmatprep.subr.mxu0 0.0
        %1286 = vmatpush2.msra.mxu0 0.0
        %1287 = vmatprep.mubr.f32.mxu0 0.0
        %1288 = vmatmul.mubr.f32.gmra.mxu0 %v1221
        %v1289 = vpop.f32.mrf.mxu0
        %v1290 = vadd.f32 0.0, %v1289
        %v1291 = vpop.f32.mrf.mxu0
        %1292 = vdwg.mxu0
        %v1294 = vsel %vm467, %v1290, 0
        %1296 = vmatprep.subr.mxu0 0.0
        %1297 = vmatpush1.msra.mxu0 0.0
        %1298 = vmatprep.subr.mxu0 0.0
        %1299 = vmatpush1.msra.mxu0 0.0
        %1300 = vmatprep.subr.mxu0 0.0
        %1301 = vmatpush1.msra.mxu0 0.0
        %1302 = vmatprep.subr.mxu0 0.0
        %1303 = vmatpush1.msra.mxu0 0.0
        %1304 = vmatprep.subr.mxu0 0.0
        %1305 = vmatpush1.msra.mxu0 0.0
        %1306 = vmatprep.subr.mxu0 0.0
        %1307 = vmatpush1.msra.mxu0 0.0
        %1308 = vmatprep.subr.mxu0 0.0
        %1309 = vmatpush1.msra.mxu0 0.0
        %1310 = vmatprep.subr.mxu0 0.0
        %1311 = vmatpush1.msra.mxu0 0.0
        %1312 = vmatprep.subr.mxu0 0.0
        %1313 = vmatpush1.msra.mxu0 0.0
        %1314 = vmatprep.subr.mxu0 0.0
        %1315 = vmatpush1.msra.mxu0 0.0
        %1316 = vmatprep.subr.mxu0 0.0
        %1317 = vmatpush1.msra.mxu0 0.0
        %1318 = vmatprep.subr.mxu0 0.0
        %1319 = vmatpush1.msra.mxu0 0.0
        %1320 = vmatprep.subr.mxu0 0.0
        %1321 = vmatpush1.msra.mxu0 0.0
        %1322 = vmatprep.subr.mxu0 0.0
        %1323 = vmatpush1.msra.mxu0 0.0
        %1324 = vmatprep.subr.mxu0 0.0
        %1325 = vmatpush1.msra.mxu0 0.0
        %1326 = vmatprep.subr.mxu0 0.0
        %1327 = vmatpush1.msra.mxu0 %v1294
        %1328 = vmatprep.subr.mxu0 0.0
        %1329 = vmatpush2.msra.mxu0 0.0
        %1330 = vmatprep.subr.mxu0 0.0
        %1331 = vmatpush2.msra.mxu0 0.0
        %1332 = vmatprep.subr.mxu0 0.0
        %1333 = vmatpush2.msra.mxu0 0.0
        %1334 = vmatprep.subr.mxu0 0.0
        %1335 = vmatpush2.msra.mxu0 0.0
        %1336 = vmatprep.subr.mxu0 0.0
        %1337 = vmatpush2.msra.mxu0 0.0
        %1338 = vmatprep.subr.mxu0 0.0
        %1339 = vmatpush2.msra.mxu0 0.0
        %1340 = vmatprep.subr.mxu0 0.0
        %1341 = vmatpush2.msra.mxu0 0.0
        %1342 = vmatprep.subr.mxu0 0.0
        %1343 = vmatpush2.msra.mxu0 0.0
        %1344 = vmatprep.subr.mxu0 0.0
        %1345 = vmatpush2.msra.mxu0 0.0
        %1346 = vmatprep.subr.mxu0 0.0
        %1347 = vmatpush2.msra.mxu0 0.0
        %1348 = vmatprep.subr.mxu0 0.0
        %1349 = vmatpush2.msra.mxu0 0.0
        %1350 = vmatprep.subr.mxu0 0.0
        %1351 = vmatpush2.msra.mxu0 0.0
        %1352 = vmatprep.subr.mxu0 0.0
        %1353 = vmatpush2.msra.mxu0 0.0
        %1354 = vmatprep.subr.mxu0 0.0
        %1355 = vmatpush2.msra.mxu0 0.0
        %1356 = vmatprep.subr.mxu0 0.0
        %1357 = vmatpush2.msra.mxu0 0.0
        %1358 = vmatprep.subr.mxu0 0.0
        %1359 = vmatpush2.msra.mxu0 0.0
        %1360 = vmatprep.mubr.f32.mxu0 0.0
        %1361 = vmatmul.mubr.f32.gmra.mxu0 %v465
        %v1362 = vpop.f32.mrf.mxu0
        %v1363 = vadd.f32 0.0, %v1362
        %v1364 = vpop.f32.mrf.mxu0
        %1365 = vdwg.mxu0
        %v1366 = vld [vmem:[%s263 + $0x8] sm:$0xf]
        %1368 = vrot.lane.b32.xlu0 %v1363, 64
        %v1369 = vpop.permute.xlu0 %1368
        %v1371 = vadd.f32 %v1366, %v1369
        %v1372 = vadd.f32 %v1371, %v546
        %1373 = vst.msk [vmem:[%s301 + $0x8] sm:$0xf] %vm716, %v1372
        %v1374 = vld [vmem:[%s272 + $0x6] sm:$0x1]
        %v1375 = vld [vmem:[%s272 + $0x26] sm:$0x1]
        %v1376 = vld [vmem:[%s272 + $0x46] sm:$0x1]
        %v1377 = vld [vmem:[%s272 + $0x66] sm:$0x1]
        %v1382 = vrot.slane %v1375, 7
        %v1383 = vsel %vm384, %v1382, %v1374
        %v1384 = vrot.slane %v1376, 6
        %v1385 = vsel %vm387, %v1384, %v1383
        %v1386 = vrot.slane %v1377, 5
        %v1387 = vsel %vm390, %v1386, %v1385
        %1389 = vmatprep.subr.mxu0 0.0
        %1390 = vmatpush1.msra.mxu0 %v374
        %1391 = vmatprep.subr.mxu0 0.0
        %1392 = vmatpush1.msra.mxu0 %v373
        %1393 = vmatprep.subr.mxu0 0.0
        %1394 = vmatpush1.msra.mxu0 %v372
        %1395 = vmatprep.subr.mxu0 0.0
        %1396 = vmatpush1.msra.mxu0 %v371
        %1397 = vmatprep.subr.mxu0 0.0
        %1398 = vmatpush1.msra.mxu0 %v370
        %1399 = vmatprep.subr.mxu0 0.0
        %1400 = vmatpush1.msra.mxu0 %v369
        %1401 = vmatprep.subr.mxu0 0.0
        %1402 = vmatpush1.msra.mxu0 %v368
        %1403 = vmatprep.subr.mxu0 0.0
        %1404 = vmatpush1.msra.mxu0 %v367
        %1405 = vmatprep.subr.mxu0 0.0
        %1406 = vmatpush1.msra.mxu0 %v366
        %1407 = vmatprep.subr.mxu0 0.0
        %1408 = vmatpush1.msra.mxu0 %v365
        %1409 = vmatprep.subr.mxu0 0.0
        %1410 = vmatpush1.msra.mxu0 %v364
        %1411 = vmatprep.subr.mxu0 0.0
        %1412 = vmatpush1.msra.mxu0 %v363
        %1413 = vmatprep.subr.mxu0 0.0
        %1414 = vmatpush1.msra.mxu0 %v362
        %1415 = vmatprep.subr.mxu0 0.0
        %1416 = vmatpush1.msra.mxu0 %v361
        %1417 = vmatprep.subr.mxu0 0.0
        %1418 = vmatpush1.msra.mxu0 %v360
        %1419 = vmatprep.subr.mxu0 0.0
        %1420 = vmatpush1.msra.mxu0 %v359
        %1421 = vmatprep.subr.mxu0 0.0
        %1422 = vmatpush2.msra.mxu0 0.0
        %1423 = vmatprep.subr.mxu0 0.0
        %1424 = vmatpush2.msra.mxu0 0.0
        %1425 = vmatprep.subr.mxu0 0.0
        %1426 = vmatpush2.msra.mxu0 0.0
        %1427 = vmatprep.subr.mxu0 0.0
        %1428 = vmatpush2.msra.mxu0 0.0
        %1429 = vmatprep.subr.mxu0 0.0
        %1430 = vmatpush2.msra.mxu0 0.0
        %1431 = vmatprep.subr.mxu0 0.0
        %1432 = vmatpush2.msra.mxu0 0.0
        %1433 = vmatprep.subr.mxu0 0.0
        %1434 = vmatpush2.msra.mxu0 0.0
        %1435 = vmatprep.subr.mxu0 0.0
        %1436 = vmatpush2.msra.mxu0 0.0
        %1437 = vmatprep.subr.mxu0 0.0
        %1438 = vmatpush2.msra.mxu0 0.0
        %1439 = vmatprep.subr.mxu0 0.0
        %1440 = vmatpush2.msra.mxu0 0.0
        %1441 = vmatprep.subr.mxu0 0.0
        %1442 = vmatpush2.msra.mxu0 0.0
        %1443 = vmatprep.subr.mxu0 0.0
        %1444 = vmatpush2.msra.mxu0 0.0
        %1445 = vmatprep.subr.mxu0 0.0
        %1446 = vmatpush2.msra.mxu0 0.0
        %1447 = vmatprep.subr.mxu0 0.0
        %1448 = vmatpush2.msra.mxu0 0.0
        %1449 = vmatprep.subr.mxu0 0.0
        %1450 = vmatpush2.msra.mxu0 0.0
        %1451 = vmatprep.subr.mxu0 0.0
        %1452 = vmatpush2.msra.mxu0 0.0
        %1453 = vmatprep.mubr.f32.mxu0 0.0
        %1454 = vmatmul.mubr.f32.gmra.mxu0 %v1387
        %v1455 = vpop.f32.mrf.mxu0
        %v1456 = vadd.f32 0.0, %v1455
        %v1457 = vpop.f32.mrf.mxu0
        %1458 = vdwg.mxu0
        %v1460 = vsel %vm467, %v1456, 0
        %1462 = vmatprep.subr.mxu0 0.0
        %1463 = vmatpush1.msra.mxu0 0.0
        %1464 = vmatprep.subr.mxu0 0.0
        %1465 = vmatpush1.msra.mxu0 0.0
        %1466 = vmatprep.subr.mxu0 0.0
        %1467 = vmatpush1.msra.mxu0 0.0
        %1468 = vmatprep.subr.mxu0 0.0
        %1469 = vmatpush1.msra.mxu0 0.0
        %1470 = vmatprep.subr.mxu0 0.0
        %1471 = vmatpush1.msra.mxu0 0.0
        %1472 = vmatprep.subr.mxu0 0.0
        %1473 = vmatpush1.msra.mxu0 0.0
        %1474 = vmatprep.subr.mxu0 0.0
        %1475 = vmatpush1.msra.mxu0 0.0
        %1476 = vmatprep.subr.mxu0 0.0
        %1477 = vmatpush1.msra.mxu0 0.0
        %1478 = vmatprep.subr.mxu0 0.0
        %1479 = vmatpush1.msra.mxu0 0.0
        %1480 = vmatprep.subr.mxu0 0.0
        %1481 = vmatpush1.msra.mxu0 0.0
        %1482 = vmatprep.subr.mxu0 0.0
        %1483 = vmatpush1.msra.mxu0 0.0
        %1484 = vmatprep.subr.mxu0 0.0
        %1485 = vmatpush1.msra.mxu0 0.0
        %1486 = vmatprep.subr.mxu0 0.0
        %1487 = vmatpush1.msra.mxu0 0.0
        %1488 = vmatprep.subr.mxu0 0.0
        %1489 = vmatpush1.msra.mxu0 0.0
        %1490 = vmatprep.subr.mxu0 0.0
        %1491 = vmatpush1.msra.mxu0 0.0
        %1492 = vmatprep.subr.mxu0 0.0
        %1493 = vmatpush1.msra.mxu0 %v1460
        %1494 = vmatprep.subr.mxu0 0.0
        %1495 = vmatpush2.msra.mxu0 0.0
        %1496 = vmatprep.subr.mxu0 0.0
        %1497 = vmatpush2.msra.mxu0 0.0
        %1498 = vmatprep.subr.mxu0 0.0
        %1499 = vmatpush2.msra.mxu0 0.0
        %1500 = vmatprep.subr.mxu0 0.0
        %1501 = vmatpush2.msra.mxu0 0.0
        %1502 = vmatprep.subr.mxu0 0.0
        %1503 = vmatpush2.msra.mxu0 0.0
        %1504 = vmatprep.subr.mxu0 0.0
        %1505 = vmatpush2.msra.mxu0 0.0
        %1506 = vmatprep.subr.mxu0 0.0
        %1507 = vmatpush2.msra.mxu0 0.0
        %1508 = vmatprep.subr.mxu0 0.0
        %1509 = vmatpush2.msra.mxu0 0.0
        %1510 = vmatprep.subr.mxu0 0.0
        %1511 = vmatpush2.msra.mxu0 0.0
        %1512 = vmatprep.subr.mxu0 0.0
        %1513 = vmatpush2.msra.mxu0 0.0
        %1514 = vmatprep.subr.mxu0 0.0
        %1515 = vmatpush2.msra.mxu0 0.0
        %1516 = vmatprep.subr.mxu0 0.0
        %1517 = vmatpush2.msra.mxu0 0.0
        %1518 = vmatprep.subr.mxu0 0.0
        %1519 = vmatpush2.msra.mxu0 0.0
        %1520 = vmatprep.subr.mxu0 0.0
        %1521 = vmatpush2.msra.mxu0 0.0
        %1522 = vmatprep.subr.mxu0 0.0
        %1523 = vmatpush2.msra.mxu0 0.0
        %1524 = vmatprep.subr.mxu0 0.0
        %1525 = vmatpush2.msra.mxu0 0.0
        %1526 = vmatprep.mubr.f32.mxu0 0.0
        %1527 = vmatmul.mubr.f32.gmra.mxu0 %v465
        %v1528 = vpop.f32.mrf.mxu0
        %v1529 = vadd.f32 0.0, %v1528
        %v1530 = vpop.f32.mrf.mxu0
        %1531 = vdwg.mxu0
        %v1532 = vld [vmem:[%s263 + $0xc] sm:$0xf]
        %v1533 = vadd.f32 %v1532, %v1529
        %v1534 = vadd.f32 %v1533, %v546
        %1535 = vst.msk [vmem:[%s301 + $0xc] sm:$0xf] %vm549, %v1534
        %v1536 = vld [vmem:[%s272 + $0x7] sm:$0x1]
        %v1537 = vld [vmem:[%s272 + $0x27] sm:$0x1]
        %v1538 = vld [vmem:[%s272 + $0x47] sm:$0x1]
        %v1539 = vld [vmem:[%s272 + $0x67] sm:$0x1]
        %v1544 = vrot.slane %v1537, 7
        %v1545 = vsel %vm384, %v1544, %v1536
        %v1546 = vrot.slane %v1538, 6
        %v1547 = vsel %vm387, %v1546, %v1545
        %v1548 = vrot.slane %v1539, 5
        %v1549 = vsel %vm390, %v1548, %v1547
        %1551 = vmatprep.subr.mxu0 0.0
        %1552 = vmatpush1.msra.mxu0 %v374
        %1553 = vmatprep.subr.mxu0 0.0
        %1554 = vmatpush1.msra.mxu0 %v373
        %1555 = vmatprep.subr.mxu0 0.0
        %1556 = vmatpush1.msra.mxu0 %v372
        %1557 = vmatprep.subr.mxu0 0.0
        %1558 = vmatpush1.msra.mxu0 %v371
        %1559 = vmatprep.subr.mxu0 0.0
        %1560 = vmatpush1.msra.mxu0 %v370
        %1561 = vmatprep.subr.mxu0 0.0
        %1562 = vmatpush1.msra.mxu0 %v369
        %1563 = vmatprep.subr.mxu0 0.0
        %1564 = vmatpush1.msra.mxu0 %v368
        %1565 = vmatprep.subr.mxu0 0.0
        %1566 = vmatpush1.msra.mxu0 %v367
        %1567 = vmatprep.subr.mxu0 0.0
        %1568 = vmatpush1.msra.mxu0 %v366
        %1569 = vmatprep.subr.mxu0 0.0
        %1570 = vmatpush1.msra.mxu0 %v365
        %1571 = vmatprep.subr.mxu0 0.0
        %1572 = vmatpush1.msra.mxu0 %v364
        %1573 = vmatprep.subr.mxu0 0.0
        %1574 = vmatpush1.msra.mxu0 %v363
        %1575 = vmatprep.subr.mxu0 0.0
        %1576 = vmatpush1.msra.mxu0 %v362
        %1577 = vmatprep.subr.mxu0 0.0
        %1578 = vmatpush1.msra.mxu0 %v361
        %1579 = vmatprep.subr.mxu0 0.0
        %1580 = vmatpush1.msra.mxu0 %v360
        %1581 = vmatprep.subr.mxu0 0.0
        %1582 = vmatpush1.msra.mxu0 %v359
        %1583 = vmatprep.subr.mxu0 0.0
        %1584 = vmatpush2.msra.mxu0 0.0
        %1585 = vmatprep.subr.mxu0 0.0
        %1586 = vmatpush2.msra.mxu0 0.0
        %1587 = vmatprep.subr.mxu0 0.0
        %1588 = vmatpush2.msra.mxu0 0.0
        %1589 = vmatprep.subr.mxu0 0.0
        %1590 = vmatpush2.msra.mxu0 0.0
        %1591 = vmatprep.subr.mxu0 0.0
        %1592 = vmatpush2.msra.mxu0 0.0
        %1593 = vmatprep.subr.mxu0 0.0
        %1594 = vmatpush2.msra.mxu0 0.0
        %1595 = vmatprep.subr.mxu0 0.0
        %1596 = vmatpush2.msra.mxu0 0.0
        %1597 = vmatprep.subr.mxu0 0.0
        %1598 = vmatpush2.msra.mxu0 0.0
        %1599 = vmatprep.subr.mxu0 0.0
        %1600 = vmatpush2.msra.mxu0 0.0
        %1601 = vmatprep.subr.mxu0 0.0
        %1602 = vmatpush2.msra.mxu0 0.0
        %1603 = vmatprep.subr.mxu0 0.0
        %1604 = vmatpush2.msra.mxu0 0.0
        %1605 = vmatprep.subr.mxu0 0.0
        %1606 = vmatpush2.msra.mxu0 0.0
        %1607 = vmatprep.subr.mxu0 0.0
        %1608 = vmatpush2.msra.mxu0 0.0
        %1609 = vmatprep.subr.mxu0 0.0
        %1610 = vmatpush2.msra.mxu0 0.0
        %1611 = vmatprep.subr.mxu0 0.0
        %1612 = vmatpush2.msra.mxu0 0.0
        %1613 = vmatprep.subr.mxu0 0.0
        %1614 = vmatpush2.msra.mxu0 0.0
        %1615 = vmatprep.mubr.f32.mxu0 0.0
        %1616 = vmatmul.mubr.f32.gmra.mxu0 %v1549
        %v1617 = vpop.f32.mrf.mxu0
        %v1618 = vadd.f32 0.0, %v1617
        %v1619 = vpop.f32.mrf.mxu0
        %1620 = vdwg.mxu0
        %v1622 = vsel %vm467, %v1618, 0
        %1624 = vmatprep.subr.mxu0 0.0
        %1625 = vmatpush1.msra.mxu0 0.0
        %1626 = vmatprep.subr.mxu0 0.0
        %1627 = vmatpush1.msra.mxu0 0.0
        %1628 = vmatprep.subr.mxu0 0.0
        %1629 = vmatpush1.msra.mxu0 0.0
        %1630 = vmatprep.subr.mxu0 0.0
        %1631 = vmatpush1.msra.mxu0 0.0
        %1632 = vmatprep.subr.mxu0 0.0
        %1633 = vmatpush1.msra.mxu0 0.0
        %1634 = vmatprep.subr.mxu0 0.0
        %1635 = vmatpush1.msra.mxu0 0.0
        %1636 = vmatprep.subr.mxu0 0.0
        %1637 = vmatpush1.msra.mxu0 0.0
        %1638 = vmatprep.subr.mxu0 0.0
        %1639 = vmatpush1.msra.mxu0 0.0
        %1640 = vmatprep.subr.mxu0 0.0
        %1641 = vmatpush1.msra.mxu0 0.0
        %1642 = vmatprep.subr.mxu0 0.0
        %1643 = vmatpush1.msra.mxu0 0.0
        %1644 = vmatprep.subr.mxu0 0.0
        %1645 = vmatpush1.msra.mxu0 0.0
        %1646 = vmatprep.subr.mxu0 0.0
        %1647 = vmatpush1.msra.mxu0 0.0
        %1648 = vmatprep.subr.mxu0 0.0
        %1649 = vmatpush1.msra.mxu0 0.0
        %1650 = vmatprep.subr.mxu0 0.0
        %1651 = vmatpush1.msra.mxu0 0.0
        %1652 = vmatprep.subr.mxu0 0.0
        %1653 = vmatpush1.msra.mxu0 0.0
        %1654 = vmatprep.subr.mxu0 0.0
        %1655 = vmatpush1.msra.mxu0 %v1622
        %1656 = vmatprep.subr.mxu0 0.0
        %1657 = vmatpush2.msra.mxu0 0.0
        %1658 = vmatprep.subr.mxu0 0.0
        %1659 = vmatpush2.msra.mxu0 0.0
        %1660 = vmatprep.subr.mxu0 0.0
        %1661 = vmatpush2.msra.mxu0 0.0
        %1662 = vmatprep.subr.mxu0 0.0
        %1663 = vmatpush2.msra.mxu0 0.0
        %1664 = vmatprep.subr.mxu0 0.0
        %1665 = vmatpush2.msra.mxu0 0.0
        %1666 = vmatprep.subr.mxu0 0.0
        %1667 = vmatpush2.msra.mxu0 0.0
        %1668 = vmatprep.subr.mxu0 0.0
        %1669 = vmatpush2.msra.mxu0 0.0
        %1670 = vmatprep.subr.mxu0 0.0
        %1671 = vmatpush2.msra.mxu0 0.0
        %1672 = vmatprep.subr.mxu0 0.0
        %1673 = vmatpush2.msra.mxu0 0.0
        %1674 = vmatprep.subr.mxu0 0.0
        %1675 = vmatpush2.msra.mxu0 0.0
        %1676 = vmatprep.subr.mxu0 0.0
        %1677 = vmatpush2.msra.mxu0 0.0
        %1678 = vmatprep.subr.mxu0 0.0
        %1679 = vmatpush2.msra.mxu0 0.0
        %1680 = vmatprep.subr.mxu0 0.0
        %1681 = vmatpush2.msra.mxu0 0.0
        %1682 = vmatprep.subr.mxu0 0.0
        %1683 = vmatpush2.msra.mxu0 0.0
        %1684 = vmatprep.subr.mxu0 0.0
        %1685 = vmatpush2.msra.mxu0 0.0
        %1686 = vmatprep.subr.mxu0 0.0
        %1687 = vmatpush2.msra.mxu0 0.0
        %1688 = vmatprep.mubr.f32.mxu0 0.0
        %1689 = vmatmul.mubr.f32.gmra.mxu0 %v465
        %v1690 = vpop.f32.mrf.mxu0
        %v1691 = vadd.f32 0.0, %v1690
        %v1692 = vpop.f32.mrf.mxu0
        %1693 = vdwg.mxu0
        %v1694 = vld [vmem:[%s263 + $0xc] sm:$0xf]
        %1696 = vrot.lane.b32.xlu0 %v1691, 64
        %v1697 = vpop.permute.xlu0 %1696
        %v1699 = vadd.f32 %v1694, %v1697
        %v1700 = vadd.f32 %v1699, %v546
        %1701 = vst.msk [vmem:[%s301 + $0xc] sm:$0xf] %vm716, %v1700
        %v1702 = vld [vmem:[%s272 + $0x8] sm:$0x1]
        %v1703 = vld [vmem:[%s272 + $0x28] sm:$0x1]
        %v1704 = vld [vmem:[%s272 + $0x48] sm:$0x1]
        %v1705 = vld [vmem:[%s272 + $0x68] sm:$0x1]
        %v1710 = vrot.slane %v1703, 7
        %v1711 = vsel %vm384, %v1710, %v1702
        %v1712 = vrot.slane %v1704, 6
        %v1713 = vsel %vm387, %v1712, %v1711
        %v1714 = vrot.slane %v1705, 5
        %v1715 = vsel %vm390, %v1714, %v1713
        %1717 = vmatprep.subr.mxu0 0.0
        %1718 = vmatpush1.msra.mxu0 %v374
        %1719 = vmatprep.subr.mxu0 0.0
        %1720 = vmatpush1.msra.mxu0 %v373
        %1721 = vmatprep.subr.mxu0 0.0
        %1722 = vmatpush1.msra.mxu0 %v372
        %1723 = vmatprep.subr.mxu0 0.0
        %1724 = vmatpush1.msra.mxu0 %v371
        %1725 = vmatprep.subr.mxu0 0.0
        %1726 = vmatpush1.msra.mxu0 %v370
        %1727 = vmatprep.subr.mxu0 0.0
        %1728 = vmatpush1.msra.mxu0 %v369
        %1729 = vmatprep.subr.mxu0 0.0
        %1730 = vmatpush1.msra.mxu0 %v368
        %1731 = vmatprep.subr.mxu0 0.0
        %1732 = vmatpush1.msra.mxu0 %v367
        %1733 = vmatprep.subr.mxu0 0.0
        %1734 = vmatpush1.msra.mxu0 %v366
        %1735 = vmatprep.subr.mxu0 0.0
        %1736 = vmatpush1.msra.mxu0 %v365
        %1737 = vmatprep.subr.mxu0 0.0
        %1738 = vmatpush1.msra.mxu0 %v364
        %1739 = vmatprep.subr.mxu0 0.0
        %1740 = vmatpush1.msra.mxu0 %v363
        %1741 = vmatprep.subr.mxu0 0.0
        %1742 = vmatpush1.msra.mxu0 %v362
        %1743 = vmatprep.subr.mxu0 0.0
        %1744 = vmatpush1.msra.mxu0 %v361
        %1745 = vmatprep.subr.mxu0 0.0
        %1746 = vmatpush1.msra.mxu0 %v360
        %1747 = vmatprep.subr.mxu0 0.0
        %1748 = vmatpush1.msra.mxu0 %v359
        %1749 = vmatprep.subr.mxu0 0.0
        %1750 = vmatpush2.msra.mxu0 0.0
        %1751 = vmatprep.subr.mxu0 0.0
        %1752 = vmatpush2.msra.mxu0 0.0
        %1753 = vmatprep.subr.mxu0 0.0
        %1754 = vmatpush2.msra.mxu0 0.0
        %1755 = vmatprep.subr.mxu0 0.0
        %1756 = vmatpush2.msra.mxu0 0.0
        %1757 = vmatprep.subr.mxu0 0.0
        %1758 = vmatpush2.msra.mxu0 0.0
        %1759 = vmatprep.subr.mxu0 0.0
        %1760 = vmatpush2.msra.mxu0 0.0
        %1761 = vmatprep.subr.mxu0 0.0
        %1762 = vmatpush2.msra.mxu0 0.0
        %1763 = vmatprep.subr.mxu0 0.0
        %1764 = vmatpush2.msra.mxu0 0.0
        %1765 = vmatprep.subr.mxu0 0.0
        %1766 = vmatpush2.msra.mxu0 0.0
        %1767 = vmatprep.subr.mxu0 0.0
        %1768 = vmatpush2.msra.mxu0 0.0
        %1769 = vmatprep.subr.mxu0 0.0
        %1770 = vmatpush2.msra.mxu0 0.0
        %1771 = vmatprep.subr.mxu0 0.0
        %1772 = vmatpush2.msra.mxu0 0.0
        %1773 = vmatprep.subr.mxu0 0.0
        %1774 = vmatpush2.msra.mxu0 0.0
        %1775 = vmatprep.subr.mxu0 0.0
        %1776 = vmatpush2.msra.mxu0 0.0
        %1777 = vmatprep.subr.mxu0 0.0
        %1778 = vmatpush2.msra.mxu0 0.0
        %1779 = vmatprep.subr.mxu0 0.0
        %1780 = vmatpush2.msra.mxu0 0.0
        %1781 = vmatprep.mubr.f32.mxu0 0.0
        %1782 = vmatmul.mubr.f32.gmra.mxu0 %v1715
        %v1783 = vpop.f32.mrf.mxu0
        %v1784 = vadd.f32 0.0, %v1783
        %v1785 = vpop.f32.mrf.mxu0
        %1786 = vdwg.mxu0
        %v1788 = vsel %vm467, %v1784, 0
        %1790 = vmatprep.subr.mxu0 0.0
        %1791 = vmatpush1.msra.mxu0 0.0
        %1792 = vmatprep.subr.mxu0 0.0
        %1793 = vmatpush1.msra.mxu0 0.0
        %1794 = vmatprep.subr.mxu0 0.0
        %1795 = vmatpush1.msra.mxu0 0.0
        %1796 = vmatprep.subr.mxu0 0.0
        %1797 = vmatpush1.msra.mxu0 0.0
        %1798 = vmatprep.subr.mxu0 0.0
        %1799 = vmatpush1.msra.mxu0 0.0
        %1800 = vmatprep.subr.mxu0 0.0
        %1801 = vmatpush1.msra.mxu0 0.0
        %1802 = vmatprep.subr.mxu0 0.0
        %1803 = vmatpush1.msra.mxu0 0.0
        %1804 = vmatprep.subr.mxu0 0.0
        %1805 = vmatpush1.msra.mxu0 0.0
        %1806 = vmatprep.subr.mxu0 0.0
        %1807 = vmatpush1.msra.mxu0 0.0
        %1808 = vmatprep.subr.mxu0 0.0
        %1809 = vmatpush1.msra.mxu0 0.0
        %1810 = vmatprep.subr.mxu0 0.0
        %1811 = vmatpush1.msra.mxu0 0.0
        %1812 = vmatprep.subr.mxu0 0.0
        %1813 = vmatpush1.msra.mxu0 0.0
        %1814 = vmatprep.subr.mxu0 0.0
        %1815 = vmatpush1.msra.mxu0 0.0
        %1816 = vmatprep.subr.mxu0 0.0
        %1817 = vmatpush1.msra.mxu0 0.0
        %1818 = vmatprep.subr.mxu0 0.0
        %1819 = vmatpush1.msra.mxu0 0.0
        %1820 = vmatprep.subr.mxu0 0.0
        %1821 = vmatpush1.msra.mxu0 %v1788
        %1822 = vmatprep.subr.mxu0 0.0
        %1823 = vmatpush2.msra.mxu0 0.0
        %1824 = vmatprep.subr.mxu0 0.0
        %1825 = vmatpush2.msra.mxu0 0.0
        %1826 = vmatprep.subr.mxu0 0.0
        %1827 = vmatpush2.msra.mxu0 0.0
        %1828 = vmatprep.subr.mxu0 0.0
        %1829 = vmatpush2.msra.mxu0 0.0
        %1830 = vmatprep.subr.mxu0 0.0
        %1831 = vmatpush2.msra.mxu0 0.0
        %1832 = vmatprep.subr.mxu0 0.0
        %1833 = vmatpush2.msra.mxu0 0.0
        %1834 = vmatprep.subr.mxu0 0.0
        %1835 = vmatpush2.msra.mxu0 0.0
        %1836 = vmatprep.subr.mxu0 0.0
        %1837 = vmatpush2.msra.mxu0 0.0
        %1838 = vmatprep.subr.mxu0 0.0
        %1839 = vmatpush2.msra.mxu0 0.0
        %1840 = vmatprep.subr.mxu0 0.0
        %1841 = vmatpush2.msra.mxu0 0.0
        %1842 = vmatprep.subr.mxu0 0.0
        %1843 = vmatpush2.msra.mxu0 0.0
        %1844 = vmatprep.subr.mxu0 0.0
        %1845 = vmatpush2.msra.mxu0 0.0
        %1846 = vmatprep.subr.mxu0 0.0
        %1847 = vmatpush2.msra.mxu0 0.0
        %1848 = vmatprep.subr.mxu0 0.0
        %1849 = vmatpush2.msra.mxu0 0.0
        %1850 = vmatprep.subr.mxu0 0.0
        %1851 = vmatpush2.msra.mxu0 0.0
        %1852 = vmatprep.subr.mxu0 0.0
        %1853 = vmatpush2.msra.mxu0 0.0
        %1854 = vmatprep.mubr.f32.mxu0 0.0
        %1855 = vmatmul.mubr.f32.gmra.mxu0 %v465
        %v1856 = vpop.f32.mrf.mxu0
        %v1857 = vadd.f32 0.0, %v1856
        %v1858 = vpop.f32.mrf.mxu0
        %1859 = vdwg.mxu0
        %v1860 = vld [vmem:[%s263 + $0x10] sm:$0xf]
        %v1861 = vadd.f32 %v1860, %v1857
        %v1862 = vadd.f32 %v1861, %v546
        %1863 = vst.msk [vmem:[%s301 + $0x10] sm:$0xf] %vm549, %v1862
        %v1864 = vld [vmem:[%s272 + $0x9] sm:$0x1]
        %v1865 = vld [vmem:[%s272 + $0x29] sm:$0x1]
        %v1866 = vld [vmem:[%s272 + $0x49] sm:$0x1]
        %v1867 = vld [vmem:[%s272 + $0x69] sm:$0x1]
        %v1872 = vrot.slane %v1865, 7
        %v1873 = vsel %vm384, %v1872, %v1864
        %v1874 = vrot.slane %v1866, 6
        %v1875 = vsel %vm387, %v1874, %v1873
        %v1876 = vrot.slane %v1867, 5
        %v1877 = vsel %vm390, %v1876, %v1875
        %1879 = vmatprep.subr.mxu0 0.0
        %1880 = vmatpush1.msra.mxu0 %v374
        %1881 = vmatprep.subr.mxu0 0.0
        %1882 = vmatpush1.msra.mxu0 %v373
        %1883 = vmatprep.subr.mxu0 0.0
        %1884 = vmatpush1.msra.mxu0 %v372
        %1885 = vmatprep.subr.mxu0 0.0
        %1886 = vmatpush1.msra.mxu0 %v371
        %1887 = vmatprep.subr.mxu0 0.0
        %1888 = vmatpush1.msra.mxu0 %v370
        %1889 = vmatprep.subr.mxu0 0.0
        %1890 = vmatpush1.msra.mxu0 %v369
        %1891 = vmatprep.subr.mxu0 0.0
        %1892 = vmatpush1.msra.mxu0 %v368
        %1893 = vmatprep.subr.mxu0 0.0
        %1894 = vmatpush1.msra.mxu0 %v367
        %1895 = vmatprep.subr.mxu0 0.0
        %1896 = vmatpush1.msra.mxu0 %v366
        %1897 = vmatprep.subr.mxu0 0.0
        %1898 = vmatpush1.msra.mxu0 %v365
        %1899 = vmatprep.subr.mxu0 0.0
        %1900 = vmatpush1.msra.mxu0 %v364
        %1901 = vmatprep.subr.mxu0 0.0
        %1902 = vmatpush1.msra.mxu0 %v363
        %1903 = vmatprep.subr.mxu0 0.0
        %1904 = vmatpush1.msra.mxu0 %v362
        %1905 = vmatprep.subr.mxu0 0.0
        %1906 = vmatpush1.msra.mxu0 %v361
        %1907 = vmatprep.subr.mxu0 0.0
        %1908 = vmatpush1.msra.mxu0 %v360
        %1909 = vmatprep.subr.mxu0 0.0
        %1910 = vmatpush1.msra.mxu0 %v359
        %1911 = vmatprep.subr.mxu0 0.0
        %1912 = vmatpush2.msra.mxu0 0.0
        %1913 = vmatprep.subr.mxu0 0.0
        %1914 = vmatpush2.msra.mxu0 0.0
        %1915 = vmatprep.subr.mxu0 0.0
        %1916 = vmatpush2.msra.mxu0 0.0
        %1917 = vmatprep.subr.mxu0 0.0
        %1918 = vmatpush2.msra.mxu0 0.0
        %1919 = vmatprep.subr.mxu0 0.0
        %1920 = vmatpush2.msra.mxu0 0.0
        %1921 = vmatprep.subr.mxu0 0.0
        %1922 = vmatpush2.msra.mxu0 0.0
        %1923 = vmatprep.subr.mxu0 0.0
        %1924 = vmatpush2.msra.mxu0 0.0
        %1925 = vmatprep.subr.mxu0 0.0
        %1926 = vmatpush2.msra.mxu0 0.0
        %1927 = vmatprep.subr.mxu0 0.0
        %1928 = vmatpush2.msra.mxu0 0.0
        %1929 = vmatprep.subr.mxu0 0.0
        %1930 = vmatpush2.msra.mxu0 0.0
        %1931 = vmatprep.subr.mxu0 0.0
        %1932 = vmatpush2.msra.mxu0 0.0
        %1933 = vmatprep.subr.mxu0 0.0
        %1934 = vmatpush2.msra.mxu0 0.0
        %1935 = vmatprep.subr.mxu0 0.0
        %1936 = vmatpush2.msra.mxu0 0.0
        %1937 = vmatprep.subr.mxu0 0.0
        %1938 = vmatpush2.msra.mxu0 0.0
        %1939 = vmatprep.subr.mxu0 0.0
        %1940 = vmatpush2.msra.mxu0 0.0
        %1941 = vmatprep.subr.mxu0 0.0
        %1942 = vmatpush2.msra.mxu0 0.0
        %1943 = vmatprep.mubr.f32.mxu0 0.0
        %1944 = vmatmul.mubr.f32.gmra.mxu0 %v1877
        %v1945 = vpop.f32.mrf.mxu0
        %v1946 = vadd.f32 0.0, %v1945
        %v1947 = vpop.f32.mrf.mxu0
        %1948 = vdwg.mxu0
        %v1950 = vsel %vm467, %v1946, 0
        %1952 = vmatprep.subr.mxu0 0.0
        %1953 = vmatpush1.msra.mxu0 0.0
        %1954 = vmatprep.subr.mxu0 0.0
        %1955 = vmatpush1.msra.mxu0 0.0
        %1956 = vmatprep.subr.mxu0 0.0
        %1957 = vmatpush1.msra.mxu0 0.0
        %1958 = vmatprep.subr.mxu0 0.0
        %1959 = vmatpush1.msra.mxu0 0.0
        %1960 = vmatprep.subr.mxu0 0.0
        %1961 = vmatpush1.msra.mxu0 0.0
        %1962 = vmatprep.subr.mxu0 0.0
        %1963 = vmatpush1.msra.mxu0 0.0
        %1964 = vmatprep.subr.mxu0 0.0
        %1965 = vmatpush1.msra.mxu0 0.0
        %1966 = vmatprep.subr.mxu0 0.0
        %1967 = vmatpush1.msra.mxu0 0.0
        %1968 = vmatprep.subr.mxu0 0.0
        %1969 = vmatpush1.msra.mxu0 0.0
        %1970 = vmatprep.subr.mxu0 0.0
        %1971 = vmatpush1.msra.mxu0 0.0
        %1972 = vmatprep.subr.mxu0 0.0
        %1973 = vmatpush1.msra.mxu0 0.0
        %1974 = vmatprep.subr.mxu0 0.0
        %1975 = vmatpush1.msra.mxu0 0.0
        %1976 = vmatprep.subr.mxu0 0.0
        %1977 = vmatpush1.msra.mxu0 0.0
        %1978 = vmatprep.subr.mxu0 0.0
        %1979 = vmatpush1.msra.mxu0 0.0
        %1980 = vmatprep.subr.mxu0 0.0
        %1981 = vmatpush1.msra.mxu0 0.0
        %1982 = vmatprep.subr.mxu0 0.0
        %1983 = vmatpush1.msra.mxu0 %v1950
        %1984 = vmatprep.subr.mxu0 0.0
        %1985 = vmatpush2.msra.mxu0 0.0
        %1986 = vmatprep.subr.mxu0 0.0
        %1987 = vmatpush2.msra.mxu0 0.0
        %1988 = vmatprep.subr.mxu0 0.0
        %1989 = vmatpush2.msra.mxu0 0.0
        %1990 = vmatprep.subr.mxu0 0.0
        %1991 = vmatpush2.msra.mxu0 0.0
        %1992 = vmatprep.subr.mxu0 0.0
        %1993 = vmatpush2.msra.mxu0 0.0
        %1994 = vmatprep.subr.mxu0 0.0
        %1995 = vmatpush2.msra.mxu0 0.0
        %1996 = vmatprep.subr.mxu0 0.0
        %1997 = vmatpush2.msra.mxu0 0.0
        %1998 = vmatprep.subr.mxu0 0.0
        %1999 = vmatpush2.msra.mxu0 0.0
        %2000 = vmatprep.subr.mxu0 0.0
        %2001 = vmatpush2.msra.mxu0 0.0
        %2002 = vmatprep.subr.mxu0 0.0
        %2003 = vmatpush2.msra.mxu0 0.0
        %2004 = vmatprep.subr.mxu0 0.0
        %2005 = vmatpush2.msra.mxu0 0.0
        %2006 = vmatprep.subr.mxu0 0.0
        %2007 = vmatpush2.msra.mxu0 0.0
        %2008 = vmatprep.subr.mxu0 0.0
        %2009 = vmatpush2.msra.mxu0 0.0
        %2010 = vmatprep.subr.mxu0 0.0
        %2011 = vmatpush2.msra.mxu0 0.0
        %2012 = vmatprep.subr.mxu0 0.0
        %2013 = vmatpush2.msra.mxu0 0.0
        %2014 = vmatprep.subr.mxu0 0.0
        %2015 = vmatpush2.msra.mxu0 0.0
        %2016 = vmatprep.mubr.f32.mxu0 0.0
        %2017 = vmatmul.mubr.f32.gmra.mxu0 %v465
        %v2018 = vpop.f32.mrf.mxu0
        %v2019 = vadd.f32 0.0, %v2018
        %v2020 = vpop.f32.mrf.mxu0
        %2021 = vdwg.mxu0
        %v2022 = vld [vmem:[%s263 + $0x10] sm:$0xf]
        %2024 = vrot.lane.b32.xlu0 %v2019, 64
        %v2025 = vpop.permute.xlu0 %2024
        %v2027 = vadd.f32 %v2022, %v2025
        %v2028 = vadd.f32 %v2027, %v546
        %2029 = vst.msk [vmem:[%s301 + $0x10] sm:$0xf] %vm716, %v2028
        %v2030 = vld [vmem:[%s272 + $0xa] sm:$0x1]
        %v2031 = vld [vmem:[%s272 + $0x2a] sm:$0x1]
        %v2032 = vld [vmem:[%s272 + $0x4a] sm:$0x1]
        %v2033 = vld [vmem:[%s272 + $0x6a] sm:$0x1]
        %v2038 = vrot.slane %v2031, 7
        %v2039 = vsel %vm384, %v2038, %v2030
        %v2040 = vrot.slane %v2032, 6
        %v2041 = vsel %vm387, %v2040, %v2039
        %v2042 = vrot.slane %v2033, 5
        %v2043 = vsel %vm390, %v2042, %v2041
        %2045 = vmatprep.subr.mxu0 0.0
        %2046 = vmatpush1.msra.mxu0 %v374
        %2047 = vmatprep.subr.mxu0 0.0
        %2048 = vmatpush1.msra.mxu0 %v373
        %2049 = vmatprep.subr.mxu0 0.0
        %2050 = vmatpush1.msra.mxu0 %v372
        %2051 = vmatprep.subr.mxu0 0.0
        %2052 = vmatpush1.msra.mxu0 %v371
        %2053 = vmatprep.subr.mxu0 0.0
        %2054 = vmatpush1.msra.mxu0 %v370
        %2055 = vmatprep.subr.mxu0 0.0
        %2056 = vmatpush1.msra.mxu0 %v369
        %2057 = vmatprep.subr.mxu0 0.0
        %2058 = vmatpush1.msra.mxu0 %v368
        %2059 = vmatprep.subr.mxu0 0.0
        %2060 = vmatpush1.msra.mxu0 %v367
        %2061 = vmatprep.subr.mxu0 0.0
        %2062 = vmatpush1.msra.mxu0 %v366
        %2063 = vmatprep.subr.mxu0 0.0
        %2064 = vmatpush1.msra.mxu0 %v365
        %2065 = vmatprep.subr.mxu0 0.0
        %2066 = vmatpush1.msra.mxu0 %v364
        %2067 = vmatprep.subr.mxu0 0.0
        %2068 = vmatpush1.msra.mxu0 %v363
        %2069 = vmatprep.subr.mxu0 0.0
        %2070 = vmatpush1.msra.mxu0 %v362
        %2071 = vmatprep.subr.mxu0 0.0
        %2072 = vmatpush1.msra.mxu0 %v361
        %2073 = vmatprep.subr.mxu0 0.0
        %2074 = vmatpush1.msra.mxu0 %v360
        %2075 = vmatprep.subr.mxu0 0.0
        %2076 = vmatpush1.msra.mxu0 %v359
        %2077 = vmatprep.subr.mxu0 0.0
        %2078 = vmatpush2.msra.mxu0 0.0
        %2079 = vmatprep.subr.mxu0 0.0
        %2080 = vmatpush2.msra.mxu0 0.0
        %2081 = vmatprep.subr.mxu0 0.0
        %2082 = vmatpush2.msra.mxu0 0.0
        %2083 = vmatprep.subr.mxu0 0.0
        %2084 = vmatpush2.msra.mxu0 0.0
        %2085 = vmatprep.subr.mxu0 0.0
        %2086 = vmatpush2.msra.mxu0 0.0
        %2087 = vmatprep.subr.mxu0 0.0
        %2088 = vmatpush2.msra.mxu0 0.0
        %2089 = vmatprep.subr.mxu0 0.0
        %2090 = vmatpush2.msra.mxu0 0.0
        %2091 = vmatprep.subr.mxu0 0.0
        %2092 = vmatpush2.msra.mxu0 0.0
        %2093 = vmatprep.subr.mxu0 0.0
        %2094 = vmatpush2.msra.mxu0 0.0
        %2095 = vmatprep.subr.mxu0 0.0
        %2096 = vmatpush2.msra.mxu0 0.0
        %2097 = vmatprep.subr.mxu0 0.0
        %2098 = vmatpush2.msra.mxu0 0.0
        %2099 = vmatprep.subr.mxu0 0.0
        %2100 = vmatpush2.msra.mxu0 0.0
        %2101 = vmatprep.subr.mxu0 0.0
        %2102 = vmatpush2.msra.mxu0 0.0
        %2103 = vmatprep.subr.mxu0 0.0
        %2104 = vmatpush2.msra.mxu0 0.0
        %2105 = vmatprep.subr.mxu0 0.0
        %2106 = vmatpush2.msra.mxu0 0.0
        %2107 = vmatprep.subr.mxu0 0.0
        %2108 = vmatpush2.msra.mxu0 0.0
        %2109 = vmatprep.mubr.f32.mxu0 0.0
        %2110 = vmatmul.mubr.f32.gmra.mxu0 %v2043
        %v2111 = vpop.f32.mrf.mxu0
        %v2112 = vadd.f32 0.0, %v2111
        %v2113 = vpop.f32.mrf.mxu0
        %2114 = vdwg.mxu0
        %v2116 = vsel %vm467, %v2112, 0
        %2118 = vmatprep.subr.mxu0 0.0
        %2119 = vmatpush1.msra.mxu0 0.0
        %2120 = vmatprep.subr.mxu0 0.0
        %2121 = vmatpush1.msra.mxu0 0.0
        %2122 = vmatprep.subr.mxu0 0.0
        %2123 = vmatpush1.msra.mxu0 0.0
        %2124 = vmatprep.subr.mxu0 0.0
        %2125 = vmatpush1.msra.mxu0 0.0
        %2126 = vmatprep.subr.mxu0 0.0
        %2127 = vmatpush1.msra.mxu0 0.0
        %2128 = vmatprep.subr.mxu0 0.0
        %2129 = vmatpush1.msra.mxu0 0.0
        %2130 = vmatprep.subr.mxu0 0.0
        %2131 = vmatpush1.msra.mxu0 0.0
        %2132 = vmatprep.subr.mxu0 0.0
        %2133 = vmatpush1.msra.mxu0 0.0
        %2134 = vmatprep.subr.mxu0 0.0
        %2135 = vmatpush1.msra.mxu0 0.0
        %2136 = vmatprep.subr.mxu0 0.0
        %2137 = vmatpush1.msra.mxu0 0.0
        %2138 = vmatprep.subr.mxu0 0.0
        %2139 = vmatpush1.msra.mxu0 0.0
        %2140 = vmatprep.subr.mxu0 0.0
        %2141 = vmatpush1.msra.mxu0 0.0
        %2142 = vmatprep.subr.mxu0 0.0
        %2143 = vmatpush1.msra.mxu0 0.0
        %2144 = vmatprep.subr.mxu0 0.0
        %2145 = vmatpush1.msra.mxu0 0.0
        %2146 = vmatprep.subr.mxu0 0.0
        %2147 = vmatpush1.msra.mxu0 0.0
        %2148 = vmatprep.subr.mxu0 0.0
        %2149 = vmatpush1.msra.mxu0 %v2116
        %2150 = vmatprep.subr.mxu0 0.0
        %2151 = vmatpush2.msra.mxu0 0.0
        %2152 = vmatprep.subr.mxu0 0.0
        %2153 = vmatpush2.msra.mxu0 0.0
        %2154 = vmatprep.subr.mxu0 0.0
        %2155 = vmatpush2.msra.mxu0 0.0
        %2156 = vmatprep.subr.mxu0 0.0
        %2157 = vmatpush2.msra.mxu0 0.0
        %2158 = vmatprep.subr.mxu0 0.0
        %2159 = vmatpush2.msra.mxu0 0.0
        %2160 = vmatprep.subr.mxu0 0.0
        %2161 = vmatpush2.msra.mxu0 0.0
        %2162 = vmatprep.subr.mxu0 0.0
        %2163 = vmatpush2.msra.mxu0 0.0
        %2164 = vmatprep.subr.mxu0 0.0
        %2165 = vmatpush2.msra.mxu0 0.0
        %2166 = vmatprep.subr.mxu0 0.0
        %2167 = vmatpush2.msra.mxu0 0.0
        %2168 = vmatprep.subr.mxu0 0.0
        %2169 = vmatpush2.msra.mxu0 0.0
        %2170 = vmatprep.subr.mxu0 0.0
        %2171 = vmatpush2.msra.mxu0 0.0
        %2172 = vmatprep.subr.mxu0 0.0
        %2173 = vmatpush2.msra.mxu0 0.0
        %2174 = vmatprep.subr.mxu0 0.0
        %2175 = vmatpush2.msra.mxu0 0.0
        %2176 = vmatprep.subr.mxu0 0.0
        %2177 = vmatpush2.msra.mxu0 0.0
        %2178 = vmatprep.subr.mxu0 0.0
        %2179 = vmatpush2.msra.mxu0 0.0
        %2180 = vmatprep.subr.mxu0 0.0
        %2181 = vmatpush2.msra.mxu0 0.0
        %2182 = vmatprep.mubr.f32.mxu0 0.0
        %2183 = vmatmul.mubr.f32.gmra.mxu0 %v465
        %v2184 = vpop.f32.mrf.mxu0
        %v2185 = vadd.f32 0.0, %v2184
        %v2186 = vpop.f32.mrf.mxu0
        %2187 = vdwg.mxu0
        %v2188 = vld [vmem:[%s263 + $0x14] sm:$0xf]
        %v2189 = vadd.f32 %v2188, %v2185
        %v2190 = vadd.f32 %v2189, %v546
        %2191 = vst.msk [vmem:[%s301 + $0x14] sm:$0xf] %vm549, %v2190
        %v2192 = vld [vmem:[%s272 + $0xb] sm:$0x1]
        %v2193 = vld [vmem:[%s272 + $0x2b] sm:$0x1]
        %v2194 = vld [vmem:[%s272 + $0x4b] sm:$0x1]
        %v2195 = vld [vmem:[%s272 + $0x6b] sm:$0x1]
        %v2200 = vrot.slane %v2193, 7
        %v2201 = vsel %vm384, %v2200, %v2192
        %v2202 = vrot.slane %v2194, 6
        %v2203 = vsel %vm387, %v2202, %v2201
        %v2204 = vrot.slane %v2195, 5
        %v2205 = vsel %vm390, %v2204, %v2203
        %2207 = vmatprep.subr.mxu0 0.0
        %2208 = vmatpush1.msra.mxu0 %v374
        %2209 = vmatprep.subr.mxu0 0.0
        %2210 = vmatpush1.msra.mxu0 %v373
        %2211 = vmatprep.subr.mxu0 0.0
        %2212 = vmatpush1.msra.mxu0 %v372
        %2213 = vmatprep.subr.mxu0 0.0
        %2214 = vmatpush1.msra.mxu0 %v371
        %2215 = vmatprep.subr.mxu0 0.0
        %2216 = vmatpush1.msra.mxu0 %v370
        %2217 = vmatprep.subr.mxu0 0.0
        %2218 = vmatpush1.msra.mxu0 %v369
        %2219 = vmatprep.subr.mxu0 0.0
        %2220 = vmatpush1.msra.mxu0 %v368
        %2221 = vmatprep.subr.mxu0 0.0
        %2222 = vmatpush1.msra.mxu0 %v367
        %2223 = vmatprep.subr.mxu0 0.0
        %2224 = vmatpush1.msra.mxu0 %v366
        %2225 = vmatprep.subr.mxu0 0.0
        %2226 = vmatpush1.msra.mxu0 %v365
        %2227 = vmatprep.subr.mxu0 0.0
        %2228 = vmatpush1.msra.mxu0 %v364
        %2229 = vmatprep.subr.mxu0 0.0
        %2230 = vmatpush1.msra.mxu0 %v363
        %2231 = vmatprep.subr.mxu0 0.0
        %2232 = vmatpush1.msra.mxu0 %v362
        %2233 = vmatprep.subr.mxu0 0.0
        %2234 = vmatpush1.msra.mxu0 %v361
        %2235 = vmatprep.subr.mxu0 0.0
        %2236 = vmatpush1.msra.mxu0 %v360
        %2237 = vmatprep.subr.mxu0 0.0
        %2238 = vmatpush1.msra.mxu0 %v359
        %2239 = vmatprep.subr.mxu0 0.0
        %2240 = vmatpush2.msra.mxu0 0.0
        %2241 = vmatprep.subr.mxu0 0.0
        %2242 = vmatpush2.msra.mxu0 0.0
        %2243 = vmatprep.subr.mxu0 0.0
        %2244 = vmatpush2.msra.mxu0 0.0
        %2245 = vmatprep.subr.mxu0 0.0
        %2246 = vmatpush2.msra.mxu0 0.0
        %2247 = vmatprep.subr.mxu0 0.0
        %2248 = vmatpush2.msra.mxu0 0.0
        %2249 = vmatprep.subr.mxu0 0.0
        %2250 = vmatpush2.msra.mxu0 0.0
        %2251 = vmatprep.subr.mxu0 0.0
        %2252 = vmatpush2.msra.mxu0 0.0
        %2253 = vmatprep.subr.mxu0 0.0
        %2254 = vmatpush2.msra.mxu0 0.0
        %2255 = vmatprep.subr.mxu0 0.0
        %2256 = vmatpush2.msra.mxu0 0.0
        %2257 = vmatprep.subr.mxu0 0.0
        %2258 = vmatpush2.msra.mxu0 0.0
        %2259 = vmatprep.subr.mxu0 0.0
        %2260 = vmatpush2.msra.mxu0 0.0
        %2261 = vmatprep.subr.mxu0 0.0
        %2262 = vmatpush2.msra.mxu0 0.0
        %2263 = vmatprep.subr.mxu0 0.0
        %2264 = vmatpush2.msra.mxu0 0.0
        %2265 = vmatprep.subr.mxu0 0.0
        %2266 = vmatpush2.msra.mxu0 0.0
        %2267 = vmatprep.subr.mxu0 0.0
        %2268 = vmatpush2.msra.mxu0 0.0
        %2269 = vmatprep.subr.mxu0 0.0
        %2270 = vmatpush2.msra.mxu0 0.0
        %2271 = vmatprep.mubr.f32.mxu0 0.0
        %2272 = vmatmul.mubr.f32.gmra.mxu0 %v2205
        %v2273 = vpop.f32.mrf.mxu0
        %v2274 = vadd.f32 0.0, %v2273
        %v2275 = vpop.f32.mrf.mxu0
        %2276 = vdwg.mxu0
        %v2278 = vsel %vm467, %v2274, 0
        %2280 = vmatprep.subr.mxu0 0.0
        %2281 = vmatpush1.msra.mxu0 0.0
        %2282 = vmatprep.subr.mxu0 0.0
        %2283 = vmatpush1.msra.mxu0 0.0
        %2284 = vmatprep.subr.mxu0 0.0
        %2285 = vmatpush1.msra.mxu0 0.0
        %2286 = vmatprep.subr.mxu0 0.0
        %2287 = vmatpush1.msra.mxu0 0.0
        %2288 = vmatprep.subr.mxu0 0.0
        %2289 = vmatpush1.msra.mxu0 0.0
        %2290 = vmatprep.subr.mxu0 0.0
        %2291 = vmatpush1.msra.mxu0 0.0
        %2292 = vmatprep.subr.mxu0 0.0
        %2293 = vmatpush1.msra.mxu0 0.0
        %2294 = vmatprep.subr.mxu0 0.0
        %2295 = vmatpush1.msra.mxu0 0.0
        %2296 = vmatprep.subr.mxu0 0.0
        %2297 = vmatpush1.msra.mxu0 0.0
        %2298 = vmatprep.subr.mxu0 0.0
        %2299 = vmatpush1.msra.mxu0 0.0
        %2300 = vmatprep.subr.mxu0 0.0
        %2301 = vmatpush1.msra.mxu0 0.0
        %2302 = vmatprep.subr.mxu0 0.0
        %2303 = vmatpush1.msra.mxu0 0.0
        %2304 = vmatprep.subr.mxu0 0.0
        %2305 = vmatpush1.msra.mxu0 0.0
        %2306 = vmatprep.subr.mxu0 0.0
        %2307 = vmatpush1.msra.mxu0 0.0
        %2308 = vmatprep.subr.mxu0 0.0
        %2309 = vmatpush1.msra.mxu0 0.0
        %2310 = vmatprep.subr.mxu0 0.0
        %2311 = vmatpush1.msra.mxu0 %v2278
        %2312 = vmatprep.subr.mxu0 0.0
        %2313 = vmatpush2.msra.mxu0 0.0
        %2314 = vmatprep.subr.mxu0 0.0
        %2315 = vmatpush2.msra.mxu0 0.0
        %2316 = vmatprep.subr.mxu0 0.0
        %2317 = vmatpush2.msra.mxu0 0.0
        %2318 = vmatprep.subr.mxu0 0.0
        %2319 = vmatpush2.msra.mxu0 0.0
        %2320 = vmatprep.subr.mxu0 0.0
        %2321 = vmatpush2.msra.mxu0 0.0
        %2322 = vmatprep.subr.mxu0 0.0
        %2323 = vmatpush2.msra.mxu0 0.0
        %2324 = vmatprep.subr.mxu0 0.0
        %2325 = vmatpush2.msra.mxu0 0.0
        %2326 = vmatprep.subr.mxu0 0.0
        %2327 = vmatpush2.msra.mxu0 0.0
        %2328 = vmatprep.subr.mxu0 0.0
        %2329 = vmatpush2.msra.mxu0 0.0
        %2330 = vmatprep.subr.mxu0 0.0
        %2331 = vmatpush2.msra.mxu0 0.0
        %2332 = vmatprep.subr.mxu0 0.0
        %2333 = vmatpush2.msra.mxu0 0.0
        %2334 = vmatprep.subr.mxu0 0.0
        %2335 = vmatpush2.msra.mxu0 0.0
        %2336 = vmatprep.subr.mxu0 0.0
        %2337 = vmatpush2.msra.mxu0 0.0
        %2338 = vmatprep.subr.mxu0 0.0
        %2339 = vmatpush2.msra.mxu0 0.0
        %2340 = vmatprep.subr.mxu0 0.0
        %2341 = vmatpush2.msra.mxu0 0.0
        %2342 = vmatprep.subr.mxu0 0.0
        %2343 = vmatpush2.msra.mxu0 0.0
        %2344 = vmatprep.mubr.f32.mxu0 0.0
        %2345 = vmatmul.mubr.f32.gmra.mxu0 %v465
        %v2346 = vpop.f32.mrf.mxu0
        %v2347 = vadd.f32 0.0, %v2346
        %v2348 = vpop.f32.mrf.mxu0
        %2349 = vdwg.mxu0
        %v2350 = vld [vmem:[%s263 + $0x14] sm:$0xf]
        %2352 = vrot.lane.b32.xlu0 %v2347, 64
        %v2353 = vpop.permute.xlu0 %2352
        %v2355 = vadd.f32 %v2350, %v2353
        %v2356 = vadd.f32 %v2355, %v546
        %2357 = vst.msk [vmem:[%s301 + $0x14] sm:$0xf] %vm716, %v2356
        %v2358 = vld [vmem:[%s272 + $0xc] sm:$0x1]
        %v2359 = vld [vmem:[%s272 + $0x2c] sm:$0x1]
        %v2360 = vld [vmem:[%s272 + $0x4c] sm:$0x1]
        %v2361 = vld [vmem:[%s272 + $0x6c] sm:$0x1]
        %v2366 = vrot.slane %v2359, 7
        %v2367 = vsel %vm384, %v2366, %v2358
        %v2368 = vrot.slane %v2360, 6
        %v2369 = vsel %vm387, %v2368, %v2367
        %v2370 = vrot.slane %v2361, 5
        %v2371 = vsel %vm390, %v2370, %v2369
        %2373 = vmatprep.subr.mxu0 0.0
        %2374 = vmatpush1.msra.mxu0 %v374
        %2375 = vmatprep.subr.mxu0 0.0
        %2376 = vmatpush1.msra.mxu0 %v373
        %2377 = vmatprep.subr.mxu0 0.0
        %2378 = vmatpush1.msra.mxu0 %v372
        %2379 = vmatprep.subr.mxu0 0.0
        %2380 = vmatpush1.msra.mxu0 %v371
        %2381 = vmatprep.subr.mxu0 0.0
        %2382 = vmatpush1.msra.mxu0 %v370
        %2383 = vmatprep.subr.mxu0 0.0
        %2384 = vmatpush1.msra.mxu0 %v369
        %2385 = vmatprep.subr.mxu0 0.0
        %2386 = vmatpush1.msra.mxu0 %v368
        %2387 = vmatprep.subr.mxu0 0.0
        %2388 = vmatpush1.msra.mxu0 %v367
        %2389 = vmatprep.subr.mxu0 0.0
        %2390 = vmatpush1.msra.mxu0 %v366
        %2391 = vmatprep.subr.mxu0 0.0
        %2392 = vmatpush1.msra.mxu0 %v365
        %2393 = vmatprep.subr.mxu0 0.0
        %2394 = vmatpush1.msra.mxu0 %v364
        %2395 = vmatprep.subr.mxu0 0.0
        %2396 = vmatpush1.msra.mxu0 %v363
        %2397 = vmatprep.subr.mxu0 0.0
        %2398 = vmatpush1.msra.mxu0 %v362
        %2399 = vmatprep.subr.mxu0 0.0
        %2400 = vmatpush1.msra.mxu0 %v361
        %2401 = vmatprep.subr.mxu0 0.0
        %2402 = vmatpush1.msra.mxu0 %v360
        %2403 = vmatprep.subr.mxu0 0.0
        %2404 = vmatpush1.msra.mxu0 %v359
        %2405 = vmatprep.subr.mxu0 0.0
        %2406 = vmatpush2.msra.mxu0 0.0
        %2407 = vmatprep.subr.mxu0 0.0
        %2408 = vmatpush2.msra.mxu0 0.0
        %2409 = vmatprep.subr.mxu0 0.0
        %2410 = vmatpush2.msra.mxu0 0.0
        %2411 = vmatprep.subr.mxu0 0.0
        %2412 = vmatpush2.msra.mxu0 0.0
        %2413 = vmatprep.subr.mxu0 0.0
        %2414 = vmatpush2.msra.mxu0 0.0
        %2415 = vmatprep.subr.mxu0 0.0
        %2416 = vmatpush2.msra.mxu0 0.0
        %2417 = vmatprep.subr.mxu0 0.0
        %2418 = vmatpush2.msra.mxu0 0.0
        %2419 = vmatprep.subr.mxu0 0.0
        %2420 = vmatpush2.msra.mxu0 0.0
        %2421 = vmatprep.subr.mxu0 0.0
        %2422 = vmatpush2.msra.mxu0 0.0
        %2423 = vmatprep.subr.mxu0 0.0
        %2424 = vmatpush2.msra.mxu0 0.0
        %2425 = vmatprep.subr.mxu0 0.0
        %2426 = vmatpush2.msra.mxu0 0.0
        %2427 = vmatprep.subr.mxu0 0.0
        %2428 = vmatpush2.msra.mxu0 0.0
        %2429 = vmatprep.subr.mxu0 0.0
        %2430 = vmatpush2.msra.mxu0 0.0
        %2431 = vmatprep.subr.mxu0 0.0
        %2432 = vmatpush2.msra.mxu0 0.0
        %2433 = vmatprep.subr.mxu0 0.0
        %2434 = vmatpush2.msra.mxu0 0.0
        %2435 = vmatprep.subr.mxu0 0.0
        %2436 = vmatpush2.msra.mxu0 0.0
        %2437 = vmatprep.mubr.f32.mxu0 0.0
        %2438 = vmatmul.mubr.f32.gmra.mxu0 %v2371
        %v2439 = vpop.f32.mrf.mxu0
        %v2440 = vadd.f32 0.0, %v2439
        %v2441 = vpop.f32.mrf.mxu0
        %2442 = vdwg.mxu0
        %v2444 = vsel %vm467, %v2440, 0
        %2446 = vmatprep.subr.mxu0 0.0
        %2447 = vmatpush1.msra.mxu0 0.0
        %2448 = vmatprep.subr.mxu0 0.0
        %2449 = vmatpush1.msra.mxu0 0.0
        %2450 = vmatprep.subr.mxu0 0.0
        %2451 = vmatpush1.msra.mxu0 0.0
        %2452 = vmatprep.subr.mxu0 0.0
        %2453 = vmatpush1.msra.mxu0 0.0
        %2454 = vmatprep.subr.mxu0 0.0
        %2455 = vmatpush1.msra.mxu0 0.0
        %2456 = vmatprep.subr.mxu0 0.0
        %2457 = vmatpush1.msra.mxu0 0.0
        %2458 = vmatprep.subr.mxu0 0.0
        %2459 = vmatpush1.msra.mxu0 0.0
        %2460 = vmatprep.subr.mxu0 0.0
        %2461 = vmatpush1.msra.mxu0 0.0
        %2462 = vmatprep.subr.mxu0 0.0
        %2463 = vmatpush1.msra.mxu0 0.0
        %2464 = vmatprep.subr.mxu0 0.0
        %2465 = vmatpush1.msra.mxu0 0.0
        %2466 = vmatprep.subr.mxu0 0.0
        %2467 = vmatpush1.msra.mxu0 0.0
        %2468 = vmatprep.subr.mxu0 0.0
        %2469 = vmatpush1.msra.mxu0 0.0
        %2470 = vmatprep.subr.mxu0 0.0
        %2471 = vmatpush1.msra.mxu0 0.0
        %2472 = vmatprep.subr.mxu0 0.0
        %2473 = vmatpush1.msra.mxu0 0.0
        %2474 = vmatprep.subr.mxu0 0.0
        %2475 = vmatpush1.msra.mxu0 0.0
        %2476 = vmatprep.subr.mxu0 0.0
        %2477 = vmatpush1.msra.mxu0 %v2444
        %2478 = vmatprep.subr.mxu0 0.0
        %2479 = vmatpush2.msra.mxu0 0.0
        %2480 = vmatprep.subr.mxu0 0.0
        %2481 = vmatpush2.msra.mxu0 0.0
        %2482 = vmatprep.subr.mxu0 0.0
        %2483 = vmatpush2.msra.mxu0 0.0
        %2484 = vmatprep.subr.mxu0 0.0
        %2485 = vmatpush2.msra.mxu0 0.0
        %2486 = vmatprep.subr.mxu0 0.0
        %2487 = vmatpush2.msra.mxu0 0.0
        %2488 = vmatprep.subr.mxu0 0.0
        %2489 = vmatpush2.msra.mxu0 0.0
        %2490 = vmatprep.subr.mxu0 0.0
        %2491 = vmatpush2.msra.mxu0 0.0
        %2492 = vmatprep.subr.mxu0 0.0
        %2493 = vmatpush2.msra.mxu0 0.0
        %2494 = vmatprep.subr.mxu0 0.0
        %2495 = vmatpush2.msra.mxu0 0.0
        %2496 = vmatprep.subr.mxu0 0.0
        %2497 = vmatpush2.msra.mxu0 0.0
        %2498 = vmatprep.subr.mxu0 0.0
        %2499 = vmatpush2.msra.mxu0 0.0
        %2500 = vmatprep.subr.mxu0 0.0
        %2501 = vmatpush2.msra.mxu0 0.0
        %2502 = vmatprep.subr.mxu0 0.0
        %2503 = vmatpush2.msra.mxu0 0.0
        %2504 = vmatprep.subr.mxu0 0.0
        %2505 = vmatpush2.msra.mxu0 0.0
        %2506 = vmatprep.subr.mxu0 0.0
        %2507 = vmatpush2.msra.mxu0 0.0
        %2508 = vmatprep.subr.mxu0 0.0
        %2509 = vmatpush2.msra.mxu0 0.0
        %2510 = vmatprep.mubr.f32.mxu0 0.0
        %2511 = vmatmul.mubr.f32.gmra.mxu0 %v465
        %v2512 = vpop.f32.mrf.mxu0
        %v2513 = vadd.f32 0.0, %v2512
        %v2514 = vpop.f32.mrf.mxu0
        %2515 = vdwg.mxu0
        %v2516 = vld [vmem:[%s263 + $0x18] sm:$0xf]
        %v2517 = vadd.f32 %v2516, %v2513
        %v2518 = vadd.f32 %v2517, %v546
        %2519 = vst.msk [vmem:[%s301 + $0x18] sm:$0xf] %vm549, %v2518
        %v2520 = vld [vmem:[%s272 + $0xd] sm:$0x1]
        %v2521 = vld [vmem:[%s272 + $0x2d] sm:$0x1]
        %v2522 = vld [vmem:[%s272 + $0x4d] sm:$0x1]
        %v2523 = vld [vmem:[%s272 + $0x6d] sm:$0x1]
        %v2528 = vrot.slane %v2521, 7
        %v2529 = vsel %vm384, %v2528, %v2520
        %v2530 = vrot.slane %v2522, 6
        %v2531 = vsel %vm387, %v2530, %v2529
        %v2532 = vrot.slane %v2523, 5
        %v2533 = vsel %vm390, %v2532, %v2531
        %2535 = vmatprep.subr.mxu0 0.0
        %2536 = vmatpush1.msra.mxu0 %v374
        %2537 = vmatprep.subr.mxu0 0.0
        %2538 = vmatpush1.msra.mxu0 %v373
        %2539 = vmatprep.subr.mxu0 0.0
        %2540 = vmatpush1.msra.mxu0 %v372
        %2541 = vmatprep.subr.mxu0 0.0
        %2542 = vmatpush1.msra.mxu0 %v371
        %2543 = vmatprep.subr.mxu0 0.0
        %2544 = vmatpush1.msra.mxu0 %v370
        %2545 = vmatprep.subr.mxu0 0.0
        %2546 = vmatpush1.msra.mxu0 %v369
        %2547 = vmatprep.subr.mxu0 0.0
        %2548 = vmatpush1.msra.mxu0 %v368
        %2549 = vmatprep.subr.mxu0 0.0
        %2550 = vmatpush1.msra.mxu0 %v367
        %2551 = vmatprep.subr.mxu0 0.0
        %2552 = vmatpush1.msra.mxu0 %v366
        %2553 = vmatprep.subr.mxu0 0.0
        %2554 = vmatpush1.msra.mxu0 %v365
        %2555 = vmatprep.subr.mxu0 0.0
        %2556 = vmatpush1.msra.mxu0 %v364
        %2557 = vmatprep.subr.mxu0 0.0
        %2558 = vmatpush1.msra.mxu0 %v363
        %2559 = vmatprep.subr.mxu0 0.0
        %2560 = vmatpush1.msra.mxu0 %v362
        %2561 = vmatprep.subr.mxu0 0.0
        %2562 = vmatpush1.msra.mxu0 %v361
        %2563 = vmatprep.subr.mxu0 0.0
        %2564 = vmatpush1.msra.mxu0 %v360
        %2565 = vmatprep.subr.mxu0 0.0
        %2566 = vmatpush1.msra.mxu0 %v359
        %2567 = vmatprep.subr.mxu0 0.0
        %2568 = vmatpush2.msra.mxu0 0.0
        %2569 = vmatprep.subr.mxu0 0.0
        %2570 = vmatpush2.msra.mxu0 0.0
        %2571 = vmatprep.subr.mxu0 0.0
        %2572 = vmatpush2.msra.mxu0 0.0
        %2573 = vmatprep.subr.mxu0 0.0
        %2574 = vmatpush2.msra.mxu0 0.0
        %2575 = vmatprep.subr.mxu0 0.0
        %2576 = vmatpush2.msra.mxu0 0.0
        %2577 = vmatprep.subr.mxu0 0.0
        %2578 = vmatpush2.msra.mxu0 0.0
        %2579 = vmatprep.subr.mxu0 0.0
        %2580 = vmatpush2.msra.mxu0 0.0
        %2581 = vmatprep.subr.mxu0 0.0
        %2582 = vmatpush2.msra.mxu0 0.0
        %2583 = vmatprep.subr.mxu0 0.0
        %2584 = vmatpush2.msra.mxu0 0.0
        %2585 = vmatprep.subr.mxu0 0.0
        %2586 = vmatpush2.msra.mxu0 0.0
        %2587 = vmatprep.subr.mxu0 0.0
        %2588 = vmatpush2.msra.mxu0 0.0
        %2589 = vmatprep.subr.mxu0 0.0
        %2590 = vmatpush2.msra.mxu0 0.0
        %2591 = vmatprep.subr.mxu0 0.0
        %2592 = vmatpush2.msra.mxu0 0.0
        %2593 = vmatprep.subr.mxu0 0.0
        %2594 = vmatpush2.msra.mxu0 0.0
        %2595 = vmatprep.subr.mxu0 0.0
        %2596 = vmatpush2.msra.mxu0 0.0
        %2597 = vmatprep.subr.mxu0 0.0
        %2598 = vmatpush2.msra.mxu0 0.0
        %2599 = vmatprep.mubr.f32.mxu0 0.0
        %2600 = vmatmul.mubr.f32.gmra.mxu0 %v2533
        %v2601 = vpop.f32.mrf.mxu0
        %v2602 = vadd.f32 0.0, %v2601
        %v2603 = vpop.f32.mrf.mxu0
        %2604 = vdwg.mxu0
        %v2606 = vsel %vm467, %v2602, 0
        %2608 = vmatprep.subr.mxu0 0.0
        %2609 = vmatpush1.msra.mxu0 0.0
        %2610 = vmatprep.subr.mxu0 0.0
        %2611 = vmatpush1.msra.mxu0 0.0
        %2612 = vmatprep.subr.mxu0 0.0
        %2613 = vmatpush1.msra.mxu0 0.0
        %2614 = vmatprep.subr.mxu0 0.0
        %2615 = vmatpush1.msra.mxu0 0.0
        %2616 = vmatprep.subr.mxu0 0.0
        %2617 = vmatpush1.msra.mxu0 0.0
        %2618 = vmatprep.subr.mxu0 0.0
        %2619 = vmatpush1.msra.mxu0 0.0
        %2620 = vmatprep.subr.mxu0 0.0
        %2621 = vmatpush1.msra.mxu0 0.0
        %2622 = vmatprep.subr.mxu0 0.0
        %2623 = vmatpush1.msra.mxu0 0.0
        %2624 = vmatprep.subr.mxu0 0.0
        %2625 = vmatpush1.msra.mxu0 0.0
        %2626 = vmatprep.subr.mxu0 0.0
        %2627 = vmatpush1.msra.mxu0 0.0
        %2628 = vmatprep.subr.mxu0 0.0
        %2629 = vmatpush1.msra.mxu0 0.0
        %2630 = vmatprep.subr.mxu0 0.0
        %2631 = vmatpush1.msra.mxu0 0.0
        %2632 = vmatprep.subr.mxu0 0.0
        %2633 = vmatpush1.msra.mxu0 0.0
        %2634 = vmatprep.subr.mxu0 0.0
        %2635 = vmatpush1.msra.mxu0 0.0
        %2636 = vmatprep.subr.mxu0 0.0
        %2637 = vmatpush1.msra.mxu0 0.0
        %2638 = vmatprep.subr.mxu0 0.0
        %2639 = vmatpush1.msra.mxu0 %v2606
        %2640 = vmatprep.subr.mxu0 0.0
        %2641 = vmatpush2.msra.mxu0 0.0
        %2642 = vmatprep.subr.mxu0 0.0
        %2643 = vmatpush2.msra.mxu0 0.0
        %2644 = vmatprep.subr.mxu0 0.0
        %2645 = vmatpush2.msra.mxu0 0.0
        %2646 = vmatprep.subr.mxu0 0.0
        %2647 = vmatpush2.msra.mxu0 0.0
        %2648 = vmatprep.subr.mxu0 0.0
        %2649 = vmatpush2.msra.mxu0 0.0
        %2650 = vmatprep.subr.mxu0 0.0
        %2651 = vmatpush2.msra.mxu0 0.0
        %2652 = vmatprep.subr.mxu0 0.0
        %2653 = vmatpush2.msra.mxu0 0.0
        %2654 = vmatprep.subr.mxu0 0.0
        %2655 = vmatpush2.msra.mxu0 0.0
        %2656 = vmatprep.subr.mxu0 0.0
        %2657 = vmatpush2.msra.mxu0 0.0
        %2658 = vmatprep.subr.mxu0 0.0
        %2659 = vmatpush2.msra.mxu0 0.0
        %2660 = vmatprep.subr.mxu0 0.0
        %2661 = vmatpush2.msra.mxu0 0.0
        %2662 = vmatprep.subr.mxu0 0.0
        %2663 = vmatpush2.msra.mxu0 0.0
        %2664 = vmatprep.subr.mxu0 0.0
        %2665 = vmatpush2.msra.mxu0 0.0
        %2666 = vmatprep.subr.mxu0 0.0
        %2667 = vmatpush2.msra.mxu0 0.0
        %2668 = vmatprep.subr.mxu0 0.0
        %2669 = vmatpush2.msra.mxu0 0.0
        %2670 = vmatprep.subr.mxu0 0.0
        %2671 = vmatpush2.msra.mxu0 0.0
        %2672 = vmatprep.mubr.f32.mxu0 0.0
        %2673 = vmatmul.mubr.f32.gmra.mxu0 %v465
        %v2674 = vpop.f32.mrf.mxu0
        %v2675 = vadd.f32 0.0, %v2674
        %v2676 = vpop.f32.mrf.mxu0
        %2677 = vdwg.mxu0
        %v2678 = vld [vmem:[%s263 + $0x18] sm:$0xf]
        %2680 = vrot.lane.b32.xlu0 %v2675, 64
        %v2681 = vpop.permute.xlu0 %2680
        %v2683 = vadd.f32 %v2678, %v2681
        %v2684 = vadd.f32 %v2683, %v546
        %2685 = vst.msk [vmem:[%s301 + $0x18] sm:$0xf] %vm716, %v2684
        %v2686 = vld [vmem:[%s272 + $0xe] sm:$0x1]
        %v2687 = vld [vmem:[%s272 + $0x2e] sm:$0x1]
        %v2688 = vld [vmem:[%s272 + $0x4e] sm:$0x1]
        %v2689 = vld [vmem:[%s272 + $0x6e] sm:$0x1]
        %v2694 = vrot.slane %v2687, 7
        %v2695 = vsel %vm384, %v2694, %v2686
        %v2696 = vrot.slane %v2688, 6
        %v2697 = vsel %vm387, %v2696, %v2695
        %v2698 = vrot.slane %v2689, 5
        %v2699 = vsel %vm390, %v2698, %v2697
        %2701 = vmatprep.subr.mxu0 0.0
        %2702 = vmatpush1.msra.mxu0 %v374
        %2703 = vmatprep.subr.mxu0 0.0
        %2704 = vmatpush1.msra.mxu0 %v373
        %2705 = vmatprep.subr.mxu0 0.0
        %2706 = vmatpush1.msra.mxu0 %v372
        %2707 = vmatprep.subr.mxu0 0.0
        %2708 = vmatpush1.msra.mxu0 %v371
        %2709 = vmatprep.subr.mxu0 0.0
        %2710 = vmatpush1.msra.mxu0 %v370
        %2711 = vmatprep.subr.mxu0 0.0
        %2712 = vmatpush1.msra.mxu0 %v369
        %2713 = vmatprep.subr.mxu0 0.0
        %2714 = vmatpush1.msra.mxu0 %v368
        %2715 = vmatprep.subr.mxu0 0.0
        %2716 = vmatpush1.msra.mxu0 %v367
        %2717 = vmatprep.subr.mxu0 0.0
        %2718 = vmatpush1.msra.mxu0 %v366
        %2719 = vmatprep.subr.mxu0 0.0
        %2720 = vmatpush1.msra.mxu0 %v365
        %2721 = vmatprep.subr.mxu0 0.0
        %2722 = vmatpush1.msra.mxu0 %v364
        %2723 = vmatprep.subr.mxu0 0.0
        %2724 = vmatpush1.msra.mxu0 %v363
        %2725 = vmatprep.subr.mxu0 0.0
        %2726 = vmatpush1.msra.mxu0 %v362
        %2727 = vmatprep.subr.mxu0 0.0
        %2728 = vmatpush1.msra.mxu0 %v361
        %2729 = vmatprep.subr.mxu0 0.0
        %2730 = vmatpush1.msra.mxu0 %v360
        %2731 = vmatprep.subr.mxu0 0.0
        %2732 = vmatpush1.msra.mxu0 %v359
        %2733 = vmatprep.subr.mxu0 0.0
        %2734 = vmatpush2.msra.mxu0 0.0
        %2735 = vmatprep.subr.mxu0 0.0
        %2736 = vmatpush2.msra.mxu0 0.0
        %2737 = vmatprep.subr.mxu0 0.0
        %2738 = vmatpush2.msra.mxu0 0.0
        %2739 = vmatprep.subr.mxu0 0.0
        %2740 = vmatpush2.msra.mxu0 0.0
        %2741 = vmatprep.subr.mxu0 0.0
        %2742 = vmatpush2.msra.mxu0 0.0
        %2743 = vmatprep.subr.mxu0 0.0
        %2744 = vmatpush2.msra.mxu0 0.0
        %2745 = vmatprep.subr.mxu0 0.0
        %2746 = vmatpush2.msra.mxu0 0.0
        %2747 = vmatprep.subr.mxu0 0.0
        %2748 = vmatpush2.msra.mxu0 0.0
        %2749 = vmatprep.subr.mxu0 0.0
        %2750 = vmatpush2.msra.mxu0 0.0
        %2751 = vmatprep.subr.mxu0 0.0
        %2752 = vmatpush2.msra.mxu0 0.0
        %2753 = vmatprep.subr.mxu0 0.0
        %2754 = vmatpush2.msra.mxu0 0.0
        %2755 = vmatprep.subr.mxu0 0.0
        %2756 = vmatpush2.msra.mxu0 0.0
        %2757 = vmatprep.subr.mxu0 0.0
        %2758 = vmatpush2.msra.mxu0 0.0
        %2759 = vmatprep.subr.mxu0 0.0
        %2760 = vmatpush2.msra.mxu0 0.0
        %2761 = vmatprep.subr.mxu0 0.0
        %2762 = vmatpush2.msra.mxu0 0.0
        %2763 = vmatprep.subr.mxu0 0.0
        %2764 = vmatpush2.msra.mxu0 0.0
        %2765 = vmatprep.mubr.f32.mxu0 0.0
        %2766 = vmatmul.mubr.f32.gmra.mxu0 %v2699
        %v2767 = vpop.f32.mrf.mxu0
        %v2768 = vadd.f32 0.0, %v2767
        %v2769 = vpop.f32.mrf.mxu0
        %2770 = vdwg.mxu0
        %v2772 = vsel %vm467, %v2768, 0
        %2774 = vmatprep.subr.mxu0 0.0
        %2775 = vmatpush1.msra.mxu0 0.0
        %2776 = vmatprep.subr.mxu0 0.0
        %2777 = vmatpush1.msra.mxu0 0.0
        %2778 = vmatprep.subr.mxu0 0.0
        %2779 = vmatpush1.msra.mxu0 0.0
        %2780 = vmatprep.subr.mxu0 0.0
        %2781 = vmatpush1.msra.mxu0 0.0
        %2782 = vmatprep.subr.mxu0 0.0
        %2783 = vmatpush1.msra.mxu0 0.0
        %2784 = vmatprep.subr.mxu0 0.0
        %2785 = vmatpush1.msra.mxu0 0.0
        %2786 = vmatprep.subr.mxu0 0.0
        %2787 = vmatpush1.msra.mxu0 0.0
        %2788 = vmatprep.subr.mxu0 0.0
        %2789 = vmatpush1.msra.mxu0 0.0
        %2790 = vmatprep.subr.mxu0 0.0
        %2791 = vmatpush1.msra.mxu0 0.0
        %2792 = vmatprep.subr.mxu0 0.0
        %2793 = vmatpush1.msra.mxu0 0.0
        %2794 = vmatprep.subr.mxu0 0.0
        %2795 = vmatpush1.msra.mxu0 0.0
        %2796 = vmatprep.subr.mxu0 0.0
        %2797 = vmatpush1.msra.mxu0 0.0
        %2798 = vmatprep.subr.mxu0 0.0
        %2799 = vmatpush1.msra.mxu0 0.0
        %2800 = vmatprep.subr.mxu0 0.0
        %2801 = vmatpush1.msra.mxu0 0.0
        %2802 = vmatprep.subr.mxu0 0.0
        %2803 = vmatpush1.msra.mxu0 0.0
        %2804 = vmatprep.subr.mxu0 0.0
        %2805 = vmatpush1.msra.mxu0 %v2772
        %2806 = vmatprep.subr.mxu0 0.0
        %2807 = vmatpush2.msra.mxu0 0.0
        %2808 = vmatprep.subr.mxu0 0.0
        %2809 = vmatpush2.msra.mxu0 0.0
        %2810 = vmatprep.subr.mxu0 0.0
        %2811 = vmatpush2.msra.mxu0 0.0
        %2812 = vmatprep.subr.mxu0 0.0
        %2813 = vmatpush2.msra.mxu0 0.0
        %2814 = vmatprep.subr.mxu0 0.0
        %2815 = vmatpush2.msra.mxu0 0.0
        %2816 = vmatprep.subr.mxu0 0.0
        %2817 = vmatpush2.msra.mxu0 0.0
        %2818 = vmatprep.subr.mxu0 0.0
        %2819 = vmatpush2.msra.mxu0 0.0
        %2820 = vmatprep.subr.mxu0 0.0
        %2821 = vmatpush2.msra.mxu0 0.0
        %2822 = vmatprep.subr.mxu0 0.0
        %2823 = vmatpush2.msra.mxu0 0.0
        %2824 = vmatprep.subr.mxu0 0.0
        %2825 = vmatpush2.msra.mxu0 0.0
        %2826 = vmatprep.subr.mxu0 0.0
        %2827 = vmatpush2.msra.mxu0 0.0
        %2828 = vmatprep.subr.mxu0 0.0
        %2829 = vmatpush2.msra.mxu0 0.0
        %2830 = vmatprep.subr.mxu0 0.0
        %2831 = vmatpush2.msra.mxu0 0.0
        %2832 = vmatprep.subr.mxu0 0.0
        %2833 = vmatpush2.msra.mxu0 0.0
        %2834 = vmatprep.subr.mxu0 0.0
        %2835 = vmatpush2.msra.mxu0 0.0
        %2836 = vmatprep.subr.mxu0 0.0
        %2837 = vmatpush2.msra.mxu0 0.0
        %2838 = vmatprep.mubr.f32.mxu0 0.0
        %2839 = vmatmul.mubr.f32.gmra.mxu0 %v465
        %v2840 = vpop.f32.mrf.mxu0
        %v2841 = vadd.f32 0.0, %v2840
        %v2842 = vpop.f32.mrf.mxu0
        %2843 = vdwg.mxu0
        %v2844 = vld [vmem:[%s263 + $0x1c] sm:$0xf]
        %v2845 = vadd.f32 %v2844, %v2841
        %v2846 = vadd.f32 %v2845, %v546
        %2847 = vst.msk [vmem:[%s301 + $0x1c] sm:$0xf] %vm549, %v2846
        %v2848 = vld [vmem:[%s272 + $0xf] sm:$0x1]
        %v2849 = vld [vmem:[%s272 + $0x2f] sm:$0x1]
        %v2850 = vld [vmem:[%s272 + $0x4f] sm:$0x1]
        %v2851 = vld [vmem:[%s272 + $0x6f] sm:$0x1]
        %v2856 = vrot.slane %v2849, 7
        %v2857 = vsel %vm384, %v2856, %v2848
        %v2858 = vrot.slane %v2850, 6
        %v2859 = vsel %vm387, %v2858, %v2857
        %v2860 = vrot.slane %v2851, 5
        %v2861 = vsel %vm390, %v2860, %v2859
        %2863 = vmatprep.subr.mxu0 0.0
        %2864 = vmatpush1.msra.mxu0 %v374
        %2865 = vmatprep.subr.mxu0 0.0
        %2866 = vmatpush1.msra.mxu0 %v373
        %2867 = vmatprep.subr.mxu0 0.0
        %2868 = vmatpush1.msra.mxu0 %v372
        %2869 = vmatprep.subr.mxu0 0.0
        %2870 = vmatpush1.msra.mxu0 %v371
        %2871 = vmatprep.subr.mxu0 0.0
        %2872 = vmatpush1.msra.mxu0 %v370
        %2873 = vmatprep.subr.mxu0 0.0
        %2874 = vmatpush1.msra.mxu0 %v369
        %2875 = vmatprep.subr.mxu0 0.0
        %2876 = vmatpush1.msra.mxu0 %v368
        %2877 = vmatprep.subr.mxu0 0.0
        %2878 = vmatpush1.msra.mxu0 %v367
        %2879 = vmatprep.subr.mxu0 0.0
        %2880 = vmatpush1.msra.mxu0 %v366
        %2881 = vmatprep.subr.mxu0 0.0
        %2882 = vmatpush1.msra.mxu0 %v365
        %2883 = vmatprep.subr.mxu0 0.0
        %2884 = vmatpush1.msra.mxu0 %v364
        %2885 = vmatprep.subr.mxu0 0.0
        %2886 = vmatpush1.msra.mxu0 %v363
        %2887 = vmatprep.subr.mxu0 0.0
        %2888 = vmatpush1.msra.mxu0 %v362
        %2889 = vmatprep.subr.mxu0 0.0
        %2890 = vmatpush1.msra.mxu0 %v361
        %2891 = vmatprep.subr.mxu0 0.0
        %2892 = vmatpush1.msra.mxu0 %v360
        %2893 = vmatprep.subr.mxu0 0.0
        %2894 = vmatpush1.msra.mxu0 %v359
        %2895 = vmatprep.subr.mxu0 0.0
        %2896 = vmatpush2.msra.mxu0 0.0
        %2897 = vmatprep.subr.mxu0 0.0
        %2898 = vmatpush2.msra.mxu0 0.0
        %2899 = vmatprep.subr.mxu0 0.0
        %2900 = vmatpush2.msra.mxu0 0.0
        %2901 = vmatprep.subr.mxu0 0.0
        %2902 = vmatpush2.msra.mxu0 0.0
        %2903 = vmatprep.subr.mxu0 0.0
        %2904 = vmatpush2.msra.mxu0 0.0
        %2905 = vmatprep.subr.mxu0 0.0
        %2906 = vmatpush2.msra.mxu0 0.0
        %2907 = vmatprep.subr.mxu0 0.0
        %2908 = vmatpush2.msra.mxu0 0.0
        %2909 = vmatprep.subr.mxu0 0.0
        %2910 = vmatpush2.msra.mxu0 0.0
        %2911 = vmatprep.subr.mxu0 0.0
        %2912 = vmatpush2.msra.mxu0 0.0
        %2913 = vmatprep.subr.mxu0 0.0
        %2914 = vmatpush2.msra.mxu0 0.0
        %2915 = vmatprep.subr.mxu0 0.0
        %2916 = vmatpush2.msra.mxu0 0.0
        %2917 = vmatprep.subr.mxu0 0.0
        %2918 = vmatpush2.msra.mxu0 0.0
        %2919 = vmatprep.subr.mxu0 0.0
        %2920 = vmatpush2.msra.mxu0 0.0
        %2921 = vmatprep.subr.mxu0 0.0
        %2922 = vmatpush2.msra.mxu0 0.0
        %2923 = vmatprep.subr.mxu0 0.0
        %2924 = vmatpush2.msra.mxu0 0.0
        %2925 = vmatprep.subr.mxu0 0.0
        %2926 = vmatpush2.msra.mxu0 0.0
        %2927 = vmatprep.mubr.f32.mxu0 0.0
        %2928 = vmatmul.mubr.f32.gmra.mxu0 %v2861
        %v2929 = vpop.f32.mrf.mxu0
        %v2930 = vadd.f32 0.0, %v2929
        %v2931 = vpop.f32.mrf.mxu0
        %2932 = vdwg.mxu0
        %v2934 = vsel %vm467, %v2930, 0
        %2936 = vmatprep.subr.mxu0 0.0
        %2937 = vmatpush1.msra.mxu0 0.0
        %2938 = vmatprep.subr.mxu0 0.0
        %2939 = vmatpush1.msra.mxu0 0.0
        %2940 = vmatprep.subr.mxu0 0.0
        %2941 = vmatpush1.msra.mxu0 0.0
        %2942 = vmatprep.subr.mxu0 0.0
        %2943 = vmatpush1.msra.mxu0 0.0
        %2944 = vmatprep.subr.mxu0 0.0
        %2945 = vmatpush1.msra.mxu0 0.0
        %2946 = vmatprep.subr.mxu0 0.0
        %2947 = vmatpush1.msra.mxu0 0.0
        %2948 = vmatprep.subr.mxu0 0.0
        %2949 = vmatpush1.msra.mxu0 0.0
        %2950 = vmatprep.subr.mxu0 0.0
        %2951 = vmatpush1.msra.mxu0 0.0
        %2952 = vmatprep.subr.mxu0 0.0
        %2953 = vmatpush1.msra.mxu0 0.0
        %2954 = vmatprep.subr.mxu0 0.0
        %2955 = vmatpush1.msra.mxu0 0.0
        %2956 = vmatprep.subr.mxu0 0.0
        %2957 = vmatpush1.msra.mxu0 0.0
        %2958 = vmatprep.subr.mxu0 0.0
        %2959 = vmatpush1.msra.mxu0 0.0
        %2960 = vmatprep.subr.mxu0 0.0
        %2961 = vmatpush1.msra.mxu0 0.0
        %2962 = vmatprep.subr.mxu0 0.0
        %2963 = vmatpush1.msra.mxu0 0.0
        %2964 = vmatprep.subr.mxu0 0.0
        %2965 = vmatpush1.msra.mxu0 0.0
        %2966 = vmatprep.subr.mxu0 0.0
        %2967 = vmatpush1.msra.mxu0 %v2934
        %2968 = vmatprep.subr.mxu0 0.0
        %2969 = vmatpush2.msra.mxu0 0.0
        %2970 = vmatprep.subr.mxu0 0.0
        %2971 = vmatpush2.msra.mxu0 0.0
        %2972 = vmatprep.subr.mxu0 0.0
        %2973 = vmatpush2.msra.mxu0 0.0
        %2974 = vmatprep.subr.mxu0 0.0
        %2975 = vmatpush2.msra.mxu0 0.0
        %2976 = vmatprep.subr.mxu0 0.0
        %2977 = vmatpush2.msra.mxu0 0.0
        %2978 = vmatprep.subr.mxu0 0.0
        %2979 = vmatpush2.msra.mxu0 0.0
        %2980 = vmatprep.subr.mxu0 0.0
        %2981 = vmatpush2.msra.mxu0 0.0
        %2982 = vmatprep.subr.mxu0 0.0
        %2983 = vmatpush2.msra.mxu0 0.0
        %2984 = vmatprep.subr.mxu0 0.0
        %2985 = vmatpush2.msra.mxu0 0.0
        %2986 = vmatprep.subr.mxu0 0.0
        %2987 = vmatpush2.msra.mxu0 0.0
        %2988 = vmatprep.subr.mxu0 0.0
        %2989 = vmatpush2.msra.mxu0 0.0
        %2990 = vmatprep.subr.mxu0 0.0
        %2991 = vmatpush2.msra.mxu0 0.0
        %2992 = vmatprep.subr.mxu0 0.0
        %2993 = vmatpush2.msra.mxu0 0.0
        %2994 = vmatprep.subr.mxu0 0.0
        %2995 = vmatpush2.msra.mxu0 0.0
        %2996 = vmatprep.subr.mxu0 0.0
        %2997 = vmatpush2.msra.mxu0 0.0
        %2998 = vmatprep.subr.mxu0 0.0
        %2999 = vmatpush2.msra.mxu0 0.0
        %3000 = vmatprep.mubr.f32.mxu0 0.0
        %3001 = vmatmul.mubr.f32.gmra.mxu0 %v465
        %v3002 = vpop.f32.mrf.mxu0
        %v3003 = vadd.f32 0.0, %v3002
        %v3004 = vpop.f32.mrf.mxu0
        %3005 = vdwg.mxu0
        %v3006 = vld [vmem:[%s263 + $0x1c] sm:$0xf]
        %3008 = vrot.lane.b32.xlu0 %v3003, 64
        %v3009 = vpop.permute.xlu0 %3008
        %v3011 = vadd.f32 %v3006, %v3009
        %v3012 = vadd.f32 %v3011, %v546
        %3013 = vst.msk [vmem:[%s301 + $0x1c] sm:$0xf] %vm716, %v3012
        %v3014 = vld [vmem:[%s272 + $0x10] sm:$0x1]
        %v3015 = vld [vmem:[%s272 + $0x30] sm:$0x1]
        %v3016 = vld [vmem:[%s272 + $0x50] sm:$0x1]
        %v3017 = vld [vmem:[%s272 + $0x70] sm:$0x1]
        %v3022 = vrot.slane %v3015, 7
        %v3023 = vsel %vm384, %v3022, %v3014
        %v3024 = vrot.slane %v3016, 6
        %v3025 = vsel %vm387, %v3024, %v3023
        %v3026 = vrot.slane %v3017, 5
        %v3027 = vsel %vm390, %v3026, %v3025
        %3029 = vmatprep.subr.mxu0 0.0
        %3030 = vmatpush1.msra.mxu0 %v374
        %3031 = vmatprep.subr.mxu0 0.0
        %3032 = vmatpush1.msra.mxu0 %v373
        %3033 = vmatprep.subr.mxu0 0.0
        %3034 = vmatpush1.msra.mxu0 %v372
        %3035 = vmatprep.subr.mxu0 0.0
        %3036 = vmatpush1.msra.mxu0 %v371
        %3037 = vmatprep.subr.mxu0 0.0
        %3038 = vmatpush1.msra.mxu0 %v370
        %3039 = vmatprep.subr.mxu0 0.0
        %3040 = vmatpush1.msra.mxu0 %v369
        %3041 = vmatprep.subr.mxu0 0.0
        %3042 = vmatpush1.msra.mxu0 %v368
        %3043 = vmatprep.subr.mxu0 0.0
        %3044 = vmatpush1.msra.mxu0 %v367
        %3045 = vmatprep.subr.mxu0 0.0
        %3046 = vmatpush1.msra.mxu0 %v366
        %3047 = vmatprep.subr.mxu0 0.0
        %3048 = vmatpush1.msra.mxu0 %v365
        %3049 = vmatprep.subr.mxu0 0.0
        %3050 = vmatpush1.msra.mxu0 %v364
        %3051 = vmatprep.subr.mxu0 0.0
        %3052 = vmatpush1.msra.mxu0 %v363
        %3053 = vmatprep.subr.mxu0 0.0
        %3054 = vmatpush1.msra.mxu0 %v362
        %3055 = vmatprep.subr.mxu0 0.0
        %3056 = vmatpush1.msra.mxu0 %v361
        %3057 = vmatprep.subr.mxu0 0.0
        %3058 = vmatpush1.msra.mxu0 %v360
        %3059 = vmatprep.subr.mxu0 0.0
        %3060 = vmatpush1.msra.mxu0 %v359
        %3061 = vmatprep.subr.mxu0 0.0
        %3062 = vmatpush2.msra.mxu0 0.0
        %3063 = vmatprep.subr.mxu0 0.0
        %3064 = vmatpush2.msra.mxu0 0.0
        %3065 = vmatprep.subr.mxu0 0.0
        %3066 = vmatpush2.msra.mxu0 0.0
        %3067 = vmatprep.subr.mxu0 0.0
        %3068 = vmatpush2.msra.mxu0 0.0
        %3069 = vmatprep.subr.mxu0 0.0
        %3070 = vmatpush2.msra.mxu0 0.0
        %3071 = vmatprep.subr.mxu0 0.0
        %3072 = vmatpush2.msra.mxu0 0.0
        %3073 = vmatprep.subr.mxu0 0.0
        %3074 = vmatpush2.msra.mxu0 0.0
        %3075 = vmatprep.subr.mxu0 0.0
        %3076 = vmatpush2.msra.mxu0 0.0
        %3077 = vmatprep.subr.mxu0 0.0
        %3078 = vmatpush2.msra.mxu0 0.0
        %3079 = vmatprep.subr.mxu0 0.0
        %3080 = vmatpush2.msra.mxu0 0.0
        %3081 = vmatprep.subr.mxu0 0.0
        %3082 = vmatpush2.msra.mxu0 0.0
        %3083 = vmatprep.subr.mxu0 0.0
        %3084 = vmatpush2.msra.mxu0 0.0
        %3085 = vmatprep.subr.mxu0 0.0
        %3086 = vmatpush2.msra.mxu0 0.0
        %3087 = vmatprep.subr.mxu0 0.0
        %3088 = vmatpush2.msra.mxu0 0.0
        %3089 = vmatprep.subr.mxu0 0.0
        %3090 = vmatpush2.msra.mxu0 0.0
        %3091 = vmatprep.subr.mxu0 0.0
        %3092 = vmatpush2.msra.mxu0 0.0
        %3093 = vmatprep.mubr.f32.mxu0 0.0
        %3094 = vmatmul.mubr.f32.gmra.mxu0 %v3027
        %v3095 = vpop.f32.mrf.mxu0
        %v3096 = vadd.f32 0.0, %v3095
        %v3097 = vpop.f32.mrf.mxu0
        %3098 = vdwg.mxu0
        %v3100 = vsel %vm467, %v3096, 0
        %3102 = vmatprep.subr.mxu0 0.0
        %3103 = vmatpush1.msra.mxu0 0.0
        %3104 = vmatprep.subr.mxu0 0.0
        %3105 = vmatpush1.msra.mxu0 0.0
        %3106 = vmatprep.subr.mxu0 0.0
        %3107 = vmatpush1.msra.mxu0 0.0
        %3108 = vmatprep.subr.mxu0 0.0
        %3109 = vmatpush1.msra.mxu0 0.0
        %3110 = vmatprep.subr.mxu0 0.0
        %3111 = vmatpush1.msra.mxu0 0.0
        %3112 = vmatprep.subr.mxu0 0.0
        %3113 = vmatpush1.msra.mxu0 0.0
        %3114 = vmatprep.subr.mxu0 0.0
        %3115 = vmatpush1.msra.mxu0 0.0
        %3116 = vmatprep.subr.mxu0 0.0
        %3117 = vmatpush1.msra.mxu0 0.0
        %3118 = vmatprep.subr.mxu0 0.0
        %3119 = vmatpush1.msra.mxu0 0.0
        %3120 = vmatprep.subr.mxu0 0.0
        %3121 = vmatpush1.msra.mxu0 0.0
        %3122 = vmatprep.subr.mxu0 0.0
        %3123 = vmatpush1.msra.mxu0 0.0
        %3124 = vmatprep.subr.mxu0 0.0
        %3125 = vmatpush1.msra.mxu0 0.0
        %3126 = vmatprep.subr.mxu0 0.0
        %3127 = vmatpush1.msra.mxu0 0.0
        %3128 = vmatprep.subr.mxu0 0.0
        %3129 = vmatpush1.msra.mxu0 0.0
        %3130 = vmatprep.subr.mxu0 0.0
        %3131 = vmatpush1.msra.mxu0 0.0
        %3132 = vmatprep.subr.mxu0 0.0
        %3133 = vmatpush1.msra.mxu0 %v3100
        %3134 = vmatprep.subr.mxu0 0.0
        %3135 = vmatpush2.msra.mxu0 0.0
        %3136 = vmatprep.subr.mxu0 0.0
        %3137 = vmatpush2.msra.mxu0 0.0
        %3138 = vmatprep.subr.mxu0 0.0
        %3139 = vmatpush2.msra.mxu0 0.0
        %3140 = vmatprep.subr.mxu0 0.0
        %3141 = vmatpush2.msra.mxu0 0.0
        %3142 = vmatprep.subr.mxu0 0.0
        %3143 = vmatpush2.msra.mxu0 0.0
        %3144 = vmatprep.subr.mxu0 0.0
        %3145 = vmatpush2.msra.mxu0 0.0
        %3146 = vmatprep.subr.mxu0 0.0
        %3147 = vmatpush2.msra.mxu0 0.0
        %3148 = vmatprep.subr.mxu0 0.0
        %3149 = vmatpush2.msra.mxu0 0.0
        %3150 = vmatprep.subr.mxu0 0.0
        %3151 = vmatpush2.msra.mxu0 0.0
        %3152 = vmatprep.subr.mxu0 0.0
        %3153 = vmatpush2.msra.mxu0 0.0
        %3154 = vmatprep.subr.mxu0 0.0
        %3155 = vmatpush2.msra.mxu0 0.0
        %3156 = vmatprep.subr.mxu0 0.0
        %3157 = vmatpush2.msra.mxu0 0.0
        %3158 = vmatprep.subr.mxu0 0.0
        %3159 = vmatpush2.msra.mxu0 0.0
        %3160 = vmatprep.subr.mxu0 0.0
        %3161 = vmatpush2.msra.mxu0 0.0
        %3162 = vmatprep.subr.mxu0 0.0
        %3163 = vmatpush2.msra.mxu0 0.0
        %3164 = vmatprep.subr.mxu0 0.0
        %3165 = vmatpush2.msra.mxu0 0.0
        %3166 = vmatprep.mubr.f32.mxu0 0.0
        %3167 = vmatmul.mubr.f32.gmra.mxu0 %v465
        %v3168 = vpop.f32.mrf.mxu0
        %v3169 = vadd.f32 0.0, %v3168
        %v3170 = vpop.f32.mrf.mxu0
        %3171 = vdwg.mxu0
        %v3172 = vld [vmem:[%s263 + $0x20] sm:$0xf]
        %v3173 = vadd.f32 %v3172, %v3169
        %v3174 = vadd.f32 %v3173, %v546
        %3175 = vst.msk [vmem:[%s301 + $0x20] sm:$0xf] %vm549, %v3174
        %v3176 = vld [vmem:[%s272 + $0x11] sm:$0x1]
        %v3177 = vld [vmem:[%s272 + $0x31] sm:$0x1]
        %v3178 = vld [vmem:[%s272 + $0x51] sm:$0x1]
        %v3179 = vld [vmem:[%s272 + $0x71] sm:$0x1]
        %v3184 = vrot.slane %v3177, 7
        %v3185 = vsel %vm384, %v3184, %v3176
        %v3186 = vrot.slane %v3178, 6
        %v3187 = vsel %vm387, %v3186, %v3185
        %v3188 = vrot.slane %v3179, 5
        %v3189 = vsel %vm390, %v3188, %v3187
        %3191 = vmatprep.subr.mxu0 0.0
        %3192 = vmatpush1.msra.mxu0 %v374
        %3193 = vmatprep.subr.mxu0 0.0
        %3194 = vmatpush1.msra.mxu0 %v373
        %3195 = vmatprep.subr.mxu0 0.0
        %3196 = vmatpush1.msra.mxu0 %v372
        %3197 = vmatprep.subr.mxu0 0.0
        %3198 = vmatpush1.msra.mxu0 %v371
        %3199 = vmatprep.subr.mxu0 0.0
        %3200 = vmatpush1.msra.mxu0 %v370
        %3201 = vmatprep.subr.mxu0 0.0
        %3202 = vmatpush1.msra.mxu0 %v369
        %3203 = vmatprep.subr.mxu0 0.0
        %3204 = vmatpush1.msra.mxu0 %v368
        %3205 = vmatprep.subr.mxu0 0.0
        %3206 = vmatpush1.msra.mxu0 %v367
        %3207 = vmatprep.subr.mxu0 0.0
        %3208 = vmatpush1.msra.mxu0 %v366
        %3209 = vmatprep.subr.mxu0 0.0
        %3210 = vmatpush1.msra.mxu0 %v365
        %3211 = vmatprep.subr.mxu0 0.0
        %3212 = vmatpush1.msra.mxu0 %v364
        %3213 = vmatprep.subr.mxu0 0.0
        %3214 = vmatpush1.msra.mxu0 %v363
        %3215 = vmatprep.subr.mxu0 0.0
        %3216 = vmatpush1.msra.mxu0 %v362
        %3217 = vmatprep.subr.mxu0 0.0
        %3218 = vmatpush1.msra.mxu0 %v361
        %3219 = vmatprep.subr.mxu0 0.0
        %3220 = vmatpush1.msra.mxu0 %v360
        %3221 = vmatprep.subr.mxu0 0.0
        %3222 = vmatpush1.msra.mxu0 %v359
        %3223 = vmatprep.subr.mxu0 0.0
        %3224 = vmatpush2.msra.mxu0 0.0
        %3225 = vmatprep.subr.mxu0 0.0
        %3226 = vmatpush2.msra.mxu0 0.0
        %3227 = vmatprep.subr.mxu0 0.0
        %3228 = vmatpush2.msra.mxu0 0.0
        %3229 = vmatprep.subr.mxu0 0.0
        %3230 = vmatpush2.msra.mxu0 0.0
        %3231 = vmatprep.subr.mxu0 0.0
        %3232 = vmatpush2.msra.mxu0 0.0
        %3233 = vmatprep.subr.mxu0 0.0
        %3234 = vmatpush2.msra.mxu0 0.0
        %3235 = vmatprep.subr.mxu0 0.0
        %3236 = vmatpush2.msra.mxu0 0.0
        %3237 = vmatprep.subr.mxu0 0.0
        %3238 = vmatpush2.msra.mxu0 0.0
        %3239 = vmatprep.subr.mxu0 0.0
        %3240 = vmatpush2.msra.mxu0 0.0
        %3241 = vmatprep.subr.mxu0 0.0
        %3242 = vmatpush2.msra.mxu0 0.0
        %3243 = vmatprep.subr.mxu0 0.0
        %3244 = vmatpush2.msra.mxu0 0.0
        %3245 = vmatprep.subr.mxu0 0.0
        %3246 = vmatpush2.msra.mxu0 0.0
        %3247 = vmatprep.subr.mxu0 0.0
        %3248 = vmatpush2.msra.mxu0 0.0
        %3249 = vmatprep.subr.mxu0 0.0
        %3250 = vmatpush2.msra.mxu0 0.0
        %3251 = vmatprep.subr.mxu0 0.0
        %3252 = vmatpush2.msra.mxu0 0.0
        %3253 = vmatprep.subr.mxu0 0.0
        %3254 = vmatpush2.msra.mxu0 0.0
        %3255 = vmatprep.mubr.f32.mxu0 0.0
        %3256 = vmatmul.mubr.f32.gmra.mxu0 %v3189
        %v3257 = vpop.f32.mrf.mxu0
        %v3258 = vadd.f32 0.0, %v3257
        %v3259 = vpop.f32.mrf.mxu0
        %3260 = vdwg.mxu0
        %v3262 = vsel %vm467, %v3258, 0
        %3264 = vmatprep.subr.mxu0 0.0
        %3265 = vmatpush1.msra.mxu0 0.0
        %3266 = vmatprep.subr.mxu0 0.0
        %3267 = vmatpush1.msra.mxu0 0.0
        %3268 = vmatprep.subr.mxu0 0.0
        %3269 = vmatpush1.msra.mxu0 0.0
        %3270 = vmatprep.subr.mxu0 0.0
        %3271 = vmatpush1.msra.mxu0 0.0
        %3272 = vmatprep.subr.mxu0 0.0
        %3273 = vmatpush1.msra.mxu0 0.0
        %3274 = vmatprep.subr.mxu0 0.0
        %3275 = vmatpush1.msra.mxu0 0.0
        %3276 = vmatprep.subr.mxu0 0.0
        %3277 = vmatpush1.msra.mxu0 0.0
        %3278 = vmatprep.subr.mxu0 0.0
        %3279 = vmatpush1.msra.mxu0 0.0
        %3280 = vmatprep.subr.mxu0 0.0
        %3281 = vmatpush1.msra.mxu0 0.0
        %3282 = vmatprep.subr.mxu0 0.0
        %3283 = vmatpush1.msra.mxu0 0.0
        %3284 = vmatprep.subr.mxu0 0.0
        %3285 = vmatpush1.msra.mxu0 0.0
        %3286 = vmatprep.subr.mxu0 0.0
        %3287 = vmatpush1.msra.mxu0 0.0
        %3288 = vmatprep.subr.mxu0 0.0
        %3289 = vmatpush1.msra.mxu0 0.0
        %3290 = vmatprep.subr.mxu0 0.0
        %3291 = vmatpush1.msra.mxu0 0.0
        %3292 = vmatprep.subr.mxu0 0.0
        %3293 = vmatpush1.msra.mxu0 0.0
        %3294 = vmatprep.subr.mxu0 0.0
        %3295 = vmatpush1.msra.mxu0 %v3262
        %3296 = vmatprep.subr.mxu0 0.0
        %3297 = vmatpush2.msra.mxu0 0.0
        %3298 = vmatprep.subr.mxu0 0.0
        %3299 = vmatpush2.msra.mxu0 0.0
        %3300 = vmatprep.subr.mxu0 0.0
        %3301 = vmatpush2.msra.mxu0 0.0
        %3302 = vmatprep.subr.mxu0 0.0
        %3303 = vmatpush2.msra.mxu0 0.0
        %3304 = vmatprep.subr.mxu0 0.0
        %3305 = vmatpush2.msra.mxu0 0.0
        %3306 = vmatprep.subr.mxu0 0.0
        %3307 = vmatpush2.msra.mxu0 0.0
        %3308 = vmatprep.subr.mxu0 0.0
        %3309 = vmatpush2.msra.mxu0 0.0
        %3310 = vmatprep.subr.mxu0 0.0
        %3311 = vmatpush2.msra.mxu0 0.0
        %3312 = vmatprep.subr.mxu0 0.0
        %3313 = vmatpush2.msra.mxu0 0.0
        %3314 = vmatprep.subr.mxu0 0.0
        %3315 = vmatpush2.msra.mxu0 0.0
        %3316 = vmatprep.subr.mxu0 0.0
        %3317 = vmatpush2.msra.mxu0 0.0
        %3318 = vmatprep.subr.mxu0 0.0
        %3319 = vmatpush2.msra.mxu0 0.0
        %3320 = vmatprep.subr.mxu0 0.0
        %3321 = vmatpush2.msra.mxu0 0.0
        %3322 = vmatprep.subr.mxu0 0.0
        %3323 = vmatpush2.msra.mxu0 0.0
        %3324 = vmatprep.subr.mxu0 0.0
        %3325 = vmatpush2.msra.mxu0 0.0
        %3326 = vmatprep.subr.mxu0 0.0
        %3327 = vmatpush2.msra.mxu0 0.0
        %3328 = vmatprep.mubr.f32.mxu0 0.0
        %3329 = vmatmul.mubr.f32.gmra.mxu0 %v465
        %v3330 = vpop.f32.mrf.mxu0
        %v3331 = vadd.f32 0.0, %v3330
        %v3332 = vpop.f32.mrf.mxu0
        %3333 = vdwg.mxu0
        %v3334 = vld [vmem:[%s263 + $0x20] sm:$0xf]
        %3336 = vrot.lane.b32.xlu0 %v3331, 64
        %v3337 = vpop.permute.xlu0 %3336
        %v3339 = vadd.f32 %v3334, %v3337
        %v3340 = vadd.f32 %v3339, %v546
        %3341 = vst.msk [vmem:[%s301 + $0x20] sm:$0xf] %vm716, %v3340
        %v3342 = vld [vmem:[%s272 + $0x12] sm:$0x1]
        %v3343 = vld [vmem:[%s272 + $0x32] sm:$0x1]
        %v3344 = vld [vmem:[%s272 + $0x52] sm:$0x1]
        %v3345 = vld [vmem:[%s272 + $0x72] sm:$0x1]
        %v3350 = vrot.slane %v3343, 7
        %v3351 = vsel %vm384, %v3350, %v3342
        %v3352 = vrot.slane %v3344, 6
        %v3353 = vsel %vm387, %v3352, %v3351
        %v3354 = vrot.slane %v3345, 5
        %v3355 = vsel %vm390, %v3354, %v3353
        %3357 = vmatprep.subr.mxu0 0.0
        %3358 = vmatpush1.msra.mxu0 %v374
        %3359 = vmatprep.subr.mxu0 0.0
        %3360 = vmatpush1.msra.mxu0 %v373
        %3361 = vmatprep.subr.mxu0 0.0
        %3362 = vmatpush1.msra.mxu0 %v372
        %3363 = vmatprep.subr.mxu0 0.0
        %3364 = vmatpush1.msra.mxu0 %v371
        %3365 = vmatprep.subr.mxu0 0.0
        %3366 = vmatpush1.msra.mxu0 %v370
        %3367 = vmatprep.subr.mxu0 0.0
        %3368 = vmatpush1.msra.mxu0 %v369
        %3369 = vmatprep.subr.mxu0 0.0
        %3370 = vmatpush1.msra.mxu0 %v368
        %3371 = vmatprep.subr.mxu0 0.0
        %3372 = vmatpush1.msra.mxu0 %v367
        %3373 = vmatprep.subr.mxu0 0.0
        %3374 = vmatpush1.msra.mxu0 %v366
        %3375 = vmatprep.subr.mxu0 0.0
        %3376 = vmatpush1.msra.mxu0 %v365
        %3377 = vmatprep.subr.mxu0 0.0
        %3378 = vmatpush1.msra.mxu0 %v364
        %3379 = vmatprep.subr.mxu0 0.0
        %3380 = vmatpush1.msra.mxu0 %v363
        %3381 = vmatprep.subr.mxu0 0.0
        %3382 = vmatpush1.msra.mxu0 %v362
        %3383 = vmatprep.subr.mxu0 0.0
        %3384 = vmatpush1.msra.mxu0 %v361
        %3385 = vmatprep.subr.mxu0 0.0
        %3386 = vmatpush1.msra.mxu0 %v360
        %3387 = vmatprep.subr.mxu0 0.0
        %3388 = vmatpush1.msra.mxu0 %v359
        %3389 = vmatprep.subr.mxu0 0.0
        %3390 = vmatpush2.msra.mxu0 0.0
        %3391 = vmatprep.subr.mxu0 0.0
        %3392 = vmatpush2.msra.mxu0 0.0
        %3393 = vmatprep.subr.mxu0 0.0
        %3394 = vmatpush2.msra.mxu0 0.0
        %3395 = vmatprep.subr.mxu0 0.0
        %3396 = vmatpush2.msra.mxu0 0.0
        %3397 = vmatprep.subr.mxu0 0.0
        %3398 = vmatpush2.msra.mxu0 0.0
        %3399 = vmatprep.subr.mxu0 0.0
        %3400 = vmatpush2.msra.mxu0 0.0
        %3401 = vmatprep.subr.mxu0 0.0
        %3402 = vmatpush2.msra.mxu0 0.0
        %3403 = vmatprep.subr.mxu0 0.0
        %3404 = vmatpush2.msra.mxu0 0.0
        %3405 = vmatprep.subr.mxu0 0.0
        %3406 = vmatpush2.msra.mxu0 0.0
        %3407 = vmatprep.subr.mxu0 0.0
        %3408 = vmatpush2.msra.mxu0 0.0
        %3409 = vmatprep.subr.mxu0 0.0
        %3410 = vmatpush2.msra.mxu0 0.0
        %3411 = vmatprep.subr.mxu0 0.0
        %3412 = vmatpush2.msra.mxu0 0.0
        %3413 = vmatprep.subr.mxu0 0.0
        %3414 = vmatpush2.msra.mxu0 0.0
        %3415 = vmatprep.subr.mxu0 0.0
        %3416 = vmatpush2.msra.mxu0 0.0
        %3417 = vmatprep.subr.mxu0 0.0
        %3418 = vmatpush2.msra.mxu0 0.0
        %3419 = vmatprep.subr.mxu0 0.0
        %3420 = vmatpush2.msra.mxu0 0.0
        %3421 = vmatprep.mubr.f32.mxu0 0.0
        %3422 = vmatmul.mubr.f32.gmra.mxu0 %v3355
        %v3423 = vpop.f32.mrf.mxu0
        %v3424 = vadd.f32 0.0, %v3423
        %v3425 = vpop.f32.mrf.mxu0
        %3426 = vdwg.mxu0
        %v3428 = vsel %vm467, %v3424, 0
        %3430 = vmatprep.subr.mxu0 0.0
        %3431 = vmatpush1.msra.mxu0 0.0
        %3432 = vmatprep.subr.mxu0 0.0
        %3433 = vmatpush1.msra.mxu0 0.0
        %3434 = vmatprep.subr.mxu0 0.0
        %3435 = vmatpush1.msra.mxu0 0.0
        %3436 = vmatprep.subr.mxu0 0.0
        %3437 = vmatpush1.msra.mxu0 0.0
        %3438 = vmatprep.subr.mxu0 0.0
        %3439 = vmatpush1.msra.mxu0 0.0
        %3440 = vmatprep.subr.mxu0 0.0
        %3441 = vmatpush1.msra.mxu0 0.0
        %3442 = vmatprep.subr.mxu0 0.0
        %3443 = vmatpush1.msra.mxu0 0.0
        %3444 = vmatprep.subr.mxu0 0.0
        %3445 = vmatpush1.msra.mxu0 0.0
        %3446 = vmatprep.subr.mxu0 0.0
        %3447 = vmatpush1.msra.mxu0 0.0
        %3448 = vmatprep.subr.mxu0 0.0
        %3449 = vmatpush1.msra.mxu0 0.0
        %3450 = vmatprep.subr.mxu0 0.0
        %3451 = vmatpush1.msra.mxu0 0.0
        %3452 = vmatprep.subr.mxu0 0.0
        %3453 = vmatpush1.msra.mxu0 0.0
        %3454 = vmatprep.subr.mxu0 0.0
        %3455 = vmatpush1.msra.mxu0 0.0
        %3456 = vmatprep.subr.mxu0 0.0
        %3457 = vmatpush1.msra.mxu0 0.0
        %3458 = vmatprep.subr.mxu0 0.0
        %3459 = vmatpush1.msra.mxu0 0.0
        %3460 = vmatprep.subr.mxu0 0.0
        %3461 = vmatpush1.msra.mxu0 %v3428
        %3462 = vmatprep.subr.mxu0 0.0
        %3463 = vmatpush2.msra.mxu0 0.0
        %3464 = vmatprep.subr.mxu0 0.0
        %3465 = vmatpush2.msra.mxu0 0.0
        %3466 = vmatprep.subr.mxu0 0.0
        %3467 = vmatpush2.msra.mxu0 0.0
        %3468 = vmatprep.subr.mxu0 0.0
        %3469 = vmatpush2.msra.mxu0 0.0
        %3470 = vmatprep.subr.mxu0 0.0
        %3471 = vmatpush2.msra.mxu0 0.0
        %3472 = vmatprep.subr.mxu0 0.0
        %3473 = vmatpush2.msra.mxu0 0.0
        %3474 = vmatprep.subr.mxu0 0.0
        %3475 = vmatpush2.msra.mxu0 0.0
        %3476 = vmatprep.subr.mxu0 0.0
        %3477 = vmatpush2.msra.mxu0 0.0
        %3478 = vmatprep.subr.mxu0 0.0
        %3479 = vmatpush2.msra.mxu0 0.0
        %3480 = vmatprep.subr.mxu0 0.0
        %3481 = vmatpush2.msra.mxu0 0.0
        %3482 = vmatprep.subr.mxu0 0.0
        %3483 = vmatpush2.msra.mxu0 0.0
        %3484 = vmatprep.subr.mxu0 0.0
        %3485 = vmatpush2.msra.mxu0 0.0
        %3486 = vmatprep.subr.mxu0 0.0
        %3487 = vmatpush2.msra.mxu0 0.0
        %3488 = vmatprep.subr.mxu0 0.0
        %3489 = vmatpush2.msra.mxu0 0.0
        %3490 = vmatprep.subr.mxu0 0.0
        %3491 = vmatpush2.msra.mxu0 0.0
        %3492 = vmatprep.subr.mxu0 0.0
        %3493 = vmatpush2.msra.mxu0 0.0
        %3494 = vmatprep.mubr.f32.mxu0 0.0
        %3495 = vmatmul.mubr.f32.gmra.mxu0 %v465
        %v3496 = vpop.f32.mrf.mxu0
        %v3497 = vadd.f32 0.0, %v3496
        %v3498 = vpop.f32.mrf.mxu0
        %3499 = vdwg.mxu0
        %v3500 = vld [vmem:[%s263 + $0x24] sm:$0xf]
        %v3501 = vadd.f32 %v3500, %v3497
        %v3502 = vadd.f32 %v3501, %v546
        %3503 = vst.msk [vmem:[%s301 + $0x24] sm:$0xf] %vm549, %v3502
        %v3504 = vld [vmem:[%s272 + $0x13] sm:$0x1]
        %v3505 = vld [vmem:[%s272 + $0x33] sm:$0x1]
        %v3506 = vld [vmem:[%s272 + $0x53] sm:$0x1]
        %v3507 = vld [vmem:[%s272 + $0x73] sm:$0x1]
        %v3512 = vrot.slane %v3505, 7
        %v3513 = vsel %vm384, %v3512, %v3504
        %v3514 = vrot.slane %v3506, 6
        %v3515 = vsel %vm387, %v3514, %v3513
        %v3516 = vrot.slane %v3507, 5
        %v3517 = vsel %vm390, %v3516, %v3515
        %3519 = vmatprep.subr.mxu0 0.0
        %3520 = vmatpush1.msra.mxu0 %v374
        %3521 = vmatprep.subr.mxu0 0.0
        %3522 = vmatpush1.msra.mxu0 %v373
        %3523 = vmatprep.subr.mxu0 0.0
        %3524 = vmatpush1.msra.mxu0 %v372
        %3525 = vmatprep.subr.mxu0 0.0
        %3526 = vmatpush1.msra.mxu0 %v371
        %3527 = vmatprep.subr.mxu0 0.0
        %3528 = vmatpush1.msra.mxu0 %v370
        %3529 = vmatprep.subr.mxu0 0.0
        %3530 = vmatpush1.msra.mxu0 %v369
        %3531 = vmatprep.subr.mxu0 0.0
        %3532 = vmatpush1.msra.mxu0 %v368
        %3533 = vmatprep.subr.mxu0 0.0
        %3534 = vmatpush1.msra.mxu0 %v367
        %3535 = vmatprep.subr.mxu0 0.0
        %3536 = vmatpush1.msra.mxu0 %v366
        %3537 = vmatprep.subr.mxu0 0.0
        %3538 = vmatpush1.msra.mxu0 %v365
        %3539 = vmatprep.subr.mxu0 0.0
        %3540 = vmatpush1.msra.mxu0 %v364
        %3541 = vmatprep.subr.mxu0 0.0
        %3542 = vmatpush1.msra.mxu0 %v363
        %3543 = vmatprep.subr.mxu0 0.0
        %3544 = vmatpush1.msra.mxu0 %v362
        %3545 = vmatprep.subr.mxu0 0.0
        %3546 = vmatpush1.msra.mxu0 %v361
        %3547 = vmatprep.subr.mxu0 0.0
        %3548 = vmatpush1.msra.mxu0 %v360
        %3549 = vmatprep.subr.mxu0 0.0
        %3550 = vmatpush1.msra.mxu0 %v359
        %3551 = vmatprep.subr.mxu0 0.0
        %3552 = vmatpush2.msra.mxu0 0.0
        %3553 = vmatprep.subr.mxu0 0.0
        %3554 = vmatpush2.msra.mxu0 0.0
        %3555 = vmatprep.subr.mxu0 0.0
        %3556 = vmatpush2.msra.mxu0 0.0
        %3557 = vmatprep.subr.mxu0 0.0
        %3558 = vmatpush2.msra.mxu0 0.0
        %3559 = vmatprep.subr.mxu0 0.0
        %3560 = vmatpush2.msra.mxu0 0.0
        %3561 = vmatprep.subr.mxu0 0.0
        %3562 = vmatpush2.msra.mxu0 0.0
        %3563 = vmatprep.subr.mxu0 0.0
        %3564 = vmatpush2.msra.mxu0 0.0
        %3565 = vmatprep.subr.mxu0 0.0
        %3566 = vmatpush2.msra.mxu0 0.0
        %3567 = vmatprep.subr.mxu0 0.0
        %3568 = vmatpush2.msra.mxu0 0.0
        %3569 = vmatprep.subr.mxu0 0.0
        %3570 = vmatpush2.msra.mxu0 0.0
        %3571 = vmatprep.subr.mxu0 0.0
        %3572 = vmatpush2.msra.mxu0 0.0
        %3573 = vmatprep.subr.mxu0 0.0
        %3574 = vmatpush2.msra.mxu0 0.0
        %3575 = vmatprep.subr.mxu0 0.0
        %3576 = vmatpush2.msra.mxu0 0.0
        %3577 = vmatprep.subr.mxu0 0.0
        %3578 = vmatpush2.msra.mxu0 0.0
        %3579 = vmatprep.subr.mxu0 0.0
        %3580 = vmatpush2.msra.mxu0 0.0
        %3581 = vmatprep.subr.mxu0 0.0
        %3582 = vmatpush2.msra.mxu0 0.0
        %3583 = vmatprep.mubr.f32.mxu0 0.0
        %3584 = vmatmul.mubr.f32.gmra.mxu0 %v3517
        %v3585 = vpop.f32.mrf.mxu0
        %v3586 = vadd.f32 0.0, %v3585
        %v3587 = vpop.f32.mrf.mxu0
        %3588 = vdwg.mxu0
        %v3590 = vsel %vm467, %v3586, 0
        %3592 = vmatprep.subr.mxu0 0.0
        %3593 = vmatpush1.msra.mxu0 0.0
        %3594 = vmatprep.subr.mxu0 0.0
        %3595 = vmatpush1.msra.mxu0 0.0
        %3596 = vmatprep.subr.mxu0 0.0
        %3597 = vmatpush1.msra.mxu0 0.0
        %3598 = vmatprep.subr.mxu0 0.0
        %3599 = vmatpush1.msra.mxu0 0.0
        %3600 = vmatprep.subr.mxu0 0.0
        %3601 = vmatpush1.msra.mxu0 0.0
        %3602 = vmatprep.subr.mxu0 0.0
        %3603 = vmatpush1.msra.mxu0 0.0
        %3604 = vmatprep.subr.mxu0 0.0
        %3605 = vmatpush1.msra.mxu0 0.0
        %3606 = vmatprep.subr.mxu0 0.0
        %3607 = vmatpush1.msra.mxu0 0.0
        %3608 = vmatprep.subr.mxu0 0.0
        %3609 = vmatpush1.msra.mxu0 0.0
        %3610 = vmatprep.subr.mxu0 0.0
        %3611 = vmatpush1.msra.mxu0 0.0
        %3612 = vmatprep.subr.mxu0 0.0
        %3613 = vmatpush1.msra.mxu0 0.0
        %3614 = vmatprep.subr.mxu0 0.0
        %3615 = vmatpush1.msra.mxu0 0.0
        %3616 = vmatprep.subr.mxu0 0.0
        %3617 = vmatpush1.msra.mxu0 0.0
        %3618 = vmatprep.subr.mxu0 0.0
        %3619 = vmatpush1.msra.mxu0 0.0
        %3620 = vmatprep.subr.mxu0 0.0
        %3621 = vmatpush1.msra.mxu0 0.0
        %3622 = vmatprep.subr.mxu0 0.0
        %3623 = vmatpush1.msra.mxu0 %v3590
        %3624 = vmatprep.subr.mxu0 0.0
        %3625 = vmatpush2.msra.mxu0 0.0
        %3626 = vmatprep.subr.mxu0 0.0
        %3627 = vmatpush2.msra.mxu0 0.0
        %3628 = vmatprep.subr.mxu0 0.0
        %3629 = vmatpush2.msra.mxu0 0.0
        %3630 = vmatprep.subr.mxu0 0.0
        %3631 = vmatpush2.msra.mxu0 0.0
        %3632 = vmatprep.subr.mxu0 0.0
        %3633 = vmatpush2.msra.mxu0 0.0
        %3634 = vmatprep.subr.mxu0 0.0
        %3635 = vmatpush2.msra.mxu0 0.0
        %3636 = vmatprep.subr.mxu0 0.0
        %3637 = vmatpush2.msra.mxu0 0.0
        %3638 = vmatprep.subr.mxu0 0.0
        %3639 = vmatpush2.msra.mxu0 0.0
        %3640 = vmatprep.subr.mxu0 0.0
        %3641 = vmatpush2.msra.mxu0 0.0
        %3642 = vmatprep.subr.mxu0 0.0
        %3643 = vmatpush2.msra.mxu0 0.0
        %3644 = vmatprep.subr.mxu0 0.0
        %3645 = vmatpush2.msra.mxu0 0.0
        %3646 = vmatprep.subr.mxu0 0.0
        %3647 = vmatpush2.msra.mxu0 0.0
        %3648 = vmatprep.subr.mxu0 0.0
        %3649 = vmatpush2.msra.mxu0 0.0
        %3650 = vmatprep.subr.mxu0 0.0
        %3651 = vmatpush2.msra.mxu0 0.0
        %3652 = vmatprep.subr.mxu0 0.0
        %3653 = vmatpush2.msra.mxu0 0.0
        %3654 = vmatprep.subr.mxu0 0.0
        %3655 = vmatpush2.msra.mxu0 0.0
        %3656 = vmatprep.mubr.f32.mxu0 0.0
        %3657 = vmatmul.mubr.f32.gmra.mxu0 %v465
        %v3658 = vpop.f32.mrf.mxu0
        %v3659 = vadd.f32 0.0, %v3658
        %v3660 = vpop.f32.mrf.mxu0
        %3661 = vdwg.mxu0
        %v3662 = vld [vmem:[%s263 + $0x24] sm:$0xf]
        %3664 = vrot.lane.b32.xlu0 %v3659, 64
        %v3665 = vpop.permute.xlu0 %3664
        %v3667 = vadd.f32 %v3662, %v3665
        %v3668 = vadd.f32 %v3667, %v546
        %3669 = vst.msk [vmem:[%s301 + $0x24] sm:$0xf] %vm716, %v3668
        %v3670 = vld [vmem:[%s272 + $0x14] sm:$0x1]
        %v3671 = vld [vmem:[%s272 + $0x34] sm:$0x1]
        %v3672 = vld [vmem:[%s272 + $0x54] sm:$0x1]
        %v3673 = vld [vmem:[%s272 + $0x74] sm:$0x1]
        %v3678 = vrot.slane %v3671, 7
        %v3679 = vsel %vm384, %v3678, %v3670
        %v3680 = vrot.slane %v3672, 6
        %v3681 = vsel %vm387, %v3680, %v3679
        %v3682 = vrot.slane %v3673, 5
        %v3683 = vsel %vm390, %v3682, %v3681
        %3685 = vmatprep.subr.mxu0 0.0
        %3686 = vmatpush1.msra.mxu0 %v374
        %3687 = vmatprep.subr.mxu0 0.0
        %3688 = vmatpush1.msra.mxu0 %v373
        %3689 = vmatprep.subr.mxu0 0.0
        %3690 = vmatpush1.msra.mxu0 %v372
        %3691 = vmatprep.subr.mxu0 0.0
        %3692 = vmatpush1.msra.mxu0 %v371
        %3693 = vmatprep.subr.mxu0 0.0
        %3694 = vmatpush1.msra.mxu0 %v370
        %3695 = vmatprep.subr.mxu0 0.0
        %3696 = vmatpush1.msra.mxu0 %v369
        %3697 = vmatprep.subr.mxu0 0.0
        %3698 = vmatpush1.msra.mxu0 %v368
        %3699 = vmatprep.subr.mxu0 0.0
        %3700 = vmatpush1.msra.mxu0 %v367
        %3701 = vmatprep.subr.mxu0 0.0
        %3702 = vmatpush1.msra.mxu0 %v366
        %3703 = vmatprep.subr.mxu0 0.0
        %3704 = vmatpush1.msra.mxu0 %v365
        %3705 = vmatprep.subr.mxu0 0.0
        %3706 = vmatpush1.msra.mxu0 %v364
        %3707 = vmatprep.subr.mxu0 0.0
        %3708 = vmatpush1.msra.mxu0 %v363
        %3709 = vmatprep.subr.mxu0 0.0
        %3710 = vmatpush1.msra.mxu0 %v362
        %3711 = vmatprep.subr.mxu0 0.0
        %3712 = vmatpush1.msra.mxu0 %v361
        %3713 = vmatprep.subr.mxu0 0.0
        %3714 = vmatpush1.msra.mxu0 %v360
        %3715 = vmatprep.subr.mxu0 0.0
        %3716 = vmatpush1.msra.mxu0 %v359
        %3717 = vmatprep.subr.mxu0 0.0
        %3718 = vmatpush2.msra.mxu0 0.0
        %3719 = vmatprep.subr.mxu0 0.0
        %3720 = vmatpush2.msra.mxu0 0.0
        %3721 = vmatprep.subr.mxu0 0.0
        %3722 = vmatpush2.msra.mxu0 0.0
        %3723 = vmatprep.subr.mxu0 0.0
        %3724 = vmatpush2.msra.mxu0 0.0
        %3725 = vmatprep.subr.mxu0 0.0
        %3726 = vmatpush2.msra.mxu0 0.0
        %3727 = vmatprep.subr.mxu0 0.0
        %3728 = vmatpush2.msra.mxu0 0.0
        %3729 = vmatprep.subr.mxu0 0.0
        %3730 = vmatpush2.msra.mxu0 0.0
        %3731 = vmatprep.subr.mxu0 0.0
        %3732 = vmatpush2.msra.mxu0 0.0
        %3733 = vmatprep.subr.mxu0 0.0
        %3734 = vmatpush2.msra.mxu0 0.0
        %3735 = vmatprep.subr.mxu0 0.0
        %3736 = vmatpush2.msra.mxu0 0.0
        %3737 = vmatprep.subr.mxu0 0.0
        %3738 = vmatpush2.msra.mxu0 0.0
        %3739 = vmatprep.subr.mxu0 0.0
        %3740 = vmatpush2.msra.mxu0 0.0
        %3741 = vmatprep.subr.mxu0 0.0
        %3742 = vmatpush2.msra.mxu0 0.0
        %3743 = vmatprep.subr.mxu0 0.0
        %3744 = vmatpush2.msra.mxu0 0.0
        %3745 = vmatprep.subr.mxu0 0.0
        %3746 = vmatpush2.msra.mxu0 0.0
        %3747 = vmatprep.subr.mxu0 0.0
        %3748 = vmatpush2.msra.mxu0 0.0
        %3749 = vmatprep.mubr.f32.mxu0 0.0
        %3750 = vmatmul.mubr.f32.gmra.mxu0 %v3683
        %v3751 = vpop.f32.mrf.mxu0
        %v3752 = vadd.f32 0.0, %v3751
        %v3753 = vpop.f32.mrf.mxu0
        %3754 = vdwg.mxu0
        %v3756 = vsel %vm467, %v3752, 0
        %3758 = vmatprep.subr.mxu0 0.0
        %3759 = vmatpush1.msra.mxu0 0.0
        %3760 = vmatprep.subr.mxu0 0.0
        %3761 = vmatpush1.msra.mxu0 0.0
        %3762 = vmatprep.subr.mxu0 0.0
        %3763 = vmatpush1.msra.mxu0 0.0
        %3764 = vmatprep.subr.mxu0 0.0
        %3765 = vmatpush1.msra.mxu0 0.0
        %3766 = vmatprep.subr.mxu0 0.0
        %3767 = vmatpush1.msra.mxu0 0.0
        %3768 = vmatprep.subr.mxu0 0.0
        %3769 = vmatpush1.msra.mxu0 0.0
        %3770 = vmatprep.subr.mxu0 0.0
        %3771 = vmatpush1.msra.mxu0 0.0
        %3772 = vmatprep.subr.mxu0 0.0
        %3773 = vmatpush1.msra.mxu0 0.0
        %3774 = vmatprep.subr.mxu0 0.0
        %3775 = vmatpush1.msra.mxu0 0.0
        %3776 = vmatprep.subr.mxu0 0.0
        %3777 = vmatpush1.msra.mxu0 0.0
        %3778 = vmatprep.subr.mxu0 0.0
        %3779 = vmatpush1.msra.mxu0 0.0
        %3780 = vmatprep.subr.mxu0 0.0
        %3781 = vmatpush1.msra.mxu0 0.0
        %3782 = vmatprep.subr.mxu0 0.0
        %3783 = vmatpush1.msra.mxu0 0.0
        %3784 = vmatprep.subr.mxu0 0.0
        %3785 = vmatpush1.msra.mxu0 0.0
        %3786 = vmatprep.subr.mxu0 0.0
        %3787 = vmatpush1.msra.mxu0 0.0
        %3788 = vmatprep.subr.mxu0 0.0
        %3789 = vmatpush1.msra.mxu0 %v3756
        %3790 = vmatprep.subr.mxu0 0.0
        %3791 = vmatpush2.msra.mxu0 0.0
        %3792 = vmatprep.subr.mxu0 0.0
        %3793 = vmatpush2.msra.mxu0 0.0
        %3794 = vmatprep.subr.mxu0 0.0
        %3795 = vmatpush2.msra.mxu0 0.0
        %3796 = vmatprep.subr.mxu0 0.0
        %3797 = vmatpush2.msra.mxu0 0.0
        %3798 = vmatprep.subr.mxu0 0.0
        %3799 = vmatpush2.msra.mxu0 0.0
        %3800 = vmatprep.subr.mxu0 0.0
        %3801 = vmatpush2.msra.mxu0 0.0
        %3802 = vmatprep.subr.mxu0 0.0
        %3803 = vmatpush2.msra.mxu0 0.0
        %3804 = vmatprep.subr.mxu0 0.0
        %3805 = vmatpush2.msra.mxu0 0.0
        %3806 = vmatprep.subr.mxu0 0.0
        %3807 = vmatpush2.msra.mxu0 0.0
        %3808 = vmatprep.subr.mxu0 0.0
        %3809 = vmatpush2.msra.mxu0 0.0
        %3810 = vmatprep.subr.mxu0 0.0
        %3811 = vmatpush2.msra.mxu0 0.0
        %3812 = vmatprep.subr.mxu0 0.0
        %3813 = vmatpush2.msra.mxu0 0.0
        %3814 = vmatprep.subr.mxu0 0.0
        %3815 = vmatpush2.msra.mxu0 0.0
        %3816 = vmatprep.subr.mxu0 0.0
        %3817 = vmatpush2.msra.mxu0 0.0
        %3818 = vmatprep.subr.mxu0 0.0
        %3819 = vmatpush2.msra.mxu0 0.0
        %3820 = vmatprep.subr.mxu0 0.0
        %3821 = vmatpush2.msra.mxu0 0.0
        %3822 = vmatprep.mubr.f32.mxu0 0.0
        %3823 = vmatmul.mubr.f32.gmra.mxu0 %v465
        %v3824 = vpop.f32.mrf.mxu0
        %v3825 = vadd.f32 0.0, %v3824
        %v3826 = vpop.f32.mrf.mxu0
        %3827 = vdwg.mxu0
        %v3828 = vld [vmem:[%s263 + $0x28] sm:$0xf]
        %v3829 = vadd.f32 %v3828, %v3825
        %v3830 = vadd.f32 %v3829, %v546
        %3831 = vst.msk [vmem:[%s301 + $0x28] sm:$0xf] %vm549, %v3830
        %v3832 = vld [vmem:[%s272 + $0x15] sm:$0x1]
        %v3833 = vld [vmem:[%s272 + $0x35] sm:$0x1]
        %v3834 = vld [vmem:[%s272 + $0x55] sm:$0x1]
        %v3835 = vld [vmem:[%s272 + $0x75] sm:$0x1]
        %v3840 = vrot.slane %v3833, 7
        %v3841 = vsel %vm384, %v3840, %v3832
        %v3842 = vrot.slane %v3834, 6
        %v3843 = vsel %vm387, %v3842, %v3841
        %v3844 = vrot.slane %v3835, 5
        %v3845 = vsel %vm390, %v3844, %v3843
        %3847 = vmatprep.subr.mxu0 0.0
        %3848 = vmatpush1.msra.mxu0 %v374
        %3849 = vmatprep.subr.mxu0 0.0
        %3850 = vmatpush1.msra.mxu0 %v373
        %3851 = vmatprep.subr.mxu0 0.0
        %3852 = vmatpush1.msra.mxu0 %v372
        %3853 = vmatprep.subr.mxu0 0.0
        %3854 = vmatpush1.msra.mxu0 %v371
        %3855 = vmatprep.subr.mxu0 0.0
        %3856 = vmatpush1.msra.mxu0 %v370
        %3857 = vmatprep.subr.mxu0 0.0
        %3858 = vmatpush1.msra.mxu0 %v369
        %3859 = vmatprep.subr.mxu0 0.0
        %3860 = vmatpush1.msra.mxu0 %v368
        %3861 = vmatprep.subr.mxu0 0.0
        %3862 = vmatpush1.msra.mxu0 %v367
        %3863 = vmatprep.subr.mxu0 0.0
        %3864 = vmatpush1.msra.mxu0 %v366
        %3865 = vmatprep.subr.mxu0 0.0
        %3866 = vmatpush1.msra.mxu0 %v365
        %3867 = vmatprep.subr.mxu0 0.0
        %3868 = vmatpush1.msra.mxu0 %v364
        %3869 = vmatprep.subr.mxu0 0.0
        %3870 = vmatpush1.msra.mxu0 %v363
        %3871 = vmatprep.subr.mxu0 0.0
        %3872 = vmatpush1.msra.mxu0 %v362
        %3873 = vmatprep.subr.mxu0 0.0
        %3874 = vmatpush1.msra.mxu0 %v361
        %3875 = vmatprep.subr.mxu0 0.0
        %3876 = vmatpush1.msra.mxu0 %v360
        %3877 = vmatprep.subr.mxu0 0.0
        %3878 = vmatpush1.msra.mxu0 %v359
        %3879 = vmatprep.subr.mxu0 0.0
        %3880 = vmatpush2.msra.mxu0 0.0
        %3881 = vmatprep.subr.mxu0 0.0
        %3882 = vmatpush2.msra.mxu0 0.0
        %3883 = vmatprep.subr.mxu0 0.0
        %3884 = vmatpush2.msra.mxu0 0.0
        %3885 = vmatprep.subr.mxu0 0.0
        %3886 = vmatpush2.msra.mxu0 0.0
        %3887 = vmatprep.subr.mxu0 0.0
        %3888 = vmatpush2.msra.mxu0 0.0
        %3889 = vmatprep.subr.mxu0 0.0
        %3890 = vmatpush2.msra.mxu0 0.0
        %3891 = vmatprep.subr.mxu0 0.0
        %3892 = vmatpush2.msra.mxu0 0.0
        %3893 = vmatprep.subr.mxu0 0.0
        %3894 = vmatpush2.msra.mxu0 0.0
        %3895 = vmatprep.subr.mxu0 0.0
        %3896 = vmatpush2.msra.mxu0 0.0
        %3897 = vmatprep.subr.mxu0 0.0
        %3898 = vmatpush2.msra.mxu0 0.0
        %3899 = vmatprep.subr.mxu0 0.0
        %3900 = vmatpush2.msra.mxu0 0.0
        %3901 = vmatprep.subr.mxu0 0.0
        %3902 = vmatpush2.msra.mxu0 0.0
        %3903 = vmatprep.subr.mxu0 0.0
        %3904 = vmatpush2.msra.mxu0 0.0
        %3905 = vmatprep.subr.mxu0 0.0
        %3906 = vmatpush2.msra.mxu0 0.0
        %3907 = vmatprep.subr.mxu0 0.0
        %3908 = vmatpush2.msra.mxu0 0.0
        %3909 = vmatprep.subr.mxu0 0.0
        %3910 = vmatpush2.msra.mxu0 0.0
        %3911 = vmatprep.mubr.f32.mxu0 0.0
        %3912 = vmatmul.mubr.f32.gmra.mxu0 %v3845
        %v3913 = vpop.f32.mrf.mxu0
        %v3914 = vadd.f32 0.0, %v3913
        %v3915 = vpop.f32.mrf.mxu0
        %3916 = vdwg.mxu0
        %v3918 = vsel %vm467, %v3914, 0
        %3920 = vmatprep.subr.mxu0 0.0
        %3921 = vmatpush1.msra.mxu0 0.0
        %3922 = vmatprep.subr.mxu0 0.0
        %3923 = vmatpush1.msra.mxu0 0.0
        %3924 = vmatprep.subr.mxu0 0.0
        %3925 = vmatpush1.msra.mxu0 0.0
        %3926 = vmatprep.subr.mxu0 0.0
        %3927 = vmatpush1.msra.mxu0 0.0
        %3928 = vmatprep.subr.mxu0 0.0
        %3929 = vmatpush1.msra.mxu0 0.0
        %3930 = vmatprep.subr.mxu0 0.0
        %3931 = vmatpush1.msra.mxu0 0.0
        %3932 = vmatprep.subr.mxu0 0.0
        %3933 = vmatpush1.msra.mxu0 0.0
        %3934 = vmatprep.subr.mxu0 0.0
        %3935 = vmatpush1.msra.mxu0 0.0
        %3936 = vmatprep.subr.mxu0 0.0
        %3937 = vmatpush1.msra.mxu0 0.0
        %3938 = vmatprep.subr.mxu0 0.0
        %3939 = vmatpush1.msra.mxu0 0.0
        %3940 = vmatprep.subr.mxu0 0.0
        %3941 = vmatpush1.msra.mxu0 0.0
        %3942 = vmatprep.subr.mxu0 0.0
        %3943 = vmatpush1.msra.mxu0 0.0
        %3944 = vmatprep.subr.mxu0 0.0
        %3945 = vmatpush1.msra.mxu0 0.0
        %3946 = vmatprep.subr.mxu0 0.0
        %3947 = vmatpush1.msra.mxu0 0.0
        %3948 = vmatprep.subr.mxu0 0.0
        %3949 = vmatpush1.msra.mxu0 0.0
        %3950 = vmatprep.subr.mxu0 0.0
        %3951 = vmatpush1.msra.mxu0 %v3918
        %3952 = vmatprep.subr.mxu0 0.0
        %3953 = vmatpush2.msra.mxu0 0.0
        %3954 = vmatprep.subr.mxu0 0.0
        %3955 = vmatpush2.msra.mxu0 0.0
        %3956 = vmatprep.subr.mxu0 0.0
        %3957 = vmatpush2.msra.mxu0 0.0
        %3958 = vmatprep.subr.mxu0 0.0
        %3959 = vmatpush2.msra.mxu0 0.0
        %3960 = vmatprep.subr.mxu0 0.0
        %3961 = vmatpush2.msra.mxu0 0.0
        %3962 = vmatprep.subr.mxu0 0.0
        %3963 = vmatpush2.msra.mxu0 0.0
        %3964 = vmatprep.subr.mxu0 0.0
        %3965 = vmatpush2.msra.mxu0 0.0
        %3966 = vmatprep.subr.mxu0 0.0
        %3967 = vmatpush2.msra.mxu0 0.0
        %3968 = vmatprep.subr.mxu0 0.0
        %3969 = vmatpush2.msra.mxu0 0.0
        %3970 = vmatprep.subr.mxu0 0.0
        %3971 = vmatpush2.msra.mxu0 0.0
        %3972 = vmatprep.subr.mxu0 0.0
        %3973 = vmatpush2.msra.mxu0 0.0
        %3974 = vmatprep.subr.mxu0 0.0
        %3975 = vmatpush2.msra.mxu0 0.0
        %3976 = vmatprep.subr.mxu0 0.0
        %3977 = vmatpush2.msra.mxu0 0.0
        %3978 = vmatprep.subr.mxu0 0.0
        %3979 = vmatpush2.msra.mxu0 0.0
        %3980 = vmatprep.subr.mxu0 0.0
        %3981 = vmatpush2.msra.mxu0 0.0
        %3982 = vmatprep.subr.mxu0 0.0
        %3983 = vmatpush2.msra.mxu0 0.0
        %3984 = vmatprep.mubr.f32.mxu0 0.0
        %3985 = vmatmul.mubr.f32.gmra.mxu0 %v465
        %v3986 = vpop.f32.mrf.mxu0
        %v3987 = vadd.f32 0.0, %v3986
        %v3988 = vpop.f32.mrf.mxu0
        %3989 = vdwg.mxu0
        %v3990 = vld [vmem:[%s263 + $0x28] sm:$0xf]
        %3992 = vrot.lane.b32.xlu0 %v3987, 64
        %v3993 = vpop.permute.xlu0 %3992
        %v3995 = vadd.f32 %v3990, %v3993
        %v3996 = vadd.f32 %v3995, %v546
        %3997 = vst.msk [vmem:[%s301 + $0x28] sm:$0xf] %vm716, %v3996
        %v3998 = vld [vmem:[%s272 + $0x16] sm:$0x1]
        %v3999 = vld [vmem:[%s272 + $0x36] sm:$0x1]
        %v4000 = vld [vmem:[%s272 + $0x56] sm:$0x1]
        %v4001 = vld [vmem:[%s272 + $0x76] sm:$0x1]
        %v4006 = vrot.slane %v3999, 7
        %v4007 = vsel %vm384, %v4006, %v3998
        %v4008 = vrot.slane %v4000, 6
        %v4009 = vsel %vm387, %v4008, %v4007
        %v4010 = vrot.slane %v4001, 5
        %v4011 = vsel %vm390, %v4010, %v4009
        %4013 = vmatprep.subr.mxu0 0.0
        %4014 = vmatpush1.msra.mxu0 %v374
        %4015 = vmatprep.subr.mxu0 0.0
        %4016 = vmatpush1.msra.mxu0 %v373
        %4017 = vmatprep.subr.mxu0 0.0
        %4018 = vmatpush1.msra.mxu0 %v372
        %4019 = vmatprep.subr.mxu0 0.0
        %4020 = vmatpush1.msra.mxu0 %v371
        %4021 = vmatprep.subr.mxu0 0.0
        %4022 = vmatpush1.msra.mxu0 %v370
        %4023 = vmatprep.subr.mxu0 0.0
        %4024 = vmatpush1.msra.mxu0 %v369
        %4025 = vmatprep.subr.mxu0 0.0
        %4026 = vmatpush1.msra.mxu0 %v368
        %4027 = vmatprep.subr.mxu0 0.0
        %4028 = vmatpush1.msra.mxu0 %v367
        %4029 = vmatprep.subr.mxu0 0.0
        %4030 = vmatpush1.msra.mxu0 %v366
        %4031 = vmatprep.subr.mxu0 0.0
        %4032 = vmatpush1.msra.mxu0 %v365
        %4033 = vmatprep.subr.mxu0 0.0
        %4034 = vmatpush1.msra.mxu0 %v364
        %4035 = vmatprep.subr.mxu0 0.0
        %4036 = vmatpush1.msra.mxu0 %v363
        %4037 = vmatprep.subr.mxu0 0.0
        %4038 = vmatpush1.msra.mxu0 %v362
        %4039 = vmatprep.subr.mxu0 0.0
        %4040 = vmatpush1.msra.mxu0 %v361
        %4041 = vmatprep.subr.mxu0 0.0
        %4042 = vmatpush1.msra.mxu0 %v360
        %4043 = vmatprep.subr.mxu0 0.0
        %4044 = vmatpush1.msra.mxu0 %v359
        %4045 = vmatprep.subr.mxu0 0.0
        %4046 = vmatpush2.msra.mxu0 0.0
        %4047 = vmatprep.subr.mxu0 0.0
        %4048 = vmatpush2.msra.mxu0 0.0
        %4049 = vmatprep.subr.mxu0 0.0
        %4050 = vmatpush2.msra.mxu0 0.0
        %4051 = vmatprep.subr.mxu0 0.0
        %4052 = vmatpush2.msra.mxu0 0.0
        %4053 = vmatprep.subr.mxu0 0.0
        %4054 = vmatpush2.msra.mxu0 0.0
        %4055 = vmatprep.subr.mxu0 0.0
        %4056 = vmatpush2.msra.mxu0 0.0
        %4057 = vmatprep.subr.mxu0 0.0
        %4058 = vmatpush2.msra.mxu0 0.0
        %4059 = vmatprep.subr.mxu0 0.0
        %4060 = vmatpush2.msra.mxu0 0.0
        %4061 = vmatprep.subr.mxu0 0.0
        %4062 = vmatpush2.msra.mxu0 0.0
        %4063 = vmatprep.subr.mxu0 0.0
        %4064 = vmatpush2.msra.mxu0 0.0
        %4065 = vmatprep.subr.mxu0 0.0
        %4066 = vmatpush2.msra.mxu0 0.0
        %4067 = vmatprep.subr.mxu0 0.0
        %4068 = vmatpush2.msra.mxu0 0.0
        %4069 = vmatprep.subr.mxu0 0.0
        %4070 = vmatpush2.msra.mxu0 0.0
        %4071 = vmatprep.subr.mxu0 0.0
        %4072 = vmatpush2.msra.mxu0 0.0
        %4073 = vmatprep.subr.mxu0 0.0
        %4074 = vmatpush2.msra.mxu0 0.0
        %4075 = vmatprep.subr.mxu0 0.0
        %4076 = vmatpush2.msra.mxu0 0.0
        %4077 = vmatprep.mubr.f32.mxu0 0.0
        %4078 = vmatmul.mubr.f32.gmra.mxu0 %v4011
        %v4079 = vpop.f32.mrf.mxu0
        %v4080 = vadd.f32 0.0, %v4079
        %v4081 = vpop.f32.mrf.mxu0
        %4082 = vdwg.mxu0
        %v4084 = vsel %vm467, %v4080, 0
        %4086 = vmatprep.subr.mxu0 0.0
        %4087 = vmatpush1.msra.mxu0 0.0
        %4088 = vmatprep.subr.mxu0 0.0
        %4089 = vmatpush1.msra.mxu0 0.0
        %4090 = vmatprep.subr.mxu0 0.0
        %4091 = vmatpush1.msra.mxu0 0.0
        %4092 = vmatprep.subr.mxu0 0.0
        %4093 = vmatpush1.msra.mxu0 0.0
        %4094 = vmatprep.subr.mxu0 0.0
        %4095 = vmatpush1.msra.mxu0 0.0
        %4096 = vmatprep.subr.mxu0 0.0
        %4097 = vmatpush1.msra.mxu0 0.0
        %4098 = vmatprep.subr.mxu0 0.0
        %4099 = vmatpush1.msra.mxu0 0.0
        %4100 = vmatprep.subr.mxu0 0.0
        %4101 = vmatpush1.msra.mxu0 0.0
        %4102 = vmatprep.subr.mxu0 0.0
        %4103 = vmatpush1.msra.mxu0 0.0
        %4104 = vmatprep.subr.mxu0 0.0
        %4105 = vmatpush1.msra.mxu0 0.0
        %4106 = vmatprep.subr.mxu0 0.0
        %4107 = vmatpush1.msra.mxu0 0.0
        %4108 = vmatprep.subr.mxu0 0.0
        %4109 = vmatpush1.msra.mxu0 0.0
        %4110 = vmatprep.subr.mxu0 0.0
        %4111 = vmatpush1.msra.mxu0 0.0
        %4112 = vmatprep.subr.mxu0 0.0
        %4113 = vmatpush1.msra.mxu0 0.0
        %4114 = vmatprep.subr.mxu0 0.0
        %4115 = vmatpush1.msra.mxu0 0.0
        %4116 = vmatprep.subr.mxu0 0.0
        %4117 = vmatpush1.msra.mxu0 %v4084
        %4118 = vmatprep.subr.mxu0 0.0
        %4119 = vmatpush2.msra.mxu0 0.0
        %4120 = vmatprep.subr.mxu0 0.0
        %4121 = vmatpush2.msra.mxu0 0.0
        %4122 = vmatprep.subr.mxu0 0.0
        %4123 = vmatpush2.msra.mxu0 0.0
        %4124 = vmatprep.subr.mxu0 0.0
        %4125 = vmatpush2.msra.mxu0 0.0
        %4126 = vmatprep.subr.mxu0 0.0
        %4127 = vmatpush2.msra.mxu0 0.0
        %4128 = vmatprep.subr.mxu0 0.0
        %4129 = vmatpush2.msra.mxu0 0.0
        %4130 = vmatprep.subr.mxu0 0.0
        %4131 = vmatpush2.msra.mxu0 0.0
        %4132 = vmatprep.subr.mxu0 0.0
        %4133 = vmatpush2.msra.mxu0 0.0
        %4134 = vmatprep.subr.mxu0 0.0
        %4135 = vmatpush2.msra.mxu0 0.0
        %4136 = vmatprep.subr.mxu0 0.0
        %4137 = vmatpush2.msra.mxu0 0.0
        %4138 = vmatprep.subr.mxu0 0.0
        %4139 = vmatpush2.msra.mxu0 0.0
        %4140 = vmatprep.subr.mxu0 0.0
        %4141 = vmatpush2.msra.mxu0 0.0
        %4142 = vmatprep.subr.mxu0 0.0
        %4143 = vmatpush2.msra.mxu0 0.0
        %4144 = vmatprep.subr.mxu0 0.0
        %4145 = vmatpush2.msra.mxu0 0.0
        %4146 = vmatprep.subr.mxu0 0.0
        %4147 = vmatpush2.msra.mxu0 0.0
        %4148 = vmatprep.subr.mxu0 0.0
        %4149 = vmatpush2.msra.mxu0 0.0
        %4150 = vmatprep.mubr.f32.mxu0 0.0
        %4151 = vmatmul.mubr.f32.gmra.mxu0 %v465
        %v4152 = vpop.f32.mrf.mxu0
        %v4153 = vadd.f32 0.0, %v4152
        %v4154 = vpop.f32.mrf.mxu0
        %4155 = vdwg.mxu0
        %v4156 = vld [vmem:[%s263 + $0x2c] sm:$0xf]
        %v4157 = vadd.f32 %v4156, %v4153
        %v4158 = vadd.f32 %v4157, %v546
        %4159 = vst.msk [vmem:[%s301 + $0x2c] sm:$0xf] %vm549, %v4158
        %v4160 = vld [vmem:[%s272 + $0x17] sm:$0x1]
        %v4161 = vld [vmem:[%s272 + $0x37] sm:$0x1]
        %v4162 = vld [vmem:[%s272 + $0x57] sm:$0x1]
        %v4163 = vld [vmem:[%s272 + $0x77] sm:$0x1]
        %v4168 = vrot.slane %v4161, 7
        %v4169 = vsel %vm384, %v4168, %v4160
        %v4170 = vrot.slane %v4162, 6
        %v4171 = vsel %vm387, %v4170, %v4169
        %v4172 = vrot.slane %v4163, 5
        %v4173 = vsel %vm390, %v4172, %v4171
        %4175 = vmatprep.subr.mxu0 0.0
        %4176 = vmatpush1.msra.mxu0 %v374
        %4177 = vmatprep.subr.mxu0 0.0
        %4178 = vmatpush1.msra.mxu0 %v373
        %4179 = vmatprep.subr.mxu0 0.0
        %4180 = vmatpush1.msra.mxu0 %v372
        %4181 = vmatprep.subr.mxu0 0.0
        %4182 = vmatpush1.msra.mxu0 %v371
        %4183 = vmatprep.subr.mxu0 0.0
        %4184 = vmatpush1.msra.mxu0 %v370
        %4185 = vmatprep.subr.mxu0 0.0
        %4186 = vmatpush1.msra.mxu0 %v369
        %4187 = vmatprep.subr.mxu0 0.0
        %4188 = vmatpush1.msra.mxu0 %v368
        %4189 = vmatprep.subr.mxu0 0.0
        %4190 = vmatpush1.msra.mxu0 %v367
        %4191 = vmatprep.subr.mxu0 0.0
        %4192 = vmatpush1.msra.mxu0 %v366
        %4193 = vmatprep.subr.mxu0 0.0
        %4194 = vmatpush1.msra.mxu0 %v365
        %4195 = vmatprep.subr.mxu0 0.0
        %4196 = vmatpush1.msra.mxu0 %v364
        %4197 = vmatprep.subr.mxu0 0.0
        %4198 = vmatpush1.msra.mxu0 %v363
        %4199 = vmatprep.subr.mxu0 0.0
        %4200 = vmatpush1.msra.mxu0 %v362
        %4201 = vmatprep.subr.mxu0 0.0
        %4202 = vmatpush1.msra.mxu0 %v361
        %4203 = vmatprep.subr.mxu0 0.0
        %4204 = vmatpush1.msra.mxu0 %v360
        %4205 = vmatprep.subr.mxu0 0.0
        %4206 = vmatpush1.msra.mxu0 %v359
        %4207 = vmatprep.subr.mxu0 0.0
        %4208 = vmatpush2.msra.mxu0 0.0
        %4209 = vmatprep.subr.mxu0 0.0
        %4210 = vmatpush2.msra.mxu0 0.0
        %4211 = vmatprep.subr.mxu0 0.0
        %4212 = vmatpush2.msra.mxu0 0.0
        %4213 = vmatprep.subr.mxu0 0.0
        %4214 = vmatpush2.msra.mxu0 0.0
        %4215 = vmatprep.subr.mxu0 0.0
        %4216 = vmatpush2.msra.mxu0 0.0
        %4217 = vmatprep.subr.mxu0 0.0
        %4218 = vmatpush2.msra.mxu0 0.0
        %4219 = vmatprep.subr.mxu0 0.0
        %4220 = vmatpush2.msra.mxu0 0.0
        %4221 = vmatprep.subr.mxu0 0.0
        %4222 = vmatpush2.msra.mxu0 0.0
        %4223 = vmatprep.subr.mxu0 0.0
        %4224 = vmatpush2.msra.mxu0 0.0
        %4225 = vmatprep.subr.mxu0 0.0
        %4226 = vmatpush2.msra.mxu0 0.0
        %4227 = vmatprep.subr.mxu0 0.0
        %4228 = vmatpush2.msra.mxu0 0.0
        %4229 = vmatprep.subr.mxu0 0.0
        %4230 = vmatpush2.msra.mxu0 0.0
        %4231 = vmatprep.subr.mxu0 0.0
        %4232 = vmatpush2.msra.mxu0 0.0
        %4233 = vmatprep.subr.mxu0 0.0
        %4234 = vmatpush2.msra.mxu0 0.0
        %4235 = vmatprep.subr.mxu0 0.0
        %4236 = vmatpush2.msra.mxu0 0.0
        %4237 = vmatprep.subr.mxu0 0.0
        %4238 = vmatpush2.msra.mxu0 0.0
        %4239 = vmatprep.mubr.f32.mxu0 0.0
        %4240 = vmatmul.mubr.f32.gmra.mxu0 %v4173
        %v4241 = vpop.f32.mrf.mxu0
        %v4242 = vadd.f32 0.0, %v4241
        %v4243 = vpop.f32.mrf.mxu0
        %4244 = vdwg.mxu0
        %v4246 = vsel %vm467, %v4242, 0
        %4248 = vmatprep.subr.mxu0 0.0
        %4249 = vmatpush1.msra.mxu0 0.0
        %4250 = vmatprep.subr.mxu0 0.0
        %4251 = vmatpush1.msra.mxu0 0.0
        %4252 = vmatprep.subr.mxu0 0.0
        %4253 = vmatpush1.msra.mxu0 0.0
        %4254 = vmatprep.subr.mxu0 0.0
        %4255 = vmatpush1.msra.mxu0 0.0
        %4256 = vmatprep.subr.mxu0 0.0
        %4257 = vmatpush1.msra.mxu0 0.0
        %4258 = vmatprep.subr.mxu0 0.0
        %4259 = vmatpush1.msra.mxu0 0.0
        %4260 = vmatprep.subr.mxu0 0.0
        %4261 = vmatpush1.msra.mxu0 0.0
        %4262 = vmatprep.subr.mxu0 0.0
        %4263 = vmatpush1.msra.mxu0 0.0
        %4264 = vmatprep.subr.mxu0 0.0
        %4265 = vmatpush1.msra.mxu0 0.0
        %4266 = vmatprep.subr.mxu0 0.0
        %4267 = vmatpush1.msra.mxu0 0.0
        %4268 = vmatprep.subr.mxu0 0.0
        %4269 = vmatpush1.msra.mxu0 0.0
        %4270 = vmatprep.subr.mxu0 0.0
        %4271 = vmatpush1.msra.mxu0 0.0
        %4272 = vmatprep.subr.mxu0 0.0
        %4273 = vmatpush1.msra.mxu0 0.0
        %4274 = vmatprep.subr.mxu0 0.0
        %4275 = vmatpush1.msra.mxu0 0.0
        %4276 = vmatprep.subr.mxu0 0.0
        %4277 = vmatpush1.msra.mxu0 0.0
        %4278 = vmatprep.subr.mxu0 0.0
        %4279 = vmatpush1.msra.mxu0 %v4246
        %4280 = vmatprep.subr.mxu0 0.0
        %4281 = vmatpush2.msra.mxu0 0.0
        %4282 = vmatprep.subr.mxu0 0.0
        %4283 = vmatpush2.msra.mxu0 0.0
        %4284 = vmatprep.subr.mxu0 0.0
        %4285 = vmatpush2.msra.mxu0 0.0
        %4286 = vmatprep.subr.mxu0 0.0
        %4287 = vmatpush2.msra.mxu0 0.0
        %4288 = vmatprep.subr.mxu0 0.0
        %4289 = vmatpush2.msra.mxu0 0.0
        %4290 = vmatprep.subr.mxu0 0.0
        %4291 = vmatpush2.msra.mxu0 0.0
        %4292 = vmatprep.subr.mxu0 0.0
        %4293 = vmatpush2.msra.mxu0 0.0
        %4294 = vmatprep.subr.mxu0 0.0
        %4295 = vmatpush2.msra.mxu0 0.0
        %4296 = vmatprep.subr.mxu0 0.0
        %4297 = vmatpush2.msra.mxu0 0.0
        %4298 = vmatprep.subr.mxu0 0.0
        %4299 = vmatpush2.msra.mxu0 0.0
        %4300 = vmatprep.subr.mxu0 0.0
        %4301 = vmatpush2.msra.mxu0 0.0
        %4302 = vmatprep.subr.mxu0 0.0
        %4303 = vmatpush2.msra.mxu0 0.0
        %4304 = vmatprep.subr.mxu0 0.0
        %4305 = vmatpush2.msra.mxu0 0.0
        %4306 = vmatprep.subr.mxu0 0.0
        %4307 = vmatpush2.msra.mxu0 0.0
        %4308 = vmatprep.subr.mxu0 0.0
        %4309 = vmatpush2.msra.mxu0 0.0
        %4310 = vmatprep.subr.mxu0 0.0
        %4311 = vmatpush2.msra.mxu0 0.0
        %4312 = vmatprep.mubr.f32.mxu0 0.0
        %4313 = vmatmul.mubr.f32.gmra.mxu0 %v465
        %v4314 = vpop.f32.mrf.mxu0
        %v4315 = vadd.f32 0.0, %v4314
        %v4316 = vpop.f32.mrf.mxu0
        %4317 = vdwg.mxu0
        %v4318 = vld [vmem:[%s263 + $0x2c] sm:$0xf]
        %4320 = vrot.lane.b32.xlu0 %v4315, 64
        %v4321 = vpop.permute.xlu0 %4320
        %v4323 = vadd.f32 %v4318, %v4321
        %v4324 = vadd.f32 %v4323, %v546
        %4325 = vst.msk [vmem:[%s301 + $0x2c] sm:$0xf] %vm716, %v4324
        %v4326 = vld [vmem:[%s272 + $0x18] sm:$0x1]
        %v4327 = vld [vmem:[%s272 + $0x38] sm:$0x1]
        %v4328 = vld [vmem:[%s272 + $0x58] sm:$0x1]
        %v4329 = vld [vmem:[%s272 + $0x78] sm:$0x1]
        %v4334 = vrot.slane %v4327, 7
        %v4335 = vsel %vm384, %v4334, %v4326
        %v4336 = vrot.slane %v4328, 6
        %v4337 = vsel %vm387, %v4336, %v4335
        %v4338 = vrot.slane %v4329, 5
        %v4339 = vsel %vm390, %v4338, %v4337
        %4341 = vmatprep.subr.mxu0 0.0
        %4342 = vmatpush1.msra.mxu0 %v374
        %4343 = vmatprep.subr.mxu0 0.0
        %4344 = vmatpush1.msra.mxu0 %v373
        %4345 = vmatprep.subr.mxu0 0.0
        %4346 = vmatpush1.msra.mxu0 %v372
        %4347 = vmatprep.subr.mxu0 0.0
        %4348 = vmatpush1.msra.mxu0 %v371
        %4349 = vmatprep.subr.mxu0 0.0
        %4350 = vmatpush1.msra.mxu0 %v370
        %4351 = vmatprep.subr.mxu0 0.0
        %4352 = vmatpush1.msra.mxu0 %v369
        %4353 = vmatprep.subr.mxu0 0.0
        %4354 = vmatpush1.msra.mxu0 %v368
        %4355 = vmatprep.subr.mxu0 0.0
        %4356 = vmatpush1.msra.mxu0 %v367
        %4357 = vmatprep.subr.mxu0 0.0
        %4358 = vmatpush1.msra.mxu0 %v366
        %4359 = vmatprep.subr.mxu0 0.0
        %4360 = vmatpush1.msra.mxu0 %v365
        %4361 = vmatprep.subr.mxu0 0.0
        %4362 = vmatpush1.msra.mxu0 %v364
        %4363 = vmatprep.subr.mxu0 0.0
        %4364 = vmatpush1.msra.mxu0 %v363
        %4365 = vmatprep.subr.mxu0 0.0
        %4366 = vmatpush1.msra.mxu0 %v362
        %4367 = vmatprep.subr.mxu0 0.0
        %4368 = vmatpush1.msra.mxu0 %v361
        %4369 = vmatprep.subr.mxu0 0.0
        %4370 = vmatpush1.msra.mxu0 %v360
        %4371 = vmatprep.subr.mxu0 0.0
        %4372 = vmatpush1.msra.mxu0 %v359
        %4373 = vmatprep.subr.mxu0 0.0
        %4374 = vmatpush2.msra.mxu0 0.0
        %4375 = vmatprep.subr.mxu0 0.0
        %4376 = vmatpush2.msra.mxu0 0.0
        %4377 = vmatprep.subr.mxu0 0.0
        %4378 = vmatpush2.msra.mxu0 0.0
        %4379 = vmatprep.subr.mxu0 0.0
        %4380 = vmatpush2.msra.mxu0 0.0
        %4381 = vmatprep.subr.mxu0 0.0
        %4382 = vmatpush2.msra.mxu0 0.0
        %4383 = vmatprep.subr.mxu0 0.0
        %4384 = vmatpush2.msra.mxu0 0.0
        %4385 = vmatprep.subr.mxu0 0.0
        %4386 = vmatpush2.msra.mxu0 0.0
        %4387 = vmatprep.subr.mxu0 0.0
        %4388 = vmatpush2.msra.mxu0 0.0
        %4389 = vmatprep.subr.mxu0 0.0
        %4390 = vmatpush2.msra.mxu0 0.0
        %4391 = vmatprep.subr.mxu0 0.0
        %4392 = vmatpush2.msra.mxu0 0.0
        %4393 = vmatprep.subr.mxu0 0.0
        %4394 = vmatpush2.msra.mxu0 0.0
        %4395 = vmatprep.subr.mxu0 0.0
        %4396 = vmatpush2.msra.mxu0 0.0
        %4397 = vmatprep.subr.mxu0 0.0
        %4398 = vmatpush2.msra.mxu0 0.0
        %4399 = vmatprep.subr.mxu0 0.0
        %4400 = vmatpush2.msra.mxu0 0.0
        %4401 = vmatprep.subr.mxu0 0.0
        %4402 = vmatpush2.msra.mxu0 0.0
        %4403 = vmatprep.subr.mxu0 0.0
        %4404 = vmatpush2.msra.mxu0 0.0
        %4405 = vmatprep.mubr.f32.mxu0 0.0
        %4406 = vmatmul.mubr.f32.gmra.mxu0 %v4339
        %v4407 = vpop.f32.mrf.mxu0
        %v4408 = vadd.f32 0.0, %v4407
        %v4409 = vpop.f32.mrf.mxu0
        %4410 = vdwg.mxu0
        %v4412 = vsel %vm467, %v4408, 0
        %4414 = vmatprep.subr.mxu0 0.0
        %4415 = vmatpush1.msra.mxu0 0.0
        %4416 = vmatprep.subr.mxu0 0.0
        %4417 = vmatpush1.msra.mxu0 0.0
        %4418 = vmatprep.subr.mxu0 0.0
        %4419 = vmatpush1.msra.mxu0 0.0
        %4420 = vmatprep.subr.mxu0 0.0
        %4421 = vmatpush1.msra.mxu0 0.0
        %4422 = vmatprep.subr.mxu0 0.0
        %4423 = vmatpush1.msra.mxu0 0.0
        %4424 = vmatprep.subr.mxu0 0.0
        %4425 = vmatpush1.msra.mxu0 0.0
        %4426 = vmatprep.subr.mxu0 0.0
        %4427 = vmatpush1.msra.mxu0 0.0
        %4428 = vmatprep.subr.mxu0 0.0
        %4429 = vmatpush1.msra.mxu0 0.0
        %4430 = vmatprep.subr.mxu0 0.0
        %4431 = vmatpush1.msra.mxu0 0.0
        %4432 = vmatprep.subr.mxu0 0.0
        %4433 = vmatpush1.msra.mxu0 0.0
        %4434 = vmatprep.subr.mxu0 0.0
        %4435 = vmatpush1.msra.mxu0 0.0
        %4436 = vmatprep.subr.mxu0 0.0
        %4437 = vmatpush1.msra.mxu0 0.0
        %4438 = vmatprep.subr.mxu0 0.0
        %4439 = vmatpush1.msra.mxu0 0.0
        %4440 = vmatprep.subr.mxu0 0.0
        %4441 = vmatpush1.msra.mxu0 0.0
        %4442 = vmatprep.subr.mxu0 0.0
        %4443 = vmatpush1.msra.mxu0 0.0
        %4444 = vmatprep.subr.mxu0 0.0
        %4445 = vmatpush1.msra.mxu0 %v4412
        %4446 = vmatprep.subr.mxu0 0.0
        %4447 = vmatpush2.msra.mxu0 0.0
        %4448 = vmatprep.subr.mxu0 0.0
        %4449 = vmatpush2.msra.mxu0 0.0
        %4450 = vmatprep.subr.mxu0 0.0
        %4451 = vmatpush2.msra.mxu0 0.0
        %4452 = vmatprep.subr.mxu0 0.0
        %4453 = vmatpush2.msra.mxu0 0.0
        %4454 = vmatprep.subr.mxu0 0.0
        %4455 = vmatpush2.msra.mxu0 0.0
        %4456 = vmatprep.subr.mxu0 0.0
        %4457 = vmatpush2.msra.mxu0 0.0
        %4458 = vmatprep.subr.mxu0 0.0
        %4459 = vmatpush2.msra.mxu0 0.0
        %4460 = vmatprep.subr.mxu0 0.0
        %4461 = vmatpush2.msra.mxu0 0.0
        %4462 = vmatprep.subr.mxu0 0.0
        %4463 = vmatpush2.msra.mxu0 0.0
        %4464 = vmatprep.subr.mxu0 0.0
        %4465 = vmatpush2.msra.mxu0 0.0
        %4466 = vmatprep.subr.mxu0 0.0
        %4467 = vmatpush2.msra.mxu0 0.0
        %4468 = vmatprep.subr.mxu0 0.0
        %4469 = vmatpush2.msra.mxu0 0.0
        %4470 = vmatprep.subr.mxu0 0.0
        %4471 = vmatpush2.msra.mxu0 0.0
        %4472 = vmatprep.subr.mxu0 0.0
        %4473 = vmatpush2.msra.mxu0 0.0
        %4474 = vmatprep.subr.mxu0 0.0
        %4475 = vmatpush2.msra.mxu0 0.0
        %4476 = vmatprep.subr.mxu0 0.0
        %4477 = vmatpush2.msra.mxu0 0.0
        %4478 = vmatprep.mubr.f32.mxu0 0.0
        %4479 = vmatmul.mubr.f32.gmra.mxu0 %v465
        %v4480 = vpop.f32.mrf.mxu0
        %v4481 = vadd.f32 0.0, %v4480
        %v4482 = vpop.f32.mrf.mxu0
        %4483 = vdwg.mxu0
        %v4484 = vld [vmem:[%s263 + $0x30] sm:$0xf]
        %v4485 = vadd.f32 %v4484, %v4481
        %v4486 = vadd.f32 %v4485, %v546
        %4487 = vst.msk [vmem:[%s301 + $0x30] sm:$0xf] %vm549, %v4486
        %v4488 = vld [vmem:[%s272 + $0x19] sm:$0x1]
        %v4489 = vld [vmem:[%s272 + $0x39] sm:$0x1]
        %v4490 = vld [vmem:[%s272 + $0x59] sm:$0x1]
        %v4491 = vld [vmem:[%s272 + $0x79] sm:$0x1]
        %v4496 = vrot.slane %v4489, 7
        %v4497 = vsel %vm384, %v4496, %v4488
        %v4498 = vrot.slane %v4490, 6
        %v4499 = vsel %vm387, %v4498, %v4497
        %v4500 = vrot.slane %v4491, 5
        %v4501 = vsel %vm390, %v4500, %v4499
        %4503 = vmatprep.subr.mxu0 0.0
        %4504 = vmatpush1.msra.mxu0 %v374
        %4505 = vmatprep.subr.mxu0 0.0
        %4506 = vmatpush1.msra.mxu0 %v373
        %4507 = vmatprep.subr.mxu0 0.0
        %4508 = vmatpush1.msra.mxu0 %v372
        %4509 = vmatprep.subr.mxu0 0.0
        %4510 = vmatpush1.msra.mxu0 %v371
        %4511 = vmatprep.subr.mxu0 0.0
        %4512 = vmatpush1.msra.mxu0 %v370
        %4513 = vmatprep.subr.mxu0 0.0
        %4514 = vmatpush1.msra.mxu0 %v369
        %4515 = vmatprep.subr.mxu0 0.0
        %4516 = vmatpush1.msra.mxu0 %v368
        %4517 = vmatprep.subr.mxu0 0.0
        %4518 = vmatpush1.msra.mxu0 %v367
        %4519 = vmatprep.subr.mxu0 0.0
        %4520 = vmatpush1.msra.mxu0 %v366
        %4521 = vmatprep.subr.mxu0 0.0
        %4522 = vmatpush1.msra.mxu0 %v365
        %4523 = vmatprep.subr.mxu0 0.0
        %4524 = vmatpush1.msra.mxu0 %v364
        %4525 = vmatprep.subr.mxu0 0.0
        %4526 = vmatpush1.msra.mxu0 %v363
        %4527 = vmatprep.subr.mxu0 0.0
        %4528 = vmatpush1.msra.mxu0 %v362
        %4529 = vmatprep.subr.mxu0 0.0
        %4530 = vmatpush1.msra.mxu0 %v361
        %4531 = vmatprep.subr.mxu0 0.0
        %4532 = vmatpush1.msra.mxu0 %v360
        %4533 = vmatprep.subr.mxu0 0.0
        %4534 = vmatpush1.msra.mxu0 %v359
        %4535 = vmatprep.subr.mxu0 0.0
        %4536 = vmatpush2.msra.mxu0 0.0
        %4537 = vmatprep.subr.mxu0 0.0
        %4538 = vmatpush2.msra.mxu0 0.0
        %4539 = vmatprep.subr.mxu0 0.0
        %4540 = vmatpush2.msra.mxu0 0.0
        %4541 = vmatprep.subr.mxu0 0.0
        %4542 = vmatpush2.msra.mxu0 0.0
        %4543 = vmatprep.subr.mxu0 0.0
        %4544 = vmatpush2.msra.mxu0 0.0
        %4545 = vmatprep.subr.mxu0 0.0
        %4546 = vmatpush2.msra.mxu0 0.0
        %4547 = vmatprep.subr.mxu0 0.0
        %4548 = vmatpush2.msra.mxu0 0.0
        %4549 = vmatprep.subr.mxu0 0.0
        %4550 = vmatpush2.msra.mxu0 0.0
        %4551 = vmatprep.subr.mxu0 0.0
        %4552 = vmatpush2.msra.mxu0 0.0
        %4553 = vmatprep.subr.mxu0 0.0
        %4554 = vmatpush2.msra.mxu0 0.0
        %4555 = vmatprep.subr.mxu0 0.0
        %4556 = vmatpush2.msra.mxu0 0.0
        %4557 = vmatprep.subr.mxu0 0.0
        %4558 = vmatpush2.msra.mxu0 0.0
        %4559 = vmatprep.subr.mxu0 0.0
        %4560 = vmatpush2.msra.mxu0 0.0
        %4561 = vmatprep.subr.mxu0 0.0
        %4562 = vmatpush2.msra.mxu0 0.0
        %4563 = vmatprep.subr.mxu0 0.0
        %4564 = vmatpush2.msra.mxu0 0.0
        %4565 = vmatprep.subr.mxu0 0.0
        %4566 = vmatpush2.msra.mxu0 0.0
        %4567 = vmatprep.mubr.f32.mxu0 0.0
        %4568 = vmatmul.mubr.f32.gmra.mxu0 %v4501
        %v4569 = vpop.f32.mrf.mxu0
        %v4570 = vadd.f32 0.0, %v4569
        %v4571 = vpop.f32.mrf.mxu0
        %4572 = vdwg.mxu0
        %v4574 = vsel %vm467, %v4570, 0
        %4576 = vmatprep.subr.mxu0 0.0
        %4577 = vmatpush1.msra.mxu0 0.0
        %4578 = vmatprep.subr.mxu0 0.0
        %4579 = vmatpush1.msra.mxu0 0.0
        %4580 = vmatprep.subr.mxu0 0.0
        %4581 = vmatpush1.msra.mxu0 0.0
        %4582 = vmatprep.subr.mxu0 0.0
        %4583 = vmatpush1.msra.mxu0 0.0
        %4584 = vmatprep.subr.mxu0 0.0
        %4585 = vmatpush1.msra.mxu0 0.0
        %4586 = vmatprep.subr.mxu0 0.0
        %4587 = vmatpush1.msra.mxu0 0.0
        %4588 = vmatprep.subr.mxu0 0.0
        %4589 = vmatpush1.msra.mxu0 0.0
        %4590 = vmatprep.subr.mxu0 0.0
        %4591 = vmatpush1.msra.mxu0 0.0
        %4592 = vmatprep.subr.mxu0 0.0
        %4593 = vmatpush1.msra.mxu0 0.0
        %4594 = vmatprep.subr.mxu0 0.0
        %4595 = vmatpush1.msra.mxu0 0.0
        %4596 = vmatprep.subr.mxu0 0.0
        %4597 = vmatpush1.msra.mxu0 0.0
        %4598 = vmatprep.subr.mxu0 0.0
        %4599 = vmatpush1.msra.mxu0 0.0
        %4600 = vmatprep.subr.mxu0 0.0
        %4601 = vmatpush1.msra.mxu0 0.0
        %4602 = vmatprep.subr.mxu0 0.0
        %4603 = vmatpush1.msra.mxu0 0.0
        %4604 = vmatprep.subr.mxu0 0.0
        %4605 = vmatpush1.msra.mxu0 0.0
        %4606 = vmatprep.subr.mxu0 0.0
        %4607 = vmatpush1.msra.mxu0 %v4574
        %4608 = vmatprep.subr.mxu0 0.0
        %4609 = vmatpush2.msra.mxu0 0.0
        %4610 = vmatprep.subr.mxu0 0.0
        %4611 = vmatpush2.msra.mxu0 0.0
        %4612 = vmatprep.subr.mxu0 0.0
        %4613 = vmatpush2.msra.mxu0 0.0
        %4614 = vmatprep.subr.mxu0 0.0
        %4615 = vmatpush2.msra.mxu0 0.0
        %4616 = vmatprep.subr.mxu0 0.0
        %4617 = vmatpush2.msra.mxu0 0.0
        %4618 = vmatprep.subr.mxu0 0.0
        %4619 = vmatpush2.msra.mxu0 0.0
        %4620 = vmatprep.subr.mxu0 0.0
        %4621 = vmatpush2.msra.mxu0 0.0
        %4622 = vmatprep.subr.mxu0 0.0
        %4623 = vmatpush2.msra.mxu0 0.0
        %4624 = vmatprep.subr.mxu0 0.0
        %4625 = vmatpush2.msra.mxu0 0.0
        %4626 = vmatprep.subr.mxu0 0.0
        %4627 = vmatpush2.msra.mxu0 0.0
        %4628 = vmatprep.subr.mxu0 0.0
        %4629 = vmatpush2.msra.mxu0 0.0
        %4630 = vmatprep.subr.mxu0 0.0
        %4631 = vmatpush2.msra.mxu0 0.0
        %4632 = vmatprep.subr.mxu0 0.0
        %4633 = vmatpush2.msra.mxu0 0.0
        %4634 = vmatprep.subr.mxu0 0.0
        %4635 = vmatpush2.msra.mxu0 0.0
        %4636 = vmatprep.subr.mxu0 0.0
        %4637 = vmatpush2.msra.mxu0 0.0
        %4638 = vmatprep.subr.mxu0 0.0
        %4639 = vmatpush2.msra.mxu0 0.0
        %4640 = vmatprep.mubr.f32.mxu0 0.0
        %4641 = vmatmul.mubr.f32.gmra.mxu0 %v465
        %v4642 = vpop.f32.mrf.mxu0
        %v4643 = vadd.f32 0.0, %v4642
        %v4644 = vpop.f32.mrf.mxu0
        %4645 = vdwg.mxu0
        %v4646 = vld [vmem:[%s263 + $0x30] sm:$0xf]
        %4648 = vrot.lane.b32.xlu0 %v4643, 64
        %v4649 = vpop.permute.xlu0 %4648
        %v4651 = vadd.f32 %v4646, %v4649
        %v4652 = vadd.f32 %v4651, %v546
        %4653 = vst.msk [vmem:[%s301 + $0x30] sm:$0xf] %vm716, %v4652
        %v4654 = vld [vmem:[%s272 + $0x1a] sm:$0x1]
        %v4655 = vld [vmem:[%s272 + $0x3a] sm:$0x1]
        %v4656 = vld [vmem:[%s272 + $0x5a] sm:$0x1]
        %v4657 = vld [vmem:[%s272 + $0x7a] sm:$0x1]
        %v4662 = vrot.slane %v4655, 7
        %v4663 = vsel %vm384, %v4662, %v4654
        %v4664 = vrot.slane %v4656, 6
        %v4665 = vsel %vm387, %v4664, %v4663
        %v4666 = vrot.slane %v4657, 5
        %v4667 = vsel %vm390, %v4666, %v4665
        %4669 = vmatprep.subr.mxu0 0.0
        %4670 = vmatpush1.msra.mxu0 %v374
        %4671 = vmatprep.subr.mxu0 0.0
        %4672 = vmatpush1.msra.mxu0 %v373
        %4673 = vmatprep.subr.mxu0 0.0
        %4674 = vmatpush1.msra.mxu0 %v372
        %4675 = vmatprep.subr.mxu0 0.0
        %4676 = vmatpush1.msra.mxu0 %v371
        %4677 = vmatprep.subr.mxu0 0.0
        %4678 = vmatpush1.msra.mxu0 %v370
        %4679 = vmatprep.subr.mxu0 0.0
        %4680 = vmatpush1.msra.mxu0 %v369
        %4681 = vmatprep.subr.mxu0 0.0
        %4682 = vmatpush1.msra.mxu0 %v368
        %4683 = vmatprep.subr.mxu0 0.0
        %4684 = vmatpush1.msra.mxu0 %v367
        %4685 = vmatprep.subr.mxu0 0.0
        %4686 = vmatpush1.msra.mxu0 %v366
        %4687 = vmatprep.subr.mxu0 0.0
        %4688 = vmatpush1.msra.mxu0 %v365
        %4689 = vmatprep.subr.mxu0 0.0
        %4690 = vmatpush1.msra.mxu0 %v364
        %4691 = vmatprep.subr.mxu0 0.0
        %4692 = vmatpush1.msra.mxu0 %v363
        %4693 = vmatprep.subr.mxu0 0.0
        %4694 = vmatpush1.msra.mxu0 %v362
        %4695 = vmatprep.subr.mxu0 0.0
        %4696 = vmatpush1.msra.mxu0 %v361
        %4697 = vmatprep.subr.mxu0 0.0
        %4698 = vmatpush1.msra.mxu0 %v360
        %4699 = vmatprep.subr.mxu0 0.0
        %4700 = vmatpush1.msra.mxu0 %v359
        %4701 = vmatprep.subr.mxu0 0.0
        %4702 = vmatpush2.msra.mxu0 0.0
        %4703 = vmatprep.subr.mxu0 0.0
        %4704 = vmatpush2.msra.mxu0 0.0
        %4705 = vmatprep.subr.mxu0 0.0
        %4706 = vmatpush2.msra.mxu0 0.0
        %4707 = vmatprep.subr.mxu0 0.0
        %4708 = vmatpush2.msra.mxu0 0.0
        %4709 = vmatprep.subr.mxu0 0.0
        %4710 = vmatpush2.msra.mxu0 0.0
        %4711 = vmatprep.subr.mxu0 0.0
        %4712 = vmatpush2.msra.mxu0 0.0
        %4713 = vmatprep.subr.mxu0 0.0
        %4714 = vmatpush2.msra.mxu0 0.0
        %4715 = vmatprep.subr.mxu0 0.0
        %4716 = vmatpush2.msra.mxu0 0.0
        %4717 = vmatprep.subr.mxu0 0.0
        %4718 = vmatpush2.msra.mxu0 0.0
        %4719 = vmatprep.subr.mxu0 0.0
        %4720 = vmatpush2.msra.mxu0 0.0
        %4721 = vmatprep.subr.mxu0 0.0
        %4722 = vmatpush2.msra.mxu0 0.0
        %4723 = vmatprep.subr.mxu0 0.0
        %4724 = vmatpush2.msra.mxu0 0.0
        %4725 = vmatprep.subr.mxu0 0.0
        %4726 = vmatpush2.msra.mxu0 0.0
        %4727 = vmatprep.subr.mxu0 0.0
        %4728 = vmatpush2.msra.mxu0 0.0
        %4729 = vmatprep.subr.mxu0 0.0
        %4730 = vmatpush2.msra.mxu0 0.0
        %4731 = vmatprep.subr.mxu0 0.0
        %4732 = vmatpush2.msra.mxu0 0.0
        %4733 = vmatprep.mubr.f32.mxu0 0.0
        %4734 = vmatmul.mubr.f32.gmra.mxu0 %v4667
        %v4735 = vpop.f32.mrf.mxu0
        %v4736 = vadd.f32 0.0, %v4735
        %v4737 = vpop.f32.mrf.mxu0
        %4738 = vdwg.mxu0
        %v4740 = vsel %vm467, %v4736, 0
        %4742 = vmatprep.subr.mxu0 0.0
        %4743 = vmatpush1.msra.mxu0 0.0
        %4744 = vmatprep.subr.mxu0 0.0
        %4745 = vmatpush1.msra.mxu0 0.0
        %4746 = vmatprep.subr.mxu0 0.0
        %4747 = vmatpush1.msra.mxu0 0.0
        %4748 = vmatprep.subr.mxu0 0.0
        %4749 = vmatpush1.msra.mxu0 0.0
        %4750 = vmatprep.subr.mxu0 0.0
        %4751 = vmatpush1.msra.mxu0 0.0
        %4752 = vmatprep.subr.mxu0 0.0
        %4753 = vmatpush1.msra.mxu0 0.0
        %4754 = vmatprep.subr.mxu0 0.0
        %4755 = vmatpush1.msra.mxu0 0.0
        %4756 = vmatprep.subr.mxu0 0.0
        %4757 = vmatpush1.msra.mxu0 0.0
        %4758 = vmatprep.subr.mxu0 0.0
        %4759 = vmatpush1.msra.mxu0 0.0
        %4760 = vmatprep.subr.mxu0 0.0
        %4761 = vmatpush1.msra.mxu0 0.0
        %4762 = vmatprep.subr.mxu0 0.0
        %4763 = vmatpush1.msra.mxu0 0.0
        %4764 = vmatprep.subr.mxu0 0.0
        %4765 = vmatpush1.msra.mxu0 0.0
        %4766 = vmatprep.subr.mxu0 0.0
        %4767 = vmatpush1.msra.mxu0 0.0
        %4768 = vmatprep.subr.mxu0 0.0
        %4769 = vmatpush1.msra.mxu0 0.0
        %4770 = vmatprep.subr.mxu0 0.0
        %4771 = vmatpush1.msra.mxu0 0.0
        %4772 = vmatprep.subr.mxu0 0.0
        %4773 = vmatpush1.msra.mxu0 %v4740
        %4774 = vmatprep.subr.mxu0 0.0
        %4775 = vmatpush2.msra.mxu0 0.0
        %4776 = vmatprep.subr.mxu0 0.0
        %4777 = vmatpush2.msra.mxu0 0.0
        %4778 = vmatprep.subr.mxu0 0.0
        %4779 = vmatpush2.msra.mxu0 0.0
        %4780 = vmatprep.subr.mxu0 0.0
        %4781 = vmatpush2.msra.mxu0 0.0
        %4782 = vmatprep.subr.mxu0 0.0
        %4783 = vmatpush2.msra.mxu0 0.0
        %4784 = vmatprep.subr.mxu0 0.0
        %4785 = vmatpush2.msra.mxu0 0.0
        %4786 = vmatprep.subr.mxu0 0.0
        %4787 = vmatpush2.msra.mxu0 0.0
        %4788 = vmatprep.subr.mxu0 0.0
        %4789 = vmatpush2.msra.mxu0 0.0
        %4790 = vmatprep.subr.mxu0 0.0
        %4791 = vmatpush2.msra.mxu0 0.0
        %4792 = vmatprep.subr.mxu0 0.0
        %4793 = vmatpush2.msra.mxu0 0.0
        %4794 = vmatprep.subr.mxu0 0.0
        %4795 = vmatpush2.msra.mxu0 0.0
        %4796 = vmatprep.subr.mxu0 0.0
        %4797 = vmatpush2.msra.mxu0 0.0
        %4798 = vmatprep.subr.mxu0 0.0
        %4799 = vmatpush2.msra.mxu0 0.0
        %4800 = vmatprep.subr.mxu0 0.0
        %4801 = vmatpush2.msra.mxu0 0.0
        %4802 = vmatprep.subr.mxu0 0.0
        %4803 = vmatpush2.msra.mxu0 0.0
        %4804 = vmatprep.subr.mxu0 0.0
        %4805 = vmatpush2.msra.mxu0 0.0
        %4806 = vmatprep.mubr.f32.mxu0 0.0
        %4807 = vmatmul.mubr.f32.gmra.mxu0 %v465
        %v4808 = vpop.f32.mrf.mxu0
        %v4809 = vadd.f32 0.0, %v4808
        %v4810 = vpop.f32.mrf.mxu0
        %4811 = vdwg.mxu0
        %v4812 = vld [vmem:[%s263 + $0x34] sm:$0xf]
        %v4813 = vadd.f32 %v4812, %v4809
        %v4814 = vadd.f32 %v4813, %v546
        %4815 = vst.msk [vmem:[%s301 + $0x34] sm:$0xf] %vm549, %v4814
        %v4816 = vld [vmem:[%s272 + $0x1b] sm:$0x1]
        %v4817 = vld [vmem:[%s272 + $0x3b] sm:$0x1]
        %v4818 = vld [vmem:[%s272 + $0x5b] sm:$0x1]
        %v4819 = vld [vmem:[%s272 + $0x7b] sm:$0x1]
        %v4824 = vrot.slane %v4817, 7
        %v4825 = vsel %vm384, %v4824, %v4816
        %v4826 = vrot.slane %v4818, 6
        %v4827 = vsel %vm387, %v4826, %v4825
        %v4828 = vrot.slane %v4819, 5
        %v4829 = vsel %vm390, %v4828, %v4827
        %4831 = vmatprep.subr.mxu0 0.0
        %4832 = vmatpush1.msra.mxu0 %v374
        %4833 = vmatprep.subr.mxu0 0.0
        %4834 = vmatpush1.msra.mxu0 %v373
        %4835 = vmatprep.subr.mxu0 0.0
        %4836 = vmatpush1.msra.mxu0 %v372
        %4837 = vmatprep.subr.mxu0 0.0
        %4838 = vmatpush1.msra.mxu0 %v371
        %4839 = vmatprep.subr.mxu0 0.0
        %4840 = vmatpush1.msra.mxu0 %v370
        %4841 = vmatprep.subr.mxu0 0.0
        %4842 = vmatpush1.msra.mxu0 %v369
        %4843 = vmatprep.subr.mxu0 0.0
        %4844 = vmatpush1.msra.mxu0 %v368
        %4845 = vmatprep.subr.mxu0 0.0
        %4846 = vmatpush1.msra.mxu0 %v367
        %4847 = vmatprep.subr.mxu0 0.0
        %4848 = vmatpush1.msra.mxu0 %v366
        %4849 = vmatprep.subr.mxu0 0.0
        %4850 = vmatpush1.msra.mxu0 %v365
        %4851 = vmatprep.subr.mxu0 0.0
        %4852 = vmatpush1.msra.mxu0 %v364
        %4853 = vmatprep.subr.mxu0 0.0
        %4854 = vmatpush1.msra.mxu0 %v363
        %4855 = vmatprep.subr.mxu0 0.0
        %4856 = vmatpush1.msra.mxu0 %v362
        %4857 = vmatprep.subr.mxu0 0.0
        %4858 = vmatpush1.msra.mxu0 %v361
        %4859 = vmatprep.subr.mxu0 0.0
        %4860 = vmatpush1.msra.mxu0 %v360
        %4861 = vmatprep.subr.mxu0 0.0
        %4862 = vmatpush1.msra.mxu0 %v359
        %4863 = vmatprep.subr.mxu0 0.0
        %4864 = vmatpush2.msra.mxu0 0.0
        %4865 = vmatprep.subr.mxu0 0.0
        %4866 = vmatpush2.msra.mxu0 0.0
        %4867 = vmatprep.subr.mxu0 0.0
        %4868 = vmatpush2.msra.mxu0 0.0
        %4869 = vmatprep.subr.mxu0 0.0
        %4870 = vmatpush2.msra.mxu0 0.0
        %4871 = vmatprep.subr.mxu0 0.0
        %4872 = vmatpush2.msra.mxu0 0.0
        %4873 = vmatprep.subr.mxu0 0.0
        %4874 = vmatpush2.msra.mxu0 0.0
        %4875 = vmatprep.subr.mxu0 0.0
        %4876 = vmatpush2.msra.mxu0 0.0
        %4877 = vmatprep.subr.mxu0 0.0
        %4878 = vmatpush2.msra.mxu0 0.0
        %4879 = vmatprep.subr.mxu0 0.0
        %4880 = vmatpush2.msra.mxu0 0.0
        %4881 = vmatprep.subr.mxu0 0.0
        %4882 = vmatpush2.msra.mxu0 0.0
        %4883 = vmatprep.subr.mxu0 0.0
        %4884 = vmatpush2.msra.mxu0 0.0
        %4885 = vmatprep.subr.mxu0 0.0
        %4886 = vmatpush2.msra.mxu0 0.0
        %4887 = vmatprep.subr.mxu0 0.0
        %4888 = vmatpush2.msra.mxu0 0.0
        %4889 = vmatprep.subr.mxu0 0.0
        %4890 = vmatpush2.msra.mxu0 0.0
        %4891 = vmatprep.subr.mxu0 0.0
        %4892 = vmatpush2.msra.mxu0 0.0
        %4893 = vmatprep.subr.mxu0 0.0
        %4894 = vmatpush2.msra.mxu0 0.0
        %4895 = vmatprep.mubr.f32.mxu0 0.0
        %4896 = vmatmul.mubr.f32.gmra.mxu0 %v4829
        %v4897 = vpop.f32.mrf.mxu0
        %v4898 = vadd.f32 0.0, %v4897
        %v4899 = vpop.f32.mrf.mxu0
        %4900 = vdwg.mxu0
        %v4902 = vsel %vm467, %v4898, 0
        %4904 = vmatprep.subr.mxu0 0.0
        %4905 = vmatpush1.msra.mxu0 0.0
        %4906 = vmatprep.subr.mxu0 0.0
        %4907 = vmatpush1.msra.mxu0 0.0
        %4908 = vmatprep.subr.mxu0 0.0
        %4909 = vmatpush1.msra.mxu0 0.0
        %4910 = vmatprep.subr.mxu0 0.0
        %4911 = vmatpush1.msra.mxu0 0.0
        %4912 = vmatprep.subr.mxu0 0.0
        %4913 = vmatpush1.msra.mxu0 0.0
        %4914 = vmatprep.subr.mxu0 0.0
        %4915 = vmatpush1.msra.mxu0 0.0
        %4916 = vmatprep.subr.mxu0 0.0
        %4917 = vmatpush1.msra.mxu0 0.0
        %4918 = vmatprep.subr.mxu0 0.0
        %4919 = vmatpush1.msra.mxu0 0.0
        %4920 = vmatprep.subr.mxu0 0.0
        %4921 = vmatpush1.msra.mxu0 0.0
        %4922 = vmatprep.subr.mxu0 0.0
        %4923 = vmatpush1.msra.mxu0 0.0
        %4924 = vmatprep.subr.mxu0 0.0
        %4925 = vmatpush1.msra.mxu0 0.0
        %4926 = vmatprep.subr.mxu0 0.0
        %4927 = vmatpush1.msra.mxu0 0.0
        %4928 = vmatprep.subr.mxu0 0.0
        %4929 = vmatpush1.msra.mxu0 0.0
        %4930 = vmatprep.subr.mxu0 0.0
        %4931 = vmatpush1.msra.mxu0 0.0
        %4932 = vmatprep.subr.mxu0 0.0
        %4933 = vmatpush1.msra.mxu0 0.0
        %4934 = vmatprep.subr.mxu0 0.0
        %4935 = vmatpush1.msra.mxu0 %v4902
        %4936 = vmatprep.subr.mxu0 0.0
        %4937 = vmatpush2.msra.mxu0 0.0
        %4938 = vmatprep.subr.mxu0 0.0
        %4939 = vmatpush2.msra.mxu0 0.0
        %4940 = vmatprep.subr.mxu0 0.0
        %4941 = vmatpush2.msra.mxu0 0.0
        %4942 = vmatprep.subr.mxu0 0.0
        %4943 = vmatpush2.msra.mxu0 0.0
        %4944 = vmatprep.subr.mxu0 0.0
        %4945 = vmatpush2.msra.mxu0 0.0
        %4946 = vmatprep.subr.mxu0 0.0
        %4947 = vmatpush2.msra.mxu0 0.0
        %4948 = vmatprep.subr.mxu0 0.0
        %4949 = vmatpush2.msra.mxu0 0.0
        %4950 = vmatprep.subr.mxu0 0.0
        %4951 = vmatpush2.msra.mxu0 0.0
        %4952 = vmatprep.subr.mxu0 0.0
        %4953 = vmatpush2.msra.mxu0 0.0
        %4954 = vmatprep.subr.mxu0 0.0
        %4955 = vmatpush2.msra.mxu0 0.0
        %4956 = vmatprep.subr.mxu0 0.0
        %4957 = vmatpush2.msra.mxu0 0.0
        %4958 = vmatprep.subr.mxu0 0.0
        %4959 = vmatpush2.msra.mxu0 0.0
        %4960 = vmatprep.subr.mxu0 0.0
        %4961 = vmatpush2.msra.mxu0 0.0
        %4962 = vmatprep.subr.mxu0 0.0
        %4963 = vmatpush2.msra.mxu0 0.0
        %4964 = vmatprep.subr.mxu0 0.0
        %4965 = vmatpush2.msra.mxu0 0.0
        %4966 = vmatprep.subr.mxu0 0.0
        %4967 = vmatpush2.msra.mxu0 0.0
        %4968 = vmatprep.mubr.f32.mxu0 0.0
        %4969 = vmatmul.mubr.f32.gmra.mxu0 %v465
        %v4970 = vpop.f32.mrf.mxu0
        %v4971 = vadd.f32 0.0, %v4970
        %v4972 = vpop.f32.mrf.mxu0
        %4973 = vdwg.mxu0
        %v4974 = vld [vmem:[%s263 + $0x34] sm:$0xf]
        %4976 = vrot.lane.b32.xlu0 %v4971, 64
        %v4977 = vpop.permute.xlu0 %4976
        %v4979 = vadd.f32 %v4974, %v4977
        %v4980 = vadd.f32 %v4979, %v546
        %4981 = vst.msk [vmem:[%s301 + $0x34] sm:$0xf] %vm716, %v4980
        %v4982 = vld [vmem:[%s272 + $0x1c] sm:$0x1]
        %v4983 = vld [vmem:[%s272 + $0x3c] sm:$0x1]
        %v4984 = vld [vmem:[%s272 + $0x5c] sm:$0x1]
        %v4985 = vld [vmem:[%s272 + $0x7c] sm:$0x1]
        %v4990 = vrot.slane %v4983, 7
        %v4991 = vsel %vm384, %v4990, %v4982
        %v4992 = vrot.slane %v4984, 6
        %v4993 = vsel %vm387, %v4992, %v4991
        %v4994 = vrot.slane %v4985, 5
        %v4995 = vsel %vm390, %v4994, %v4993
        %4997 = vmatprep.subr.mxu0 0.0
        %4998 = vmatpush1.msra.mxu0 %v374
        %4999 = vmatprep.subr.mxu0 0.0
        %5000 = vmatpush1.msra.mxu0 %v373
        %5001 = vmatprep.subr.mxu0 0.0
        %5002 = vmatpush1.msra.mxu0 %v372
        %5003 = vmatprep.subr.mxu0 0.0
        %5004 = vmatpush1.msra.mxu0 %v371
        %5005 = vmatprep.subr.mxu0 0.0
        %5006 = vmatpush1.msra.mxu0 %v370
        %5007 = vmatprep.subr.mxu0 0.0
        %5008 = vmatpush1.msra.mxu0 %v369
        %5009 = vmatprep.subr.mxu0 0.0
        %5010 = vmatpush1.msra.mxu0 %v368
        %5011 = vmatprep.subr.mxu0 0.0
        %5012 = vmatpush1.msra.mxu0 %v367
        %5013 = vmatprep.subr.mxu0 0.0
        %5014 = vmatpush1.msra.mxu0 %v366
        %5015 = vmatprep.subr.mxu0 0.0
        %5016 = vmatpush1.msra.mxu0 %v365
        %5017 = vmatprep.subr.mxu0 0.0
        %5018 = vmatpush1.msra.mxu0 %v364
        %5019 = vmatprep.subr.mxu0 0.0
        %5020 = vmatpush1.msra.mxu0 %v363
        %5021 = vmatprep.subr.mxu0 0.0
        %5022 = vmatpush1.msra.mxu0 %v362
        %5023 = vmatprep.subr.mxu0 0.0
        %5024 = vmatpush1.msra.mxu0 %v361
        %5025 = vmatprep.subr.mxu0 0.0
        %5026 = vmatpush1.msra.mxu0 %v360
        %5027 = vmatprep.subr.mxu0 0.0
        %5028 = vmatpush1.msra.mxu0 %v359
        %5029 = vmatprep.subr.mxu0 0.0
        %5030 = vmatpush2.msra.mxu0 0.0
        %5031 = vmatprep.subr.mxu0 0.0
        %5032 = vmatpush2.msra.mxu0 0.0
        %5033 = vmatprep.subr.mxu0 0.0
        %5034 = vmatpush2.msra.mxu0 0.0
        %5035 = vmatprep.subr.mxu0 0.0
        %5036 = vmatpush2.msra.mxu0 0.0
        %5037 = vmatprep.subr.mxu0 0.0
        %5038 = vmatpush2.msra.mxu0 0.0
        %5039 = vmatprep.subr.mxu0 0.0
        %5040 = vmatpush2.msra.mxu0 0.0
        %5041 = vmatprep.subr.mxu0 0.0
        %5042 = vmatpush2.msra.mxu0 0.0
        %5043 = vmatprep.subr.mxu0 0.0
        %5044 = vmatpush2.msra.mxu0 0.0
        %5045 = vmatprep.subr.mxu0 0.0
        %5046 = vmatpush2.msra.mxu0 0.0
        %5047 = vmatprep.subr.mxu0 0.0
        %5048 = vmatpush2.msra.mxu0 0.0
        %5049 = vmatprep.subr.mxu0 0.0
        %5050 = vmatpush2.msra.mxu0 0.0
        %5051 = vmatprep.subr.mxu0 0.0
        %5052 = vmatpush2.msra.mxu0 0.0
        %5053 = vmatprep.subr.mxu0 0.0
        %5054 = vmatpush2.msra.mxu0 0.0
        %5055 = vmatprep.subr.mxu0 0.0
        %5056 = vmatpush2.msra.mxu0 0.0
        %5057 = vmatprep.subr.mxu0 0.0
        %5058 = vmatpush2.msra.mxu0 0.0
        %5059 = vmatprep.subr.mxu0 0.0
        %5060 = vmatpush2.msra.mxu0 0.0
        %5061 = vmatprep.mubr.f32.mxu0 0.0
        %5062 = vmatmul.mubr.f32.gmra.mxu0 %v4995
        %v5063 = vpop.f32.mrf.mxu0
        %v5064 = vadd.f32 0.0, %v5063
        %v5065 = vpop.f32.mrf.mxu0
        %5066 = vdwg.mxu0
        %v5068 = vsel %vm467, %v5064, 0
        %5070 = vmatprep.subr.mxu0 0.0
        %5071 = vmatpush1.msra.mxu0 0.0
        %5072 = vmatprep.subr.mxu0 0.0
        %5073 = vmatpush1.msra.mxu0 0.0
        %5074 = vmatprep.subr.mxu0 0.0
        %5075 = vmatpush1.msra.mxu0 0.0
        %5076 = vmatprep.subr.mxu0 0.0
        %5077 = vmatpush1.msra.mxu0 0.0
        %5078 = vmatprep.subr.mxu0 0.0
        %5079 = vmatpush1.msra.mxu0 0.0
        %5080 = vmatprep.subr.mxu0 0.0
        %5081 = vmatpush1.msra.mxu0 0.0
        %5082 = vmatprep.subr.mxu0 0.0
        %5083 = vmatpush1.msra.mxu0 0.0
        %5084 = vmatprep.subr.mxu0 0.0
        %5085 = vmatpush1.msra.mxu0 0.0
        %5086 = vmatprep.subr.mxu0 0.0
        %5087 = vmatpush1.msra.mxu0 0.0
        %5088 = vmatprep.subr.mxu0 0.0
        %5089 = vmatpush1.msra.mxu0 0.0
        %5090 = vmatprep.subr.mxu0 0.0
        %5091 = vmatpush1.msra.mxu0 0.0
        %5092 = vmatprep.subr.mxu0 0.0
        %5093 = vmatpush1.msra.mxu0 0.0
        %5094 = vmatprep.subr.mxu0 0.0
        %5095 = vmatpush1.msra.mxu0 0.0
        %5096 = vmatprep.subr.mxu0 0.0
        %5097 = vmatpush1.msra.mxu0 0.0
        %5098 = vmatprep.subr.mxu0 0.0
        %5099 = vmatpush1.msra.mxu0 0.0
        %5100 = vmatprep.subr.mxu0 0.0
        %5101 = vmatpush1.msra.mxu0 %v5068
        %5102 = vmatprep.subr.mxu0 0.0
        %5103 = vmatpush2.msra.mxu0 0.0
        %5104 = vmatprep.subr.mxu0 0.0
        %5105 = vmatpush2.msra.mxu0 0.0
        %5106 = vmatprep.subr.mxu0 0.0
        %5107 = vmatpush2.msra.mxu0 0.0
        %5108 = vmatprep.subr.mxu0 0.0
        %5109 = vmatpush2.msra.mxu0 0.0
        %5110 = vmatprep.subr.mxu0 0.0
        %5111 = vmatpush2.msra.mxu0 0.0
        %5112 = vmatprep.subr.mxu0 0.0
        %5113 = vmatpush2.msra.mxu0 0.0
        %5114 = vmatprep.subr.mxu0 0.0
        %5115 = vmatpush2.msra.mxu0 0.0
        %5116 = vmatprep.subr.mxu0 0.0
        %5117 = vmatpush2.msra.mxu0 0.0
        %5118 = vmatprep.subr.mxu0 0.0
        %5119 = vmatpush2.msra.mxu0 0.0
        %5120 = vmatprep.subr.mxu0 0.0
        %5121 = vmatpush2.msra.mxu0 0.0
        %5122 = vmatprep.subr.mxu0 0.0
        %5123 = vmatpush2.msra.mxu0 0.0
        %5124 = vmatprep.subr.mxu0 0.0
        %5125 = vmatpush2.msra.mxu0 0.0
        %5126 = vmatprep.subr.mxu0 0.0
        %5127 = vmatpush2.msra.mxu0 0.0
        %5128 = vmatprep.subr.mxu0 0.0
        %5129 = vmatpush2.msra.mxu0 0.0
        %5130 = vmatprep.subr.mxu0 0.0
        %5131 = vmatpush2.msra.mxu0 0.0
        %5132 = vmatprep.subr.mxu0 0.0
        %5133 = vmatpush2.msra.mxu0 0.0
        %5134 = vmatprep.mubr.f32.mxu0 0.0
        %5135 = vmatmul.mubr.f32.gmra.mxu0 %v465
        %v5136 = vpop.f32.mrf.mxu0
        %v5137 = vadd.f32 0.0, %v5136
        %v5138 = vpop.f32.mrf.mxu0
        %5139 = vdwg.mxu0
        %v5140 = vld [vmem:[%s263 + $0x38] sm:$0xf]
        %v5141 = vadd.f32 %v5140, %v5137
        %v5142 = vadd.f32 %v5141, %v546
        %5143 = vst.msk [vmem:[%s301 + $0x38] sm:$0xf] %vm549, %v5142
        %v5144 = vld [vmem:[%s272 + $0x1d] sm:$0x1]
        %v5145 = vld [vmem:[%s272 + $0x3d] sm:$0x1]
        %v5146 = vld [vmem:[%s272 + $0x5d] sm:$0x1]
        %v5147 = vld [vmem:[%s272 + $0x7d] sm:$0x1]
        %v5152 = vrot.slane %v5145, 7
        %v5153 = vsel %vm384, %v5152, %v5144
        %v5154 = vrot.slane %v5146, 6
        %v5155 = vsel %vm387, %v5154, %v5153
        %v5156 = vrot.slane %v5147, 5
        %v5157 = vsel %vm390, %v5156, %v5155
        %5159 = vmatprep.subr.mxu0 0.0
        %5160 = vmatpush1.msra.mxu0 %v374
        %5161 = vmatprep.subr.mxu0 0.0
        %5162 = vmatpush1.msra.mxu0 %v373
        %5163 = vmatprep.subr.mxu0 0.0
        %5164 = vmatpush1.msra.mxu0 %v372
        %5165 = vmatprep.subr.mxu0 0.0
        %5166 = vmatpush1.msra.mxu0 %v371
        %5167 = vmatprep.subr.mxu0 0.0
        %5168 = vmatpush1.msra.mxu0 %v370
        %5169 = vmatprep.subr.mxu0 0.0
        %5170 = vmatpush1.msra.mxu0 %v369
        %5171 = vmatprep.subr.mxu0 0.0
        %5172 = vmatpush1.msra.mxu0 %v368
        %5173 = vmatprep.subr.mxu0 0.0
        %5174 = vmatpush1.msra.mxu0 %v367
        %5175 = vmatprep.subr.mxu0 0.0
        %5176 = vmatpush1.msra.mxu0 %v366
        %5177 = vmatprep.subr.mxu0 0.0
        %5178 = vmatpush1.msra.mxu0 %v365
        %5179 = vmatprep.subr.mxu0 0.0
        %5180 = vmatpush1.msra.mxu0 %v364
        %5181 = vmatprep.subr.mxu0 0.0
        %5182 = vmatpush1.msra.mxu0 %v363
        %5183 = vmatprep.subr.mxu0 0.0
        %5184 = vmatpush1.msra.mxu0 %v362
        %5185 = vmatprep.subr.mxu0 0.0
        %5186 = vmatpush1.msra.mxu0 %v361
        %5187 = vmatprep.subr.mxu0 0.0
        %5188 = vmatpush1.msra.mxu0 %v360
        %5189 = vmatprep.subr.mxu0 0.0
        %5190 = vmatpush1.msra.mxu0 %v359
        %5191 = vmatprep.subr.mxu0 0.0
        %5192 = vmatpush2.msra.mxu0 0.0
        %5193 = vmatprep.subr.mxu0 0.0
        %5194 = vmatpush2.msra.mxu0 0.0
        %5195 = vmatprep.subr.mxu0 0.0
        %5196 = vmatpush2.msra.mxu0 0.0
        %5197 = vmatprep.subr.mxu0 0.0
        %5198 = vmatpush2.msra.mxu0 0.0
        %5199 = vmatprep.subr.mxu0 0.0
        %5200 = vmatpush2.msra.mxu0 0.0
        %5201 = vmatprep.subr.mxu0 0.0
        %5202 = vmatpush2.msra.mxu0 0.0
        %5203 = vmatprep.subr.mxu0 0.0
        %5204 = vmatpush2.msra.mxu0 0.0
        %5205 = vmatprep.subr.mxu0 0.0
        %5206 = vmatpush2.msra.mxu0 0.0
        %5207 = vmatprep.subr.mxu0 0.0
        %5208 = vmatpush2.msra.mxu0 0.0
        %5209 = vmatprep.subr.mxu0 0.0
        %5210 = vmatpush2.msra.mxu0 0.0
        %5211 = vmatprep.subr.mxu0 0.0
        %5212 = vmatpush2.msra.mxu0 0.0
        %5213 = vmatprep.subr.mxu0 0.0
        %5214 = vmatpush2.msra.mxu0 0.0
        %5215 = vmatprep.subr.mxu0 0.0
        %5216 = vmatpush2.msra.mxu0 0.0
        %5217 = vmatprep.subr.mxu0 0.0
        %5218 = vmatpush2.msra.mxu0 0.0
        %5219 = vmatprep.subr.mxu0 0.0
        %5220 = vmatpush2.msra.mxu0 0.0
        %5221 = vmatprep.subr.mxu0 0.0
        %5222 = vmatpush2.msra.mxu0 0.0
        %5223 = vmatprep.mubr.f32.mxu0 0.0
        %5224 = vmatmul.mubr.f32.gmra.mxu0 %v5157
        %v5225 = vpop.f32.mrf.mxu0
        %v5226 = vadd.f32 0.0, %v5225
        %v5227 = vpop.f32.mrf.mxu0
        %5228 = vdwg.mxu0
        %v5230 = vsel %vm467, %v5226, 0
        %5232 = vmatprep.subr.mxu0 0.0
        %5233 = vmatpush1.msra.mxu0 0.0
        %5234 = vmatprep.subr.mxu0 0.0
        %5235 = vmatpush1.msra.mxu0 0.0
        %5236 = vmatprep.subr.mxu0 0.0
        %5237 = vmatpush1.msra.mxu0 0.0
        %5238 = vmatprep.subr.mxu0 0.0
        %5239 = vmatpush1.msra.mxu0 0.0
        %5240 = vmatprep.subr.mxu0 0.0
        %5241 = vmatpush1.msra.mxu0 0.0
        %5242 = vmatprep.subr.mxu0 0.0
        %5243 = vmatpush1.msra.mxu0 0.0
        %5244 = vmatprep.subr.mxu0 0.0
        %5245 = vmatpush1.msra.mxu0 0.0
        %5246 = vmatprep.subr.mxu0 0.0
        %5247 = vmatpush1.msra.mxu0 0.0
        %5248 = vmatprep.subr.mxu0 0.0
        %5249 = vmatpush1.msra.mxu0 0.0
        %5250 = vmatprep.subr.mxu0 0.0
        %5251 = vmatpush1.msra.mxu0 0.0
        %5252 = vmatprep.subr.mxu0 0.0
        %5253 = vmatpush1.msra.mxu0 0.0
        %5254 = vmatprep.subr.mxu0 0.0
        %5255 = vmatpush1.msra.mxu0 0.0
        %5256 = vmatprep.subr.mxu0 0.0
        %5257 = vmatpush1.msra.mxu0 0.0
        %5258 = vmatprep.subr.mxu0 0.0
        %5259 = vmatpush1.msra.mxu0 0.0
        %5260 = vmatprep.subr.mxu0 0.0
        %5261 = vmatpush1.msra.mxu0 0.0
        %5262 = vmatprep.subr.mxu0 0.0
        %5263 = vmatpush1.msra.mxu0 %v5230
        %5264 = vmatprep.subr.mxu0 0.0
        %5265 = vmatpush2.msra.mxu0 0.0
        %5266 = vmatprep.subr.mxu0 0.0
        %5267 = vmatpush2.msra.mxu0 0.0
        %5268 = vmatprep.subr.mxu0 0.0
        %5269 = vmatpush2.msra.mxu0 0.0
        %5270 = vmatprep.subr.mxu0 0.0
        %5271 = vmatpush2.msra.mxu0 0.0
        %5272 = vmatprep.subr.mxu0 0.0
        %5273 = vmatpush2.msra.mxu0 0.0
        %5274 = vmatprep.subr.mxu0 0.0
        %5275 = vmatpush2.msra.mxu0 0.0
        %5276 = vmatprep.subr.mxu0 0.0
        %5277 = vmatpush2.msra.mxu0 0.0
        %5278 = vmatprep.subr.mxu0 0.0
        %5279 = vmatpush2.msra.mxu0 0.0
        %5280 = vmatprep.subr.mxu0 0.0
        %5281 = vmatpush2.msra.mxu0 0.0
        %5282 = vmatprep.subr.mxu0 0.0
        %5283 = vmatpush2.msra.mxu0 0.0
        %5284 = vmatprep.subr.mxu0 0.0
        %5285 = vmatpush2.msra.mxu0 0.0
        %5286 = vmatprep.subr.mxu0 0.0
        %5287 = vmatpush2.msra.mxu0 0.0
        %5288 = vmatprep.subr.mxu0 0.0
        %5289 = vmatpush2.msra.mxu0 0.0
        %5290 = vmatprep.subr.mxu0 0.0
        %5291 = vmatpush2.msra.mxu0 0.0
        %5292 = vmatprep.subr.mxu0 0.0
        %5293 = vmatpush2.msra.mxu0 0.0
        %5294 = vmatprep.subr.mxu0 0.0
        %5295 = vmatpush2.msra.mxu0 0.0
        %5296 = vmatprep.mubr.f32.mxu0 0.0
        %5297 = vmatmul.mubr.f32.gmra.mxu0 %v465
        %v5298 = vpop.f32.mrf.mxu0
        %v5299 = vadd.f32 0.0, %v5298
        %v5300 = vpop.f32.mrf.mxu0
        %5301 = vdwg.mxu0
        %v5302 = vld [vmem:[%s263 + $0x38] sm:$0xf]
        %5304 = vrot.lane.b32.xlu0 %v5299, 64
        %v5305 = vpop.permute.xlu0 %5304
        %v5307 = vadd.f32 %v5302, %v5305
        %v5308 = vadd.f32 %v5307, %v546
        %5309 = vst.msk [vmem:[%s301 + $0x38] sm:$0xf] %vm716, %v5308
        %v5310 = vld [vmem:[%s272 + $0x1e] sm:$0x1]
        %v5311 = vld [vmem:[%s272 + $0x3e] sm:$0x1]
        %v5312 = vld [vmem:[%s272 + $0x5e] sm:$0x1]
        %v5313 = vld [vmem:[%s272 + $0x7e] sm:$0x1]
        %v5318 = vrot.slane %v5311, 7
        %v5319 = vsel %vm384, %v5318, %v5310
        %v5320 = vrot.slane %v5312, 6
        %v5321 = vsel %vm387, %v5320, %v5319
        %v5322 = vrot.slane %v5313, 5
        %v5323 = vsel %vm390, %v5322, %v5321
        %5325 = vmatprep.subr.mxu0 0.0
        %5326 = vmatpush1.msra.mxu0 %v374
        %5327 = vmatprep.subr.mxu0 0.0
        %5328 = vmatpush1.msra.mxu0 %v373
        %5329 = vmatprep.subr.mxu0 0.0
        %5330 = vmatpush1.msra.mxu0 %v372
        %5331 = vmatprep.subr.mxu0 0.0
        %5332 = vmatpush1.msra.mxu0 %v371
        %5333 = vmatprep.subr.mxu0 0.0
        %5334 = vmatpush1.msra.mxu0 %v370
        %5335 = vmatprep.subr.mxu0 0.0
        %5336 = vmatpush1.msra.mxu0 %v369
        %5337 = vmatprep.subr.mxu0 0.0
        %5338 = vmatpush1.msra.mxu0 %v368
        %5339 = vmatprep.subr.mxu0 0.0
        %5340 = vmatpush1.msra.mxu0 %v367
        %5341 = vmatprep.subr.mxu0 0.0
        %5342 = vmatpush1.msra.mxu0 %v366
        %5343 = vmatprep.subr.mxu0 0.0
        %5344 = vmatpush1.msra.mxu0 %v365
        %5345 = vmatprep.subr.mxu0 0.0
        %5346 = vmatpush1.msra.mxu0 %v364
        %5347 = vmatprep.subr.mxu0 0.0
        %5348 = vmatpush1.msra.mxu0 %v363
        %5349 = vmatprep.subr.mxu0 0.0
        %5350 = vmatpush1.msra.mxu0 %v362
        %5351 = vmatprep.subr.mxu0 0.0
        %5352 = vmatpush1.msra.mxu0 %v361
        %5353 = vmatprep.subr.mxu0 0.0
        %5354 = vmatpush1.msra.mxu0 %v360
        %5355 = vmatprep.subr.mxu0 0.0
        %5356 = vmatpush1.msra.mxu0 %v359
        %5357 = vmatprep.subr.mxu0 0.0
        %5358 = vmatpush2.msra.mxu0 0.0
        %5359 = vmatprep.subr.mxu0 0.0
        %5360 = vmatpush2.msra.mxu0 0.0
        %5361 = vmatprep.subr.mxu0 0.0
        %5362 = vmatpush2.msra.mxu0 0.0
        %5363 = vmatprep.subr.mxu0 0.0
        %5364 = vmatpush2.msra.mxu0 0.0
        %5365 = vmatprep.subr.mxu0 0.0
        %5366 = vmatpush2.msra.mxu0 0.0
        %5367 = vmatprep.subr.mxu0 0.0
        %5368 = vmatpush2.msra.mxu0 0.0
        %5369 = vmatprep.subr.mxu0 0.0
        %5370 = vmatpush2.msra.mxu0 0.0
        %5371 = vmatprep.subr.mxu0 0.0
        %5372 = vmatpush2.msra.mxu0 0.0
        %5373 = vmatprep.subr.mxu0 0.0
        %5374 = vmatpush2.msra.mxu0 0.0
        %5375 = vmatprep.subr.mxu0 0.0
        %5376 = vmatpush2.msra.mxu0 0.0
        %5377 = vmatprep.subr.mxu0 0.0
        %5378 = vmatpush2.msra.mxu0 0.0
        %5379 = vmatprep.subr.mxu0 0.0
        %5380 = vmatpush2.msra.mxu0 0.0
        %5381 = vmatprep.subr.mxu0 0.0
        %5382 = vmatpush2.msra.mxu0 0.0
        %5383 = vmatprep.subr.mxu0 0.0
        %5384 = vmatpush2.msra.mxu0 0.0
        %5385 = vmatprep.subr.mxu0 0.0
        %5386 = vmatpush2.msra.mxu0 0.0
        %5387 = vmatprep.subr.mxu0 0.0
        %5388 = vmatpush2.msra.mxu0 0.0
        %5389 = vmatprep.mubr.f32.mxu0 0.0
        %5390 = vmatmul.mubr.f32.gmra.mxu0 %v5323
        %v5391 = vpop.f32.mrf.mxu0
        %v5392 = vadd.f32 0.0, %v5391
        %v5393 = vpop.f32.mrf.mxu0
        %5394 = vdwg.mxu0
        %v5396 = vsel %vm467, %v5392, 0
        %5398 = vmatprep.subr.mxu0 0.0
        %5399 = vmatpush1.msra.mxu0 0.0
        %5400 = vmatprep.subr.mxu0 0.0
        %5401 = vmatpush1.msra.mxu0 0.0
        %5402 = vmatprep.subr.mxu0 0.0
        %5403 = vmatpush1.msra.mxu0 0.0
        %5404 = vmatprep.subr.mxu0 0.0
        %5405 = vmatpush1.msra.mxu0 0.0
        %5406 = vmatprep.subr.mxu0 0.0
        %5407 = vmatpush1.msra.mxu0 0.0
        %5408 = vmatprep.subr.mxu0 0.0
        %5409 = vmatpush1.msra.mxu0 0.0
        %5410 = vmatprep.subr.mxu0 0.0
        %5411 = vmatpush1.msra.mxu0 0.0
        %5412 = vmatprep.subr.mxu0 0.0
        %5413 = vmatpush1.msra.mxu0 0.0
        %5414 = vmatprep.subr.mxu0 0.0
        %5415 = vmatpush1.msra.mxu0 0.0
        %5416 = vmatprep.subr.mxu0 0.0
        %5417 = vmatpush1.msra.mxu0 0.0
        %5418 = vmatprep.subr.mxu0 0.0
        %5419 = vmatpush1.msra.mxu0 0.0
        %5420 = vmatprep.subr.mxu0 0.0
        %5421 = vmatpush1.msra.mxu0 0.0
        %5422 = vmatprep.subr.mxu0 0.0
        %5423 = vmatpush1.msra.mxu0 0.0
        %5424 = vmatprep.subr.mxu0 0.0
        %5425 = vmatpush1.msra.mxu0 0.0
        %5426 = vmatprep.subr.mxu0 0.0
        %5427 = vmatpush1.msra.mxu0 0.0
        %5428 = vmatprep.subr.mxu0 0.0
        %5429 = vmatpush1.msra.mxu0 %v5396
        %5430 = vmatprep.subr.mxu0 0.0
        %5431 = vmatpush2.msra.mxu0 0.0
        %5432 = vmatprep.subr.mxu0 0.0
        %5433 = vmatpush2.msra.mxu0 0.0
        %5434 = vmatprep.subr.mxu0 0.0
        %5435 = vmatpush2.msra.mxu0 0.0
        %5436 = vmatprep.subr.mxu0 0.0
        %5437 = vmatpush2.msra.mxu0 0.0
        %5438 = vmatprep.subr.mxu0 0.0
        %5439 = vmatpush2.msra.mxu0 0.0
        %5440 = vmatprep.subr.mxu0 0.0
        %5441 = vmatpush2.msra.mxu0 0.0
        %5442 = vmatprep.subr.mxu0 0.0
        %5443 = vmatpush2.msra.mxu0 0.0
        %5444 = vmatprep.subr.mxu0 0.0
        %5445 = vmatpush2.msra.mxu0 0.0
        %5446 = vmatprep.subr.mxu0 0.0
        %5447 = vmatpush2.msra.mxu0 0.0
        %5448 = vmatprep.subr.mxu0 0.0
        %5449 = vmatpush2.msra.mxu0 0.0
        %5450 = vmatprep.subr.mxu0 0.0
        %5451 = vmatpush2.msra.mxu0 0.0
        %5452 = vmatprep.subr.mxu0 0.0
        %5453 = vmatpush2.msra.mxu0 0.0
        %5454 = vmatprep.subr.mxu0 0.0
        %5455 = vmatpush2.msra.mxu0 0.0
        %5456 = vmatprep.subr.mxu0 0.0
        %5457 = vmatpush2.msra.mxu0 0.0
        %5458 = vmatprep.subr.mxu0 0.0
        %5459 = vmatpush2.msra.mxu0 0.0
        %5460 = vmatprep.subr.mxu0 0.0
        %5461 = vmatpush2.msra.mxu0 0.0
        %5462 = vmatprep.mubr.f32.mxu0 0.0
        %5463 = vmatmul.mubr.f32.gmra.mxu0 %v465
        %v5464 = vpop.f32.mrf.mxu0
        %v5465 = vadd.f32 0.0, %v5464
        %v5466 = vpop.f32.mrf.mxu0
        %5467 = vdwg.mxu0
        %v5468 = vld [vmem:[%s263 + $0x3c] sm:$0xf]
        %v5469 = vadd.f32 %v5468, %v5465
        %v5470 = vadd.f32 %v5469, %v546
        %5471 = vst.msk [vmem:[%s301 + $0x3c] sm:$0xf] %vm549, %v5470
        %v5472 = vld [vmem:[%s272 + $0x1f] sm:$0x1]
        %v5473 = vld [vmem:[%s272 + $0x3f] sm:$0x1]
        %v5474 = vld [vmem:[%s272 + $0x5f] sm:$0x1]
        %v5475 = vld [vmem:[%s272 + $0x7f] sm:$0x1]
        %v5480 = vrot.slane %v5473, 7
        %v5481 = vsel %vm384, %v5480, %v5472
        %v5482 = vrot.slane %v5474, 6
        %v5483 = vsel %vm387, %v5482, %v5481
        %v5484 = vrot.slane %v5475, 5
        %v5485 = vsel %vm390, %v5484, %v5483
        %5487 = vmatprep.subr.mxu0 0.0
        %5488 = vmatpush1.msra.mxu0 %v374
        %5489 = vmatprep.subr.mxu0 0.0
        %5490 = vmatpush1.msra.mxu0 %v373
        %5491 = vmatprep.subr.mxu0 0.0
        %5492 = vmatpush1.msra.mxu0 %v372
        %5493 = vmatprep.subr.mxu0 0.0
        %5494 = vmatpush1.msra.mxu0 %v371
        %5495 = vmatprep.subr.mxu0 0.0
        %5496 = vmatpush1.msra.mxu0 %v370
        %5497 = vmatprep.subr.mxu0 0.0
        %5498 = vmatpush1.msra.mxu0 %v369
        %5499 = vmatprep.subr.mxu0 0.0
        %5500 = vmatpush1.msra.mxu0 %v368
        %5501 = vmatprep.subr.mxu0 0.0
        %5502 = vmatpush1.msra.mxu0 %v367
        %5503 = vmatprep.subr.mxu0 0.0
        %5504 = vmatpush1.msra.mxu0 %v366
        %5505 = vmatprep.subr.mxu0 0.0
        %5506 = vmatpush1.msra.mxu0 %v365
        %5507 = vmatprep.subr.mxu0 0.0
        %5508 = vmatpush1.msra.mxu0 %v364
        %5509 = vmatprep.subr.mxu0 0.0
        %5510 = vmatpush1.msra.mxu0 %v363
        %5511 = vmatprep.subr.mxu0 0.0
        %5512 = vmatpush1.msra.mxu0 %v362
        %5513 = vmatprep.subr.mxu0 0.0
        %5514 = vmatpush1.msra.mxu0 %v361
        %5515 = vmatprep.subr.mxu0 0.0
        %5516 = vmatpush1.msra.mxu0 %v360
        %5517 = vmatprep.subr.mxu0 0.0
        %5518 = vmatpush1.msra.mxu0 %v359
        %5519 = vmatprep.subr.mxu0 0.0
        %5520 = vmatpush2.msra.mxu0 0.0
        %5521 = vmatprep.subr.mxu0 0.0
        %5522 = vmatpush2.msra.mxu0 0.0
        %5523 = vmatprep.subr.mxu0 0.0
        %5524 = vmatpush2.msra.mxu0 0.0
        %5525 = vmatprep.subr.mxu0 0.0
        %5526 = vmatpush2.msra.mxu0 0.0
        %5527 = vmatprep.subr.mxu0 0.0
        %5528 = vmatpush2.msra.mxu0 0.0
        %5529 = vmatprep.subr.mxu0 0.0
        %5530 = vmatpush2.msra.mxu0 0.0
        %5531 = vmatprep.subr.mxu0 0.0
        %5532 = vmatpush2.msra.mxu0 0.0
        %5533 = vmatprep.subr.mxu0 0.0
        %5534 = vmatpush2.msra.mxu0 0.0
        %5535 = vmatprep.subr.mxu0 0.0
        %5536 = vmatpush2.msra.mxu0 0.0
        %5537 = vmatprep.subr.mxu0 0.0
        %5538 = vmatpush2.msra.mxu0 0.0
        %5539 = vmatprep.subr.mxu0 0.0
        %5540 = vmatpush2.msra.mxu0 0.0
        %5541 = vmatprep.subr.mxu0 0.0
        %5542 = vmatpush2.msra.mxu0 0.0
        %5543 = vmatprep.subr.mxu0 0.0
        %5544 = vmatpush2.msra.mxu0 0.0
        %5545 = vmatprep.subr.mxu0 0.0
        %5546 = vmatpush2.msra.mxu0 0.0
        %5547 = vmatprep.subr.mxu0 0.0
        %5548 = vmatpush2.msra.mxu0 0.0
        %5549 = vmatprep.subr.mxu0 0.0
        %5550 = vmatpush2.msra.mxu0 0.0
        %5551 = vmatprep.mubr.f32.mxu0 0.0
        %5552 = vmatmul.mubr.f32.gmra.mxu0 %v5485
        %v5553 = vpop.f32.mrf.mxu0
        %v5554 = vadd.f32 0.0, %v5553
        %v5555 = vpop.f32.mrf.mxu0
        %5556 = vdwg.mxu0
        %v5558 = vsel %vm467, %v5554, 0
        %5560 = vmatprep.subr.mxu0 0.0
        %5561 = vmatpush1.msra.mxu0 0.0
        %5562 = vmatprep.subr.mxu0 0.0
        %5563 = vmatpush1.msra.mxu0 0.0
        %5564 = vmatprep.subr.mxu0 0.0
        %5565 = vmatpush1.msra.mxu0 0.0
        %5566 = vmatprep.subr.mxu0 0.0
        %5567 = vmatpush1.msra.mxu0 0.0
        %5568 = vmatprep.subr.mxu0 0.0
        %5569 = vmatpush1.msra.mxu0 0.0
        %5570 = vmatprep.subr.mxu0 0.0
        %5571 = vmatpush1.msra.mxu0 0.0
        %5572 = vmatprep.subr.mxu0 0.0
        %5573 = vmatpush1.msra.mxu0 0.0
        %5574 = vmatprep.subr.mxu0 0.0
        %5575 = vmatpush1.msra.mxu0 0.0
        %5576 = vmatprep.subr.mxu0 0.0
        %5577 = vmatpush1.msra.mxu0 0.0
        %5578 = vmatprep.subr.mxu0 0.0
        %5579 = vmatpush1.msra.mxu0 0.0
        %5580 = vmatprep.subr.mxu0 0.0
        %5581 = vmatpush1.msra.mxu0 0.0
        %5582 = vmatprep.subr.mxu0 0.0
        %5583 = vmatpush1.msra.mxu0 0.0
        %5584 = vmatprep.subr.mxu0 0.0
        %5585 = vmatpush1.msra.mxu0 0.0
        %5586 = vmatprep.subr.mxu0 0.0
        %5587 = vmatpush1.msra.mxu0 0.0
        %5588 = vmatprep.subr.mxu0 0.0
        %5589 = vmatpush1.msra.mxu0 0.0
        %5590 = vmatprep.subr.mxu0 0.0
        %5591 = vmatpush1.msra.mxu0 %v5558
        %5592 = vmatprep.subr.mxu0 0.0
        %5593 = vmatpush2.msra.mxu0 0.0
        %5594 = vmatprep.subr.mxu0 0.0
        %5595 = vmatpush2.msra.mxu0 0.0
        %5596 = vmatprep.subr.mxu0 0.0
        %5597 = vmatpush2.msra.mxu0 0.0
        %5598 = vmatprep.subr.mxu0 0.0
        %5599 = vmatpush2.msra.mxu0 0.0
        %5600 = vmatprep.subr.mxu0 0.0
        %5601 = vmatpush2.msra.mxu0 0.0
        %5602 = vmatprep.subr.mxu0 0.0
        %5603 = vmatpush2.msra.mxu0 0.0
        %5604 = vmatprep.subr.mxu0 0.0
        %5605 = vmatpush2.msra.mxu0 0.0
        %5606 = vmatprep.subr.mxu0 0.0
        %5607 = vmatpush2.msra.mxu0 0.0
        %5608 = vmatprep.subr.mxu0 0.0
        %5609 = vmatpush2.msra.mxu0 0.0
        %5610 = vmatprep.subr.mxu0 0.0
        %5611 = vmatpush2.msra.mxu0 0.0
        %5612 = vmatprep.subr.mxu0 0.0
        %5613 = vmatpush2.msra.mxu0 0.0
        %5614 = vmatprep.subr.mxu0 0.0
        %5615 = vmatpush2.msra.mxu0 0.0
        %5616 = vmatprep.subr.mxu0 0.0
        %5617 = vmatpush2.msra.mxu0 0.0
        %5618 = vmatprep.subr.mxu0 0.0
        %5619 = vmatpush2.msra.mxu0 0.0
        %5620 = vmatprep.subr.mxu0 0.0
        %5621 = vmatpush2.msra.mxu0 0.0
        %5622 = vmatprep.subr.mxu0 0.0
        %5623 = vmatpush2.msra.mxu0 0.0
        %5624 = vmatprep.mubr.f32.mxu0 0.0
        %5625 = vmatmul.mubr.f32.gmra.mxu0 %v465
        %v5626 = vpop.f32.mrf.mxu0
        %v5627 = vadd.f32 0.0, %v5626
        %v5628 = vpop.f32.mrf.mxu0
        %5629 = vdwg.mxu0
        %v5630 = vld [vmem:[%s263 + $0x3c] sm:$0xf]
        %5632 = vrot.lane.b32.xlu0 %v5627, 64
        %v5633 = vpop.permute.xlu0 %5632
        %v5635 = vadd.f32 %v5630, %v5633
        %v5636 = vadd.f32 %v5635, %v546
        %5637 = vst.msk [vmem:[%s301 + $0x3c] sm:$0xf] %vm716, %v5636
        %s5638 = sand.u32 %s144, 1
        %s5639 = scalar_lea.sflag [#allocation4], %s5638
        %s5640 = sand.u32 %s144, 1
        %s5641 = smul.addr %s5640, 64
        %s5642 = scalar_lea.vmem [#allocation7], %s5641
        // Predicated region
        $region45: #{tpu_custom_call.1} parent=35 // pred_check
          %p5643 = pneg %p154
        $region46: #{tpu_custom_call.1} parent=35 // pred_check_branch
          %5645 = sbr.rel (%p5643) target = $region48
        $region47: #{tpu_custom_call.1} parent=35 // pred_region
          %s5646 = smul.u32 16, %s29
          %s5648 = ssub.s32 1024, 1024
          %5649 = vsyncadd %s5639, %s5648
          %s5650 = smul.addr %s28, 32
          %s5651 = sadd.s32 %s5646, %s5650
          %s5652 = smul.addr %s5651, 64
          %s5653 = scalar_lea.hbm %s4, %s5652
          %s5655 = sshll.u32 %s5642, 4
          %s5656 = int_to_ptr.vmem [resolvable:$true] %s5655
          %5658 = dma.vmem_to_hbm [thread:$0]  %s5656, 1024, %s5653, %s5639
        $region48: #{tpu_custom_call.1} parent=35 // pred_fallthru
          _
      $region36: #{tpu_custom_call.1} parent=5 // pred_fallthru
        _
      %p5659 = scmp.le.s32.totalorder 2, %s19
      // Predicated region
      $region49: #{tpu_custom_call.1} parent=5 // pred_check
        %p5660 = pneg %p5659
      $region50: #{tpu_custom_call.1} parent=5 // pred_check_branch
        %5662 = sbr.rel (%p5660) target = $region52
      $region51: #{tpu_custom_call.1} parent=5 // pred_region
        %s5663 = ssub.s32 %s19, 2
        // Predicated region
        $region53: #{tpu_custom_call.1} parent=51 // pred_check
          %p5664 = pneg %p160
        $region54: #{tpu_custom_call.1} parent=51 // pred_check_branch
          %5666 = sbr.rel (%p5664) target = $region56
        $region55: #{tpu_custom_call.1} parent=51 // pred_region
          %s5667 = sand.u32 %s145, 1
          %s5668 = scalar_lea.sflag [#allocation4], %s5667
          %s5669 = sand.u32 %s145, 1
          %s5670 = smul.addr %s5669, 64
          %s5671 = scalar_lea.vmem [#allocation7], %s5670
          %5672 = dma.done %s5668, 1024
        $region56: #{tpu_custom_call.1} parent=51 // pred_fallthru
          _
      $region52: #{tpu_custom_call.1} parent=5 // pred_fallthru
        _
    $region6: #{tpu_custom_call.1} parent=1 // loop_footer
      %s23 = sadd.s32 1, %s19
    $region7: #{tpu_custom_call.1} parent=1 // loop_footer_branch
      %18 = sbr.rel target = $region3
    $region8: #{tpu_custom_call.1} parent=1 // loop_exit
      _
    %5673 = vsyncpa [#allocation3], 1
    %s5674 = scalar_lea.sflag [#allocation3], 1
    %5675 = vsyncpa %s5674, 1
    %5676 = vsyncpa [#allocation6], 1
    %s5677 = scalar_lea.sflag [#allocation6], 1
    %5678 = vsyncpa %s5677, 1
    %5679 = vsyncpa [#allocation4], 1
    %s5680 = scalar_lea.sflag [#allocation4], 1
    %5681 = vsyncpa %s5680, 1

</llo_original>
